<compile_context>
chip_gen: v7x
topology: tpu7x:2x2x1
jax: 0.10.0
libtpu: 0.0.40
codegen_flags: <defaults>
</compile_context>

<pallas_src>
import functools

import jax
import jax.numpy as jnp
from jax.experimental import pallas as pl
from jax.experimental.pallas import tpu as pltpu


TILE_M_CAP = 512  # rows per grid step (~85% of HBM roofline per measured data)


def _round_up(x, m):
    return ((x + m - 1) // m) * m


def _vmem_limit_bytes():
    """~75% of physical VMEM, capped at 96 MiB; safe 32 MiB floor."""
    try:
        info = pltpu.get_tpu_info()
        cap = int(getattr(info, "vmem_capacity_bytes", 64 * 1024 * 1024))
    except Exception:
        cap = 64 * 1024 * 1024
    return max(32 * 1024 * 1024, min(cap * 3 // 4, 96 * 1024 * 1024))


_VMEM_LIMIT = _vmem_limit_bytes()

_CPARAMS_PARALLEL = pltpu.CompilerParams(
    dimension_semantics=("parallel",),       # megacore sharding on v7x
    vmem_limit_bytes=_VMEM_LIMIT,
)
# Both axes of the two-pass BN kernel carry cross-iteration dependencies
# (stats accumulate into persistent VMEM scratch) -> must stay "arbitrary".
_CPARAMS_TWO_PASS = pltpu.CompilerParams(
    dimension_semantics=("arbitrary", "arbitrary"),
    vmem_limit_bytes=_VMEM_LIMIT,
)


def _tile_and_pad(m, cap=TILE_M_CAP):
    """16-aligned row tile <= cap, plus padded M (a multiple of the tile)."""
    m16 = _round_up(m, 16)                  # bf16 packs 16 rows per vreg
    nt = -(-m16 // cap)
    tm = _round_up(-(-m16 // nt), 16)
    return tm, tm * nt


# ----------------------------- Pallas kernels ------------------------------

def _conv_lrelu_kernel(p_ref, w_ref, o_ref):
    # (TM, K) bf16 @ (K, C) bf16 -> f32 on the MXU; LeakyReLU(0.2) epilogue.
    y = jnp.dot(p_ref[...], w_ref[...], preferred_element_type=jnp.float32)
    o_ref[...] = jnp.where(y > 0, y, 0.2 * y).astype(o_ref.dtype)


def _conv_bn_lrelu_kernel(p_ref, w_ref, g_ref, b_ref, o_ref,
                          sum_ref, sq_ref, scale_ref, bias_ref, *, inv_m):
    """Two-pass fused conv + training-mode BatchNorm + LeakyReLU(0.2).

    grid = (2, nt).  Pass 0: accumulate per-channel sum / sum-of-squares into
    persistent VMEM scratch (no HBM writeback; out index_map pins block 0).
    Pass boundary (p==1, i==0): fold mean/var/gamma/beta -> scale/bias.
    Pass 1: recompute the matmul, apply y*scale+bias + LeakyReLU, store bf16.
    """
    p = pl.program_id(0)      # 0 = stats pass, 1 = apply pass
    i = pl.program_id(1)      # row-tile index

    y = jnp.dot(p_ref[...], w_ref[...], preferred_element_type=jnp.float32)

    @pl.when(jnp.logical_and(p == 0, i == 0))
    def _():
        sum_ref[...] = jnp.zeros_like(sum_ref)
        sq_ref[...] = jnp.zeros_like(sq_ref)

    @pl.when(p == 0)
    def _():
        # Zero-padded tail rows contribute 0 to both sums (inv_m uses real M).
        sum_ref[...] += jnp.sum(y, axis=0, keepdims=True)
        sq_ref[...] += jnp.sum(y * y, axis=0, keepdims=True)

    @pl.when(jnp.logical_and(p == 1, i == 0))
    def _():
        mean = sum_ref[...] * inv_m
        # Biased variance (PyTorch training-mode normalization), f32, clamped
        # >= 0 against cancellation in E[x^2] - E[x]^2.
        var = jnp.maximum(sq_ref[...] * inv_m - mean * mean, 0.0)
        inv = jax.lax.rsqrt(var + 1e-5)       # EUP slot, essentially free
        scale_ref[...] = g_ref[...] * inv
        bias_ref[...] = b_ref[...] - mean * g_ref[...] * inv

    @pl.when(p == 1)
    def _():
        z = y * scale_ref[...] + bias_ref[...]
        o_ref[...] = jnp.where(z > 0, z, 0.2 * z).astype(o_ref.dtype)


# --------------------------- pallas_call wrappers ---------------------------

def _conv_lrelu(patches, w):
    m, k = patches.shape
    c = w.shape[1]
    tm, m_pad = _tile_and_pad(m)
    if m_pad != m:
        patches = jnp.pad(patches, ((0, m_pad - m), (0, 0)))
    out = pl.pallas_call(
        _conv_lrelu_kernel,
        out_shape=jax.ShapeDtypeStruct((m_pad, c), jnp.bfloat16),
        grid=(m_pad // tm,),
        in_specs=[
            pl.BlockSpec((tm, k), lambda i: (i, 0)),
            pl.BlockSpec((k, c), lambda i: (0, 0)),   # weight stays resident
        ],
        out_specs=pl.BlockSpec((tm, c), lambda i: (i, 0)),
        compiler_params=_CPARAMS_PARALLEL,
        cost_estimate=pl.CostEstimate(
            flops=2 * m_pad * k * c,
            transcendentals=0,
            bytes_accessed=m_pad * k * 2 + k * c * 2 + m_pad * c * 2,
        ),
    )(patches, w)
    return out[:m] if m_pad != m else out


def _conv_bn_lrelu(patches, w, gamma, beta):
    m, k = patches.shape
    c = w.shape[1]
    tm, m_pad = _tile_and_pad(m)
    if m_pad != m:
        patches = jnp.pad(patches, ((0, m_pad - m), (0, 0)))
    nt = m_pad // tm
    kernel = functools.partial(_conv_bn_lrelu_kernel, inv_m=1.0 / m)
    out = pl.pallas_call(
        kernel,
        out_shape=jax.ShapeDtypeStruct((m_pad, c), jnp.bfloat16),
        grid=(2, nt),
        in_specs=[
            pl.BlockSpec((tm, k), lambda p, i: (i, 0)),
            pl.BlockSpec((k, c), lambda p, i: (0, 0)),   # resident weight
            pl.BlockSpec((1, c), lambda p, i: (0, 0)),   # gamma
            pl.BlockSpec((1, c), lambda p, i: (0, 0)),   # beta
        ],
        # Pass 0 pins the output to block 0 and never writes it, so no
        # garbage/extra HBM writes happen during the stats pass.
        out_specs=pl.BlockSpec((tm, c), lambda p, i: (i * p, 0)),
        scratch_shapes=[
            pltpu.VMEM((1, c), jnp.float32),   # per-channel sum
            pltpu.VMEM((1, c), jnp.float32),   # per-channel sum of squares
            pltpu.VMEM((1, c), jnp.float32),   # folded scale
            pltpu.VMEM((1, c), jnp.float32),   # folded bias
        ],
        compiler_params=_CPARAMS_TWO_PASS,
        cost_estimate=pl.CostEstimate(
            flops=2 * 2 * m_pad * k * c,                       # two MXU passes
            transcendentals=c,                                 # rsqrt fold
            bytes_accessed=2 * m_pad * k * 2 + k * c * 2 + m_pad * c * 2,
        ),
    )(patches, w, gamma.reshape(1, c), beta.reshape(1, c))
    return out[:m] if m_pad != m else out


# ------------------------------ JAX glue ------------------------------------

def _im2col(x_nhwc, kh, kw, stride, pad):
    """Extract conv patches. Returns ((N*Ho*Wo, kh*kw*Cin), Ho, Wo)."""
    # TODO(synk): replace with in-kernel tap accumulation over an NHWC VMEM
    # slab to remove the kh*kw x activation-byte HBM blowup.
    if pad > 0:
        x_nhwc = jnp.pad(x_nhwc, ((0, 0), (pad, pad), (pad, pad), (0, 0)))
    n, h, w, c = x_nhwc.shape
    ho = (h - kh) // stride + 1
    wo = (w - kw) // stride + 1
    pieces = []
    for i in range(kh):
        for j in range(kw):
            pieces.append(
                x_nhwc[:, i:i + stride * ho:stride, j:j + stride * wo:stride, :]
            )
    # (N, Ho, Wo, kh*kw, C) -> row index k = (i*kw + j)*C + c
    p = jnp.stack(pieces, axis=-2)
    return p.reshape(n * ho * wo, kh * kw * c), ho, wo


def _torch_weight_to_mat(w_oihw, cin_pad, cout_pad):
    """PyTorch Conv2d weight (Cout, Cin, kh, kw) -> bf16 (kh*kw*cin_pad, cout_pad)
    matrix matching the im2col row ordering, zero-padded for lane density.
    The zero rows for padded input channels make the conv insensitive to
    whatever lives in the activation's pad channels."""
    cout, cin, kh, kw = w_oihw.shape
    w = jnp.pad(w_oihw, ((0, cout_pad - cout), (0, cin_pad - cin), (0, 0), (0, 0)))
    m = jnp.transpose(w, (2, 3, 1, 0)).reshape(kh * kw * cin_pad, cout_pad)
    return m.astype(jnp.bfloat16)


def init_params(key, channels, noise_filter):
    nf = noise_filter
    ks = jax.random.split(key, 5)

    def conv_w(k, cout, cin, kh, kw):
        return 0.05 * jax.random.normal(k, (cout, cin, kh, kw), jnp.float32)

    def bn_vec(val, c_real, c_pad):
        # NOTE: pad entries MUST stay 0 so padded BN channels map to exactly 0
        # (scale = gamma*inv = 0, bias = 0).  Checkpoint loaders must preserve
        # this zero padding.
        return jnp.pad(jnp.full((c_real,), val, jnp.float32), (0, c_pad - c_real))

    cins = [channels, nf, nf * 2, nf * 4]
    couts = [nf, nf * 2, nf * 4, nf * 8]
    cout_pads = [_round_up(c, 128) for c in couts]      # lane-dense outputs
    # Chain cin_pad = previous cout_pad so no channel slicing between layers.
    cin_pads = [_round_up(cins[0], 8)] + cout_pads[:3]

    params = {}
    for idx in range(4):
        w = conv_w(ks[idx], couts[idx], cins[idx], 4, 4)
        params[f"w{idx + 1}"] = _torch_weight_to_mat(w, cin_pads[idx], cout_pads[idx])
    for idx in (1, 2, 3):  # BatchNorm on layers 2..4 (PyTorch defaults: gamma=1, beta=0)
        params[f"g{idx + 1}"] = bn_vec(1.0, couts[idx], cout_pads[idx])
        params[f"b{idx + 1}"] = bn_vec(0.0, couts[idx], cout_pads[idx])
    # layer 5: Conv(8nf -> 1, k2 s1 p0).  Built with cin padded to layer-4's
    # cout_pad (zero rows), so the flattened padded activation can be used
    # directly (no slice).  Kept f32 / plain-jnp (tiny matvec, 1-lane output).
    w5 = conv_w(ks[4], 1, nf * 8, 2, 2)
    w5p = jnp.pad(w5, ((0, 0), (0, cout_pads[3] - nf * 8), (0, 0), (0, 0)))
    params["w5"] = jnp.transpose(w5p, (2, 3, 1, 0)).reshape(2 * 2 * cout_pads[3], 1)
    return params


@jax.jit
def discriminator_forward(x_nchw, params):
    """x_nchw: (N, C, H, W) float32, H=W must be 32 for the final 2x2 conv."""
    n = x_nchw.shape[0]
    x = jnp.transpose(x_nchw, (0, 2, 3, 1)).astype(jnp.bfloat16)  # NHWC, bf16

    # layer 1: conv k4 s2 p1 + LeakyReLU (pad Cin so K is a multiple of 128)
    w1 = params["w1"]
    cin1 = w1.shape[0] // 16
    if x.shape[-1] < cin1:
        x = jnp.pad(x, ((0, 0), (0, 0), (0, 0), (0, cin1 - x.shape[-1])))
    p, ho, wo = _im2col(x, 4, 4, 2, 1)
    a = _conv_lrelu(p, w1)                      # (M1, Cpad) bf16
    x = a.reshape(n, ho, wo, -1)

    # layers 2-4: fused conv + BN (global batch stats) + LeakyReLU, one
    # pallas_call each (two-pass: stats then apply).  No channel slicing:
    # each weight's cin_pad equals the previous layer's cout_pad.
    for wk, gk, bk in (("w2", "g2", "b2"), ("w3", "g3", "b3"), ("w4", "g4", "b4")):
        p, ho, wo = _im2col(x, 4, 4, 2, 1)
        a = _conv_bn_lrelu(p, params[wk], params[gk], params[bk])
        x = a.reshape(n, ho, wo, -1)

    # layer 5: conv k2 s1 p0 + Sigmoid.  With H=W=2 this is a (N, 4*Cpad) x
    # (4*Cpad, 1) matvec with a 1-lane output -> pure overhead as a standalone
    # Pallas kernel; do it in plain jnp (row-major flatten == im2col order).
    w5 = params["w5"]
    x5 = x.astype(jnp.float32).reshape(n, -1)
    out = jax.nn.sigmoid(x5 @ w5)               # (N, 1)

    # output = x.view(N, -1)
    return out.reshape(n, -1)


if __name__ == "__main__":
    key = jax.random.PRNGKey(0)
    k_x, k_p = jax.random.split(key)

    batch, channels, noise_filter = 2, 3, 8
    H = W = 32  # 32 -> 16 -> 8 -> 4 -> 2 -> 1 (final 2x2 conv)

    x = jax.random.normal(k_x, (batch, channels, H, W), jnp.float32)
    params = init_params(k_p, channels, noise_filter)

    out = discriminator_forward(x, params)
    out = jax.block_until_ready(out)

    assert out.shape == (batch, 1), out.shape
    assert bool(jnp.all(jnp.isfinite(out)))
    assert bool(jnp.all((out >= 0.0) & (out <= 1.0)))
    print("KERNEL_OK")
</pallas_src>

<mosaic_0001>
module attributes {stable_mosaic.version = 11 : i64} {
  func.func @_conv_lrelu_kernel(%arg0: i32, %arg1: memref<512x128xbf16, #tpu.memory_space<vmem>>, %arg2: memref<128x128xbf16, #tpu.memory_space<vmem>>, %arg3: memref<512x128xbf16, #tpu.memory_space<vmem>>) attributes {dimension_semantics = [#tpu.dimension_semantics<parallel>], iteration_bounds = array<i64: 1>, scalar_prefetch = 0 : i64, scratch_operands = 0 : i64, tpu.core_type = #tpu.core_type<tc>, window_params = [{transform_indices = @transform_0, window_bounds = array<i64: 512, 128>}, {pipeline_mode = #tpu.pipeline_mode<synchronous>, transform_indices = @transform_1, window_bounds = array<i64: 128, 128>}, {transform_indices = @transform_2, window_bounds = array<i64: 512, 128>}]} {
    %c0 = arith.constant 0 : index
    %c0_0 = arith.constant 0 : index
    %0 = vector.load %arg1[%c0, %c0_0] : memref<512x128xbf16, #tpu.memory_space<vmem>>, vector<512x128xbf16>
    %c0_1 = arith.constant 0 : index
    %c0_2 = arith.constant 0 : index
    %1 = vector.load %arg2[%c0_1, %c0_2] : memref<128x128xbf16, #tpu.memory_space<vmem>>, vector<128x128xbf16>
    %cst = arith.constant dense<0.000000e+00> : vector<512x128xf32>
    %2 = tpu.matmul %0, %1, %cst {dimension_numbers = #tpu.dot_dimension_numbers<[1], [0], [0], [1], [0, 0, 1, 1], [], []>} : vector<512x128xbf16>, vector<128x128xbf16>, vector<512x128xf32> -> vector<512x128xf32>
    %cst_3 = arith.constant 0.000000e+00 : f32
    %3 = vector.broadcast %cst_3 : f32 to vector<512x128xf32>
    %4 = arith.cmpf ogt, %2, %3 : vector<512x128xf32>
    %cst_4 = arith.constant 2.000000e-01 : f32
    %5 = vector.broadcast %cst_4 : f32 to vector<512x128xf32>
    %6 = arith.mulf %5, %2 : vector<512x128xf32>
    %7 = arith.select %4, %2, %6 : vector<512x128xi1>, vector<512x128xf32>
    %8 = arith.truncf %7 : vector<512x128xf32> to vector<512x128xbf16>
    %c0_5 = arith.constant 0 : index
    %c0_6 = arith.constant 0 : index
    %9 = vector.load %arg3[%c0_5, %c0_6] : memref<512x128xbf16, #tpu.memory_space<vmem>>, vector<512x128xbf16>
    tpu.vector_store %arg3[%c0_5, %c0_6], %8 {strides = array<i32>} : memref<512x128xbf16, #tpu.memory_space<vmem>>, vector<512x128xbf16>,
    return
  }
  func.func @transform_0(%arg0: i32) -> (i32, i32) {
    %c0_i32 = arith.constant 0 : i32
    %c0_i32_0 = arith.constant 0 : i32
    return %arg0, %c0_i32 : i32, i32
  }
  func.func @transform_1(%arg0: i32) -> (i32, i32) {
    %c0_i32 = arith.constant 0 : i32
    %c0_i32_0 = arith.constant 0 : i32
    %c0_i32_1 = arith.constant 0 : i32
    return %c0_i32, %c0_i32_0 : i32, i32
  }
  func.func @transform_2(%arg0: i32) -> (i32, i32) {
    %c0_i32 = arith.constant 0 : i32
    %c0_i32_0 = arith.constant 0 : i32
    return %arg0, %c0_i32 : i32, i32
  }
}

module attributes {stable_mosaic.version = 11 : i64} {
  func.func @_conv_bn_lrelu_kernel(%arg0: i32, %arg1: i32, %arg2: memref<128x2048xbf16, #tpu.memory_space<vmem>>, %arg3: memref<2048x128xbf16, #tpu.memory_space<vmem>>, %arg4: memref<1x128xf32, #tpu.memory_space<vmem>>, %arg5: memref<1x128xf32, #tpu.memory_space<vmem>>, %arg6: memref<128x128xbf16, #tpu.memory_space<vmem>>, %arg7: memref<1x128xf32, #tpu.memory_space<vmem>>, %arg8: memref<1x128xf32, #tpu.memory_space<vmem>>, %arg9: memref<1x128xf32, #tpu.memory_space<vmem>>, %arg10: memref<1x128xf32, #tpu.memory_space<vmem>>) attributes {dimension_semantics = [#tpu.dimension_semantics<arbitrary>, #tpu.dimension_semantics<arbitrary>], iteration_bounds = array<i64: 2, 1>, scalar_prefetch = 0 : i64, scratch_operands = 4 : i64, tpu.core_type = #tpu.core_type<tc>, window_params = [{transform_indices = @transform_0, window_bounds = array<i64: 128, 2048>}, {pipeline_mode = #tpu.pipeline_mode<synchronous>, transform_indices = @transform_1, window_bounds = array<i64: 2048, 128>}, {pipeline_mode = #tpu.pipeline_mode<synchronous>, transform_indices = @transform_2, window_bounds = array<i64: 1, 128>}, {pipeline_mode = #tpu.pipeline_mode<synchronous>, transform_indices = @transform_3, window_bounds = array<i64: 1, 128>}, {transform_indices = @transform_4, window_bounds = array<i64: 128, 128>}]} {
    %c0 = arith.constant 0 : index
    %c0_0 = arith.constant 0 : index
    %0 = vector.load %arg2[%c0, %c0_0] : memref<128x2048xbf16, #tpu.memory_space<vmem>>, vector<128x2048xbf16>
    %c0_1 = arith.constant 0 : index
    %c0_2 = arith.constant 0 : index
    %1 = vector.load %arg3[%c0_1, %c0_2] : memref<2048x128xbf16, #tpu.memory_space<vmem>>, vector<2048x128xbf16>
    %cst = arith.constant dense<0.000000e+00> : vector<128x128xf32>
    %2 = tpu.matmul %0, %1, %cst {dimension_numbers = #tpu.dot_dimension_numbers<[1], [0], [0], [1], [0, 0, 1, 1], [], []>} : vector<128x2048xbf16>, vector<2048x128xbf16>, vector<128x128xf32> -> vector<128x128xf32>
    %c0_i32 = arith.constant 0 : i32
    %3 = arith.cmpi eq, %arg0, %c0_i32 : i32
    %c0_i32_3 = arith.constant 0 : i32
    %4 = arith.cmpi eq, %arg1, %c0_i32_3 : i32
    %5 = arith.andi %3, %4 : i1
    %6 = arith.extui %5 : i1 to i32
    %c0_i32_4 = arith.constant 0 : i32
    %7 = arith.cmpi ne, %6, %c0_i32_4 : i32
    scf.if %7 {
      %cst_11 = arith.constant 0.000000e+00 : f32
      %19 = vector.broadcast %cst_11 : f32 to vector<1x128xf32>
      %c0_12 = arith.constant 0 : index
      %c0_13 = arith.constant 0 : index
      %20 = vector.load %arg7[%c0_12, %c0_13] : memref<1x128xf32, #tpu.memory_space<vmem>>, vector<1x128xf32>
      tpu.vector_store %arg7[%c0_12, %c0_13], %19 {strides = array<i32>} : memref<1x128xf32, #tpu.memory_space<vmem>>, vector<1x128xf32>,
      %cst_14 = arith.constant 0.000000e+00 : f32
      %21 = vector.broadcast %cst_14 : f32 to vector<1x128xf32>
      %c0_15 = arith.constant 0 : index
      %c0_16 = arith.constant 0 : index
      %22 = vector.load %arg8[%c0_15, %c0_16] : memref<1x128xf32, #tpu.memory_space<vmem>>, vector<1x128xf32>
      tpu.vector_store %arg8[%c0_15, %c0_16], %21 {strides = array<i32>} : memref<1x128xf32, #tpu.memory_space<vmem>>, vector<1x128xf32>,
    } else {
    }
    %c0_i32_5 = arith.constant 0 : i32
    %8 = arith.cmpi eq, %arg0, %c0_i32_5 : i32
    %9 = arith.extui %8 : i1 to i32
    %c0_i32_6 = arith.constant 0 : i32
    %10 = arith.cmpi ne, %9, %c0_i32_6 : i32
    scf.if %10 {
      %c0_11 = arith.constant 0 : index
      %c0_12 = arith.constant 0 : index
      %19 = vector.load %arg7[%c0_11, %c0_12] : memref<1x128xf32, #tpu.memory_space<vmem>>, vector<1x128xf32>
      %cst_13 = arith.constant dense<0.000000e+00> : vector<128xf32>
      %20 = vector.multi_reduction <add>, %2, %cst_13 [0] : vector<128x128xf32> to vector<128xf32>
      %21 = vector.shape_cast %20 : vector<128xf32> to vector<1x128xf32>
      %22 = arith.addf %19, %21 : vector<1x128xf32>
      %c0_14 = arith.constant 0 : index
      %c0_15 = arith.constant 0 : index
      %23 = vector.load %arg7[%c0_14, %c0_15] : memref<1x128xf32, #tpu.memory_space<vmem>>, vector<1x128xf32>
      tpu.vector_store %arg7[%c0_14, %c0_15], %22 {strides = array<i32>} : memref<1x128xf32, #tpu.memory_space<vmem>>, vector<1x128xf32>,
      %c0_16 = arith.constant 0 : index
      %c0_17 = arith.constant 0 : index
      %24 = vector.load %arg8[%c0_16, %c0_17] : memref<1x128xf32, #tpu.memory_space<vmem>>, vector<1x128xf32>
      %25 = arith.mulf %2, %2 : vector<128x128xf32>
      %cst_18 = arith.constant dense<0.000000e+00> : vector<128xf32>
      %26 = vector.multi_reduction <add>, %25, %cst_18 [0] : vector<128x128xf32> to vector<128xf32>
      %27 = vector.shape_cast %26 : vector<128xf32> to vector<1x128xf32>
      %28 = arith.addf %24, %27 : vector<1x128xf32>
      %c0_19 = arith.constant 0 : index
      %c0_20 = arith.constant 0 : index
      %29 = vector.load %arg8[%c0_19, %c0_20] : memref<1x128xf32, #tpu.memory_space<vmem>>, vector<1x128xf32>
      tpu.vector_store %arg8[%c0_19, %c0_20], %28 {strides = array<i32>} : memref<1x128xf32, #tpu.memory_space<vmem>>, vector<1x128xf32>,
    } else {
    }
    %c1_i32 = arith.constant 1 : i32
    %11 = arith.cmpi eq, %arg0, %c1_i32 : i32
    %c0_i32_7 = arith.constant 0 : i32
    %12 = arith.cmpi eq, %arg1, %c0_i32_7 : i32
    %13 = arith.andi %11, %12 : i1
    %14 = arith.extui %13 : i1 to i32
    %c0_i32_8 = arith.constant 0 : i32
    %15 = arith.cmpi ne, %14, %c0_i32_8 : i32
    scf.if %15 {
      %c0_11 = arith.constant 0 : index
      %c0_12 = arith.constant 0 : index
      %19 = vector.load %arg7[%c0_11, %c0_12] : memref<1x128xf32, #tpu.memory_space<vmem>>, vector<1x128xf32>
      %cst_13 = arith.constant 7.812500e-03 : f32
      %20 = vector.broadcast %cst_13 : f32 to vector<1x128xf32>
      %21 = arith.mulf %19, %20 : vector<1x128xf32>
      %c0_14 = arith.constant 0 : index
      %c0_15 = arith.constant 0 : index
      %22 = vector.load %arg8[%c0_14, %c0_15] : memref<1x128xf32, #tpu.memory_space<vmem>>, vector<1x128xf32>
      %cst_16 = arith.constant 7.812500e-03 : f32
      %23 = vector.broadcast %cst_16 : f32 to vector<1x128xf32>
      %24 = arith.mulf %22, %23 : vector<1x128xf32>
      %25 = arith.mulf %21, %21 : vector<1x128xf32>
      %26 = arith.subf %24, %25 : vector<1x128xf32>
      %cst_17 = arith.constant 0.000000e+00 : f32
      %27 = vector.broadcast %cst_17 : f32 to vector<1x128xf32>
      %28 = arith.maximumf %26, %27 : vector<1x128xf32>
      %cst_18 = arith.constant 9.99999974E-6 : f32
      %29 = vector.broadcast %cst_18 : f32 to vector<1x128xf32>
      %30 = arith.addf %28, %29 : vector<1x128xf32>
      %31 = math.rsqrt %30 : vector<1x128xf32>
      %c0_19 = arith.constant 0 : index
      %c0_20 = arith.constant 0 : index
      %32 = vector.load %arg4[%c0_19, %c0_20] : memref<1x128xf32, #tpu.memory_space<vmem>>, vector<1x128xf32>
      %33 = arith.mulf %32, %31 : vector<1x128xf32>
      %c0_21 = arith.constant 0 : index
      %c0_22 = arith.constant 0 : index
      %34 = vector.load %arg9[%c0_21, %c0_22] : memref<1x128xf32, #tpu.memory_space<vmem>>, vector<1x128xf32>
      tpu.vector_store %arg9[%c0_21, %c0_22], %33 {strides = array<i32>} : memref<1x128xf32, #tpu.memory_space<vmem>>, vector<1x128xf32>,
      %c0_23 = arith.constant 0 : index
      %c0_24 = arith.constant 0 : index
      %35 = vector.load %arg5[%c0_23, %c0_24] : memref<1x128xf32, #tpu.memory_space<vmem>>, vector<1x128xf32>
      %c0_25 = arith.constant 0 : index
      %c0_26 = arith.constant 0 : index
      %36 = vector.load %arg4[%c0_25, %c0_26] : memref<1x128xf32, #tpu.memory_space<vmem>>, vector<1x128xf32>
      %37 = arith.mulf %21, %36 : vector<1x128xf32>
      %38 = arith.mulf %37, %31 : vector<1x128xf32>
      %39 = arith.subf %35, %38 : vector<1x128xf32>
      %c0_27 = arith.constant 0 : index
      %c0_28 = arith.constant 0 : index
      %40 = vector.load %arg10[%c0_27, %c0_28] : memref<1x128xf32, #tpu.memory_space<vmem>>, vector<1x128xf32>
      tpu.vector_store %arg10[%c0_27, %c0_28], %39 {strides = array<i32>} : memref<1x128xf32, #tpu.memory_space<vmem>>, vector<1x128xf32>,
    } else {
    }
    %c1_i32_9 = arith.constant 1 : i32
    %16 = arith.cmpi eq, %arg0, %c1_i32_9 : i32
    %17 = arith.extui %16 : i1 to i32
    %c0_i32_10 = arith.constant 0 : i32
    %18 = arith.cmpi ne, %17, %c0_i32_10 : i32
    scf.if %18 {
      %c0_11 = arith.constant 0 : index
      %c0_12 = arith.constant 0 : index
      %19 = vector.load %arg9[%c0_11, %c0_12] : memref<1x128xf32, #tpu.memory_space<vmem>>, vector<1x128xf32>
      %20 = vector.broadcast %19 : vector<1x128xf32> to vector<128x128xf32>
      %21 = arith.mulf %2, %20 : vector<128x128xf32>
      %c0_13 = arith.constant 0 : index
      %c0_14 = arith.constant 0 : index
      %22 = vector.load %arg10[%c0_13, %c0_14] : memref<1x128xf32, #tpu.memory_space<vmem>>, vector<1x128xf32>
      %23 = vector.broadcast %22 : vector<1x128xf32> to vector<128x128xf32>
      %24 = arith.addf %21, %23 : vector<128x128xf32>
      %cst_15 = arith.constant 0.000000e+00 : f32
      %25 = vector.broadcast %cst_15 : f32 to vector<128x128xf32>
      %26 = arith.cmpf ogt, %24, %25 : vector<128x128xf32>
      %cst_16 = arith.constant 2.000000e-01 : f32
      %27 = vector.broadcast %cst_16 : f32 to vector<128x128xf32>
      %28 = arith.mulf %27, %24 : vector<128x128xf32>
      %29 = arith.select %26, %24, %28 : vector<128x128xi1>, vector<128x128xf32>
      %30 = arith.truncf %29 : vector<128x128xf32> to vector<128x128xbf16>
      %c0_17 = arith.constant 0 : index
      %c0_18 = arith.constant 0 : index
      %31 = vector.load %arg6[%c0_17, %c0_18] : memref<128x128xbf16, #tpu.memory_space<vmem>>, vector<128x128xbf16>
      tpu.vector_store %arg6[%c0_17, %c0_18], %30 {strides = array<i32>} : memref<128x128xbf16, #tpu.memory_space<vmem>>, vector<128x128xbf16>,
    } else {
    }
    return
  }
  func.func @transform_0(%arg0: i32, %arg1: i32) -> (i32, i32) {
    %c0_i32 = arith.constant 0 : i32
    %c0_i32_0 = arith.constant 0 : i32
    return %arg1, %c0_i32 : i32, i32
  }
  func.func @transform_1(%arg0: i32, %arg1: i32) -> (i32, i32) {
    %c0_i32 = arith.constant 0 : i32
    %c0_i32_0 = arith.constant 0 : i32
    %c0_i32_1 = arith.constant 0 : i32
    return %c0_i32, %c0_i32_0 : i32, i32
  }
  func.func @transform_2(%arg0: i32, %arg1: i32) -> (i32, i32) {
    %c0_i32 = arith.constant 0 : i32
    %c0_i32_0 = arith.constant 0 : i32
    %c0_i32_1 = arith.constant 0 : i32
    return %c0_i32, %c0_i32_0 : i32, i32
  }
  func.func @transform_3(%arg0: i32, %arg1: i32) -> (i32, i32) {
    %c0_i32 = arith.constant 0 : i32
    %c0_i32_0 = arith.constant 0 : i32
    %c0_i32_1 = arith.constant 0 : i32
    return %c0_i32, %c0_i32_0 : i32, i32
  }
  func.func @transform_4(%arg0: i32, %arg1: i32) -> (i32, i32) {
    %0 = arith.muli %arg1, %arg0 : i32
    %c0_i32 = arith.constant 0 : i32
    %c0_i32_0 = arith.constant 0 : i32
    return %0, %c0_i32 : i32, i32
  }
}

module attributes {stable_mosaic.version = 11 : i64} {
  func.func @_conv_bn_lrelu_kernel(%arg0: i32, %arg1: i32, %arg2: memref<32x2048xbf16, #tpu.memory_space<vmem>>, %arg3: memref<2048x128xbf16, #tpu.memory_space<vmem>>, %arg4: memref<1x128xf32, #tpu.memory_space<vmem>>, %arg5: memref<1x128xf32, #tpu.memory_space<vmem>>, %arg6: memref<32x128xbf16, #tpu.memory_space<vmem>>, %arg7: memref<1x128xf32, #tpu.memory_space<vmem>>, %arg8: memref<1x128xf32, #tpu.memory_space<vmem>>, %arg9: memref<1x128xf32, #tpu.memory_space<vmem>>, %arg10: memref<1x128xf32, #tpu.memory_space<vmem>>) attributes {dimension_semantics = [#tpu.dimension_semantics<arbitrary>, #tpu.dimension_semantics<arbitrary>], iteration_bounds = array<i64: 2, 1>, scalar_prefetch = 0 : i64, scratch_operands = 4 : i64, tpu.core_type = #tpu.core_type<tc>, window_params = [{transform_indices = @transform_0, window_bounds = array<i64: 32, 2048>}, {pipeline_mode = #tpu.pipeline_mode<synchronous>, transform_indices = @transform_1, window_bounds = array<i64: 2048, 128>}, {pipeline_mode = #tpu.pipeline_mode<synchronous>, transform_indices = @transform_2, window_bounds = array<i64: 1, 128>}, {pipeline_mode = #tpu.pipeline_mode<synchronous>, transform_indices = @transform_3, window_bounds = array<i64: 1, 128>}, {transform_indices = @transform_4, window_bounds = array<i64: 32, 128>}]} {
    %c0 = arith.constant 0 : index
    %c0_0 = arith.constant 0 : index
    %0 = vector.load %arg2[%c0, %c0_0] : memref<32x2048xbf16, #tpu.memory_space<vmem>>, vector<32x2048xbf16>
    %c0_1 = arith.constant 0 : index
    %c0_2 = arith.constant 0 : index
    %1 = vector.load %arg3[%c0_1, %c0_2] : memref<2048x128xbf16, #tpu.memory_space<vmem>>, vector<2048x128xbf16>
    %cst = arith.constant dense<0.000000e+00> : vector<32x128xf32>
    %2 = tpu.matmul %0, %1, %cst {dimension_numbers = #tpu.dot_dimension_numbers<[1], [0], [0], [1], [0, 0, 1, 1], [], []>} : vector<32x2048xbf16>, vector<2048x128xbf16>, vector<32x128xf32> -> vector<32x128xf32>
    %c0_i32 = arith.constant 0 : i32
    %3 = arith.cmpi eq, %arg0, %c0_i32 : i32
    %c0_i32_3 = arith.constant 0 : i32
    %4 = arith.cmpi eq, %arg1, %c0_i32_3 : i32
    %5 = arith.andi %3, %4 : i1
    %6 = arith.extui %5 : i1 to i32
    %c0_i32_4 = arith.constant 0 : i32
    %7 = arith.cmpi ne, %6, %c0_i32_4 : i32
    scf.if %7 {
      %cst_11 = arith.constant 0.000000e+00 : f32
      %19 = vector.broadcast %cst_11 : f32 to vector<1x128xf32>
      %c0_12 = arith.constant 0 : index
      %c0_13 = arith.constant 0 : index
      %20 = vector.load %arg7[%c0_12, %c0_13] : memref<1x128xf32, #tpu.memory_space<vmem>>, vector<1x128xf32>
      tpu.vector_store %arg7[%c0_12, %c0_13], %19 {strides = array<i32>} : memref<1x128xf32, #tpu.memory_space<vmem>>, vector<1x128xf32>,
      %cst_14 = arith.constant 0.000000e+00 : f32
      %21 = vector.broadcast %cst_14 : f32 to vector<1x128xf32>
      %c0_15 = arith.constant 0 : index
      %c0_16 = arith.constant 0 : index
      %22 = vector.load %arg8[%c0_15, %c0_16] : memref<1x128xf32, #tpu.memory_space<vmem>>, vector<1x128xf32>
      tpu.vector_store %arg8[%c0_15, %c0_16], %21 {strides = array<i32>} : memref<1x128xf32, #tpu.memory_space<vmem>>, vector<1x128xf32>,
    } else {
    }
    %c0_i32_5 = arith.constant 0 : i32
    %8 = arith.cmpi eq, %arg0, %c0_i32_5 : i32
    %9 = arith.extui %8 : i1 to i32
    %c0_i32_6 = arith.constant 0 : i32
    %10 = arith.cmpi ne, %9, %c0_i32_6 : i32
    scf.if %10 {
      %c0_11 = arith.constant 0 : index
      %c0_12 = arith.constant 0 : index
      %19 = vector.load %arg7[%c0_11, %c0_12] : memref<1x128xf32, #tpu.memory_space<vmem>>, vector<1x128xf32>
      %cst_13 = arith.constant dense<0.000000e+00> : vector<128xf32>
      %20 = vector.multi_reduction <add>, %2, %cst_13 [0] : vector<32x128xf32> to vector<128xf32>
      %21 = vector.shape_cast %20 : vector<128xf32> to vector<1x128xf32>
      %22 = arith.addf %19, %21 : vector<1x128xf32>
      %c0_14 = arith.constant 0 : index
      %c0_15 = arith.constant 0 : index
      %23 = vector.load %arg7[%c0_14, %c0_15] : memref<1x128xf32, #tpu.memory_space<vmem>>, vector<1x128xf32>
      tpu.vector_store %arg7[%c0_14, %c0_15], %22 {strides = array<i32>} : memref<1x128xf32, #tpu.memory_space<vmem>>, vector<1x128xf32>,
      %c0_16 = arith.constant 0 : index
      %c0_17 = arith.constant 0 : index
      %24 = vector.load %arg8[%c0_16, %c0_17] : memref<1x128xf32, #tpu.memory_space<vmem>>, vector<1x128xf32>
      %25 = arith.mulf %2, %2 : vector<32x128xf32>
      %cst_18 = arith.constant dense<0.000000e+00> : vector<128xf32>
      %26 = vector.multi_reduction <add>, %25, %cst_18 [0] : vector<32x128xf32> to vector<128xf32>
      %27 = vector.shape_cast %26 : vector<128xf32> to vector<1x128xf32>
      %28 = arith.addf %24, %27 : vector<1x128xf32>
      %c0_19 = arith.constant 0 : index
      %c0_20 = arith.constant 0 : index
      %29 = vector.load %arg8[%c0_19, %c0_20] : memref<1x128xf32, #tpu.memory_space<vmem>>, vector<1x128xf32>
      tpu.vector_store %arg8[%c0_19, %c0_20], %28 {strides = array<i32>} : memref<1x128xf32, #tpu.memory_space<vmem>>, vector<1x128xf32>,
    } else {
    }
    %c1_i32 = arith.constant 1 : i32
    %11 = arith.cmpi eq, %arg0, %c1_i32 : i32
    %c0_i32_7 = arith.constant 0 : i32
    %12 = arith.cmpi eq, %arg1, %c0_i32_7 : i32
    %13 = arith.andi %11, %12 : i1
    %14 = arith.extui %13 : i1 to i32
    %c0_i32_8 = arith.constant 0 : i32
    %15 = arith.cmpi ne, %14, %c0_i32_8 : i32
    scf.if %15 {
      %c0_11 = arith.constant 0 : index
      %c0_12 = arith.constant 0 : index
      %19 = vector.load %arg7[%c0_11, %c0_12] : memref<1x128xf32, #tpu.memory_space<vmem>>, vector<1x128xf32>
      %cst_13 = arith.constant 3.125000e-02 : f32
      %20 = vector.broadcast %cst_13 : f32 to vector<1x128xf32>
      %21 = arith.mulf %19, %20 : vector<1x128xf32>
      %c0_14 = arith.constant 0 : index
      %c0_15 = arith.constant 0 : index
      %22 = vector.load %arg8[%c0_14, %c0_15] : memref<1x128xf32, #tpu.memory_space<vmem>>, vector<1x128xf32>
      %cst_16 = arith.constant 3.125000e-02 : f32
      %23 = vector.broadcast %cst_16 : f32 to vector<1x128xf32>
      %24 = arith.mulf %22, %23 : vector<1x128xf32>
      %25 = arith.mulf %21, %21 : vector<1x128xf32>
      %26 = arith.subf %24, %25 : vector<1x128xf32>
      %cst_17 = arith.constant 0.000000e+00 : f32
      %27 = vector.broadcast %cst_17 : f32 to vector<1x128xf32>
      %28 = arith.maximumf %26, %27 : vector<1x128xf32>
      %cst_18 = arith.constant 9.99999974E-6 : f32
      %29 = vector.broadcast %cst_18 : f32 to vector<1x128xf32>
      %30 = arith.addf %28, %29 : vector<1x128xf32>
      %31 = math.rsqrt %30 : vector<1x128xf32>
      %c0_19 = arith.constant 0 : index
      %c0_20 = arith.constant 0 : index
      %32 = vector.load %arg4[%c0_19, %c0_20] : memref<1x128xf32, #tpu.memory_space<vmem>>, vector<1x128xf32>
      %33 = arith.mulf %32, %31 : vector<1x128xf32>
      %c0_21 = arith.constant 0 : index
      %c0_22 = arith.constant 0 : index
      %34 = vector.load %arg9[%c0_21, %c0_22] : memref<1x128xf32, #tpu.memory_space<vmem>>, vector<1x128xf32>
      tpu.vector_store %arg9[%c0_21, %c0_22], %33 {strides = array<i32>} : memref<1x128xf32, #tpu.memory_space<vmem>>, vector<1x128xf32>,
      %c0_23 = arith.constant 0 : index
      %c0_24 = arith.constant 0 : index
      %35 = vector.load %arg5[%c0_23, %c0_24] : memref<1x128xf32, #tpu.memory_space<vmem>>, vector<1x128xf32>
      %c0_25 = arith.constant 0 : index
      %c0_26 = arith.constant 0 : index
      %36 = vector.load %arg4[%c0_25, %c0_26] : memref<1x128xf32, #tpu.memory_space<vmem>>, vector<1x128xf32>
      %37 = arith.mulf %21, %36 : vector<1x128xf32>
      %38 = arith.mulf %37, %31 : vector<1x128xf32>
      %39 = arith.subf %35, %38 : vector<1x128xf32>
      %c0_27 = arith.constant 0 : index
      %c0_28 = arith.constant 0 : index
      %40 = vector.load %arg10[%c0_27, %c0_28] : memref<1x128xf32, #tpu.memory_space<vmem>>, vector<1x128xf32>
      tpu.vector_store %arg10[%c0_27, %c0_28], %39 {strides = array<i32>} : memref<1x128xf32, #tpu.memory_space<vmem>>, vector<1x128xf32>,
    } else {
    }
    %c1_i32_9 = arith.constant 1 : i32
    %16 = arith.cmpi eq, %arg0, %c1_i32_9 : i32
    %17 = arith.extui %16 : i1 to i32
    %c0_i32_10 = arith.constant 0 : i32
    %18 = arith.cmpi ne, %17, %c0_i32_10 : i32
    scf.if %18 {
      %c0_11 = arith.constant 0 : index
      %c0_12 = arith.constant 0 : index
      %19 = vector.load %arg9[%c0_11, %c0_12] : memref<1x128xf32, #tpu.memory_space<vmem>>, vector<1x128xf32>
      %20 = vector.broadcast %19 : vector<1x128xf32> to vector<32x128xf32>
      %21 = arith.mulf %2, %20 : vector<32x128xf32>
      %c0_13 = arith.constant 0 : index
      %c0_14 = arith.constant 0 : index
      %22 = vector.load %arg10[%c0_13, %c0_14] : memref<1x128xf32, #tpu.memory_space<vmem>>, vector<1x128xf32>
      %23 = vector.broadcast %22 : vector<1x128xf32> to vector<32x128xf32>
      %24 = arith.addf %21, %23 : vector<32x128xf32>
      %cst_15 = arith.constant 0.000000e+00 : f32
      %25 = vector.broadcast %cst_15 : f32 to vector<32x128xf32>
      %26 = arith.cmpf ogt, %24, %25 : vector<32x128xf32>
      %cst_16 = arith.constant 2.000000e-01 : f32
      %27 = vector.broadcast %cst_16 : f32 to vector<32x128xf32>
      %28 = arith.mulf %27, %24 : vector<32x128xf32>
      %29 = arith.select %26, %24, %28 : vector<32x128xi1>, vector<32x128xf32>
      %30 = arith.truncf %29 : vector<32x128xf32> to vector<32x128xbf16>
      %c0_17 = arith.constant 0 : index
      %c0_18 = arith.constant 0 : index
      %31 = vector.load %arg6[%c0_17, %c0_18] : memref<32x128xbf16, #tpu.memory_space<vmem>>, vector<32x128xbf16>
      tpu.vector_store %arg6[%c0_17, %c0_18], %30 {strides = array<i32>} : memref<32x128xbf16, #tpu.memory_space<vmem>>, vector<32x128xbf16>,
    } else {
    }
    return
  }
  func.func @transform_0(%arg0: i32, %arg1: i32) -> (i32, i32) {
    %c0_i32 = arith.constant 0 : i32
    %c0_i32_0 = arith.constant 0 : i32
    return %arg1, %c0_i32 : i32, i32
  }
  func.func @transform_1(%arg0: i32, %arg1: i32) -> (i32, i32) {
    %c0_i32 = arith.constant 0 : i32
    %c0_i32_0 = arith.constant 0 : i32
    %c0_i32_1 = arith.constant 0 : i32
    return %c0_i32, %c0_i32_0 : i32, i32
  }
  func.func @transform_2(%arg0: i32, %arg1: i32) -> (i32, i32) {
    %c0_i32 = arith.constant 0 : i32
    %c0_i32_0 = arith.constant 0 : i32
    %c0_i32_1 = arith.constant 0 : i32
    return %c0_i32, %c0_i32_0 : i32, i32
  }
  func.func @transform_3(%arg0: i32, %arg1: i32) -> (i32, i32) {
    %c0_i32 = arith.constant 0 : i32
    %c0_i32_0 = arith.constant 0 : i32
    %c0_i32_1 = arith.constant 0 : i32
    return %c0_i32, %c0_i32_0 : i32, i32
  }
  func.func @transform_4(%arg0: i32, %arg1: i32) -> (i32, i32) {
    %0 = arith.muli %arg1, %arg0 : i32
    %c0_i32 = arith.constant 0 : i32
    %c0_i32_0 = arith.constant 0 : i32
    return %0, %c0_i32 : i32, i32
  }
}

module attributes {stable_mosaic.version = 11 : i64} {
  func.func @_conv_bn_lrelu_kernel(%arg0: i32, %arg1: i32, %arg2: memref<16x2048xbf16, #tpu.memory_space<vmem>>, %arg3: memref<2048x128xbf16, #tpu.memory_space<vmem>>, %arg4: memref<1x128xf32, #tpu.memory_space<vmem>>, %arg5: memref<1x128xf32, #tpu.memory_space<vmem>>, %arg6: memref<16x128xbf16, #tpu.memory_space<vmem>>, %arg7: memref<1x128xf32, #tpu.memory_space<vmem>>, %arg8: memref<1x128xf32, #tpu.memory_space<vmem>>, %arg9: memref<1x128xf32, #tpu.memory_space<vmem>>, %arg10: memref<1x128xf32, #tpu.memory_space<vmem>>) attributes {dimension_semantics = [#tpu.dimension_semantics<arbitrary>, #tpu.dimension_semantics<arbitrary>], iteration_bounds = array<i64: 2, 1>, scalar_prefetch = 0 : i64, scratch_operands = 4 : i64, tpu.core_type = #tpu.core_type<tc>, window_params = [{transform_indices = @transform_0, window_bounds = array<i64: 16, 2048>}, {pipeline_mode = #tpu.pipeline_mode<synchronous>, transform_indices = @transform_1, window_bounds = array<i64: 2048, 128>}, {pipeline_mode = #tpu.pipeline_mode<synchronous>, transform_indices = @transform_2, window_bounds = array<i64: 1, 128>}, {pipeline_mode = #tpu.pipeline_mode<synchronous>, transform_indices = @transform_3, window_bounds = array<i64: 1, 128>}, {transform_indices = @transform_4, window_bounds = array<i64: 16, 128>}]} {
    %c0 = arith.constant 0 : index
    %c0_0 = arith.constant 0 : index
    %0 = vector.load %arg2[%c0, %c0_0] : memref<16x2048xbf16, #tpu.memory_space<vmem>>, vector<16x2048xbf16>
    %c0_1 = arith.constant 0 : index
    %c0_2 = arith.constant 0 : index
    %1 = vector.load %arg3[%c0_1, %c0_2] : memref<2048x128xbf16, #tpu.memory_space<vmem>>, vector<2048x128xbf16>
    %cst = arith.constant dense<0.000000e+00> : vector<16x128xf32>
    %2 = tpu.matmul %0, %1, %cst {dimension_numbers = #tpu.dot_dimension_numbers<[1], [0], [0], [1], [0, 0, 1, 1], [], []>} : vector<16x2048xbf16>, vector<2048x128xbf16>, vector<16x128xf32> -> vector<16x128xf32>
    %c0_i32 = arith.constant 0 : i32
    %3 = arith.cmpi eq, %arg0, %c0_i32 : i32
    %c0_i32_3 = arith.constant 0 : i32
    %4 = arith.cmpi eq, %arg1, %c0_i32_3 : i32
    %5 = arith.andi %3, %4 : i1
    %6 = arith.extui %5 : i1 to i32
    %c0_i32_4 = arith.constant 0 : i32
    %7 = arith.cmpi ne, %6, %c0_i32_4 : i32
    scf.if %7 {
      %cst_11 = arith.constant 0.000000e+00 : f32
      %19 = vector.broadcast %cst_11 : f32 to vector<1x128xf32>
      %c0_12 = arith.constant 0 : index
      %c0_13 = arith.constant 0 : index
      %20 = vector.load %arg7[%c0_12, %c0_13] : memref<1x128xf32, #tpu.memory_space<vmem>>, vector<1x128xf32>
      tpu.vector_store %arg7[%c0_12, %c0_13], %19 {strides = array<i32>} : memref<1x128xf32, #tpu.memory_space<vmem>>, vector<1x128xf32>,
      %cst_14 = arith.constant 0.000000e+00 : f32
      %21 = vector.broadcast %cst_14 : f32 to vector<1x128xf32>
      %c0_15 = arith.constant 0 : index
      %c0_16 = arith.constant 0 : index
      %22 = vector.load %arg8[%c0_15, %c0_16] : memref<1x128xf32, #tpu.memory_space<vmem>>, vector<1x128xf32>
      tpu.vector_store %arg8[%c0_15, %c0_16], %21 {strides = array<i32>} : memref<1x128xf32, #tpu.memory_space<vmem>>, vector<1x128xf32>,
    } else {
    }
    %c0_i32_5 = arith.constant 0 : i32
    %8 = arith.cmpi eq, %arg0, %c0_i32_5 : i32
    %9 = arith.extui %8 : i1 to i32
    %c0_i32_6 = arith.constant 0 : i32
    %10 = arith.cmpi ne, %9, %c0_i32_6 : i32
    scf.if %10 {
      %c0_11 = arith.constant 0 : index
      %c0_12 = arith.constant 0 : index
      %19 = vector.load %arg7[%c0_11, %c0_12] : memref<1x128xf32, #tpu.memory_space<vmem>>, vector<1x128xf32>
      %cst_13 = arith.constant dense<0.000000e+00> : vector<128xf32>
      %20 = vector.multi_reduction <add>, %2, %cst_13 [0] : vector<16x128xf32> to vector<128xf32>
      %21 = vector.shape_cast %20 : vector<128xf32> to vector<1x128xf32>
      %22 = arith.addf %19, %21 : vector<1x128xf32>
      %c0_14 = arith.constant 0 : index
      %c0_15 = arith.constant 0 : index
      %23 = vector.load %arg7[%c0_14, %c0_15] : memref<1x128xf32, #tpu.memory_space<vmem>>, vector<1x128xf32>
      tpu.vector_store %arg7[%c0_14, %c0_15], %22 {strides = array<i32>} : memref<1x128xf32, #tpu.memory_space<vmem>>, vector<1x128xf32>,
      %c0_16 = arith.constant 0 : index
      %c0_17 = arith.constant 0 : index
      %24 = vector.load %arg8[%c0_16, %c0_17] : memref<1x128xf32, #tpu.memory_space<vmem>>, vector<1x128xf32>
      %25 = arith.mulf %2, %2 : vector<16x128xf32>
      %cst_18 = arith.constant dense<0.000000e+00> : vector<128xf32>
      %26 = vector.multi_reduction <add>, %25, %cst_18 [0] : vector<16x128xf32> to vector<128xf32>
      %27 = vector.shape_cast %26 : vector<128xf32> to vector<1x128xf32>
      %28 = arith.addf %24, %27 : vector<1x128xf32>
      %c0_19 = arith.constant 0 : index
      %c0_20 = arith.constant 0 : index
      %29 = vector.load %arg8[%c0_19, %c0_20] : memref<1x128xf32, #tpu.memory_space<vmem>>, vector<1x128xf32>
      tpu.vector_store %arg8[%c0_19, %c0_20], %28 {strides = array<i32>} : memref<1x128xf32, #tpu.memory_space<vmem>>, vector<1x128xf32>,
    } else {
    }
    %c1_i32 = arith.constant 1 : i32
    %11 = arith.cmpi eq, %arg0, %c1_i32 : i32
    %c0_i32_7 = arith.constant 0 : i32
    %12 = arith.cmpi eq, %arg1, %c0_i32_7 : i32
    %13 = arith.andi %11, %12 : i1
    %14 = arith.extui %13 : i1 to i32
    %c0_i32_8 = arith.constant 0 : i32
    %15 = arith.cmpi ne, %14, %c0_i32_8 : i32
    scf.if %15 {
      %c0_11 = arith.constant 0 : index
      %c0_12 = arith.constant 0 : index
      %19 = vector.load %arg7[%c0_11, %c0_12] : memref<1x128xf32, #tpu.memory_space<vmem>>, vector<1x128xf32>
      %cst_13 = arith.constant 1.250000e-01 : f32
      %20 = vector.broadcast %cst_13 : f32 to vector<1x128xf32>
      %21 = arith.mulf %19, %20 : vector<1x128xf32>
      %c0_14 = arith.constant 0 : index
      %c0_15 = arith.constant 0 : index
      %22 = vector.load %arg8[%c0_14, %c0_15] : memref<1x128xf32, #tpu.memory_space<vmem>>, vector<1x128xf32>
      %cst_16 = arith.constant 1.250000e-01 : f32
      %23 = vector.broadcast %cst_16 : f32 to vector<1x128xf32>
      %24 = arith.mulf %22, %23 : vector<1x128xf32>
      %25 = arith.mulf %21, %21 : vector<1x128xf32>
      %26 = arith.subf %24, %25 : vector<1x128xf32>
      %cst_17 = arith.constant 0.000000e+00 : f32
      %27 = vector.broadcast %cst_17 : f32 to vector<1x128xf32>
      %28 = arith.maximumf %26, %27 : vector<1x128xf32>
      %cst_18 = arith.constant 9.99999974E-6 : f32
      %29 = vector.broadcast %cst_18 : f32 to vector<1x128xf32>
      %30 = arith.addf %28, %29 : vector<1x128xf32>
      %31 = math.rsqrt %30 : vector<1x128xf32>
      %c0_19 = arith.constant 0 : index
      %c0_20 = arith.constant 0 : index
      %32 = vector.load %arg4[%c0_19, %c0_20] : memref<1x128xf32, #tpu.memory_space<vmem>>, vector<1x128xf32>
      %33 = arith.mulf %32, %31 : vector<1x128xf32>
      %c0_21 = arith.constant 0 : index
      %c0_22 = arith.constant 0 : index
      %34 = vector.load %arg9[%c0_21, %c0_22] : memref<1x128xf32, #tpu.memory_space<vmem>>, vector<1x128xf32>
      tpu.vector_store %arg9[%c0_21, %c0_22], %33 {strides = array<i32>} : memref<1x128xf32, #tpu.memory_space<vmem>>, vector<1x128xf32>,
      %c0_23 = arith.constant 0 : index
      %c0_24 = arith.constant 0 : index
      %35 = vector.load %arg5[%c0_23, %c0_24] : memref<1x128xf32, #tpu.memory_space<vmem>>, vector<1x128xf32>
      %c0_25 = arith.constant 0 : index
      %c0_26 = arith.constant 0 : index
      %36 = vector.load %arg4[%c0_25, %c0_26] : memref<1x128xf32, #tpu.memory_space<vmem>>, vector<1x128xf32>
      %37 = arith.mulf %21, %36 : vector<1x128xf32>
      %38 = arith.mulf %37, %31 : vector<1x128xf32>
      %39 = arith.subf %35, %38 : vector<1x128xf32>
      %c0_27 = arith.constant 0 : index
      %c0_28 = arith.constant 0 : index
      %40 = vector.load %arg10[%c0_27, %c0_28] : memref<1x128xf32, #tpu.memory_space<vmem>>, vector<1x128xf32>
      tpu.vector_store %arg10[%c0_27, %c0_28], %39 {strides = array<i32>} : memref<1x128xf32, #tpu.memory_space<vmem>>, vector<1x128xf32>,
    } else {
    }
    %c1_i32_9 = arith.constant 1 : i32
    %16 = arith.cmpi eq, %arg0, %c1_i32_9 : i32
    %17 = arith.extui %16 : i1 to i32
    %c0_i32_10 = arith.constant 0 : i32
    %18 = arith.cmpi ne, %17, %c0_i32_10 : i32
    scf.if %18 {
      %c0_11 = arith.constant 0 : index
      %c0_12 = arith.constant 0 : index
      %19 = vector.load %arg9[%c0_11, %c0_12] : memref<1x128xf32, #tpu.memory_space<vmem>>, vector<1x128xf32>
      %20 = vector.broadcast %19 : vector<1x128xf32> to vector<16x128xf32>
      %21 = arith.mulf %2, %20 : vector<16x128xf32>
      %c0_13 = arith.constant 0 : index
      %c0_14 = arith.constant 0 : index
      %22 = vector.load %arg10[%c0_13, %c0_14] : memref<1x128xf32, #tpu.memory_space<vmem>>, vector<1x128xf32>
      %23 = vector.broadcast %22 : vector<1x128xf32> to vector<16x128xf32>
      %24 = arith.addf %21, %23 : vector<16x128xf32>
      %cst_15 = arith.constant 0.000000e+00 : f32
      %25 = vector.broadcast %cst_15 : f32 to vector<16x128xf32>
      %26 = arith.cmpf ogt, %24, %25 : vector<16x128xf32>
      %cst_16 = arith.constant 2.000000e-01 : f32
      %27 = vector.broadcast %cst_16 : f32 to vector<16x128xf32>
      %28 = arith.mulf %27, %24 : vector<16x128xf32>
      %29 = arith.select %26, %24, %28 : vector<16x128xi1>, vector<16x128xf32>
      %30 = arith.truncf %29 : vector<16x128xf32> to vector<16x128xbf16>
      %c0_17 = arith.constant 0 : index
      %c0_18 = arith.constant 0 : index
      %31 = vector.load %arg6[%c0_17, %c0_18] : memref<16x128xbf16, #tpu.memory_space<vmem>>, vector<16x128xbf16>
      tpu.vector_store %arg6[%c0_17, %c0_18], %30 {strides = array<i32>} : memref<16x128xbf16, #tpu.memory_space<vmem>>, vector<16x128xbf16>,
    } else {
    }
    return
  }
  func.func @transform_0(%arg0: i32, %arg1: i32) -> (i32, i32) {
    %c0_i32 = arith.constant 0 : i32
    %c0_i32_0 = arith.constant 0 : i32
    return %arg1, %c0_i32 : i32, i32
  }
  func.func @transform_1(%arg0: i32, %arg1: i32) -> (i32, i32) {
    %c0_i32 = arith.constant 0 : i32
    %c0_i32_0 = arith.constant 0 : i32
    %c0_i32_1 = arith.constant 0 : i32
    return %c0_i32, %c0_i32_0 : i32, i32
  }
  func.func @transform_2(%arg0: i32, %arg1: i32) -> (i32, i32) {
    %c0_i32 = arith.constant 0 : i32
    %c0_i32_0 = arith.constant 0 : i32
    %c0_i32_1 = arith.constant 0 : i32
    return %c0_i32, %c0_i32_0 : i32, i32
  }
  func.func @transform_3(%arg0: i32, %arg1: i32) -> (i32, i32) {
    %c0_i32 = arith.constant 0 : i32
    %c0_i32_0 = arith.constant 0 : i32
    %c0_i32_1 = arith.constant 0 : i32
    return %c0_i32, %c0_i32_0 : i32, i32
  }
  func.func @transform_4(%arg0: i32, %arg1: i32) -> (i32, i32) {
    %0 = arith.muli %arg1, %arg0 : i32
    %c0_i32 = arith.constant 0 : i32
    %c0_i32_0 = arith.constant 0 : i32
    return %0, %c0_i32 : i32, i32
  }
}

</mosaic_0001>

<llo_original>
// kernel: discriminator_forward.4
$region0: #{discriminator_forward.4}
  #allocation0 [shape = 'u32[]', space=smem, size = 0x4, offset = 0x4, fixed_abs, tag = 'smem constant byte address 0x4 - core index']
  #allocation1 [shape = 'u32[144,128]{1,0:T(1,128)}', space=vmem, size = 0x12000, scoped, tag = 'internal scratch']
  %s0 = inlined_call_operand.vmem [shape: bf16[512,128], index: 0, kind: input, shape index: {}]
  %s1 = inlined_call_operand.vmem [shape: bf16[128,128], index: 1, kind: input, shape index: {}]
  %s2 = inlined_call_operand.vmem [shape: bf16[512,128], index: 2, kind: output, shape index: {}]
  %s3 = sld [smem:[#allocation0]]
  $region18: #{discriminator_forward.4} parent=0
    _
  %s5 = ssub.s32 1, %s3
  %s6 = scalar_select 0, %s5, %s3
  // Predicated region
  $region2: #{discriminator_forward.4} parent=0 // pred_check
    _
  $region3: #{discriminator_forward.4} parent=0 // pred_check_branch
    %8 = sbr.rel (0) target = $region5
  $region4: #{discriminator_forward.4} parent=0 // pred_region
    _
  $region5: #{discriminator_forward.4} parent=0 // pred_fallthru
    _
  // Predicated region
  $region6: #{discriminator_forward.4} parent=0 // pred_check
    _
  $region7: #{discriminator_forward.4} parent=0 // pred_check_branch
    %10 = sbr.rel (0) target = $region9
  $region8: #{discriminator_forward.4} parent=0 // pred_region
    _
  $region9: #{discriminator_forward.4} parent=0 // pred_fallthru
    _
  %v12 = vld [vmem:[%s0] sm:$0xf]
  %v13 = vld [vmem:[%s0 + $0x4] sm:$0xf]
  %v14 = vld [vmem:[%s0 + $0x8] sm:$0xf]
  %v15 = vld [vmem:[%s0 + $0xc] sm:$0xf]
  %v16 = vld [vmem:[%s0 + $0x10] sm:$0xf]
  %v17 = vld [vmem:[%s0 + $0x14] sm:$0xf]
  %v18 = vld [vmem:[%s0 + $0x18] sm:$0xf]
  %v19 = vld [vmem:[%s0 + $0x1c] sm:$0xf]
  %v20 = vld [vmem:[%s0 + $0x20] sm:$0xf]
  %v21 = vld [vmem:[%s0 + $0x24] sm:$0xf]
  %v22 = vld [vmem:[%s0 + $0x28] sm:$0xf]
  %v23 = vld [vmem:[%s0 + $0x2c] sm:$0xf]
  %v24 = vld [vmem:[%s0 + $0x30] sm:$0xf]
  %v25 = vld [vmem:[%s0 + $0x34] sm:$0xf]
  %v26 = vld [vmem:[%s0 + $0x38] sm:$0xf]
  %v27 = vld [vmem:[%s0 + $0x3c] sm:$0xf]
  %v28 = vld [vmem:[%s0 + $0x40] sm:$0xf]
  %v29 = vld [vmem:[%s0 + $0x44] sm:$0xf]
  %v30 = vld [vmem:[%s0 + $0x48] sm:$0xf]
  %v31 = vld [vmem:[%s0 + $0x4c] sm:$0xf]
  %v32 = vld [vmem:[%s0 + $0x50] sm:$0xf]
  %v33 = vld [vmem:[%s0 + $0x54] sm:$0xf]
  %v34 = vld [vmem:[%s0 + $0x58] sm:$0xf]
  %v35 = vld [vmem:[%s0 + $0x5c] sm:$0xf]
  %v36 = vld [vmem:[%s0 + $0x60] sm:$0xf]
  %v37 = vld [vmem:[%s0 + $0x64] sm:$0xf]
  %v38 = vld [vmem:[%s0 + $0x68] sm:$0xf]
  %v39 = vld [vmem:[%s0 + $0x6c] sm:$0xf]
  %v40 = vld [vmem:[%s0 + $0x70] sm:$0xf]
  %v41 = vld [vmem:[%s0 + $0x74] sm:$0xf]
  %v42 = vld [vmem:[%s0 + $0x78] sm:$0xf]
  %v43 = vld [vmem:[%s0 + $0x7c] sm:$0xf]
  %v44 = vld [vmem:[%s0 + $0x80] sm:$0xf]
  %v45 = vld [vmem:[%s0 + $0x84] sm:$0xf]
  %v46 = vld [vmem:[%s0 + $0x88] sm:$0xf]
  %v47 = vld [vmem:[%s0 + $0x8c] sm:$0xf]
  %v48 = vld [vmem:[%s0 + $0x90] sm:$0xf]
  %v49 = vld [vmem:[%s0 + $0x94] sm:$0xf]
  %v50 = vld [vmem:[%s0 + $0x98] sm:$0xf]
  %v51 = vld [vmem:[%s0 + $0x9c] sm:$0xf]
  %v52 = vld [vmem:[%s0 + $0xa0] sm:$0xf]
  %v53 = vld [vmem:[%s0 + $0xa4] sm:$0xf]
  %v54 = vld [vmem:[%s0 + $0xa8] sm:$0xf]
  %v55 = vld [vmem:[%s0 + $0xac] sm:$0xf]
  %v56 = vld [vmem:[%s0 + $0xb0] sm:$0xf]
  %v57 = vld [vmem:[%s0 + $0xb4] sm:$0xf]
  %v58 = vld [vmem:[%s0 + $0xb8] sm:$0xf]
  %v59 = vld [vmem:[%s0 + $0xbc] sm:$0xf]
  %v60 = vld [vmem:[%s0 + $0xc0] sm:$0xf]
  %v61 = vld [vmem:[%s0 + $0xc4] sm:$0xf]
  %v62 = vld [vmem:[%s0 + $0xc8] sm:$0xf]
  %v63 = vld [vmem:[%s0 + $0xcc] sm:$0xf]
  %v64 = vld [vmem:[%s0 + $0xd0] sm:$0xf]
  %v65 = vld [vmem:[%s0 + $0xd4] sm:$0xf]
  %v66 = vld [vmem:[%s0 + $0xd8] sm:$0xf]
  %v67 = vld [vmem:[%s0 + $0xdc] sm:$0xf]
  %v68 = vld [vmem:[%s0 + $0xe0] sm:$0xf]
  %v69 = vld [vmem:[%s0 + $0xe4] sm:$0xf]
  %v70 = vld [vmem:[%s0 + $0xe8] sm:$0xf]
  %v71 = vld [vmem:[%s0 + $0xec] sm:$0xf]
  %v72 = vld [vmem:[%s0 + $0xf0] sm:$0xf]
  %v73 = vld [vmem:[%s0 + $0xf4] sm:$0xf]
  %v74 = vld [vmem:[%s0 + $0xf8] sm:$0xf]
  %v75 = vld [vmem:[%s0 + $0xfc] sm:$0xf]
  %v76 = vld [vmem:[%s1] sm:$0xf]
  %v77 = vld [vmem:[%s1 + $0x4] sm:$0xf]
  %v78 = vld [vmem:[%s1 + $0x8] sm:$0xf]
  %v79 = vld [vmem:[%s1 + $0xc] sm:$0xf]
  %v80 = vld [vmem:[%s1 + $0x10] sm:$0xf]
  %v81 = vld [vmem:[%s1 + $0x14] sm:$0xf]
  %v82 = vld [vmem:[%s1 + $0x18] sm:$0xf]
  %v83 = vld [vmem:[%s1 + $0x1c] sm:$0xf]
  %v84 = vld [vmem:[%s1 + $0x20] sm:$0xf]
  %v85 = vld [vmem:[%s1 + $0x24] sm:$0xf]
  %v86 = vld [vmem:[%s1 + $0x28] sm:$0xf]
  %v87 = vld [vmem:[%s1 + $0x2c] sm:$0xf]
  %v88 = vld [vmem:[%s1 + $0x30] sm:$0xf]
  %v89 = vld [vmem:[%s1 + $0x34] sm:$0xf]
  %v90 = vld [vmem:[%s1 + $0x38] sm:$0xf]
  %v91 = vld [vmem:[%s1 + $0x3c] sm:$0xf]
  %v156 = vunpack.c.l.b16 %v12
  %v157 = vunpack.c.l.b16 %v13
  %v158 = vunpack.c.l.b16 %v14
  %v159 = vunpack.c.l.b16 %v15
  %v160 = vunpack.c.l.b16 %v16
  %v161 = vunpack.c.l.b16 %v17
  %v162 = vunpack.c.l.b16 %v18
  %v163 = vunpack.c.l.b16 %v19
  %v164 = vunpack.c.l.b16 %v20
  %v165 = vunpack.c.l.b16 %v21
  %v166 = vunpack.c.l.b16 %v22
  %v167 = vunpack.c.l.b16 %v23
  %v168 = vunpack.c.l.b16 %v24
  %v169 = vunpack.c.l.b16 %v25
  %v170 = vunpack.c.l.b16 %v26
  %v171 = vunpack.c.l.b16 %v27
  %v172 = vunpack.c.l.b16 %v28
  %v173 = vunpack.c.l.b16 %v29
  %v174 = vunpack.c.l.b16 %v30
  %v175 = vunpack.c.l.b16 %v31
  %v176 = vunpack.c.l.b16 %v32
  %v177 = vunpack.c.l.b16 %v33
  %v178 = vunpack.c.l.b16 %v34
  %v179 = vunpack.c.l.b16 %v35
  %v180 = vunpack.c.l.b16 %v36
  %v181 = vunpack.c.l.b16 %v37
  %v182 = vunpack.c.l.b16 %v38
  %v183 = vunpack.c.l.b16 %v39
  %v184 = vunpack.c.l.b16 %v40
  %v185 = vunpack.c.l.b16 %v41
  %v186 = vunpack.c.l.b16 %v42
  %v187 = vunpack.c.l.b16 %v43
  %v188 = vunpack.c.l.b16 %v44
  %v189 = vunpack.c.l.b16 %v45
  %v190 = vunpack.c.l.b16 %v46
  %v191 = vunpack.c.l.b16 %v47
  %v192 = vunpack.c.l.b16 %v48
  %v193 = vunpack.c.l.b16 %v49
  %v194 = vunpack.c.l.b16 %v50
  %v195 = vunpack.c.l.b16 %v51
  %v196 = vunpack.c.l.b16 %v52
  %v197 = vunpack.c.l.b16 %v53
  %v198 = vunpack.c.l.b16 %v54
  %v199 = vunpack.c.l.b16 %v55
  %v200 = vunpack.c.l.b16 %v56
  %v201 = vunpack.c.l.b16 %v57
  %v202 = vunpack.c.l.b16 %v58
  %v203 = vunpack.c.l.b16 %v59
  %v204 = vunpack.c.l.b16 %v60
  %v205 = vunpack.c.l.b16 %v61
  %v206 = vunpack.c.l.b16 %v62
  %v207 = vunpack.c.l.b16 %v63
  %v208 = vunpack.c.l.b16 %v64
  %v209 = vunpack.c.l.b16 %v65
  %v210 = vunpack.c.l.b16 %v66
  %v211 = vunpack.c.l.b16 %v67
  %v212 = vunpack.c.l.b16 %v68
  %v213 = vunpack.c.l.b16 %v69
  %v214 = vunpack.c.l.b16 %v70
  %v215 = vunpack.c.l.b16 %v71
  %v216 = vunpack.c.l.b16 %v72
  %v217 = vunpack.c.l.b16 %v73
  %v218 = vunpack.c.l.b16 %v74
  %v219 = vunpack.c.l.b16 %v75
  %v220 = vpack.c.b16 %v157, %v156
  %v221 = vpack.c.b16 %v159, %v158
  %v222 = vpack.c.b16 %v161, %v160
  %v223 = vpack.c.b16 %v163, %v162
  %v224 = vpack.c.b16 %v165, %v164
  %v225 = vpack.c.b16 %v167, %v166
  %v226 = vpack.c.b16 %v169, %v168
  %v227 = vpack.c.b16 %v171, %v170
  %v228 = vpack.c.b16 %v173, %v172
  %v229 = vpack.c.b16 %v175, %v174
  %v230 = vpack.c.b16 %v177, %v176
  %v231 = vpack.c.b16 %v179, %v178
  %v232 = vpack.c.b16 %v181, %v180
  %v233 = vpack.c.b16 %v183, %v182
  %v234 = vpack.c.b16 %v185, %v184
  %v235 = vpack.c.b16 %v187, %v186
  %v236 = vpack.c.b16 %v189, %v188
  %v237 = vpack.c.b16 %v191, %v190
  %v238 = vpack.c.b16 %v193, %v192
  %v239 = vpack.c.b16 %v195, %v194
  %v240 = vpack.c.b16 %v197, %v196
  %v241 = vpack.c.b16 %v199, %v198
  %v242 = vpack.c.b16 %v201, %v200
  %v243 = vpack.c.b16 %v203, %v202
  %v244 = vpack.c.b16 %v205, %v204
  %v245 = vpack.c.b16 %v207, %v206
  %v246 = vpack.c.b16 %v209, %v208
  %v247 = vpack.c.b16 %v211, %v210
  %v248 = vpack.c.b16 %v213, %v212
  %v249 = vpack.c.b16 %v215, %v214
  %v250 = vpack.c.b16 %v217, %v216
  %v251 = vpack.c.b16 %v219, %v218
  %v300 = vunpack.c.l.b16 %v76
  %v301 = vunpack.c.l.b16 %v77
  %v302 = vunpack.c.l.b16 %v78
  %v303 = vunpack.c.l.b16 %v79
  %v304 = vunpack.c.l.b16 %v80
  %v305 = vunpack.c.l.b16 %v81
  %v306 = vunpack.c.l.b16 %v82
  %v307 = vunpack.c.l.b16 %v83
  %v308 = vunpack.c.l.b16 %v84
  %v309 = vunpack.c.l.b16 %v85
  %v310 = vunpack.c.l.b16 %v86
  %v311 = vunpack.c.l.b16 %v87
  %v312 = vunpack.c.l.b16 %v88
  %v313 = vunpack.c.l.b16 %v89
  %v314 = vunpack.c.l.b16 %v90
  %v315 = vunpack.c.l.b16 %v91
  %v316 = vpack.c.b16 %v301, %v300
  %v317 = vpack.c.b16 %v303, %v302
  %v318 = vpack.c.b16 %v305, %v304
  %v319 = vpack.c.b16 %v307, %v306
  %v320 = vpack.c.b16 %v309, %v308
  %v321 = vpack.c.b16 %v311, %v310
  %v322 = vpack.c.b16 %v313, %v312
  %v323 = vpack.c.b16 %v315, %v314
  %332 = vmatprep.subr.bf16.mxu0 0
  %333 = vmatpush1.bf16.msra.mxu0 %v316
  %334 = vmatprep.subr.bf16.mxu0 0
  %335 = vmatpush1.bf16.msra.mxu0 %v317
  %336 = vmatprep.subr.bf16.mxu0 0
  %337 = vmatpush1.bf16.msra.mxu0 %v318
  %338 = vmatprep.subr.bf16.mxu0 0
  %339 = vmatpush1.bf16.msra.mxu0 %v319
  %340 = vmatprep.subr.bf16.mxu0 0
  %341 = vmatpush1.bf16.msra.mxu0 %v320
  %342 = vmatprep.subr.bf16.mxu0 0
  %343 = vmatpush1.bf16.msra.mxu0 %v321
  %344 = vmatprep.subr.bf16.mxu0 0
  %345 = vmatpush1.bf16.msra.mxu0 %v322
  %346 = vmatprep.subr.bf16.mxu0 0
  %347 = vmatpush1.bf16.msra.mxu0 %v323
  %348 = vmatprep.subr.bf16.mxu0 0
  %349 = vmatpush1.bf16.msra.mxu0 0
  %350 = vmatprep.subr.bf16.mxu0 0
  %351 = vmatpush1.bf16.msra.mxu0 0
  %352 = vmatprep.subr.bf16.mxu0 0
  %353 = vmatpush1.bf16.msra.mxu0 0
  %354 = vmatprep.subr.bf16.mxu0 0
  %355 = vmatpush1.bf16.msra.mxu0 0
  %356 = vmatprep.subr.bf16.mxu0 0
  %357 = vmatpush1.bf16.msra.mxu0 0
  %358 = vmatprep.subr.bf16.mxu0 0
  %359 = vmatpush1.bf16.msra.mxu0 0
  %360 = vmatprep.subr.bf16.mxu0 0
  %361 = vmatpush1.bf16.msra.mxu0 0
  %362 = vmatprep.subr.bf16.mxu0 0
  %363 = vmatpush1.bf16.msra.mxu0 0
  %364 = vmatprep.mubr.bf16.mxu0 0
  %365 = vmatmul.mubr.bf16.gmra.mrb[0].mxu0 %v220
  %v366 = vpop.f32.mrb[0].mxu0
  %v367 = vadd.f32 0.0, %v366
  %v368 = vpop.f32.mrb[0].mxu0
  %v369 = vpop.f32.mrb[0].mxu0
  %v370 = vadd.f32 0.0, %v369
  %v371 = vpop.f32.mrb[0].mxu0
  %372 = vmatprep.mubr.bf16.mxu0 0
  %373 = vmatmul.mubr.bf16.gmra.mrb[0].mxu0 %v221
  %v374 = vpop.f32.mrb[0].mxu0
  %v375 = vadd.f32 0.0, %v374
  %v376 = vpop.f32.mrb[0].mxu0
  %v377 = vpop.f32.mrb[0].mxu0
  %v378 = vadd.f32 0.0, %v377
  %v379 = vpop.f32.mrb[0].mxu0
  %380 = vmatprep.mubr.bf16.mxu0 0
  %381 = vmatmul.mubr.bf16.gmra.mrb[0].mxu0 %v222
  %v382 = vpop.f32.mrb[0].mxu0
  %v383 = vadd.f32 0.0, %v382
  %v384 = vpop.f32.mrb[0].mxu0
  %v385 = vpop.f32.mrb[0].mxu0
  %v386 = vadd.f32 0.0, %v385
  %v387 = vpop.f32.mrb[0].mxu0
  %388 = vmatprep.mubr.bf16.mxu0 0
  %389 = vmatmul.mubr.bf16.gmra.mrb[0].mxu0 %v223
  %v390 = vpop.f32.mrb[0].mxu0
  %v391 = vadd.f32 0.0, %v390
  %v392 = vpop.f32.mrb[0].mxu0
  %v393 = vpop.f32.mrb[0].mxu0
  %v394 = vadd.f32 0.0, %v393
  %v395 = vpop.f32.mrb[0].mxu0
  %396 = vmatprep.mubr.bf16.mxu0 0
  %397 = vmatmul.mubr.bf16.gmra.mrb[0].mxu0 %v224
  %v398 = vpop.f32.mrb[0].mxu0
  %v399 = vadd.f32 0.0, %v398
  %v400 = vpop.f32.mrb[0].mxu0
  %v401 = vpop.f32.mrb[0].mxu0
  %v402 = vadd.f32 0.0, %v401
  %v403 = vpop.f32.mrb[0].mxu0
  %404 = vmatprep.mubr.bf16.mxu0 0
  %405 = vmatmul.mubr.bf16.gmra.mrb[0].mxu0 %v225
  %v406 = vpop.f32.mrb[0].mxu0
  %v407 = vadd.f32 0.0, %v406
  %v408 = vpop.f32.mrb[0].mxu0
  %v409 = vpop.f32.mrb[0].mxu0
  %v410 = vadd.f32 0.0, %v409
  %v411 = vpop.f32.mrb[0].mxu0
  %412 = vmatprep.mubr.bf16.mxu0 0
  %413 = vmatmul.mubr.bf16.gmra.mrb[0].mxu0 %v226
  %v414 = vpop.f32.mrb[0].mxu0
  %v415 = vadd.f32 0.0, %v414
  %v416 = vpop.f32.mrb[0].mxu0
  %v417 = vpop.f32.mrb[0].mxu0
  %v418 = vadd.f32 0.0, %v417
  %v419 = vpop.f32.mrb[0].mxu0
  %420 = vmatprep.mubr.bf16.mxu0 0
  %421 = vmatmul.mubr.bf16.gmra.mrb[0].mxu0 %v227
  %v422 = vpop.f32.mrb[0].mxu0
  %v423 = vadd.f32 0.0, %v422
  %v424 = vpop.f32.mrb[0].mxu0
  %v425 = vpop.f32.mrb[0].mxu0
  %v426 = vadd.f32 0.0, %v425
  %v427 = vpop.f32.mrb[0].mxu0
  %428 = vmatprep.mubr.bf16.mxu0 0
  %429 = vmatmul.mubr.bf16.gmra.mrb[0].mxu0 %v228
  %v430 = vpop.f32.mrb[0].mxu0
  %v431 = vadd.f32 0.0, %v430
  %v432 = vpop.f32.mrb[0].mxu0
  %v433 = vpop.f32.mrb[0].mxu0
  %v434 = vadd.f32 0.0, %v433
  %v435 = vpop.f32.mrb[0].mxu0
  %436 = vmatprep.mubr.bf16.mxu0 0
  %437 = vmatmul.mubr.bf16.gmra.mrb[0].mxu0 %v229
  %v438 = vpop.f32.mrb[0].mxu0
  %v439 = vadd.f32 0.0, %v438
  %v440 = vpop.f32.mrb[0].mxu0
  %v441 = vpop.f32.mrb[0].mxu0
  %v442 = vadd.f32 0.0, %v441
  %v443 = vpop.f32.mrb[0].mxu0
  %444 = vmatprep.mubr.bf16.mxu0 0
  %445 = vmatmul.mubr.bf16.gmra.mrb[0].mxu0 %v230
  %v446 = vpop.f32.mrb[0].mxu0
  %v447 = vadd.f32 0.0, %v446
  %v448 = vpop.f32.mrb[0].mxu0
  %v449 = vpop.f32.mrb[0].mxu0
  %v450 = vadd.f32 0.0, %v449
  %v451 = vpop.f32.mrb[0].mxu0
  %452 = vmatprep.mubr.bf16.mxu0 0
  %453 = vmatmul.mubr.bf16.gmra.mrb[0].mxu0 %v231
  %v454 = vpop.f32.mrb[0].mxu0
  %v455 = vadd.f32 0.0, %v454
  %v456 = vpop.f32.mrb[0].mxu0
  %v457 = vpop.f32.mrb[0].mxu0
  %v458 = vadd.f32 0.0, %v457
  %v459 = vpop.f32.mrb[0].mxu0
  %460 = vmatprep.mubr.bf16.mxu0 0
  %461 = vmatmul.mubr.bf16.gmra.mrb[0].mxu0 %v232
  %v462 = vpop.f32.mrb[0].mxu0
  %v463 = vadd.f32 0.0, %v462
  %v464 = vpop.f32.mrb[0].mxu0
  %v465 = vpop.f32.mrb[0].mxu0
  %v466 = vadd.f32 0.0, %v465
  %v467 = vpop.f32.mrb[0].mxu0
  %468 = vmatprep.mubr.bf16.mxu0 0
  %469 = vmatmul.mubr.bf16.gmra.mrb[0].mxu0 %v233
  %v470 = vpop.f32.mrb[0].mxu0
  %v471 = vadd.f32 0.0, %v470
  %v472 = vpop.f32.mrb[0].mxu0
  %v473 = vpop.f32.mrb[0].mxu0
  %v474 = vadd.f32 0.0, %v473
  %v475 = vpop.f32.mrb[0].mxu0
  %476 = vmatprep.mubr.bf16.mxu0 0
  %477 = vmatmul.mubr.bf16.gmra.mrb[0].mxu0 %v234
  %v478 = vpop.f32.mrb[0].mxu0
  %v479 = vadd.f32 0.0, %v478
  %v480 = vpop.f32.mrb[0].mxu0
  %v481 = vpop.f32.mrb[0].mxu0
  %v482 = vadd.f32 0.0, %v481
  %v483 = vpop.f32.mrb[0].mxu0
  %484 = vmatprep.mubr.bf16.mxu0 0
  %485 = vmatmul.mubr.bf16.gmra.mrb[0].mxu0 %v235
  %v486 = vpop.f32.mrb[0].mxu0
  %v487 = vadd.f32 0.0, %v486
  %v488 = vpop.f32.mrb[0].mxu0
  %v489 = vpop.f32.mrb[0].mxu0
  %v490 = vadd.f32 0.0, %v489
  %v491 = vpop.f32.mrb[0].mxu0
  %492 = vmatprep.mubr.bf16.mxu0 0
  %493 = vmatmul.mubr.bf16.gmra.mrb[0].mxu0 %v236
  %v494 = vpop.f32.mrb[0].mxu0
  %v495 = vadd.f32 0.0, %v494
  %v496 = vpop.f32.mrb[0].mxu0
  %v497 = vpop.f32.mrb[0].mxu0
  %v498 = vadd.f32 0.0, %v497
  %v499 = vpop.f32.mrb[0].mxu0
  %500 = vmatprep.mubr.bf16.mxu0 0
  %501 = vmatmul.mubr.bf16.gmra.mrb[0].mxu0 %v237
  %v502 = vpop.f32.mrb[0].mxu0
  %v503 = vadd.f32 0.0, %v502
  %v504 = vpop.f32.mrb[0].mxu0
  %v505 = vpop.f32.mrb[0].mxu0
  %v506 = vadd.f32 0.0, %v505
  %v507 = vpop.f32.mrb[0].mxu0
  %508 = vmatprep.mubr.bf16.mxu0 0
  %509 = vmatmul.mubr.bf16.gmra.mrb[0].mxu0 %v238
  %v510 = vpop.f32.mrb[0].mxu0
  %v511 = vadd.f32 0.0, %v510
  %v512 = vpop.f32.mrb[0].mxu0
  %v513 = vpop.f32.mrb[0].mxu0
  %v514 = vadd.f32 0.0, %v513
  %v515 = vpop.f32.mrb[0].mxu0
  %516 = vmatprep.mubr.bf16.mxu0 0
  %517 = vmatmul.mubr.bf16.gmra.mrb[0].mxu0 %v239
  %v518 = vpop.f32.mrb[0].mxu0
  %v519 = vadd.f32 0.0, %v518
  %v520 = vpop.f32.mrb[0].mxu0
  %v521 = vpop.f32.mrb[0].mxu0
  %v522 = vadd.f32 0.0, %v521
  %v523 = vpop.f32.mrb[0].mxu0
  %524 = vmatprep.mubr.bf16.mxu0 0
  %525 = vmatmul.mubr.bf16.gmra.mrb[0].mxu0 %v240
  %v526 = vpop.f32.mrb[0].mxu0
  %v527 = vadd.f32 0.0, %v526
  %v528 = vpop.f32.mrb[0].mxu0
  %v529 = vpop.f32.mrb[0].mxu0
  %v530 = vadd.f32 0.0, %v529
  %v531 = vpop.f32.mrb[0].mxu0
  %532 = vmatprep.mubr.bf16.mxu0 0
  %533 = vmatmul.mubr.bf16.gmra.mrb[0].mxu0 %v241
  %v534 = vpop.f32.mrb[0].mxu0
  %v535 = vadd.f32 0.0, %v534
  %v536 = vpop.f32.mrb[0].mxu0
  %v537 = vpop.f32.mrb[0].mxu0
  %v538 = vadd.f32 0.0, %v537
  %v539 = vpop.f32.mrb[0].mxu0
  %540 = vmatprep.mubr.bf16.mxu0 0
  %541 = vmatmul.mubr.bf16.gmra.mrb[0].mxu0 %v242
  %v542 = vpop.f32.mrb[0].mxu0
  %v543 = vadd.f32 0.0, %v542
  %v544 = vpop.f32.mrb[0].mxu0
  %v545 = vpop.f32.mrb[0].mxu0
  %v546 = vadd.f32 0.0, %v545
  %v547 = vpop.f32.mrb[0].mxu0
  %548 = vmatprep.mubr.bf16.mxu0 0
  %549 = vmatmul.mubr.bf16.gmra.mrb[0].mxu0 %v243
  %v550 = vpop.f32.mrb[0].mxu0
  %v551 = vadd.f32 0.0, %v550
  %v552 = vpop.f32.mrb[0].mxu0
  %v553 = vpop.f32.mrb[0].mxu0
  %v554 = vadd.f32 0.0, %v553
  %v555 = vpop.f32.mrb[0].mxu0
  %556 = vmatprep.mubr.bf16.mxu0 0
  %557 = vmatmul.mubr.bf16.gmra.mrb[0].mxu0 %v244
  %v558 = vpop.f32.mrb[0].mxu0
  %v559 = vadd.f32 0.0, %v558
  %v560 = vpop.f32.mrb[0].mxu0
  %v561 = vpop.f32.mrb[0].mxu0
  %v562 = vadd.f32 0.0, %v561
  %v563 = vpop.f32.mrb[0].mxu0
  %564 = vmatprep.mubr.bf16.mxu0 0
  %565 = vmatmul.mubr.bf16.gmra.mrb[0].mxu0 %v245
  %v566 = vpop.f32.mrb[0].mxu0
  %v567 = vadd.f32 0.0, %v566
  %v568 = vpop.f32.mrb[0].mxu0
  %v569 = vpop.f32.mrb[0].mxu0
  %v570 = vadd.f32 0.0, %v569
  %v571 = vpop.f32.mrb[0].mxu0
  %572 = vmatprep.mubr.bf16.mxu0 0
  %573 = vmatmul.mubr.bf16.gmra.mrb[0].mxu0 %v246
  %v574 = vpop.f32.mrb[0].mxu0
  %v575 = vadd.f32 0.0, %v574
  %v576 = vpop.f32.mrb[0].mxu0
  %v577 = vpop.f32.mrb[0].mxu0
  %v578 = vadd.f32 0.0, %v577
  %v579 = vpop.f32.mrb[0].mxu0
  %580 = vmatprep.mubr.bf16.mxu0 0
  %581 = vmatmul.mubr.bf16.gmra.mrb[0].mxu0 %v247
  %v582 = vpop.f32.mrb[0].mxu0
  %v583 = vadd.f32 0.0, %v582
  %v584 = vpop.f32.mrb[0].mxu0
  %v585 = vpop.f32.mrb[0].mxu0
  %v586 = vadd.f32 0.0, %v585
  %v587 = vpop.f32.mrb[0].mxu0
  %588 = vmatprep.mubr.bf16.mxu0 0
  %589 = vmatmul.mubr.bf16.gmra.mrb[0].mxu0 %v248
  %v590 = vpop.f32.mrb[0].mxu0
  %v591 = vadd.f32 0.0, %v590
  %v592 = vpop.f32.mrb[0].mxu0
  %v593 = vpop.f32.mrb[0].mxu0
  %v594 = vadd.f32 0.0, %v593
  %v595 = vpop.f32.mrb[0].mxu0
  %596 = vmatprep.mubr.bf16.mxu0 0
  %597 = vmatmul.mubr.bf16.gmra.mrb[0].mxu0 %v249
  %v598 = vpop.f32.mrb[0].mxu0
  %v599 = vadd.f32 0.0, %v598
  %v600 = vpop.f32.mrb[0].mxu0
  %v601 = vpop.f32.mrb[0].mxu0
  %v602 = vadd.f32 0.0, %v601
  %v603 = vpop.f32.mrb[0].mxu0
  %604 = vmatprep.mubr.bf16.mxu0 0
  %605 = vmatmul.mubr.bf16.gmra.mrb[0].mxu0 %v250
  %v606 = vpop.f32.mrb[0].mxu0
  %v607 = vadd.f32 0.0, %v606
  %v608 = vpop.f32.mrb[0].mxu0
  %v609 = vpop.f32.mrb[0].mxu0
  %v610 = vadd.f32 0.0, %v609
  %v611 = vpop.f32.mrb[0].mxu0
  %612 = vmatprep.mubr.bf16.mxu0 0
  %613 = vmatmul.mubr.bf16.gmra.mrb[0].mxu0 %v251
  %v614 = vpop.f32.mrb[0].mxu0
  %v615 = vadd.f32 0.0, %v614
  %v616 = vpop.f32.mrb[0].mxu0
  %v617 = vpop.f32.mrb[0].mxu0
  %v618 = vadd.f32 0.0, %v617
  %v619 = vpop.f32.mrb[0].mxu0
  %620 = vdwg.mxu0
  %vm621 = vcmp.gt.f32.partialorder %v367, 0.0
  %vm622 = vcmp.gt.f32.partialorder %v370, 0.0
  %vm623 = vcmp.gt.f32.partialorder %v375, 0.0
  %vm624 = vcmp.gt.f32.partialorder %v378, 0.0
  %vm625 = vcmp.gt.f32.partialorder %v383, 0.0
  %vm626 = vcmp.gt.f32.partialorder %v386, 0.0
  %vm627 = vcmp.gt.f32.partialorder %v391, 0.0
  %vm628 = vcmp.gt.f32.partialorder %v394, 0.0
  %vm629 = vcmp.gt.f32.partialorder %v399, 0.0
  %vm630 = vcmp.gt.f32.partialorder %v402, 0.0
  %vm631 = vcmp.gt.f32.partialorder %v407, 0.0
  %vm632 = vcmp.gt.f32.partialorder %v410, 0.0
  %vm633 = vcmp.gt.f32.partialorder %v415, 0.0
  %vm634 = vcmp.gt.f32.partialorder %v418, 0.0
  %vm635 = vcmp.gt.f32.partialorder %v423, 0.0
  %vm636 = vcmp.gt.f32.partialorder %v426, 0.0
  %vm637 = vcmp.gt.f32.partialorder %v431, 0.0
  %vm638 = vcmp.gt.f32.partialorder %v434, 0.0
  %vm639 = vcmp.gt.f32.partialorder %v439, 0.0
  %vm640 = vcmp.gt.f32.partialorder %v442, 0.0
  %vm641 = vcmp.gt.f32.partialorder %v447, 0.0
  %vm642 = vcmp.gt.f32.partialorder %v450, 0.0
  %vm643 = vcmp.gt.f32.partialorder %v455, 0.0
  %vm644 = vcmp.gt.f32.partialorder %v458, 0.0
  %vm645 = vcmp.gt.f32.partialorder %v463, 0.0
  %vm646 = vcmp.gt.f32.partialorder %v466, 0.0
  %vm647 = vcmp.gt.f32.partialorder %v471, 0.0
  %vm648 = vcmp.gt.f32.partialorder %v474, 0.0
  %vm649 = vcmp.gt.f32.partialorder %v479, 0.0
  %vm650 = vcmp.gt.f32.partialorder %v482, 0.0
  %vm651 = vcmp.gt.f32.partialorder %v487, 0.0
  %vm652 = vcmp.gt.f32.partialorder %v490, 0.0
  %vm653 = vcmp.gt.f32.partialorder %v495, 0.0
  %vm654 = vcmp.gt.f32.partialorder %v498, 0.0
  %vm655 = vcmp.gt.f32.partialorder %v503, 0.0
  %vm656 = vcmp.gt.f32.partialorder %v506, 0.0
  %vm657 = vcmp.gt.f32.partialorder %v511, 0.0
  %vm658 = vcmp.gt.f32.partialorder %v514, 0.0
  %vm659 = vcmp.gt.f32.partialorder %v519, 0.0
  %vm660 = vcmp.gt.f32.partialorder %v522, 0.0
  %vm661 = vcmp.gt.f32.partialorder %v527, 0.0
  %vm662 = vcmp.gt.f32.partialorder %v530, 0.0
  %vm663 = vcmp.gt.f32.partialorder %v535, 0.0
  %vm664 = vcmp.gt.f32.partialorder %v538, 0.0
  %vm665 = vcmp.gt.f32.partialorder %v543, 0.0
  %vm666 = vcmp.gt.f32.partialorder %v546, 0.0
  %vm667 = vcmp.gt.f32.partialorder %v551, 0.0
  %vm668 = vcmp.gt.f32.partialorder %v554, 0.0
  %vm669 = vcmp.gt.f32.partialorder %v559, 0.0
  %vm670 = vcmp.gt.f32.partialorder %v562, 0.0
  %vm671 = vcmp.gt.f32.partialorder %v567, 0.0
  %vm672 = vcmp.gt.f32.partialorder %v570, 0.0
  %vm673 = vcmp.gt.f32.partialorder %v575, 0.0
  %vm674 = vcmp.gt.f32.partialorder %v578, 0.0
  %vm675 = vcmp.gt.f32.partialorder %v583, 0.0
  %vm676 = vcmp.gt.f32.partialorder %v586, 0.0
  %vm677 = vcmp.gt.f32.partialorder %v591, 0.0
  %vm678 = vcmp.gt.f32.partialorder %v594, 0.0
  %vm679 = vcmp.gt.f32.partialorder %v599, 0.0
  %vm680 = vcmp.gt.f32.partialorder %v602, 0.0
  %vm681 = vcmp.gt.f32.partialorder %v607, 0.0
  %vm682 = vcmp.gt.f32.partialorder %v610, 0.0
  %vm683 = vcmp.gt.f32.partialorder %v615, 0.0
  %vm684 = vcmp.gt.f32.partialorder %v618, 0.0
  %v685 = vmul.f32 %v367, 0.2
  %v686 = vmul.f32 %v370, 0.2
  %v687 = vmul.f32 %v375, 0.2
  %v688 = vmul.f32 %v378, 0.2
  %v689 = vmul.f32 %v383, 0.2
  %v690 = vmul.f32 %v386, 0.2
  %v691 = vmul.f32 %v391, 0.2
  %v692 = vmul.f32 %v394, 0.2
  %v693 = vmul.f32 %v399, 0.2
  %v694 = vmul.f32 %v402, 0.2
  %v695 = vmul.f32 %v407, 0.2
  %v696 = vmul.f32 %v410, 0.2
  %v697 = vmul.f32 %v415, 0.2
  %v698 = vmul.f32 %v418, 0.2
  %v699 = vmul.f32 %v423, 0.2
  %v700 = vmul.f32 %v426, 0.2
  %v701 = vmul.f32 %v431, 0.2
  %v702 = vmul.f32 %v434, 0.2
  %v703 = vmul.f32 %v439, 0.2
  %v704 = vmul.f32 %v442, 0.2
  %v705 = vmul.f32 %v447, 0.2
  %v706 = vmul.f32 %v450, 0.2
  %v707 = vmul.f32 %v455, 0.2
  %v708 = vmul.f32 %v458, 0.2
  %v709 = vmul.f32 %v463, 0.2
  %v710 = vmul.f32 %v466, 0.2
  %v711 = vmul.f32 %v471, 0.2
  %v712 = vmul.f32 %v474, 0.2
  %v713 = vmul.f32 %v479, 0.2
  %v714 = vmul.f32 %v482, 0.2
  %v715 = vmul.f32 %v487, 0.2
  %v716 = vmul.f32 %v490, 0.2
  %v717 = vmul.f32 %v495, 0.2
  %v718 = vmul.f32 %v498, 0.2
  %v719 = vmul.f32 %v503, 0.2
  %v720 = vmul.f32 %v506, 0.2
  %v721 = vmul.f32 %v511, 0.2
  %v722 = vmul.f32 %v514, 0.2
  %v723 = vmul.f32 %v519, 0.2
  %v724 = vmul.f32 %v522, 0.2
  %v725 = vmul.f32 %v527, 0.2
  %v726 = vmul.f32 %v530, 0.2
  %v727 = vmul.f32 %v535, 0.2
  %v728 = vmul.f32 %v538, 0.2
  %v729 = vmul.f32 %v543, 0.2
  %v730 = vmul.f32 %v546, 0.2
  %v731 = vmul.f32 %v551, 0.2
  %v732 = vmul.f32 %v554, 0.2
  %v733 = vmul.f32 %v559, 0.2
  %v734 = vmul.f32 %v562, 0.2
  %v735 = vmul.f32 %v567, 0.2
  %v736 = vmul.f32 %v570, 0.2
  %v737 = vmul.f32 %v575, 0.2
  %v738 = vmul.f32 %v578, 0.2
  %v739 = vmul.f32 %v583, 0.2
  %v740 = vmul.f32 %v586, 0.2
  %v741 = vmul.f32 %v591, 0.2
  %v742 = vmul.f32 %v594, 0.2
  %v743 = vmul.f32 %v599, 0.2
  %v744 = vmul.f32 %v602, 0.2
  %v745 = vmul.f32 %v607, 0.2
  %v746 = vmul.f32 %v610, 0.2
  %v747 = vmul.f32 %v615, 0.2
  %v748 = vmul.f32 %v618, 0.2
  %v749 = vsel %vm621, %v367, %v685
  %v750 = vsel %vm622, %v370, %v686
  %v751 = vsel %vm623, %v375, %v687
  %v752 = vsel %vm624, %v378, %v688
  %v753 = vsel %vm625, %v383, %v689
  %v754 = vsel %vm626, %v386, %v690
  %v755 = vsel %vm627, %v391, %v691
  %v756 = vsel %vm628, %v394, %v692
  %v757 = vsel %vm629, %v399, %v693
  %v758 = vsel %vm630, %v402, %v694
  %v759 = vsel %vm631, %v407, %v695
  %v760 = vsel %vm632, %v410, %v696
  %v761 = vsel %vm633, %v415, %v697
  %v762 = vsel %vm634, %v418, %v698
  %v763 = vsel %vm635, %v423, %v699
  %v764 = vsel %vm636, %v426, %v700
  %v765 = vsel %vm637, %v431, %v701
  %v766 = vsel %vm638, %v434, %v702
  %v767 = vsel %vm639, %v439, %v703
  %v768 = vsel %vm640, %v442, %v704
  %v769 = vsel %vm641, %v447, %v705
  %v770 = vsel %vm642, %v450, %v706
  %v771 = vsel %vm643, %v455, %v707
  %v772 = vsel %vm644, %v458, %v708
  %v773 = vsel %vm645, %v463, %v709
  %v774 = vsel %vm646, %v466, %v710
  %v775 = vsel %vm647, %v471, %v711
  %v776 = vsel %vm648, %v474, %v712
  %v777 = vsel %vm649, %v479, %v713
  %v778 = vsel %vm650, %v482, %v714
  %v779 = vsel %vm651, %v487, %v715
  %v780 = vsel %vm652, %v490, %v716
  %v781 = vsel %vm653, %v495, %v717
  %v782 = vsel %vm654, %v498, %v718
  %v783 = vsel %vm655, %v503, %v719
  %v784 = vsel %vm656, %v506, %v720
  %v785 = vsel %vm657, %v511, %v721
  %v786 = vsel %vm658, %v514, %v722
  %v787 = vsel %vm659, %v519, %v723
  %v788 = vsel %vm660, %v522, %v724
  %v789 = vsel %vm661, %v527, %v725
  %v790 = vsel %vm662, %v530, %v726
  %v791 = vsel %vm663, %v535, %v727
  %v792 = vsel %vm664, %v538, %v728
  %v793 = vsel %vm665, %v543, %v729
  %v794 = vsel %vm666, %v546, %v730
  %v795 = vsel %vm667, %v551, %v731
  %v796 = vsel %vm668, %v554, %v732
  %v797 = vsel %vm669, %v559, %v733
  %v798 = vsel %vm670, %v562, %v734
  %v799 = vsel %vm671, %v567, %v735
  %v800 = vsel %vm672, %v570, %v736
  %v801 = vsel %vm673, %v575, %v737
  %v802 = vsel %vm674, %v578, %v738
  %v803 = vsel %vm675, %v583, %v739
  %v804 = vsel %vm676, %v586, %v740
  %v805 = vsel %vm677, %v591, %v741
  %v806 = vsel %vm678, %v594, %v742
  %v807 = vsel %vm679, %v599, %v743
  %v808 = vsel %vm680, %v602, %v744
  %v809 = vsel %vm681, %v607, %v745
  %v810 = vsel %vm682, %v610, %v746
  %v811 = vsel %vm683, %v615, %v747
  %v812 = vsel %vm684, %v618, %v748
  %v813 = vpack.c.bf16 %v750, %v749
  %v814 = vpack.c.bf16 %v752, %v751
  %v815 = vpack.c.bf16 %v754, %v753
  %v816 = vpack.c.bf16 %v756, %v755
  %v817 = vpack.c.bf16 %v758, %v757
  %v818 = vpack.c.bf16 %v760, %v759
  %v819 = vpack.c.bf16 %v762, %v761
  %v820 = vpack.c.bf16 %v764, %v763
  %v821 = vpack.c.bf16 %v766, %v765
  %v822 = vpack.c.bf16 %v768, %v767
  %v823 = vpack.c.bf16 %v770, %v769
  %v824 = vpack.c.bf16 %v772, %v771
  %v825 = vpack.c.bf16 %v774, %v773
  %v826 = vpack.c.bf16 %v776, %v775
  %v827 = vpack.c.bf16 %v778, %v777
  %v828 = vpack.c.bf16 %v780, %v779
  %v829 = vpack.c.bf16 %v782, %v781
  %v830 = vpack.c.bf16 %v784, %v783
  %v831 = vpack.c.bf16 %v786, %v785
  %v832 = vpack.c.bf16 %v788, %v787
  %v833 = vpack.c.bf16 %v790, %v789
  %v834 = vpack.c.bf16 %v792, %v791
  %v835 = vpack.c.bf16 %v794, %v793
  %v836 = vpack.c.bf16 %v796, %v795
  %v837 = vpack.c.bf16 %v798, %v797
  %v838 = vpack.c.bf16 %v800, %v799
  %v839 = vpack.c.bf16 %v802, %v801
  %v840 = vpack.c.bf16 %v804, %v803
  %v841 = vpack.c.bf16 %v806, %v805
  %v842 = vpack.c.bf16 %v808, %v807
  %v843 = vpack.c.bf16 %v810, %v809
  %v844 = vpack.c.bf16 %v812, %v811
  %v877 = vunpack.c.l.b16 %v813
  %v878 = vunpack.c.h.b16 %v813
  %v879 = vunpack.c.l.b16 %v814
  %v880 = vunpack.c.h.b16 %v814
  %v881 = vunpack.c.l.b16 %v815
  %v882 = vunpack.c.h.b16 %v815
  %v883 = vunpack.c.l.b16 %v816
  %v884 = vunpack.c.h.b16 %v816
  %v885 = vunpack.c.l.b16 %v817
  %v886 = vunpack.c.h.b16 %v817
  %v887 = vunpack.c.l.b16 %v818
  %v888 = vunpack.c.h.b16 %v818
  %v889 = vunpack.c.l.b16 %v819
  %v890 = vunpack.c.h.b16 %v819
  %v891 = vunpack.c.l.b16 %v820
  %v892 = vunpack.c.h.b16 %v820
  %v893 = vunpack.c.l.b16 %v821
  %v894 = vunpack.c.h.b16 %v821
  %v895 = vunpack.c.l.b16 %v822
  %v896 = vunpack.c.h.b16 %v822
  %v897 = vunpack.c.l.b16 %v823
  %v898 = vunpack.c.h.b16 %v823
  %v899 = vunpack.c.l.b16 %v824
  %v900 = vunpack.c.h.b16 %v824
  %v901 = vunpack.c.l.b16 %v825
  %v902 = vunpack.c.h.b16 %v825
  %v903 = vunpack.c.l.b16 %v826
  %v904 = vunpack.c.h.b16 %v826
  %v905 = vunpack.c.l.b16 %v827
  %v906 = vunpack.c.h.b16 %v827
  %v907 = vunpack.c.l.b16 %v828
  %v908 = vunpack.c.h.b16 %v828
  %v909 = vunpack.c.l.b16 %v829
  %v910 = vunpack.c.h.b16 %v829
  %v911 = vunpack.c.l.b16 %v830
  %v912 = vunpack.c.h.b16 %v830
  %v913 = vunpack.c.l.b16 %v831
  %v914 = vunpack.c.h.b16 %v831
  %v915 = vunpack.c.l.b16 %v832
  %v916 = vunpack.c.h.b16 %v832
  %v917 = vunpack.c.l.b16 %v833
  %v918 = vunpack.c.h.b16 %v833
  %v919 = vunpack.c.l.b16 %v834
  %v920 = vunpack.c.h.b16 %v834
  %v921 = vunpack.c.l.b16 %v835
  %v922 = vunpack.c.h.b16 %v835
  %v923 = vunpack.c.l.b16 %v836
  %v924 = vunpack.c.h.b16 %v836
  %v925 = vunpack.c.l.b16 %v837
  %v926 = vunpack.c.h.b16 %v837
  %v927 = vunpack.c.l.b16 %v838
  %v928 = vunpack.c.h.b16 %v838
  %v929 = vunpack.c.l.b16 %v839
  %v930 = vunpack.c.h.b16 %v839
  %v931 = vunpack.c.l.b16 %v840
  %v932 = vunpack.c.h.b16 %v840
  %v933 = vunpack.c.l.b16 %v841
  %v934 = vunpack.c.h.b16 %v841
  %v935 = vunpack.c.l.b16 %v842
  %v936 = vunpack.c.h.b16 %v842
  %v937 = vunpack.c.l.b16 %v843
  %v938 = vunpack.c.h.b16 %v843
  %v939 = vunpack.c.l.b16 %v844
  %v940 = vunpack.c.h.b16 %v844
  %v941 = vpack.c.b16 %v877, %v877
  %v942 = vpack.c.b16 %v878, %v878
  %v943 = vpack.c.b16 %v879, %v879
  %v944 = vpack.c.b16 %v880, %v880
  %v945 = vpack.c.b16 %v881, %v881
  %v946 = vpack.c.b16 %v882, %v882
  %v947 = vpack.c.b16 %v883, %v883
  %v948 = vpack.c.b16 %v884, %v884
  %v949 = vpack.c.b16 %v885, %v885
  %v950 = vpack.c.b16 %v886, %v886
  %v951 = vpack.c.b16 %v887, %v887
  %v952 = vpack.c.b16 %v888, %v888
  %v953 = vpack.c.b16 %v889, %v889
  %v954 = vpack.c.b16 %v890, %v890
  %v955 = vpack.c.b16 %v891, %v891
  %v956 = vpack.c.b16 %v892, %v892
  %v957 = vpack.c.b16 %v893, %v893
  %v958 = vpack.c.b16 %v894, %v894
  %v959 = vpack.c.b16 %v895, %v895
  %v960 = vpack.c.b16 %v896, %v896
  %v961 = vpack.c.b16 %v897, %v897
  %v962 = vpack.c.b16 %v898, %v898
  %v963 = vpack.c.b16 %v899, %v899
  %v964 = vpack.c.b16 %v900, %v900
  %v965 = vpack.c.b16 %v901, %v901
  %v966 = vpack.c.b16 %v902, %v902
  %v967 = vpack.c.b16 %v903, %v903
  %v968 = vpack.c.b16 %v904, %v904
  %v969 = vpack.c.b16 %v905, %v905
  %v970 = vpack.c.b16 %v906, %v906
  %v971 = vpack.c.b16 %v907, %v907
  %v972 = vpack.c.b16 %v908, %v908
  %v973 = vpack.c.b16 %v909, %v909
  %v974 = vpack.c.b16 %v910, %v910
  %v975 = vpack.c.b16 %v911, %v911
  %v976 = vpack.c.b16 %v912, %v912
  %v977 = vpack.c.b16 %v913, %v913
  %v978 = vpack.c.b16 %v914, %v914
  %v979 = vpack.c.b16 %v915, %v915
  %v980 = vpack.c.b16 %v916, %v916
  %v981 = vpack.c.b16 %v917, %v917
  %v982 = vpack.c.b16 %v918, %v918
  %v983 = vpack.c.b16 %v919, %v919
  %v984 = vpack.c.b16 %v920, %v920
  %v985 = vpack.c.b16 %v921, %v921
  %v986 = vpack.c.b16 %v922, %v922
  %v987 = vpack.c.b16 %v923, %v923
  %v988 = vpack.c.b16 %v924, %v924
  %v989 = vpack.c.b16 %v925, %v925
  %v990 = vpack.c.b16 %v926, %v926
  %v991 = vpack.c.b16 %v927, %v927
  %v992 = vpack.c.b16 %v928, %v928
  %v993 = vpack.c.b16 %v929, %v929
  %v994 = vpack.c.b16 %v930, %v930
  %v995 = vpack.c.b16 %v931, %v931
  %v996 = vpack.c.b16 %v932, %v932
  %v997 = vpack.c.b16 %v933, %v933
  %v998 = vpack.c.b16 %v934, %v934
  %v999 = vpack.c.b16 %v935, %v935
  %v1000 = vpack.c.b16 %v936, %v936
  %v1001 = vpack.c.b16 %v937, %v937
  %v1002 = vpack.c.b16 %v938, %v938
  %v1003 = vpack.c.b16 %v939, %v939
  %v1004 = vpack.c.b16 %v940, %v940
  %1069 = vst [vmem:[%s2] sm:$0xf] %v941
  %1070 = vst [vmem:[%s2 + $0x4] sm:$0xf] %v942
  %1071 = vst [vmem:[%s2 + $0x8] sm:$0xf] %v943
  %1072 = vst [vmem:[%s2 + $0xc] sm:$0xf] %v944
  %1073 = vst [vmem:[%s2 + $0x10] sm:$0xf] %v945
  %1074 = vst [vmem:[%s2 + $0x14] sm:$0xf] %v946
  %1075 = vst [vmem:[%s2 + $0x18] sm:$0xf] %v947
  %1076 = vst [vmem:[%s2 + $0x1c] sm:$0xf] %v948
  %1077 = vst [vmem:[%s2 + $0x20] sm:$0xf] %v949
  %1078 = vst [vmem:[%s2 + $0x24] sm:$0xf] %v950
  %1079 = vst [vmem:[%s2 + $0x28] sm:$0xf] %v951
  %1080 = vst [vmem:[%s2 + $0x2c] sm:$0xf] %v952
  %1081 = vst [vmem:[%s2 + $0x30] sm:$0xf] %v953
  %1082 = vst [vmem:[%s2 + $0x34] sm:$0xf] %v954
  %1083 = vst [vmem:[%s2 + $0x38] sm:$0xf] %v955
  %1084 = vst [vmem:[%s2 + $0x3c] sm:$0xf] %v956
  %1085 = vst [vmem:[%s2 + $0x40] sm:$0xf] %v957
  %1086 = vst [vmem:[%s2 + $0x44] sm:$0xf] %v958
  %1087 = vst [vmem:[%s2 + $0x48] sm:$0xf] %v959
  %1088 = vst [vmem:[%s2 + $0x4c] sm:$0xf] %v960
  %1089 = vst [vmem:[%s2 + $0x50] sm:$0xf] %v961
  %1090 = vst [vmem:[%s2 + $0x54] sm:$0xf] %v962
  %1091 = vst [vmem:[%s2 + $0x58] sm:$0xf] %v963
  %1092 = vst [vmem:[%s2 + $0x5c] sm:$0xf] %v964
  %1093 = vst [vmem:[%s2 + $0x60] sm:$0xf] %v965
  %1094 = vst [vmem:[%s2 + $0x64] sm:$0xf] %v966
  %1095 = vst [vmem:[%s2 + $0x68] sm:$0xf] %v967
  %1096 = vst [vmem:[%s2 + $0x6c] sm:$0xf] %v968
  %1097 = vst [vmem:[%s2 + $0x70] sm:$0xf] %v969
  %1098 = vst [vmem:[%s2 + $0x74] sm:$0xf] %v970
  %1099 = vst [vmem:[%s2 + $0x78] sm:$0xf] %v971
  %1100 = vst [vmem:[%s2 + $0x7c] sm:$0xf] %v972
  %1101 = vst [vmem:[%s2 + $0x80] sm:$0xf] %v973
  %1102 = vst [vmem:[%s2 + $0x84] sm:$0xf] %v974
  %1103 = vst [vmem:[%s2 + $0x88] sm:$0xf] %v975
  %1104 = vst [vmem:[%s2 + $0x8c] sm:$0xf] %v976
  %1105 = vst [vmem:[%s2 + $0x90] sm:$0xf] %v977
  %1106 = vst [vmem:[%s2 + $0x94] sm:$0xf] %v978
  %1107 = vst [vmem:[%s2 + $0x98] sm:$0xf] %v979
  %1108 = vst [vmem:[%s2 + $0x9c] sm:$0xf] %v980
  %1109 = vst [vmem:[%s2 + $0xa0] sm:$0xf] %v981
  %1110 = vst [vmem:[%s2 + $0xa4] sm:$0xf] %v982
  %1111 = vst [vmem:[%s2 + $0xa8] sm:$0xf] %v983
  %1112 = vst [vmem:[%s2 + $0xac] sm:$0xf] %v984
  %1113 = vst [vmem:[%s2 + $0xb0] sm:$0xf] %v985
  %1114 = vst [vmem:[%s2 + $0xb4] sm:$0xf] %v986
  %1115 = vst [vmem:[%s2 + $0xb8] sm:$0xf] %v987
  %1116 = vst [vmem:[%s2 + $0xbc] sm:$0xf] %v988
  %1117 = vst [vmem:[%s2 + $0xc0] sm:$0xf] %v989
  %1118 = vst [vmem:[%s2 + $0xc4] sm:$0xf] %v990
  %1119 = vst [vmem:[%s2 + $0xc8] sm:$0xf] %v991
  %1120 = vst [vmem:[%s2 + $0xcc] sm:$0xf] %v992
  %1121 = vst [vmem:[%s2 + $0xd0] sm:$0xf] %v993
  %1122 = vst [vmem:[%s2 + $0xd4] sm:$0xf] %v994
  %1123 = vst [vmem:[%s2 + $0xd8] sm:$0xf] %v995
  %1124 = vst [vmem:[%s2 + $0xdc] sm:$0xf] %v996
  %1125 = vst [vmem:[%s2 + $0xe0] sm:$0xf] %v997
  %1126 = vst [vmem:[%s2 + $0xe4] sm:$0xf] %v998
  %1127 = vst [vmem:[%s2 + $0xe8] sm:$0xf] %v999
  %1128 = vst [vmem:[%s2 + $0xec] sm:$0xf] %v1000
  %1129 = vst [vmem:[%s2 + $0xf0] sm:$0xf] %v1001
  %1130 = vst [vmem:[%s2 + $0xf4] sm:$0xf] %v1002
  %1131 = vst [vmem:[%s2 + $0xf8] sm:$0xf] %v1003
  %1132 = vst [vmem:[%s2 + $0xfc] sm:$0xf] %v1004
  // Predicated region
  $region10: #{discriminator_forward.4} parent=0 // pred_check
    _
  $region11: #{discriminator_forward.4} parent=0 // pred_check_branch
    %1134 = sbr.rel (0) target = $region13
  $region12: #{discriminator_forward.4} parent=0 // pred_region
    _
  $region13: #{discriminator_forward.4} parent=0 // pred_fallthru
    _
  // Predicated region
  $region14: #{discriminator_forward.4} parent=0 // pred_check
    _
  $region15: #{discriminator_forward.4} parent=0 // pred_check_branch
    %1136 = sbr.rel (0) target = $region17
  $region16: #{discriminator_forward.4} parent=0 // pred_region
    _
  $region17: #{discriminator_forward.4} parent=0 // pred_fallthru
    _

// kernel: discriminator_forward.5
$region0: #{discriminator_forward.5}
  #allocation0 [shape = 'u32[]', space=smem, size = 0x4, offset = 0x4, fixed_abs, tag = 'smem constant byte address 0x4 - core index']
  #allocation1 [shape = 'u32[144,128]{1,0:T(1,128)}', space=vmem, size = 0x12000, scoped, tag = 'internal scratch']
  #allocation2 [shape = 'f32[1,128]{1,0:T(1,128)}', space=vmem, size = 0x200, scoped, tag = 'scratch operand']
  #allocation3 [shape = 'f32[1,128]{1,0:T(1,128)}', space=vmem, size = 0x200, scoped, tag = 'scratch operand']
  #allocation4 [shape = 'f32[1,128]{1,0:T(1,128)}', space=vmem, size = 0x200, scoped, tag = 'scratch operand']
  #allocation5 [shape = 'f32[1,128]{1,0:T(1,128)}', space=vmem, size = 0x200, scoped, tag = 'scratch operand']
  %s0 = inlined_call_operand.vmem [shape: bf16[128,2048], index: 0, kind: input, shape index: {}]
  %s1 = inlined_call_operand.vmem [shape: bf16[2048,128], index: 1, kind: input, shape index: {}]
  %s2 = inlined_call_operand.vmem [shape: f32[1,128], index: 2, kind: input, shape index: {}]
  %s3 = inlined_call_operand.vmem [shape: f32[1,128], index: 3, kind: input, shape index: {}]
  %s4 = inlined_call_operand.vmem [shape: bf16[128,128], index: 4, kind: output, shape index: {}]
  %s5 = sld [smem:[#allocation0]]
  $region65: #{discriminator_forward.5} parent=0
    _
  %s7 = ssub.s32 1, %s5
  %s8 = scalar_select 0, %s7, %s5
  loop: start=0, step=1, limit=4
  $region2: #{discriminator_forward.5} parent=0 // loop_pre_header
    _
  $region3: #{discriminator_forward.5} parent=0 // loop_header
    %s10 = sphi 0, %s14
    %p11 = scmp.ge.s32.totalorder %s10, 4
    %s17 = sphi 0, %s29
    %s18 = sphi 0, %s25
    %s19 = sphi 0, %s17
    %s20 = sphi 0, %s18
    %s21 = sphi 0, %s19
    %s22 = sphi 0, %s20
    %s32 = sphi 0, %s34
    %s35 = sphi 0, %s32
    %s36 = sphi 0, %s35
    %s52 = sphi 0, %s36
    %s56 = sphi 0, %s56
    %s58 = sphi 0, %s56
    %s59 = sphi 0, %s58
    %s73 = sphi 0, %s59
    %s77 = sphi 0, %s77
    %s79 = sphi 0, %s77
    %s80 = sphi 0, %s79
    %s94 = sphi 0, %s80
    %s98 = sphi 0, %s98
    %s100 = sphi 0, %s98
    %s101 = sphi 0, %s100
    %s115 = sphi 0, %s101
    %s123 = sphi 0, %s125
    %s126 = sphi 0, %s123
    %s127 = sphi 0, %s126
    %s143 = sphi 0, %s127
  $region4: #{discriminator_forward.5} parent=0 // loop_header_branch
    %13 = sbr.rel (%p11) target = $region8
  $region5: #{discriminator_forward.5} parent=0 // loop_body
    %s15 = ssub.s32 %s10, 1
    %s16 = ssub.s32 %s10, 2
    %s23 = sadd.s32 1, %s18
    %p24 = scmp.ge.s32.totalorder %s23, 1
    %s25 = scalar_select %p24, 0, %s23
    %s26 = sadd.s32 1, %s17
    %s27 = scalar_select %p24, %s26, %s17
    %p28 = scmp.ge.s32.totalorder %s27, 2
    %s29 = scalar_select %p28, 0, %s27
    %s30 = ssub.s32 %s18, %s25
    %p31 = scmp.eq.s32.totalorder %s30, 0
    %s33 = sadd.s32 %s32, 1
    %s34 = scalar_select %p31, %s32, %s33
    %p37 = pneg %p31
    %p38 = scmp.eq.s32.totalorder %s10, 1
    %p39 = por %p37, %p38
    %p40 = scmp.ne.s32.totalorder %s32, %s35
    %p41 = scmp.eq.s32.totalorder %s10, 0
    %p42 = por %p40, %p41
    %p43 = scmp.ne.s32.totalorder %s32, %s35
    %p44 = scmp.eq.s32.totalorder %s15, 1
    %p45 = por %p43, %p44
    %p46 = scmp.ne.s32.totalorder %s35, %s36
    %p47 = scmp.eq.s32.totalorder %s15, 0
    %p48 = por %p46, %p47
    %p49 = scmp.ne.s32.totalorder %s35, %s36
    %p50 = scmp.eq.s32.totalorder %s16, 1
    %p51 = por %p49, %p50
    %p53 = scmp.ne.s32.totalorder %s36, %s52
    %p54 = scmp.eq.s32.totalorder %s16, 0
    %p55 = por %p53, %p54
    %s57 = sadd.s32 %s56, 1
    %p60 = scmp.eq.s32.totalorder %s10, 1
    %p61 = scmp.ne.s32.totalorder %s56, %s58
    %p62 = scmp.eq.s32.totalorder %s10, 0
    %p63 = por %p61, %p62
    %p64 = scmp.ne.s32.totalorder %s56, %s58
    %p65 = scmp.eq.s32.totalorder %s15, 1
    %p66 = por %p64, %p65
    %p67 = scmp.ne.s32.totalorder %s58, %s59
    %p68 = scmp.eq.s32.totalorder %s15, 0
    %p69 = por %p67, %p68
    %p70 = scmp.ne.s32.totalorder %s58, %s59
    %p71 = scmp.eq.s32.totalorder %s16, 1
    %p72 = por %p70, %p71
    %p74 = scmp.ne.s32.totalorder %s59, %s73
    %p75 = scmp.eq.s32.totalorder %s16, 0
    %p76 = por %p74, %p75
    %s78 = sadd.s32 %s77, 1
    %p81 = scmp.eq.s32.totalorder %s10, 1
    %p82 = scmp.ne.s32.totalorder %s77, %s79
    %p83 = scmp.eq.s32.totalorder %s10, 0
    %p84 = por %p82, %p83
    %p85 = scmp.ne.s32.totalorder %s77, %s79
    %p86 = scmp.eq.s32.totalorder %s15, 1
    %p87 = por %p85, %p86
    %p88 = scmp.ne.s32.totalorder %s79, %s80
    %p89 = scmp.eq.s32.totalorder %s15, 0
    %p90 = por %p88, %p89
    %p91 = scmp.ne.s32.totalorder %s79, %s80
    %p92 = scmp.eq.s32.totalorder %s16, 1
    %p93 = por %p91, %p92
    %p95 = scmp.ne.s32.totalorder %s80, %s94
    %p96 = scmp.eq.s32.totalorder %s16, 0
    %p97 = por %p95, %p96
    %s99 = sadd.s32 %s98, 1
    %p102 = scmp.eq.s32.totalorder %s10, 1
    %p103 = scmp.ne.s32.totalorder %s98, %s100
    %p104 = scmp.eq.s32.totalorder %s10, 0
    %p105 = por %p103, %p104
    %p106 = scmp.ne.s32.totalorder %s98, %s100
    %p107 = scmp.eq.s32.totalorder %s15, 1
    %p108 = por %p106, %p107
    %p109 = scmp.ne.s32.totalorder %s100, %s101
    %p110 = scmp.eq.s32.totalorder %s15, 0
    %p111 = por %p109, %p110
    %p112 = scmp.ne.s32.totalorder %s100, %s101
    %p113 = scmp.eq.s32.totalorder %s16, 1
    %p114 = por %p112, %p113
    %p116 = scmp.ne.s32.totalorder %s101, %s115
    %p117 = scmp.eq.s32.totalorder %s16, 0
    %p118 = por %p116, %p117
    %s119 = smul.u32 %s18, %s17
    %s120 = smul.u32 %s25, %s29
    %s121 = ssub.s32 %s119, %s120
    %p122 = scmp.eq.s32.totalorder %s121, 0
    %s124 = sadd.s32 %s123, 1
    %s125 = scalar_select %p122, %s123, %s124
    %p128 = pneg %p122
    %p129 = scmp.eq.s32.totalorder %s10, 1
    %p130 = por %p128, %p129
    %p131 = scmp.ne.s32.totalorder %s123, %s126
    %p132 = scmp.eq.s32.totalorder %s10, 0
    %p133 = por %p131, %p132
    %p134 = scmp.ne.s32.totalorder %s123, %s126
    %p135 = scmp.eq.s32.totalorder %s15, 1
    %p136 = por %p134, %p135
    %p137 = scmp.ne.s32.totalorder %s126, %s127
    %p138 = scmp.eq.s32.totalorder %s15, 0
    %p139 = por %p137, %p138
    %p140 = scmp.ne.s32.totalorder %s126, %s127
    %p141 = scmp.eq.s32.totalorder %s16, 1
    %p142 = por %p140, %p141
    %p144 = scmp.ne.s32.totalorder %s127, %s143
    %p145 = scmp.eq.s32.totalorder %s16, 0
    %p146 = por %p144, %p145
    %p147 = scmp.le.s32.totalorder 1, %s10
    %p148 = scmp.lt.s32.totalorder %s10, 3
    %p149 = pnand %p147, %p148
    %p150 = pneg %p149
    // Predicated region
    $region9: #{discriminator_forward.5} parent=5 // pred_check
      _
    $region10: #{discriminator_forward.5} parent=5 // pred_check_branch
      %152 = sbr.rel (%p149) target = $region12
    $region11: #{discriminator_forward.5} parent=5 // pred_region
      %s153 = ssub.s32 %s10, 1
      // Predicated region
      $region13: #{discriminator_forward.5} parent=11 // pred_check
        %p154 = pneg %p48
      $region14: #{discriminator_forward.5} parent=11 // pred_check_branch
        %156 = sbr.rel (%p154) target = $region16
      $region15: #{discriminator_forward.5} parent=11 // pred_region
        %s157 = smul.u32 16, %s20
        %p158 = scmp.lt.s32.totalorder %s157, 15
        %s159 = scalar_select %p158, %s157, 15
        %s160 = smul.addr %s159, 16
        %s161 = smul.addr %s160, 4
        %s162 = scalar_lea.vmem %s0, %s161
        %s163 = smul.u32 16, %s20
      $region16: #{discriminator_forward.5} parent=11 // pred_fallthru
        _
      // Predicated region
      $region17: #{discriminator_forward.5} parent=11 // pred_check
        %p164 = pneg %p69
      $region18: #{discriminator_forward.5} parent=11 // pred_check_branch
        %166 = sbr.rel (%p164) target = $region20
      $region19: #{discriminator_forward.5} parent=11 // pred_region
        _
      $region20: #{discriminator_forward.5} parent=11 // pred_fallthru
        _
      // Predicated region
      $region21: #{discriminator_forward.5} parent=11 // pred_check
        %p167 = pneg %p90
      $region22: #{discriminator_forward.5} parent=11 // pred_check_branch
        %169 = sbr.rel (%p167) target = $region24
      $region23: #{discriminator_forward.5} parent=11 // pred_region
        _
      $region24: #{discriminator_forward.5} parent=11 // pred_fallthru
        _
      // Predicated region
      $region25: #{discriminator_forward.5} parent=11 // pred_check
        %p170 = pneg %p111
      $region26: #{discriminator_forward.5} parent=11 // pred_check_branch
        %172 = sbr.rel (%p170) target = $region28
      $region27: #{discriminator_forward.5} parent=11 // pred_region
        _
      $region28: #{discriminator_forward.5} parent=11 // pred_fallthru
        _
    $region12: #{discriminator_forward.5} parent=5 // pred_fallthru
      _
    %p173 = scmp.lt.s32.totalorder %s10, 2
    // Predicated region
    $region29: #{discriminator_forward.5} parent=5 // pred_check
      %p174 = pneg %p173
    $region30: #{discriminator_forward.5} parent=5 // pred_check_branch
      %176 = sbr.rel (%p174) target = $region32
    $region31: #{discriminator_forward.5} parent=5 // pred_region
      _
    $region32: #{discriminator_forward.5} parent=5 // pred_fallthru
      _
    %p177 = scmp.le.s32.totalorder 1, %s10
    %p178 = scmp.lt.s32.totalorder %s10, 3
    %p179 = pnand %p177, %p178
    %p180 = pneg %p179
    // Predicated region
    $region33: #{discriminator_forward.5} parent=5 // pred_check
      _
    $region34: #{discriminator_forward.5} parent=5 // pred_check_branch
      %182 = sbr.rel (%p179) target = $region36
    $region35: #{discriminator_forward.5} parent=5 // pred_region
      %s183 = ssub.s32 %s10, 1
      %s184 = smul.u32 16, %s20
      %p185 = scmp.lt.s32.totalorder %s184, 15
      %s186 = scalar_select %p185, %s184, 15
      %s187 = smul.addr %s186, 16
      %s188 = smul.addr %s187, 4
      %s189 = scalar_lea.vmem %s0, %s188
      %p190 = pneg %p48
      %p191 = pneg %p45
      %p192 = pneg %p69
      %p193 = pneg %p66
      %p194 = pneg %p90
      %p195 = pneg %p87
      %p196 = pneg %p111
      %p197 = pneg %p108
      %p198 = pneg %p139
      %p199 = pneg %p136
      %s200 = smul.u32 %s20, %s19
      %s201 = smul.u32 16, %s200
      %p202 = scmp.lt.s32.totalorder %s201, 15
      %s203 = scalar_select %p202, %s201, 15
      %s204 = smul.addr %s203, 4
      %s205 = scalar_lea.vmem %s4, %s204
      %s206 = smul.u32 16, %s20
      %p207 = scmp.lt.s32.totalorder %s206, 15
      %s208 = scalar_select %p207, %s206, 15
      %s209 = smul.addr %s208, 16
      %s210 = smul.addr %s209, 4
      %s211 = scalar_lea.vmem %s0, %s210
      %s212 = smul.u32 16, %s20
      %s213 = smul.u32 %s20, %s19
      %s214 = smul.u32 16, %s213
      %p215 = scmp.lt.s32.totalorder %s214, 15
      %s216 = scalar_select %p215, %s214, 15
      %s217 = smul.addr %s216, 4
      %s218 = scalar_lea.vmem %s4, %s217
      %s219 = smul.u32 %s20, %s19
      %s220 = smul.u32 16, %s219
      %v222 = vld [vmem:[%s211] sm:$0xff]
      %v223 = vld [vmem:[%s211 + $0x8] sm:$0xff]
      %v224 = vld [vmem:[%s211 + $0x10] sm:$0xff]
      %v225 = vld [vmem:[%s211 + $0x18] sm:$0xff]
      %v226 = vld [vmem:[%s211 + $0x20] sm:$0xff]
      %v227 = vld [vmem:[%s211 + $0x28] sm:$0xff]
      %v228 = vld [vmem:[%s211 + $0x30] sm:$0xff]
      %v229 = vld [vmem:[%s211 + $0x38] sm:$0xff]
      %v230 = vld [vmem:[%s211 + $0x40] sm:$0xff]
      %v231 = vld [vmem:[%s211 + $0x48] sm:$0xff]
      %v232 = vld [vmem:[%s211 + $0x50] sm:$0xff]
      %v233 = vld [vmem:[%s211 + $0x58] sm:$0xff]
      %v234 = vld [vmem:[%s211 + $0x60] sm:$0xff]
      %v235 = vld [vmem:[%s211 + $0x68] sm:$0xff]
      %v236 = vld [vmem:[%s211 + $0x70] sm:$0xff]
      %v237 = vld [vmem:[%s211 + $0x78] sm:$0xff]
      %v238 = vld [vmem:[%s211 + $0x80] sm:$0xff]
      %v239 = vld [vmem:[%s211 + $0x88] sm:$0xff]
      %v240 = vld [vmem:[%s211 + $0x90] sm:$0xff]
      %v241 = vld [vmem:[%s211 + $0x98] sm:$0xff]
      %v242 = vld [vmem:[%s211 + $0xa0] sm:$0xff]
      %v243 = vld [vmem:[%s211 + $0xa8] sm:$0xff]
      %v244 = vld [vmem:[%s211 + $0xb0] sm:$0xff]
      %v245 = vld [vmem:[%s211 + $0xb8] sm:$0xff]
      %v246 = vld [vmem:[%s211 + $0xc0] sm:$0xff]
      %v247 = vld [vmem:[%s211 + $0xc8] sm:$0xff]
      %v248 = vld [vmem:[%s211 + $0xd0] sm:$0xff]
      %v249 = vld [vmem:[%s211 + $0xd8] sm:$0xff]
      %v250 = vld [vmem:[%s211 + $0xe0] sm:$0xff]
      %v251 = vld [vmem:[%s211 + $0xe8] sm:$0xff]
      %v252 = vld [vmem:[%s211 + $0xf0] sm:$0xff]
      %v253 = vld [vmem:[%s211 + $0xf8] sm:$0xff]
      %v254 = vld [vmem:[%s211 + $0x100] sm:$0xff]
      %v255 = vld [vmem:[%s211 + $0x108] sm:$0xff]
      %v256 = vld [vmem:[%s211 + $0x110] sm:$0xff]
      %v257 = vld [vmem:[%s211 + $0x118] sm:$0xff]
      %v258 = vld [vmem:[%s211 + $0x120] sm:$0xff]
      %v259 = vld [vmem:[%s211 + $0x128] sm:$0xff]
      %v260 = vld [vmem:[%s211 + $0x130] sm:$0xff]
      %v261 = vld [vmem:[%s211 + $0x138] sm:$0xff]
      %v262 = vld [vmem:[%s211 + $0x140] sm:$0xff]
      %v263 = vld [vmem:[%s211 + $0x148] sm:$0xff]
      %v264 = vld [vmem:[%s211 + $0x150] sm:$0xff]
      %v265 = vld [vmem:[%s211 + $0x158] sm:$0xff]
      %v266 = vld [vmem:[%s211 + $0x160] sm:$0xff]
      %v267 = vld [vmem:[%s211 + $0x168] sm:$0xff]
      %v268 = vld [vmem:[%s211 + $0x170] sm:$0xff]
      %v269 = vld [vmem:[%s211 + $0x178] sm:$0xff]
      %v270 = vld [vmem:[%s211 + $0x180] sm:$0xff]
      %v271 = vld [vmem:[%s211 + $0x188] sm:$0xff]
      %v272 = vld [vmem:[%s211 + $0x190] sm:$0xff]
      %v273 = vld [vmem:[%s211 + $0x198] sm:$0xff]
      %v274 = vld [vmem:[%s211 + $0x1a0] sm:$0xff]
      %v275 = vld [vmem:[%s211 + $0x1a8] sm:$0xff]
      %v276 = vld [vmem:[%s211 + $0x1b0] sm:$0xff]
      %v277 = vld [vmem:[%s211 + $0x1b8] sm:$0xff]
      %v278 = vld [vmem:[%s211 + $0x1c0] sm:$0xff]
      %v279 = vld [vmem:[%s211 + $0x1c8] sm:$0xff]
      %v280 = vld [vmem:[%s211 + $0x1d0] sm:$0xff]
      %v281 = vld [vmem:[%s211 + $0x1d8] sm:$0xff]
      %v282 = vld [vmem:[%s211 + $0x1e0] sm:$0xff]
      %v283 = vld [vmem:[%s211 + $0x1e8] sm:$0xff]
      %v284 = vld [vmem:[%s211 + $0x1f0] sm:$0xff]
      %v285 = vld [vmem:[%s211 + $0x1f8] sm:$0xff]
      %v286 = vld [vmem:[%s211 + $0x200] sm:$0xff]
      %v287 = vld [vmem:[%s211 + $0x208] sm:$0xff]
      %v288 = vld [vmem:[%s211 + $0x210] sm:$0xff]
      %v289 = vld [vmem:[%s211 + $0x218] sm:$0xff]
      %v290 = vld [vmem:[%s211 + $0x220] sm:$0xff]
      %v291 = vld [vmem:[%s211 + $0x228] sm:$0xff]
      %v292 = vld [vmem:[%s211 + $0x230] sm:$0xff]
      %v293 = vld [vmem:[%s211 + $0x238] sm:$0xff]
      %v294 = vld [vmem:[%s211 + $0x240] sm:$0xff]
      %v295 = vld [vmem:[%s211 + $0x248] sm:$0xff]
      %v296 = vld [vmem:[%s211 + $0x250] sm:$0xff]
      %v297 = vld [vmem:[%s211 + $0x258] sm:$0xff]
      %v298 = vld [vmem:[%s211 + $0x260] sm:$0xff]
      %v299 = vld [vmem:[%s211 + $0x268] sm:$0xff]
      %v300 = vld [vmem:[%s211 + $0x270] sm:$0xff]
      %v301 = vld [vmem:[%s211 + $0x278] sm:$0xff]
      %v302 = vld [vmem:[%s211 + $0x280] sm:$0xff]
      %v303 = vld [vmem:[%s211 + $0x288] sm:$0xff]
      %v304 = vld [vmem:[%s211 + $0x290] sm:$0xff]
      %v305 = vld [vmem:[%s211 + $0x298] sm:$0xff]
      %v306 = vld [vmem:[%s211 + $0x2a0] sm:$0xff]
      %v307 = vld [vmem:[%s211 + $0x2a8] sm:$0xff]
      %v308 = vld [vmem:[%s211 + $0x2b0] sm:$0xff]
      %v309 = vld [vmem:[%s211 + $0x2b8] sm:$0xff]
      %v310 = vld [vmem:[%s211 + $0x2c0] sm:$0xff]
      %v311 = vld [vmem:[%s211 + $0x2c8] sm:$0xff]
      %v312 = vld [vmem:[%s211 + $0x2d0] sm:$0xff]
      %v313 = vld [vmem:[%s211 + $0x2d8] sm:$0xff]
      %v314 = vld [vmem:[%s211 + $0x2e0] sm:$0xff]
      %v315 = vld [vmem:[%s211 + $0x2e8] sm:$0xff]
      %v316 = vld [vmem:[%s211 + $0x2f0] sm:$0xff]
      %v317 = vld [vmem:[%s211 + $0x2f8] sm:$0xff]
      %v318 = vld [vmem:[%s211 + $0x300] sm:$0xff]
      %v319 = vld [vmem:[%s211 + $0x308] sm:$0xff]
      %v320 = vld [vmem:[%s211 + $0x310] sm:$0xff]
      %v321 = vld [vmem:[%s211 + $0x318] sm:$0xff]
      %v322 = vld [vmem:[%s211 + $0x320] sm:$0xff]
      %v323 = vld [vmem:[%s211 + $0x328] sm:$0xff]
      %v324 = vld [vmem:[%s211 + $0x330] sm:$0xff]
      %v325 = vld [vmem:[%s211 + $0x338] sm:$0xff]
      %v326 = vld [vmem:[%s211 + $0x340] sm:$0xff]
      %v327 = vld [vmem:[%s211 + $0x348] sm:$0xff]
      %v328 = vld [vmem:[%s211 + $0x350] sm:$0xff]
      %v329 = vld [vmem:[%s211 + $0x358] sm:$0xff]
      %v330 = vld [vmem:[%s211 + $0x360] sm:$0xff]
      %v331 = vld [vmem:[%s211 + $0x368] sm:$0xff]
      %v332 = vld [vmem:[%s211 + $0x370] sm:$0xff]
      %v333 = vld [vmem:[%s211 + $0x378] sm:$0xff]
      %v334 = vld [vmem:[%s211 + $0x380] sm:$0xff]
      %v335 = vld [vmem:[%s211 + $0x388] sm:$0xff]
      %v336 = vld [vmem:[%s211 + $0x390] sm:$0xff]
      %v337 = vld [vmem:[%s211 + $0x398] sm:$0xff]
      %v338 = vld [vmem:[%s211 + $0x3a0] sm:$0xff]
      %v339 = vld [vmem:[%s211 + $0x3a8] sm:$0xff]
      %v340 = vld [vmem:[%s211 + $0x3b0] sm:$0xff]
      %v341 = vld [vmem:[%s211 + $0x3b8] sm:$0xff]
      %v342 = vld [vmem:[%s211 + $0x3c0] sm:$0xff]
      %v343 = vld [vmem:[%s211 + $0x3c8] sm:$0xff]
      %v344 = vld [vmem:[%s211 + $0x3d0] sm:$0xff]
      %v345 = vld [vmem:[%s211 + $0x3d8] sm:$0xff]
      %v346 = vld [vmem:[%s211 + $0x3e0] sm:$0xff]
      %v347 = vld [vmem:[%s211 + $0x3e8] sm:$0xff]
      %v348 = vld [vmem:[%s211 + $0x3f0] sm:$0xff]
      %v349 = vld [vmem:[%s211 + $0x3f8] sm:$0xff]
      %v350 = vld [vmem:[%s1] sm:$0xf]
      %v351 = vld [vmem:[%s1 + $0x4] sm:$0xf]
      %v352 = vld [vmem:[%s1 + $0x8] sm:$0xf]
      %v353 = vld [vmem:[%s1 + $0xc] sm:$0xf]
      %v354 = vld [vmem:[%s1 + $0x10] sm:$0xf]
      %v355 = vld [vmem:[%s1 + $0x14] sm:$0xf]
      %v356 = vld [vmem:[%s1 + $0x18] sm:$0xf]
      %v357 = vld [vmem:[%s1 + $0x1c] sm:$0xf]
      %v358 = vld [vmem:[%s1 + $0x20] sm:$0xf]
      %v359 = vld [vmem:[%s1 + $0x24] sm:$0xf]
      %v360 = vld [vmem:[%s1 + $0x28] sm:$0xf]
      %v361 = vld [vmem:[%s1 + $0x2c] sm:$0xf]
      %v362 = vld [vmem:[%s1 + $0x30] sm:$0xf]
      %v363 = vld [vmem:[%s1 + $0x34] sm:$0xf]
      %v364 = vld [vmem:[%s1 + $0x38] sm:$0xf]
      %v365 = vld [vmem:[%s1 + $0x3c] sm:$0xf]
      %v366 = vld [vmem:[%s1 + $0x40] sm:$0xf]
      %v367 = vld [vmem:[%s1 + $0x44] sm:$0xf]
      %v368 = vld [vmem:[%s1 + $0x48] sm:$0xf]
      %v369 = vld [vmem:[%s1 + $0x4c] sm:$0xf]
      %v370 = vld [vmem:[%s1 + $0x50] sm:$0xf]
      %v371 = vld [vmem:[%s1 + $0x54] sm:$0xf]
      %v372 = vld [vmem:[%s1 + $0x58] sm:$0xf]
      %v373 = vld [vmem:[%s1 + $0x5c] sm:$0xf]
      %v374 = vld [vmem:[%s1 + $0x60] sm:$0xf]
      %v375 = vld [vmem:[%s1 + $0x64] sm:$0xf]
      %v376 = vld [vmem:[%s1 + $0x68] sm:$0xf]
      %v377 = vld [vmem:[%s1 + $0x6c] sm:$0xf]
      %v378 = vld [vmem:[%s1 + $0x70] sm:$0xf]
      %v379 = vld [vmem:[%s1 + $0x74] sm:$0xf]
      %v380 = vld [vmem:[%s1 + $0x78] sm:$0xf]
      %v381 = vld [vmem:[%s1 + $0x7c] sm:$0xf]
      %v382 = vld [vmem:[%s1 + $0x80] sm:$0xf]
      %v383 = vld [vmem:[%s1 + $0x84] sm:$0xf]
      %v384 = vld [vmem:[%s1 + $0x88] sm:$0xf]
      %v385 = vld [vmem:[%s1 + $0x8c] sm:$0xf]
      %v386 = vld [vmem:[%s1 + $0x90] sm:$0xf]
      %v387 = vld [vmem:[%s1 + $0x94] sm:$0xf]
      %v388 = vld [vmem:[%s1 + $0x98] sm:$0xf]
      %v389 = vld [vmem:[%s1 + $0x9c] sm:$0xf]
      %v390 = vld [vmem:[%s1 + $0xa0] sm:$0xf]
      %v391 = vld [vmem:[%s1 + $0xa4] sm:$0xf]
      %v392 = vld [vmem:[%s1 + $0xa8] sm:$0xf]
      %v393 = vld [vmem:[%s1 + $0xac] sm:$0xf]
      %v394 = vld [vmem:[%s1 + $0xb0] sm:$0xf]
      %v395 = vld [vmem:[%s1 + $0xb4] sm:$0xf]
      %v396 = vld [vmem:[%s1 + $0xb8] sm:$0xf]
      %v397 = vld [vmem:[%s1 + $0xbc] sm:$0xf]
      %v398 = vld [vmem:[%s1 + $0xc0] sm:$0xf]
      %v399 = vld [vmem:[%s1 + $0xc4] sm:$0xf]
      %v400 = vld [vmem:[%s1 + $0xc8] sm:$0xf]
      %v401 = vld [vmem:[%s1 + $0xcc] sm:$0xf]
      %v402 = vld [vmem:[%s1 + $0xd0] sm:$0xf]
      %v403 = vld [vmem:[%s1 + $0xd4] sm:$0xf]
      %v404 = vld [vmem:[%s1 + $0xd8] sm:$0xf]
      %v405 = vld [vmem:[%s1 + $0xdc] sm:$0xf]
      %v406 = vld [vmem:[%s1 + $0xe0] sm:$0xf]
      %v407 = vld [vmem:[%s1 + $0xe4] sm:$0xf]
      %v408 = vld [vmem:[%s1 + $0xe8] sm:$0xf]
      %v409 = vld [vmem:[%s1 + $0xec] sm:$0xf]
      %v410 = vld [vmem:[%s1 + $0xf0] sm:$0xf]
      %v411 = vld [vmem:[%s1 + $0xf4] sm:$0xf]
      %v412 = vld [vmem:[%s1 + $0xf8] sm:$0xf]
      %v413 = vld [vmem:[%s1 + $0xfc] sm:$0xf]
      %v414 = vld [vmem:[%s1 + $0x100] sm:$0xf]
      %v415 = vld [vmem:[%s1 + $0x104] sm:$0xf]
      %v416 = vld [vmem:[%s1 + $0x108] sm:$0xf]
      %v417 = vld [vmem:[%s1 + $0x10c] sm:$0xf]
      %v418 = vld [vmem:[%s1 + $0x110] sm:$0xf]
      %v419 = vld [vmem:[%s1 + $0x114] sm:$0xf]
      %v420 = vld [vmem:[%s1 + $0x118] sm:$0xf]
      %v421 = vld [vmem:[%s1 + $0x11c] sm:$0xf]
      %v422 = vld [vmem:[%s1 + $0x120] sm:$0xf]
      %v423 = vld [vmem:[%s1 + $0x124] sm:$0xf]
      %v424 = vld [vmem:[%s1 + $0x128] sm:$0xf]
      %v425 = vld [vmem:[%s1 + $0x12c] sm:$0xf]
      %v426 = vld [vmem:[%s1 + $0x130] sm:$0xf]
      %v427 = vld [vmem:[%s1 + $0x134] sm:$0xf]
      %v428 = vld [vmem:[%s1 + $0x138] sm:$0xf]
      %v429 = vld [vmem:[%s1 + $0x13c] sm:$0xf]
      %v430 = vld [vmem:[%s1 + $0x140] sm:$0xf]
      %v431 = vld [vmem:[%s1 + $0x144] sm:$0xf]
      %v432 = vld [vmem:[%s1 + $0x148] sm:$0xf]
      %v433 = vld [vmem:[%s1 + $0x14c] sm:$0xf]
      %v434 = vld [vmem:[%s1 + $0x150] sm:$0xf]
      %v435 = vld [vmem:[%s1 + $0x154] sm:$0xf]
      %v436 = vld [vmem:[%s1 + $0x158] sm:$0xf]
      %v437 = vld [vmem:[%s1 + $0x15c] sm:$0xf]
      %v438 = vld [vmem:[%s1 + $0x160] sm:$0xf]
      %v439 = vld [vmem:[%s1 + $0x164] sm:$0xf]
      %v440 = vld [vmem:[%s1 + $0x168] sm:$0xf]
      %v441 = vld [vmem:[%s1 + $0x16c] sm:$0xf]
      %v442 = vld [vmem:[%s1 + $0x170] sm:$0xf]
      %v443 = vld [vmem:[%s1 + $0x174] sm:$0xf]
      %v444 = vld [vmem:[%s1 + $0x178] sm:$0xf]
      %v445 = vld [vmem:[%s1 + $0x17c] sm:$0xf]
      %v446 = vld [vmem:[%s1 + $0x180] sm:$0xf]
      %v447 = vld [vmem:[%s1 + $0x184] sm:$0xf]
      %v448 = vld [vmem:[%s1 + $0x188] sm:$0xf]
      %v449 = vld [vmem:[%s1 + $0x18c] sm:$0xf]
      %v450 = vld [vmem:[%s1 + $0x190] sm:$0xf]
      %v451 = vld [vmem:[%s1 + $0x194] sm:$0xf]
      %v452 = vld [vmem:[%s1 + $0x198] sm:$0xf]
      %v453 = vld [vmem:[%s1 + $0x19c] sm:$0xf]
      %v454 = vld [vmem:[%s1 + $0x1a0] sm:$0xf]
      %v455 = vld [vmem:[%s1 + $0x1a4] sm:$0xf]
      %v456 = vld [vmem:[%s1 + $0x1a8] sm:$0xf]
      %v457 = vld [vmem:[%s1 + $0x1ac] sm:$0xf]
      %v458 = vld [vmem:[%s1 + $0x1b0] sm:$0xf]
      %v459 = vld [vmem:[%s1 + $0x1b4] sm:$0xf]
      %v460 = vld [vmem:[%s1 + $0x1b8] sm:$0xf]
      %v461 = vld [vmem:[%s1 + $0x1bc] sm:$0xf]
      %v462 = vld [vmem:[%s1 + $0x1c0] sm:$0xf]
      %v463 = vld [vmem:[%s1 + $0x1c4] sm:$0xf]
      %v464 = vld [vmem:[%s1 + $0x1c8] sm:$0xf]
      %v465 = vld [vmem:[%s1 + $0x1cc] sm:$0xf]
      %v466 = vld [vmem:[%s1 + $0x1d0] sm:$0xf]
      %v467 = vld [vmem:[%s1 + $0x1d4] sm:$0xf]
      %v468 = vld [vmem:[%s1 + $0x1d8] sm:$0xf]
      %v469 = vld [vmem:[%s1 + $0x1dc] sm:$0xf]
      %v470 = vld [vmem:[%s1 + $0x1e0] sm:$0xf]
      %v471 = vld [vmem:[%s1 + $0x1e4] sm:$0xf]
      %v472 = vld [vmem:[%s1 + $0x1e8] sm:$0xf]
      %v473 = vld [vmem:[%s1 + $0x1ec] sm:$0xf]
      %v474 = vld [vmem:[%s1 + $0x1f0] sm:$0xf]
      %v475 = vld [vmem:[%s1 + $0x1f4] sm:$0xf]
      %v476 = vld [vmem:[%s1 + $0x1f8] sm:$0xf]
      %v477 = vld [vmem:[%s1 + $0x1fc] sm:$0xf]
      %v478 = vld [vmem:[%s1 + $0x200] sm:$0xf]
      %v479 = vld [vmem:[%s1 + $0x204] sm:$0xf]
      %v480 = vld [vmem:[%s1 + $0x208] sm:$0xf]
      %v481 = vld [vmem:[%s1 + $0x20c] sm:$0xf]
      %v482 = vld [vmem:[%s1 + $0x210] sm:$0xf]
      %v483 = vld [vmem:[%s1 + $0x214] sm:$0xf]
      %v484 = vld [vmem:[%s1 + $0x218] sm:$0xf]
      %v485 = vld [vmem:[%s1 + $0x21c] sm:$0xf]
      %v486 = vld [vmem:[%s1 + $0x220] sm:$0xf]
      %v487 = vld [vmem:[%s1 + $0x224] sm:$0xf]
      %v488 = vld [vmem:[%s1 + $0x228] sm:$0xf]
      %v489 = vld [vmem:[%s1 + $0x22c] sm:$0xf]
      %v490 = vld [vmem:[%s1 + $0x230] sm:$0xf]
      %v491 = vld [vmem:[%s1 + $0x234] sm:$0xf]
      %v492 = vld [vmem:[%s1 + $0x238] sm:$0xf]
      %v493 = vld [vmem:[%s1 + $0x23c] sm:$0xf]
      %v494 = vld [vmem:[%s1 + $0x240] sm:$0xf]
      %v495 = vld [vmem:[%s1 + $0x244] sm:$0xf]
      %v496 = vld [vmem:[%s1 + $0x248] sm:$0xf]
      %v497 = vld [vmem:[%s1 + $0x24c] sm:$0xf]
      %v498 = vld [vmem:[%s1 + $0x250] sm:$0xf]
      %v499 = vld [vmem:[%s1 + $0x254] sm:$0xf]
      %v500 = vld [vmem:[%s1 + $0x258] sm:$0xf]
      %v501 = vld [vmem:[%s1 + $0x25c] sm:$0xf]
      %v502 = vld [vmem:[%s1 + $0x260] sm:$0xf]
      %v503 = vld [vmem:[%s1 + $0x264] sm:$0xf]
      %v504 = vld [vmem:[%s1 + $0x268] sm:$0xf]
      %v505 = vld [vmem:[%s1 + $0x26c] sm:$0xf]
      %v506 = vld [vmem:[%s1 + $0x270] sm:$0xf]
      %v507 = vld [vmem:[%s1 + $0x274] sm:$0xf]
      %v508 = vld [vmem:[%s1 + $0x278] sm:$0xf]
      %v509 = vld [vmem:[%s1 + $0x27c] sm:$0xf]
      %v510 = vld [vmem:[%s1 + $0x280] sm:$0xf]
      %v511 = vld [vmem:[%s1 + $0x284] sm:$0xf]
      %v512 = vld [vmem:[%s1 + $0x288] sm:$0xf]
      %v513 = vld [vmem:[%s1 + $0x28c] sm:$0xf]
      %v514 = vld [vmem:[%s1 + $0x290] sm:$0xf]
      %v515 = vld [vmem:[%s1 + $0x294] sm:$0xf]
      %v516 = vld [vmem:[%s1 + $0x298] sm:$0xf]
      %v517 = vld [vmem:[%s1 + $0x29c] sm:$0xf]
      %v518 = vld [vmem:[%s1 + $0x2a0] sm:$0xf]
      %v519 = vld [vmem:[%s1 + $0x2a4] sm:$0xf]
      %v520 = vld [vmem:[%s1 + $0x2a8] sm:$0xf]
      %v521 = vld [vmem:[%s1 + $0x2ac] sm:$0xf]
      %v522 = vld [vmem:[%s1 + $0x2b0] sm:$0xf]
      %v523 = vld [vmem:[%s1 + $0x2b4] sm:$0xf]
      %v524 = vld [vmem:[%s1 + $0x2b8] sm:$0xf]
      %v525 = vld [vmem:[%s1 + $0x2bc] sm:$0xf]
      %v526 = vld [vmem:[%s1 + $0x2c0] sm:$0xf]
      %v527 = vld [vmem:[%s1 + $0x2c4] sm:$0xf]
      %v528 = vld [vmem:[%s1 + $0x2c8] sm:$0xf]
      %v529 = vld [vmem:[%s1 + $0x2cc] sm:$0xf]
      %v530 = vld [vmem:[%s1 + $0x2d0] sm:$0xf]
      %v531 = vld [vmem:[%s1 + $0x2d4] sm:$0xf]
      %v532 = vld [vmem:[%s1 + $0x2d8] sm:$0xf]
      %v533 = vld [vmem:[%s1 + $0x2dc] sm:$0xf]
      %v534 = vld [vmem:[%s1 + $0x2e0] sm:$0xf]
      %v535 = vld [vmem:[%s1 + $0x2e4] sm:$0xf]
      %v536 = vld [vmem:[%s1 + $0x2e8] sm:$0xf]
      %v537 = vld [vmem:[%s1 + $0x2ec] sm:$0xf]
      %v538 = vld [vmem:[%s1 + $0x2f0] sm:$0xf]
      %v539 = vld [vmem:[%s1 + $0x2f4] sm:$0xf]
      %v540 = vld [vmem:[%s1 + $0x2f8] sm:$0xf]
      %v541 = vld [vmem:[%s1 + $0x2fc] sm:$0xf]
      %v542 = vld [vmem:[%s1 + $0x300] sm:$0xf]
      %v543 = vld [vmem:[%s1 + $0x304] sm:$0xf]
      %v544 = vld [vmem:[%s1 + $0x308] sm:$0xf]
      %v545 = vld [vmem:[%s1 + $0x30c] sm:$0xf]
      %v546 = vld [vmem:[%s1 + $0x310] sm:$0xf]
      %v547 = vld [vmem:[%s1 + $0x314] sm:$0xf]
      %v548 = vld [vmem:[%s1 + $0x318] sm:$0xf]
      %v549 = vld [vmem:[%s1 + $0x31c] sm:$0xf]
      %v550 = vld [vmem:[%s1 + $0x320] sm:$0xf]
      %v551 = vld [vmem:[%s1 + $0x324] sm:$0xf]
      %v552 = vld [vmem:[%s1 + $0x328] sm:$0xf]
      %v553 = vld [vmem:[%s1 + $0x32c] sm:$0xf]
      %v554 = vld [vmem:[%s1 + $0x330] sm:$0xf]
      %v555 = vld [vmem:[%s1 + $0x334] sm:$0xf]
      %v556 = vld [vmem:[%s1 + $0x338] sm:$0xf]
      %v557 = vld [vmem:[%s1 + $0x33c] sm:$0xf]
      %v558 = vld [vmem:[%s1 + $0x340] sm:$0xf]
      %v559 = vld [vmem:[%s1 + $0x344] sm:$0xf]
      %v560 = vld [vmem:[%s1 + $0x348] sm:$0xf]
      %v561 = vld [vmem:[%s1 + $0x34c] sm:$0xf]
      %v562 = vld [vmem:[%s1 + $0x350] sm:$0xf]
      %v563 = vld [vmem:[%s1 + $0x354] sm:$0xf]
      %v564 = vld [vmem:[%s1 + $0x358] sm:$0xf]
      %v565 = vld [vmem:[%s1 + $0x35c] sm:$0xf]
      %v566 = vld [vmem:[%s1 + $0x360] sm:$0xf]
      %v567 = vld [vmem:[%s1 + $0x364] sm:$0xf]
      %v568 = vld [vmem:[%s1 + $0x368] sm:$0xf]
      %v569 = vld [vmem:[%s1 + $0x36c] sm:$0xf]
      %v570 = vld [vmem:[%s1 + $0x370] sm:$0xf]
      %v571 = vld [vmem:[%s1 + $0x374] sm:$0xf]
      %v572 = vld [vmem:[%s1 + $0x378] sm:$0xf]
      %v573 = vld [vmem:[%s1 + $0x37c] sm:$0xf]
      %v574 = vld [vmem:[%s1 + $0x380] sm:$0xf]
      %v575 = vld [vmem:[%s1 + $0x384] sm:$0xf]
      %v576 = vld [vmem:[%s1 + $0x388] sm:$0xf]
      %v577 = vld [vmem:[%s1 + $0x38c] sm:$0xf]
      %v578 = vld [vmem:[%s1 + $0x390] sm:$0xf]
      %v579 = vld [vmem:[%s1 + $0x394] sm:$0xf]
      %v580 = vld [vmem:[%s1 + $0x398] sm:$0xf]
      %v581 = vld [vmem:[%s1 + $0x39c] sm:$0xf]
      %v582 = vld [vmem:[%s1 + $0x3a0] sm:$0xf]
      %v583 = vld [vmem:[%s1 + $0x3a4] sm:$0xf]
      %v584 = vld [vmem:[%s1 + $0x3a8] sm:$0xf]
      %v585 = vld [vmem:[%s1 + $0x3ac] sm:$0xf]
      %v586 = vld [vmem:[%s1 + $0x3b0] sm:$0xf]
      %v587 = vld [vmem:[%s1 + $0x3b4] sm:$0xf]
      %v588 = vld [vmem:[%s1 + $0x3b8] sm:$0xf]
      %v589 = vld [vmem:[%s1 + $0x3bc] sm:$0xf]
      %v590 = vld [vmem:[%s1 + $0x3c0] sm:$0xf]
      %v591 = vld [vmem:[%s1 + $0x3c4] sm:$0xf]
      %v592 = vld [vmem:[%s1 + $0x3c8] sm:$0xf]
      %v593 = vld [vmem:[%s1 + $0x3cc] sm:$0xf]
      %v594 = vld [vmem:[%s1 + $0x3d0] sm:$0xf]
      %v595 = vld [vmem:[%s1 + $0x3d4] sm:$0xf]
      %v596 = vld [vmem:[%s1 + $0x3d8] sm:$0xf]
      %v597 = vld [vmem:[%s1 + $0x3dc] sm:$0xf]
      %v598 = vld [vmem:[%s1 + $0x3e0] sm:$0xf]
      %v599 = vld [vmem:[%s1 + $0x3e4] sm:$0xf]
      %v600 = vld [vmem:[%s1 + $0x3e8] sm:$0xf]
      %v601 = vld [vmem:[%s1 + $0x3ec] sm:$0xf]
      %v602 = vld [vmem:[%s1 + $0x3f0] sm:$0xf]
      %v603 = vld [vmem:[%s1 + $0x3f4] sm:$0xf]
      %v604 = vld [vmem:[%s1 + $0x3f8] sm:$0xf]
      %v605 = vld [vmem:[%s1 + $0x3fc] sm:$0xf]
      %v734 = vunpack.c.l.b16 %v222
      %v735 = vunpack.c.h.b16 %v222
      %v736 = vunpack.c.l.b16 %v223
      %v737 = vunpack.c.h.b16 %v223
      %v738 = vunpack.c.l.b16 %v224
      %v739 = vunpack.c.h.b16 %v224
      %v740 = vunpack.c.l.b16 %v225
      %v741 = vunpack.c.h.b16 %v225
      %v742 = vunpack.c.l.b16 %v226
      %v743 = vunpack.c.h.b16 %v226
      %v744 = vunpack.c.l.b16 %v227
      %v745 = vunpack.c.h.b16 %v227
      %v746 = vunpack.c.l.b16 %v228
      %v747 = vunpack.c.h.b16 %v228
      %v748 = vunpack.c.l.b16 %v229
      %v749 = vunpack.c.h.b16 %v229
      %v750 = vunpack.c.l.b16 %v230
      %v751 = vunpack.c.h.b16 %v230
      %v752 = vunpack.c.l.b16 %v231
      %v753 = vunpack.c.h.b16 %v231
      %v754 = vunpack.c.l.b16 %v232
      %v755 = vunpack.c.h.b16 %v232
      %v756 = vunpack.c.l.b16 %v233
      %v757 = vunpack.c.h.b16 %v233
      %v758 = vunpack.c.l.b16 %v234
      %v759 = vunpack.c.h.b16 %v234
      %v760 = vunpack.c.l.b16 %v235
      %v761 = vunpack.c.h.b16 %v235
      %v762 = vunpack.c.l.b16 %v236
      %v763 = vunpack.c.h.b16 %v236
      %v764 = vunpack.c.l.b16 %v237
      %v765 = vunpack.c.h.b16 %v237
      %v766 = vunpack.c.l.b16 %v238
      %v767 = vunpack.c.h.b16 %v238
      %v768 = vunpack.c.l.b16 %v239
      %v769 = vunpack.c.h.b16 %v239
      %v770 = vunpack.c.l.b16 %v240
      %v771 = vunpack.c.h.b16 %v240
      %v772 = vunpack.c.l.b16 %v241
      %v773 = vunpack.c.h.b16 %v241
      %v774 = vunpack.c.l.b16 %v242
      %v775 = vunpack.c.h.b16 %v242
      %v776 = vunpack.c.l.b16 %v243
      %v777 = vunpack.c.h.b16 %v243
      %v778 = vunpack.c.l.b16 %v244
      %v779 = vunpack.c.h.b16 %v244
      %v780 = vunpack.c.l.b16 %v245
      %v781 = vunpack.c.h.b16 %v245
      %v782 = vunpack.c.l.b16 %v246
      %v783 = vunpack.c.h.b16 %v246
      %v784 = vunpack.c.l.b16 %v247
      %v785 = vunpack.c.h.b16 %v247
      %v786 = vunpack.c.l.b16 %v248
      %v787 = vunpack.c.h.b16 %v248
      %v788 = vunpack.c.l.b16 %v249
      %v789 = vunpack.c.h.b16 %v249
      %v790 = vunpack.c.l.b16 %v250
      %v791 = vunpack.c.h.b16 %v250
      %v792 = vunpack.c.l.b16 %v251
      %v793 = vunpack.c.h.b16 %v251
      %v794 = vunpack.c.l.b16 %v252
      %v795 = vunpack.c.h.b16 %v252
      %v796 = vunpack.c.l.b16 %v253
      %v797 = vunpack.c.h.b16 %v253
      %v798 = vunpack.c.l.b16 %v254
      %v799 = vunpack.c.h.b16 %v254
      %v800 = vunpack.c.l.b16 %v255
      %v801 = vunpack.c.h.b16 %v255
      %v802 = vunpack.c.l.b16 %v256
      %v803 = vunpack.c.h.b16 %v256
      %v804 = vunpack.c.l.b16 %v257
      %v805 = vunpack.c.h.b16 %v257
      %v806 = vunpack.c.l.b16 %v258
      %v807 = vunpack.c.h.b16 %v258
      %v808 = vunpack.c.l.b16 %v259
      %v809 = vunpack.c.h.b16 %v259
      %v810 = vunpack.c.l.b16 %v260
      %v811 = vunpack.c.h.b16 %v260
      %v812 = vunpack.c.l.b16 %v261
      %v813 = vunpack.c.h.b16 %v261
      %v814 = vunpack.c.l.b16 %v262
      %v815 = vunpack.c.h.b16 %v262
      %v816 = vunpack.c.l.b16 %v263
      %v817 = vunpack.c.h.b16 %v263
      %v818 = vunpack.c.l.b16 %v264
      %v819 = vunpack.c.h.b16 %v264
      %v820 = vunpack.c.l.b16 %v265
      %v821 = vunpack.c.h.b16 %v265
      %v822 = vunpack.c.l.b16 %v266
      %v823 = vunpack.c.h.b16 %v266
      %v824 = vunpack.c.l.b16 %v267
      %v825 = vunpack.c.h.b16 %v267
      %v826 = vunpack.c.l.b16 %v268
      %v827 = vunpack.c.h.b16 %v268
      %v828 = vunpack.c.l.b16 %v269
      %v829 = vunpack.c.h.b16 %v269
      %v830 = vunpack.c.l.b16 %v270
      %v831 = vunpack.c.h.b16 %v270
      %v832 = vunpack.c.l.b16 %v271
      %v833 = vunpack.c.h.b16 %v271
      %v834 = vunpack.c.l.b16 %v272
      %v835 = vunpack.c.h.b16 %v272
      %v836 = vunpack.c.l.b16 %v273
      %v837 = vunpack.c.h.b16 %v273
      %v838 = vunpack.c.l.b16 %v274
      %v839 = vunpack.c.h.b16 %v274
      %v840 = vunpack.c.l.b16 %v275
      %v841 = vunpack.c.h.b16 %v275
      %v842 = vunpack.c.l.b16 %v276
      %v843 = vunpack.c.h.b16 %v276
      %v844 = vunpack.c.l.b16 %v277
      %v845 = vunpack.c.h.b16 %v277
      %v846 = vunpack.c.l.b16 %v278
      %v847 = vunpack.c.h.b16 %v278
      %v848 = vunpack.c.l.b16 %v279
      %v849 = vunpack.c.h.b16 %v279
      %v850 = vunpack.c.l.b16 %v280
      %v851 = vunpack.c.h.b16 %v280
      %v852 = vunpack.c.l.b16 %v281
      %v853 = vunpack.c.h.b16 %v281
      %v854 = vunpack.c.l.b16 %v282
      %v855 = vunpack.c.h.b16 %v282
      %v856 = vunpack.c.l.b16 %v283
      %v857 = vunpack.c.h.b16 %v283
      %v858 = vunpack.c.l.b16 %v284
      %v859 = vunpack.c.h.b16 %v284
      %v860 = vunpack.c.l.b16 %v285
      %v861 = vunpack.c.h.b16 %v285
      %v862 = vunpack.c.l.b16 %v286
      %v863 = vunpack.c.h.b16 %v286
      %v864 = vunpack.c.l.b16 %v287
      %v865 = vunpack.c.h.b16 %v287
      %v866 = vunpack.c.l.b16 %v288
      %v867 = vunpack.c.h.b16 %v288
      %v868 = vunpack.c.l.b16 %v289
      %v869 = vunpack.c.h.b16 %v289
      %v870 = vunpack.c.l.b16 %v290
      %v871 = vunpack.c.h.b16 %v290
      %v872 = vunpack.c.l.b16 %v291
      %v873 = vunpack.c.h.b16 %v291
      %v874 = vunpack.c.l.b16 %v292
      %v875 = vunpack.c.h.b16 %v292
      %v876 = vunpack.c.l.b16 %v293
      %v877 = vunpack.c.h.b16 %v293
      %v878 = vunpack.c.l.b16 %v294
      %v879 = vunpack.c.h.b16 %v294
      %v880 = vunpack.c.l.b16 %v295
      %v881 = vunpack.c.h.b16 %v295
      %v882 = vunpack.c.l.b16 %v296
      %v883 = vunpack.c.h.b16 %v296
      %v884 = vunpack.c.l.b16 %v297
      %v885 = vunpack.c.h.b16 %v297
      %v886 = vunpack.c.l.b16 %v298
      %v887 = vunpack.c.h.b16 %v298
      %v888 = vunpack.c.l.b16 %v299
      %v889 = vunpack.c.h.b16 %v299
      %v890 = vunpack.c.l.b16 %v300
      %v891 = vunpack.c.h.b16 %v300
      %v892 = vunpack.c.l.b16 %v301
      %v893 = vunpack.c.h.b16 %v301
      %v894 = vunpack.c.l.b16 %v302
      %v895 = vunpack.c.h.b16 %v302
      %v896 = vunpack.c.l.b16 %v303
      %v897 = vunpack.c.h.b16 %v303
      %v898 = vunpack.c.l.b16 %v304
      %v899 = vunpack.c.h.b16 %v304
      %v900 = vunpack.c.l.b16 %v305
      %v901 = vunpack.c.h.b16 %v305
      %v902 = vunpack.c.l.b16 %v306
      %v903 = vunpack.c.h.b16 %v306
      %v904 = vunpack.c.l.b16 %v307
      %v905 = vunpack.c.h.b16 %v307
      %v906 = vunpack.c.l.b16 %v308
      %v907 = vunpack.c.h.b16 %v308
      %v908 = vunpack.c.l.b16 %v309
      %v909 = vunpack.c.h.b16 %v309
      %v910 = vunpack.c.l.b16 %v310
      %v911 = vunpack.c.h.b16 %v310
      %v912 = vunpack.c.l.b16 %v311
      %v913 = vunpack.c.h.b16 %v311
      %v914 = vunpack.c.l.b16 %v312
      %v915 = vunpack.c.h.b16 %v312
      %v916 = vunpack.c.l.b16 %v313
      %v917 = vunpack.c.h.b16 %v313
      %v918 = vunpack.c.l.b16 %v314
      %v919 = vunpack.c.h.b16 %v314
      %v920 = vunpack.c.l.b16 %v315
      %v921 = vunpack.c.h.b16 %v315
      %v922 = vunpack.c.l.b16 %v316
      %v923 = vunpack.c.h.b16 %v316
      %v924 = vunpack.c.l.b16 %v317
      %v925 = vunpack.c.h.b16 %v317
      %v926 = vunpack.c.l.b16 %v318
      %v927 = vunpack.c.h.b16 %v318
      %v928 = vunpack.c.l.b16 %v319
      %v929 = vunpack.c.h.b16 %v319
      %v930 = vunpack.c.l.b16 %v320
      %v931 = vunpack.c.h.b16 %v320
      %v932 = vunpack.c.l.b16 %v321
      %v933 = vunpack.c.h.b16 %v321
      %v934 = vunpack.c.l.b16 %v322
      %v935 = vunpack.c.h.b16 %v322
      %v936 = vunpack.c.l.b16 %v323
      %v937 = vunpack.c.h.b16 %v323
      %v938 = vunpack.c.l.b16 %v324
      %v939 = vunpack.c.h.b16 %v324
      %v940 = vunpack.c.l.b16 %v325
      %v941 = vunpack.c.h.b16 %v325
      %v942 = vunpack.c.l.b16 %v326
      %v943 = vunpack.c.h.b16 %v326
      %v944 = vunpack.c.l.b16 %v327
      %v945 = vunpack.c.h.b16 %v327
      %v946 = vunpack.c.l.b16 %v328
      %v947 = vunpack.c.h.b16 %v328
      %v948 = vunpack.c.l.b16 %v329
      %v949 = vunpack.c.h.b16 %v329
      %v950 = vunpack.c.l.b16 %v330
      %v951 = vunpack.c.h.b16 %v330
      %v952 = vunpack.c.l.b16 %v331
      %v953 = vunpack.c.h.b16 %v331
      %v954 = vunpack.c.l.b16 %v332
      %v955 = vunpack.c.h.b16 %v332
      %v956 = vunpack.c.l.b16 %v333
      %v957 = vunpack.c.h.b16 %v333
      %v958 = vunpack.c.l.b16 %v334
      %v959 = vunpack.c.h.b16 %v334
      %v960 = vunpack.c.l.b16 %v335
      %v961 = vunpack.c.h.b16 %v335
      %v962 = vunpack.c.l.b16 %v336
      %v963 = vunpack.c.h.b16 %v336
      %v964 = vunpack.c.l.b16 %v337
      %v965 = vunpack.c.h.b16 %v337
      %v966 = vunpack.c.l.b16 %v338
      %v967 = vunpack.c.h.b16 %v338
      %v968 = vunpack.c.l.b16 %v339
      %v969 = vunpack.c.h.b16 %v339
      %v970 = vunpack.c.l.b16 %v340
      %v971 = vunpack.c.h.b16 %v340
      %v972 = vunpack.c.l.b16 %v341
      %v973 = vunpack.c.h.b16 %v341
      %v974 = vunpack.c.l.b16 %v342
      %v975 = vunpack.c.h.b16 %v342
      %v976 = vunpack.c.l.b16 %v343
      %v977 = vunpack.c.h.b16 %v343
      %v978 = vunpack.c.l.b16 %v344
      %v979 = vunpack.c.h.b16 %v344
      %v980 = vunpack.c.l.b16 %v345
      %v981 = vunpack.c.h.b16 %v345
      %v982 = vunpack.c.l.b16 %v346
      %v983 = vunpack.c.h.b16 %v346
      %v984 = vunpack.c.l.b16 %v347
      %v985 = vunpack.c.h.b16 %v347
      %v986 = vunpack.c.l.b16 %v348
      %v987 = vunpack.c.h.b16 %v348
      %v988 = vunpack.c.l.b16 %v349
      %v989 = vunpack.c.h.b16 %v349
      %v990 = vpack.c.b16 %v750, %v734
      %v991 = vpack.c.b16 %v751, %v735
      %v992 = vpack.c.b16 %v752, %v736
      %v993 = vpack.c.b16 %v753, %v737
      %v994 = vpack.c.b16 %v754, %v738
      %v995 = vpack.c.b16 %v755, %v739
      %v996 = vpack.c.b16 %v756, %v740
      %v997 = vpack.c.b16 %v757, %v741
      %v998 = vpack.c.b16 %v758, %v742
      %v999 = vpack.c.b16 %v759, %v743
      %v1000 = vpack.c.b16 %v760, %v744
      %v1001 = vpack.c.b16 %v761, %v745
      %v1002 = vpack.c.b16 %v762, %v746
      %v1003 = vpack.c.b16 %v763, %v747
      %v1004 = vpack.c.b16 %v764, %v748
      %v1005 = vpack.c.b16 %v765, %v749
      %v1006 = vpack.c.b16 %v782, %v766
      %v1007 = vpack.c.b16 %v783, %v767
      %v1008 = vpack.c.b16 %v784, %v768
      %v1009 = vpack.c.b16 %v785, %v769
      %v1010 = vpack.c.b16 %v786, %v770
      %v1011 = vpack.c.b16 %v787, %v771
      %v1012 = vpack.c.b16 %v788, %v772
      %v1013 = vpack.c.b16 %v789, %v773
      %v1014 = vpack.c.b16 %v790, %v774
      %v1015 = vpack.c.b16 %v791, %v775
      %v1016 = vpack.c.b16 %v792, %v776
      %v1017 = vpack.c.b16 %v793, %v777
      %v1018 = vpack.c.b16 %v794, %v778
      %v1019 = vpack.c.b16 %v795, %v779
      %v1020 = vpack.c.b16 %v796, %v780
      %v1021 = vpack.c.b16 %v797, %v781
      %v1022 = vpack.c.b16 %v814, %v798
      %v1023 = vpack.c.b16 %v815, %v799
      %v1024 = vpack.c.b16 %v816, %v800
      %v1025 = vpack.c.b16 %v817, %v801
      %v1026 = vpack.c.b16 %v818, %v802
      %v1027 = vpack.c.b16 %v819, %v803
      %v1028 = vpack.c.b16 %v820, %v804
      %v1029 = vpack.c.b16 %v821, %v805
      %v1030 = vpack.c.b16 %v822, %v806
      %v1031 = vpack.c.b16 %v823, %v807
      %v1032 = vpack.c.b16 %v824, %v808
      %v1033 = vpack.c.b16 %v825, %v809
      %v1034 = vpack.c.b16 %v826, %v810
      %v1035 = vpack.c.b16 %v827, %v811
      %v1036 = vpack.c.b16 %v828, %v812
      %v1037 = vpack.c.b16 %v829, %v813
      %v1038 = vpack.c.b16 %v846, %v830
      %v1039 = vpack.c.b16 %v847, %v831
      %v1040 = vpack.c.b16 %v848, %v832
      %v1041 = vpack.c.b16 %v849, %v833
      %v1042 = vpack.c.b16 %v850, %v834
      %v1043 = vpack.c.b16 %v851, %v835
      %v1044 = vpack.c.b16 %v852, %v836
      %v1045 = vpack.c.b16 %v853, %v837
      %v1046 = vpack.c.b16 %v854, %v838
      %v1047 = vpack.c.b16 %v855, %v839
      %v1048 = vpack.c.b16 %v856, %v840
      %v1049 = vpack.c.b16 %v857, %v841
      %v1050 = vpack.c.b16 %v858, %v842
      %v1051 = vpack.c.b16 %v859, %v843
      %v1052 = vpack.c.b16 %v860, %v844
      %v1053 = vpack.c.b16 %v861, %v845
      %v1054 = vpack.c.b16 %v878, %v862
      %v1055 = vpack.c.b16 %v879, %v863
      %v1056 = vpack.c.b16 %v880, %v864
      %v1057 = vpack.c.b16 %v881, %v865
      %v1058 = vpack.c.b16 %v882, %v866
      %v1059 = vpack.c.b16 %v883, %v867
      %v1060 = vpack.c.b16 %v884, %v868
      %v1061 = vpack.c.b16 %v885, %v869
      %v1062 = vpack.c.b16 %v886, %v870
      %v1063 = vpack.c.b16 %v887, %v871
      %v1064 = vpack.c.b16 %v888, %v872
      %v1065 = vpack.c.b16 %v889, %v873
      %v1066 = vpack.c.b16 %v890, %v874
      %v1067 = vpack.c.b16 %v891, %v875
      %v1068 = vpack.c.b16 %v892, %v876
      %v1069 = vpack.c.b16 %v893, %v877
      %v1070 = vpack.c.b16 %v910, %v894
      %v1071 = vpack.c.b16 %v911, %v895
      %v1072 = vpack.c.b16 %v912, %v896
      %v1073 = vpack.c.b16 %v913, %v897
      %v1074 = vpack.c.b16 %v914, %v898
      %v1075 = vpack.c.b16 %v915, %v899
      %v1076 = vpack.c.b16 %v916, %v900
      %v1077 = vpack.c.b16 %v917, %v901
      %v1078 = vpack.c.b16 %v918, %v902
      %v1079 = vpack.c.b16 %v919, %v903
      %v1080 = vpack.c.b16 %v920, %v904
      %v1081 = vpack.c.b16 %v921, %v905
      %v1082 = vpack.c.b16 %v922, %v906
      %v1083 = vpack.c.b16 %v923, %v907
      %v1084 = vpack.c.b16 %v924, %v908
      %v1085 = vpack.c.b16 %v925, %v909
      %v1086 = vpack.c.b16 %v942, %v926
      %v1087 = vpack.c.b16 %v943, %v927
      %v1088 = vpack.c.b16 %v944, %v928
      %v1089 = vpack.c.b16 %v945, %v929
      %v1090 = vpack.c.b16 %v946, %v930
      %v1091 = vpack.c.b16 %v947, %v931
      %v1092 = vpack.c.b16 %v948, %v932
      %v1093 = vpack.c.b16 %v949, %v933
      %v1094 = vpack.c.b16 %v950, %v934
      %v1095 = vpack.c.b16 %v951, %v935
      %v1096 = vpack.c.b16 %v952, %v936
      %v1097 = vpack.c.b16 %v953, %v937
      %v1098 = vpack.c.b16 %v954, %v938
      %v1099 = vpack.c.b16 %v955, %v939
      %v1100 = vpack.c.b16 %v956, %v940
      %v1101 = vpack.c.b16 %v957, %v941
      %v1102 = vpack.c.b16 %v974, %v958
      %v1103 = vpack.c.b16 %v975, %v959
      %v1104 = vpack.c.b16 %v976, %v960
      %v1105 = vpack.c.b16 %v977, %v961
      %v1106 = vpack.c.b16 %v978, %v962
      %v1107 = vpack.c.b16 %v979, %v963
      %v1108 = vpack.c.b16 %v980, %v964
      %v1109 = vpack.c.b16 %v981, %v965
      %v1110 = vpack.c.b16 %v982, %v966
      %v1111 = vpack.c.b16 %v983, %v967
      %v1112 = vpack.c.b16 %v984, %v968
      %v1113 = vpack.c.b16 %v985, %v969
      %v1114 = vpack.c.b16 %v986, %v970
      %v1115 = vpack.c.b16 %v987, %v971
      %v1116 = vpack.c.b16 %v988, %v972
      %v1117 = vpack.c.b16 %v989, %v973
      %v1502 = vunpack.c.l.b16 %v350
      %v1503 = vunpack.c.l.b16 %v351
      %v1504 = vunpack.c.l.b16 %v352
      %v1505 = vunpack.c.l.b16 %v353
      %v1506 = vunpack.c.l.b16 %v354
      %v1507 = vunpack.c.l.b16 %v355
      %v1508 = vunpack.c.l.b16 %v356
      %v1509 = vunpack.c.l.b16 %v357
      %v1510 = vunpack.c.l.b16 %v358
      %v1511 = vunpack.c.l.b16 %v359
      %v1512 = vunpack.c.l.b16 %v360
      %v1513 = vunpack.c.l.b16 %v361
      %v1514 = vunpack.c.l.b16 %v362
      %v1515 = vunpack.c.l.b16 %v363
      %v1516 = vunpack.c.l.b16 %v364
      %v1517 = vunpack.c.l.b16 %v365
      %v1518 = vunpack.c.l.b16 %v366
      %v1519 = vunpack.c.l.b16 %v367
      %v1520 = vunpack.c.l.b16 %v368
      %v1521 = vunpack.c.l.b16 %v369
      %v1522 = vunpack.c.l.b16 %v370
      %v1523 = vunpack.c.l.b16 %v371
      %v1524 = vunpack.c.l.b16 %v372
      %v1525 = vunpack.c.l.b16 %v373
      %v1526 = vunpack.c.l.b16 %v374
      %v1527 = vunpack.c.l.b16 %v375
      %v1528 = vunpack.c.l.b16 %v376
      %v1529 = vunpack.c.l.b16 %v377
      %v1530 = vunpack.c.l.b16 %v378
      %v1531 = vunpack.c.l.b16 %v379
      %v1532 = vunpack.c.l.b16 %v380
      %v1533 = vunpack.c.l.b16 %v381
      %v1534 = vunpack.c.l.b16 %v382
      %v1535 = vunpack.c.l.b16 %v383
      %v1536 = vunpack.c.l.b16 %v384
      %v1537 = vunpack.c.l.b16 %v385
      %v1538 = vunpack.c.l.b16 %v386
      %v1539 = vunpack.c.l.b16 %v387
      %v1540 = vunpack.c.l.b16 %v388
      %v1541 = vunpack.c.l.b16 %v389
      %v1542 = vunpack.c.l.b16 %v390
      %v1543 = vunpack.c.l.b16 %v391
      %v1544 = vunpack.c.l.b16 %v392
      %v1545 = vunpack.c.l.b16 %v393
      %v1546 = vunpack.c.l.b16 %v394
      %v1547 = vunpack.c.l.b16 %v395
      %v1548 = vunpack.c.l.b16 %v396
      %v1549 = vunpack.c.l.b16 %v397
      %v1550 = vunpack.c.l.b16 %v398
      %v1551 = vunpack.c.l.b16 %v399
      %v1552 = vunpack.c.l.b16 %v400
      %v1553 = vunpack.c.l.b16 %v401
      %v1554 = vunpack.c.l.b16 %v402
      %v1555 = vunpack.c.l.b16 %v403
      %v1556 = vunpack.c.l.b16 %v404
      %v1557 = vunpack.c.l.b16 %v405
      %v1558 = vunpack.c.l.b16 %v406
      %v1559 = vunpack.c.l.b16 %v407
      %v1560 = vunpack.c.l.b16 %v408
      %v1561 = vunpack.c.l.b16 %v409
      %v1562 = vunpack.c.l.b16 %v410
      %v1563 = vunpack.c.l.b16 %v411
      %v1564 = vunpack.c.l.b16 %v412
      %v1565 = vunpack.c.l.b16 %v413
      %v1566 = vunpack.c.l.b16 %v414
      %v1567 = vunpack.c.l.b16 %v415
      %v1568 = vunpack.c.l.b16 %v416
      %v1569 = vunpack.c.l.b16 %v417
      %v1570 = vunpack.c.l.b16 %v418
      %v1571 = vunpack.c.l.b16 %v419
      %v1572 = vunpack.c.l.b16 %v420
      %v1573 = vunpack.c.l.b16 %v421
      %v1574 = vunpack.c.l.b16 %v422
      %v1575 = vunpack.c.l.b16 %v423
      %v1576 = vunpack.c.l.b16 %v424
      %v1577 = vunpack.c.l.b16 %v425
      %v1578 = vunpack.c.l.b16 %v426
      %v1579 = vunpack.c.l.b16 %v427
      %v1580 = vunpack.c.l.b16 %v428
      %v1581 = vunpack.c.l.b16 %v429
      %v1582 = vunpack.c.l.b16 %v430
      %v1583 = vunpack.c.l.b16 %v431
      %v1584 = vunpack.c.l.b16 %v432
      %v1585 = vunpack.c.l.b16 %v433
      %v1586 = vunpack.c.l.b16 %v434
      %v1587 = vunpack.c.l.b16 %v435
      %v1588 = vunpack.c.l.b16 %v436
      %v1589 = vunpack.c.l.b16 %v437
      %v1590 = vunpack.c.l.b16 %v438
      %v1591 = vunpack.c.l.b16 %v439
      %v1592 = vunpack.c.l.b16 %v440
      %v1593 = vunpack.c.l.b16 %v441
      %v1594 = vunpack.c.l.b16 %v442
      %v1595 = vunpack.c.l.b16 %v443
      %v1596 = vunpack.c.l.b16 %v444
      %v1597 = vunpack.c.l.b16 %v445
      %v1598 = vunpack.c.l.b16 %v446
      %v1599 = vunpack.c.l.b16 %v447
      %v1600 = vunpack.c.l.b16 %v448
      %v1601 = vunpack.c.l.b16 %v449
      %v1602 = vunpack.c.l.b16 %v450
      %v1603 = vunpack.c.l.b16 %v451
      %v1604 = vunpack.c.l.b16 %v452
      %v1605 = vunpack.c.l.b16 %v453
      %v1606 = vunpack.c.l.b16 %v454
      %v1607 = vunpack.c.l.b16 %v455
      %v1608 = vunpack.c.l.b16 %v456
      %v1609 = vunpack.c.l.b16 %v457
      %v1610 = vunpack.c.l.b16 %v458
      %v1611 = vunpack.c.l.b16 %v459
      %v1612 = vunpack.c.l.b16 %v460
      %v1613 = vunpack.c.l.b16 %v461
      %v1614 = vunpack.c.l.b16 %v462
      %v1615 = vunpack.c.l.b16 %v463
      %v1616 = vunpack.c.l.b16 %v464
      %v1617 = vunpack.c.l.b16 %v465
      %v1618 = vunpack.c.l.b16 %v466
      %v1619 = vunpack.c.l.b16 %v467
      %v1620 = vunpack.c.l.b16 %v468
      %v1621 = vunpack.c.l.b16 %v469
      %v1622 = vunpack.c.l.b16 %v470
      %v1623 = vunpack.c.l.b16 %v471
      %v1624 = vunpack.c.l.b16 %v472
      %v1625 = vunpack.c.l.b16 %v473
      %v1626 = vunpack.c.l.b16 %v474
      %v1627 = vunpack.c.l.b16 %v475
      %v1628 = vunpack.c.l.b16 %v476
      %v1629 = vunpack.c.l.b16 %v477
      %v1630 = vunpack.c.l.b16 %v478
      %v1631 = vunpack.c.l.b16 %v479
      %v1632 = vunpack.c.l.b16 %v480
      %v1633 = vunpack.c.l.b16 %v481
      %v1634 = vunpack.c.l.b16 %v482
      %v1635 = vunpack.c.l.b16 %v483
      %v1636 = vunpack.c.l.b16 %v484
      %v1637 = vunpack.c.l.b16 %v485
      %v1638 = vunpack.c.l.b16 %v486
      %v1639 = vunpack.c.l.b16 %v487
      %v1640 = vunpack.c.l.b16 %v488
      %v1641 = vunpack.c.l.b16 %v489
      %v1642 = vunpack.c.l.b16 %v490
      %v1643 = vunpack.c.l.b16 %v491
      %v1644 = vunpack.c.l.b16 %v492
      %v1645 = vunpack.c.l.b16 %v493
      %v1646 = vunpack.c.l.b16 %v494
      %v1647 = vunpack.c.l.b16 %v495
      %v1648 = vunpack.c.l.b16 %v496
      %v1649 = vunpack.c.l.b16 %v497
      %v1650 = vunpack.c.l.b16 %v498
      %v1651 = vunpack.c.l.b16 %v499
      %v1652 = vunpack.c.l.b16 %v500
      %v1653 = vunpack.c.l.b16 %v501
      %v1654 = vunpack.c.l.b16 %v502
      %v1655 = vunpack.c.l.b16 %v503
      %v1656 = vunpack.c.l.b16 %v504
      %v1657 = vunpack.c.l.b16 %v505
      %v1658 = vunpack.c.l.b16 %v506
      %v1659 = vunpack.c.l.b16 %v507
      %v1660 = vunpack.c.l.b16 %v508
      %v1661 = vunpack.c.l.b16 %v509
      %v1662 = vunpack.c.l.b16 %v510
      %v1663 = vunpack.c.l.b16 %v511
      %v1664 = vunpack.c.l.b16 %v512
      %v1665 = vunpack.c.l.b16 %v513
      %v1666 = vunpack.c.l.b16 %v514
      %v1667 = vunpack.c.l.b16 %v515
      %v1668 = vunpack.c.l.b16 %v516
      %v1669 = vunpack.c.l.b16 %v517
      %v1670 = vunpack.c.l.b16 %v518
      %v1671 = vunpack.c.l.b16 %v519
      %v1672 = vunpack.c.l.b16 %v520
      %v1673 = vunpack.c.l.b16 %v521
      %v1674 = vunpack.c.l.b16 %v522
      %v1675 = vunpack.c.l.b16 %v523
      %v1676 = vunpack.c.l.b16 %v524
      %v1677 = vunpack.c.l.b16 %v525
      %v1678 = vunpack.c.l.b16 %v526
      %v1679 = vunpack.c.l.b16 %v527
      %v1680 = vunpack.c.l.b16 %v528
      %v1681 = vunpack.c.l.b16 %v529
      %v1682 = vunpack.c.l.b16 %v530
      %v1683 = vunpack.c.l.b16 %v531
      %v1684 = vunpack.c.l.b16 %v532
      %v1685 = vunpack.c.l.b16 %v533
      %v1686 = vunpack.c.l.b16 %v534
      %v1687 = vunpack.c.l.b16 %v535
      %v1688 = vunpack.c.l.b16 %v536
      %v1689 = vunpack.c.l.b16 %v537
      %v1690 = vunpack.c.l.b16 %v538
      %v1691 = vunpack.c.l.b16 %v539
      %v1692 = vunpack.c.l.b16 %v540
      %v1693 = vunpack.c.l.b16 %v541
      %v1694 = vunpack.c.l.b16 %v542
      %v1695 = vunpack.c.l.b16 %v543
      %v1696 = vunpack.c.l.b16 %v544
      %v1697 = vunpack.c.l.b16 %v545
      %v1698 = vunpack.c.l.b16 %v546
      %v1699 = vunpack.c.l.b16 %v547
      %v1700 = vunpack.c.l.b16 %v548
      %v1701 = vunpack.c.l.b16 %v549
      %v1702 = vunpack.c.l.b16 %v550
      %v1703 = vunpack.c.l.b16 %v551
      %v1704 = vunpack.c.l.b16 %v552
      %v1705 = vunpack.c.l.b16 %v553
      %v1706 = vunpack.c.l.b16 %v554
      %v1707 = vunpack.c.l.b16 %v555
      %v1708 = vunpack.c.l.b16 %v556
      %v1709 = vunpack.c.l.b16 %v557
      %v1710 = vunpack.c.l.b16 %v558
      %v1711 = vunpack.c.l.b16 %v559
      %v1712 = vunpack.c.l.b16 %v560
      %v1713 = vunpack.c.l.b16 %v561
      %v1714 = vunpack.c.l.b16 %v562
      %v1715 = vunpack.c.l.b16 %v563
      %v1716 = vunpack.c.l.b16 %v564
      %v1717 = vunpack.c.l.b16 %v565
      %v1718 = vunpack.c.l.b16 %v566
      %v1719 = vunpack.c.l.b16 %v567
      %v1720 = vunpack.c.l.b16 %v568
      %v1721 = vunpack.c.l.b16 %v569
      %v1722 = vunpack.c.l.b16 %v570
      %v1723 = vunpack.c.l.b16 %v571
      %v1724 = vunpack.c.l.b16 %v572
      %v1725 = vunpack.c.l.b16 %v573
      %v1726 = vunpack.c.l.b16 %v574
      %v1727 = vunpack.c.l.b16 %v575
      %v1728 = vunpack.c.l.b16 %v576
      %v1729 = vunpack.c.l.b16 %v577
      %v1730 = vunpack.c.l.b16 %v578
      %v1731 = vunpack.c.l.b16 %v579
      %v1732 = vunpack.c.l.b16 %v580
      %v1733 = vunpack.c.l.b16 %v581
      %v1734 = vunpack.c.l.b16 %v582
      %v1735 = vunpack.c.l.b16 %v583
      %v1736 = vunpack.c.l.b16 %v584
      %v1737 = vunpack.c.l.b16 %v585
      %v1738 = vunpack.c.l.b16 %v586
      %v1739 = vunpack.c.l.b16 %v587
      %v1740 = vunpack.c.l.b16 %v588
      %v1741 = vunpack.c.l.b16 %v589
      %v1742 = vunpack.c.l.b16 %v590
      %v1743 = vunpack.c.l.b16 %v591
      %v1744 = vunpack.c.l.b16 %v592
      %v1745 = vunpack.c.l.b16 %v593
      %v1746 = vunpack.c.l.b16 %v594
      %v1747 = vunpack.c.l.b16 %v595
      %v1748 = vunpack.c.l.b16 %v596
      %v1749 = vunpack.c.l.b16 %v597
      %v1750 = vunpack.c.l.b16 %v598
      %v1751 = vunpack.c.l.b16 %v599
      %v1752 = vunpack.c.l.b16 %v600
      %v1753 = vunpack.c.l.b16 %v601
      %v1754 = vunpack.c.l.b16 %v602
      %v1755 = vunpack.c.l.b16 %v603
      %v1756 = vunpack.c.l.b16 %v604
      %v1757 = vunpack.c.l.b16 %v605
      %v1758 = vpack.c.b16 %v1503, %v1502
      %v1759 = vpack.c.b16 %v1505, %v1504
      %v1760 = vpack.c.b16 %v1507, %v1506
      %v1761 = vpack.c.b16 %v1509, %v1508
      %v1762 = vpack.c.b16 %v1511, %v1510
      %v1763 = vpack.c.b16 %v1513, %v1512
      %v1764 = vpack.c.b16 %v1515, %v1514
      %v1765 = vpack.c.b16 %v1517, %v1516
      %v1766 = vpack.c.b16 %v1519, %v1518
      %v1767 = vpack.c.b16 %v1521, %v1520
      %v1768 = vpack.c.b16 %v1523, %v1522
      %v1769 = vpack.c.b16 %v1525, %v1524
      %v1770 = vpack.c.b16 %v1527, %v1526
      %v1771 = vpack.c.b16 %v1529, %v1528
      %v1772 = vpack.c.b16 %v1531, %v1530
      %v1773 = vpack.c.b16 %v1533, %v1532
      %v1774 = vpack.c.b16 %v1535, %v1534
      %v1775 = vpack.c.b16 %v1537, %v1536
      %v1776 = vpack.c.b16 %v1539, %v1538
      %v1777 = vpack.c.b16 %v1541, %v1540
      %v1778 = vpack.c.b16 %v1543, %v1542
      %v1779 = vpack.c.b16 %v1545, %v1544
      %v1780 = vpack.c.b16 %v1547, %v1546
      %v1781 = vpack.c.b16 %v1549, %v1548
      %v1782 = vpack.c.b16 %v1551, %v1550
      %v1783 = vpack.c.b16 %v1553, %v1552
      %v1784 = vpack.c.b16 %v1555, %v1554
      %v1785 = vpack.c.b16 %v1557, %v1556
      %v1786 = vpack.c.b16 %v1559, %v1558
      %v1787 = vpack.c.b16 %v1561, %v1560
      %v1788 = vpack.c.b16 %v1563, %v1562
      %v1789 = vpack.c.b16 %v1565, %v1564
      %v1790 = vpack.c.b16 %v1567, %v1566
      %v1791 = vpack.c.b16 %v1569, %v1568
      %v1792 = vpack.c.b16 %v1571, %v1570
      %v1793 = vpack.c.b16 %v1573, %v1572
      %v1794 = vpack.c.b16 %v1575, %v1574
      %v1795 = vpack.c.b16 %v1577, %v1576
      %v1796 = vpack.c.b16 %v1579, %v1578
      %v1797 = vpack.c.b16 %v1581, %v1580
      %v1798 = vpack.c.b16 %v1583, %v1582
      %v1799 = vpack.c.b16 %v1585, %v1584
      %v1800 = vpack.c.b16 %v1587, %v1586
      %v1801 = vpack.c.b16 %v1589, %v1588
      %v1802 = vpack.c.b16 %v1591, %v1590
      %v1803 = vpack.c.b16 %v1593, %v1592
      %v1804 = vpack.c.b16 %v1595, %v1594
      %v1805 = vpack.c.b16 %v1597, %v1596
      %v1806 = vpack.c.b16 %v1599, %v1598
      %v1807 = vpack.c.b16 %v1601, %v1600
      %v1808 = vpack.c.b16 %v1603, %v1602
      %v1809 = vpack.c.b16 %v1605, %v1604
      %v1810 = vpack.c.b16 %v1607, %v1606
      %v1811 = vpack.c.b16 %v1609, %v1608
      %v1812 = vpack.c.b16 %v1611, %v1610
      %v1813 = vpack.c.b16 %v1613, %v1612
      %v1814 = vpack.c.b16 %v1615, %v1614
      %v1815 = vpack.c.b16 %v1617, %v1616
      %v1816 = vpack.c.b16 %v1619, %v1618
      %v1817 = vpack.c.b16 %v1621, %v1620
      %v1818 = vpack.c.b16 %v1623, %v1622
      %v1819 = vpack.c.b16 %v1625, %v1624
      %v1820 = vpack.c.b16 %v1627, %v1626
      %v1821 = vpack.c.b16 %v1629, %v1628
      %v1822 = vpack.c.b16 %v1631, %v1630
      %v1823 = vpack.c.b16 %v1633, %v1632
      %v1824 = vpack.c.b16 %v1635, %v1634
      %v1825 = vpack.c.b16 %v1637, %v1636
      %v1826 = vpack.c.b16 %v1639, %v1638
      %v1827 = vpack.c.b16 %v1641, %v1640
      %v1828 = vpack.c.b16 %v1643, %v1642
      %v1829 = vpack.c.b16 %v1645, %v1644
      %v1830 = vpack.c.b16 %v1647, %v1646
      %v1831 = vpack.c.b16 %v1649, %v1648
      %v1832 = vpack.c.b16 %v1651, %v1650
      %v1833 = vpack.c.b16 %v1653, %v1652
      %v1834 = vpack.c.b16 %v1655, %v1654
      %v1835 = vpack.c.b16 %v1657, %v1656
      %v1836 = vpack.c.b16 %v1659, %v1658
      %v1837 = vpack.c.b16 %v1661, %v1660
      %v1838 = vpack.c.b16 %v1663, %v1662
      %v1839 = vpack.c.b16 %v1665, %v1664
      %v1840 = vpack.c.b16 %v1667, %v1666
      %v1841 = vpack.c.b16 %v1669, %v1668
      %v1842 = vpack.c.b16 %v1671, %v1670
      %v1843 = vpack.c.b16 %v1673, %v1672
      %v1844 = vpack.c.b16 %v1675, %v1674
      %v1845 = vpack.c.b16 %v1677, %v1676
      %v1846 = vpack.c.b16 %v1679, %v1678
      %v1847 = vpack.c.b16 %v1681, %v1680
      %v1848 = vpack.c.b16 %v1683, %v1682
      %v1849 = vpack.c.b16 %v1685, %v1684
      %v1850 = vpack.c.b16 %v1687, %v1686
      %v1851 = vpack.c.b16 %v1689, %v1688
      %v1852 = vpack.c.b16 %v1691, %v1690
      %v1853 = vpack.c.b16 %v1693, %v1692
      %v1854 = vpack.c.b16 %v1695, %v1694
      %v1855 = vpack.c.b16 %v1697, %v1696
      %v1856 = vpack.c.b16 %v1699, %v1698
      %v1857 = vpack.c.b16 %v1701, %v1700
      %v1858 = vpack.c.b16 %v1703, %v1702
      %v1859 = vpack.c.b16 %v1705, %v1704
      %v1860 = vpack.c.b16 %v1707, %v1706
      %v1861 = vpack.c.b16 %v1709, %v1708
      %v1862 = vpack.c.b16 %v1711, %v1710
      %v1863 = vpack.c.b16 %v1713, %v1712
      %v1864 = vpack.c.b16 %v1715, %v1714
      %v1865 = vpack.c.b16 %v1717, %v1716
      %v1866 = vpack.c.b16 %v1719, %v1718
      %v1867 = vpack.c.b16 %v1721, %v1720
      %v1868 = vpack.c.b16 %v1723, %v1722
      %v1869 = vpack.c.b16 %v1725, %v1724
      %v1870 = vpack.c.b16 %v1727, %v1726
      %v1871 = vpack.c.b16 %v1729, %v1728
      %v1872 = vpack.c.b16 %v1731, %v1730
      %v1873 = vpack.c.b16 %v1733, %v1732
      %v1874 = vpack.c.b16 %v1735, %v1734
      %v1875 = vpack.c.b16 %v1737, %v1736
      %v1876 = vpack.c.b16 %v1739, %v1738
      %v1877 = vpack.c.b16 %v1741, %v1740
      %v1878 = vpack.c.b16 %v1743, %v1742
      %v1879 = vpack.c.b16 %v1745, %v1744
      %v1880 = vpack.c.b16 %v1747, %v1746
      %v1881 = vpack.c.b16 %v1749, %v1748
      %v1882 = vpack.c.b16 %v1751, %v1750
      %v1883 = vpack.c.b16 %v1753, %v1752
      %v1884 = vpack.c.b16 %v1755, %v1754
      %v1885 = vpack.c.b16 %v1757, %v1756
      %2014 = vmatprep.subr.bf16.mxu0 0
      %2015 = vmatpush1.bf16.msra.mxu0 %v1758
      %2016 = vmatprep.subr.bf16.mxu0 0
      %2017 = vmatpush1.bf16.msra.mxu0 %v1759
      %2018 = vmatprep.subr.bf16.mxu0 0
      %2019 = vmatpush1.bf16.msra.mxu0 %v1760
      %2020 = vmatprep.subr.bf16.mxu0 0
      %2021 = vmatpush1.bf16.msra.mxu0 %v1761
      %2022 = vmatprep.subr.bf16.mxu0 0
      %2023 = vmatpush1.bf16.msra.mxu0 %v1762
      %2024 = vmatprep.subr.bf16.mxu0 0
      %2025 = vmatpush1.bf16.msra.mxu0 %v1763
      %2026 = vmatprep.subr.bf16.mxu0 0
      %2027 = vmatpush1.bf16.msra.mxu0 %v1764
      %2028 = vmatprep.subr.bf16.mxu0 0
      %2029 = vmatpush1.bf16.msra.mxu0 %v1765
      %2030 = vmatprep.subr.bf16.mxu0 0
      %2031 = vmatpush1.bf16.msra.mxu0 %v1766
      %2032 = vmatprep.subr.bf16.mxu0 0
      %2033 = vmatpush1.bf16.msra.mxu0 %v1767
      %2034 = vmatprep.subr.bf16.mxu0 0
      %2035 = vmatpush1.bf16.msra.mxu0 %v1768
      %2036 = vmatprep.subr.bf16.mxu0 0
      %2037 = vmatpush1.bf16.msra.mxu0 %v1769
      %2038 = vmatprep.subr.bf16.mxu0 0
      %2039 = vmatpush1.bf16.msra.mxu0 %v1770
      %2040 = vmatprep.subr.bf16.mxu0 0
      %2041 = vmatpush1.bf16.msra.mxu0 %v1771
      %2042 = vmatprep.subr.bf16.mxu0 0
      %2043 = vmatpush1.bf16.msra.mxu0 %v1772
      %2044 = vmatprep.subr.bf16.mxu0 0
      %2045 = vmatpush1.bf16.msra.mxu0 %v1773
      %2046 = vmatprep.mubr.bf16.mxu0 %v991
      %2047 = vmatmul.mubr.bf16.gmra.mrb[0].mxu0 %v990
      %v2048 = vpop.f32.mrb[0].mxu0
      %v2049 = vadd.f32 0.0, %v2048
      %v2050 = vpop.f32.mrb[0].mxu0
      %v2051 = vpop.f32.mrb[0].mxu0
      %v2052 = vadd.f32 0.0, %v2051
      %v2053 = vpop.f32.mrb[0].mxu0
      %2054 = vmatprep.mubr.bf16.mxu0 %v1007
      %2055 = vmatmul.mubr.bf16.gmra.mrb[0].mxu0 %v1006
      %v2056 = vpop.f32.mrb[0].mxu0
      %v2057 = vadd.f32 0.0, %v2056
      %v2058 = vpop.f32.mrb[0].mxu0
      %v2059 = vpop.f32.mrb[0].mxu0
      %v2060 = vadd.f32 0.0, %v2059
      %v2061 = vpop.f32.mrb[0].mxu0
      %2062 = vmatprep.mubr.bf16.mxu0 %v1023
      %2063 = vmatmul.mubr.bf16.gmra.mrb[0].mxu0 %v1022
      %v2064 = vpop.f32.mrb[0].mxu0
      %v2065 = vadd.f32 0.0, %v2064
      %v2066 = vpop.f32.mrb[0].mxu0
      %v2067 = vpop.f32.mrb[0].mxu0
      %v2068 = vadd.f32 0.0, %v2067
      %v2069 = vpop.f32.mrb[0].mxu0
      %2070 = vmatprep.mubr.bf16.mxu0 %v1039
      %2071 = vmatmul.mubr.bf16.gmra.mrb[0].mxu0 %v1038
      %v2072 = vpop.f32.mrb[0].mxu0
      %v2073 = vadd.f32 0.0, %v2072
      %v2074 = vpop.f32.mrb[0].mxu0
      %v2075 = vpop.f32.mrb[0].mxu0
      %v2076 = vadd.f32 0.0, %v2075
      %v2077 = vpop.f32.mrb[0].mxu0
      %2078 = vmatprep.mubr.bf16.mxu0 %v1055
      %2079 = vmatmul.mubr.bf16.gmra.mrb[0].mxu0 %v1054
      %v2080 = vpop.f32.mrb[0].mxu0
      %v2081 = vadd.f32 0.0, %v2080
      %v2082 = vpop.f32.mrb[0].mxu0
      %v2083 = vpop.f32.mrb[0].mxu0
      %v2084 = vadd.f32 0.0, %v2083
      %v2085 = vpop.f32.mrb[0].mxu0
      %2086 = vmatprep.mubr.bf16.mxu0 %v1071
      %2087 = vmatmul.mubr.bf16.gmra.mrb[0].mxu0 %v1070
      %v2088 = vpop.f32.mrb[0].mxu0
      %v2089 = vadd.f32 0.0, %v2088
      %v2090 = vpop.f32.mrb[0].mxu0
      %v2091 = vpop.f32.mrb[0].mxu0
      %v2092 = vadd.f32 0.0, %v2091
      %v2093 = vpop.f32.mrb[0].mxu0
      %2094 = vmatprep.mubr.bf16.mxu0 %v1087
      %2095 = vmatmul.mubr.bf16.gmra.mrb[0].mxu0 %v1086
      %v2096 = vpop.f32.mrb[0].mxu0
      %v2097 = vadd.f32 0.0, %v2096
      %v2098 = vpop.f32.mrb[0].mxu0
      %v2099 = vpop.f32.mrb[0].mxu0
      %v2100 = vadd.f32 0.0, %v2099
      %v2101 = vpop.f32.mrb[0].mxu0
      %2102 = vmatprep.mubr.bf16.mxu0 %v1103
      %2103 = vmatmul.mubr.bf16.gmra.mrb[0].mxu0 %v1102
      %v2104 = vpop.f32.mrb[0].mxu0
      %v2105 = vadd.f32 0.0, %v2104
      %v2106 = vpop.f32.mrb[0].mxu0
      %v2107 = vpop.f32.mrb[0].mxu0
      %v2108 = vadd.f32 0.0, %v2107
      %v2109 = vpop.f32.mrb[0].mxu0
      %2110 = vdwg.mxu0
      %2111 = vmatprep.subr.bf16.mxu0 0
      %2112 = vmatpush1.bf16.msra.mxu0 %v1774
      %2113 = vmatprep.subr.bf16.mxu0 0
      %2114 = vmatpush1.bf16.msra.mxu0 %v1775
      %2115 = vmatprep.subr.bf16.mxu0 0
      %2116 = vmatpush1.bf16.msra.mxu0 %v1776
      %2117 = vmatprep.subr.bf16.mxu0 0
      %2118 = vmatpush1.bf16.msra.mxu0 %v1777
      %2119 = vmatprep.subr.bf16.mxu0 0
      %2120 = vmatpush1.bf16.msra.mxu0 %v1778
      %2121 = vmatprep.subr.bf16.mxu0 0
      %2122 = vmatpush1.bf16.msra.mxu0 %v1779
      %2123 = vmatprep.subr.bf16.mxu0 0
      %2124 = vmatpush1.bf16.msra.mxu0 %v1780
      %2125 = vmatprep.subr.bf16.mxu0 0
      %2126 = vmatpush1.bf16.msra.mxu0 %v1781
      %2127 = vmatprep.subr.bf16.mxu0 0
      %2128 = vmatpush1.bf16.msra.mxu0 %v1782
      %2129 = vmatprep.subr.bf16.mxu0 0
      %2130 = vmatpush1.bf16.msra.mxu0 %v1783
      %2131 = vmatprep.subr.bf16.mxu0 0
      %2132 = vmatpush1.bf16.msra.mxu0 %v1784
      %2133 = vmatprep.subr.bf16.mxu0 0
      %2134 = vmatpush1.bf16.msra.mxu0 %v1785
      %2135 = vmatprep.subr.bf16.mxu0 0
      %2136 = vmatpush1.bf16.msra.mxu0 %v1786
      %2137 = vmatprep.subr.bf16.mxu0 0
      %2138 = vmatpush1.bf16.msra.mxu0 %v1787
      %2139 = vmatprep.subr.bf16.mxu0 0
      %2140 = vmatpush1.bf16.msra.mxu0 %v1788
      %2141 = vmatprep.subr.bf16.mxu0 0
      %2142 = vmatpush1.bf16.msra.mxu0 %v1789
      %2143 = vmatprep.mubr.bf16.mxu0 %v993
      %2144 = vmatmul.mubr.bf16.gmra.mrb[0].mxu0 %v992
      %v2145 = vpop.f32.mrb[0].mxu0
      %v2146 = vadd.f32 %v2049, %v2145
      %v2147 = vpop.f32.mrb[0].mxu0
      %v2148 = vpop.f32.mrb[0].mxu0
      %v2149 = vadd.f32 %v2052, %v2148
      %v2150 = vpop.f32.mrb[0].mxu0
      %2151 = vmatprep.mubr.bf16.mxu0 %v1009
      %2152 = vmatmul.mubr.bf16.gmra.mrb[0].mxu0 %v1008
      %v2153 = vpop.f32.mrb[0].mxu0
      %v2154 = vadd.f32 %v2057, %v2153
      %v2155 = vpop.f32.mrb[0].mxu0
      %v2156 = vpop.f32.mrb[0].mxu0
      %v2157 = vadd.f32 %v2060, %v2156
      %v2158 = vpop.f32.mrb[0].mxu0
      %2159 = vmatprep.mubr.bf16.mxu0 %v1025
      %2160 = vmatmul.mubr.bf16.gmra.mrb[0].mxu0 %v1024
      %v2161 = vpop.f32.mrb[0].mxu0
      %v2162 = vadd.f32 %v2065, %v2161
      %v2163 = vpop.f32.mrb[0].mxu0
      %v2164 = vpop.f32.mrb[0].mxu0
      %v2165 = vadd.f32 %v2068, %v2164
      %v2166 = vpop.f32.mrb[0].mxu0
      %2167 = vmatprep.mubr.bf16.mxu0 %v1041
      %2168 = vmatmul.mubr.bf16.gmra.mrb[0].mxu0 %v1040
      %v2169 = vpop.f32.mrb[0].mxu0
      %v2170 = vadd.f32 %v2073, %v2169
      %v2171 = vpop.f32.mrb[0].mxu0
      %v2172 = vpop.f32.mrb[0].mxu0
      %v2173 = vadd.f32 %v2076, %v2172
      %v2174 = vpop.f32.mrb[0].mxu0
      %2175 = vmatprep.mubr.bf16.mxu0 %v1057
      %2176 = vmatmul.mubr.bf16.gmra.mrb[0].mxu0 %v1056
      %v2177 = vpop.f32.mrb[0].mxu0
      %v2178 = vadd.f32 %v2081, %v2177
      %v2179 = vpop.f32.mrb[0].mxu0
      %v2180 = vpop.f32.mrb[0].mxu0
      %v2181 = vadd.f32 %v2084, %v2180
      %v2182 = vpop.f32.mrb[0].mxu0
      %2183 = vmatprep.mubr.bf16.mxu0 %v1073
      %2184 = vmatmul.mubr.bf16.gmra.mrb[0].mxu0 %v1072
      %v2185 = vpop.f32.mrb[0].mxu0
      %v2186 = vadd.f32 %v2089, %v2185
      %v2187 = vpop.f32.mrb[0].mxu0
      %v2188 = vpop.f32.mrb[0].mxu0
      %v2189 = vadd.f32 %v2092, %v2188
      %v2190 = vpop.f32.mrb[0].mxu0
      %2191 = vmatprep.mubr.bf16.mxu0 %v1089
      %2192 = vmatmul.mubr.bf16.gmra.mrb[0].mxu0 %v1088
      %v2193 = vpop.f32.mrb[0].mxu0
      %v2194 = vadd.f32 %v2097, %v2193
      %v2195 = vpop.f32.mrb[0].mxu0
      %v2196 = vpop.f32.mrb[0].mxu0
      %v2197 = vadd.f32 %v2100, %v2196
      %v2198 = vpop.f32.mrb[0].mxu0
      %2199 = vmatprep.mubr.bf16.mxu0 %v1105
      %2200 = vmatmul.mubr.bf16.gmra.mrb[0].mxu0 %v1104
      %v2201 = vpop.f32.mrb[0].mxu0
      %v2202 = vadd.f32 %v2105, %v2201
      %v2203 = vpop.f32.mrb[0].mxu0
      %v2204 = vpop.f32.mrb[0].mxu0
      %v2205 = vadd.f32 %v2108, %v2204
      %v2206 = vpop.f32.mrb[0].mxu0
      %2207 = vdwg.mxu0
      %2208 = vmatprep.subr.bf16.mxu0 0
      %2209 = vmatpush1.bf16.msra.mxu0 %v1790
      %2210 = vmatprep.subr.bf16.mxu0 0
      %2211 = vmatpush1.bf16.msra.mxu0 %v1791
      %2212 = vmatprep.subr.bf16.mxu0 0
      %2213 = vmatpush1.bf16.msra.mxu0 %v1792
      %2214 = vmatprep.subr.bf16.mxu0 0
      %2215 = vmatpush1.bf16.msra.mxu0 %v1793
      %2216 = vmatprep.subr.bf16.mxu0 0
      %2217 = vmatpush1.bf16.msra.mxu0 %v1794
      %2218 = vmatprep.subr.bf16.mxu0 0
      %2219 = vmatpush1.bf16.msra.mxu0 %v1795
      %2220 = vmatprep.subr.bf16.mxu0 0
      %2221 = vmatpush1.bf16.msra.mxu0 %v1796
      %2222 = vmatprep.subr.bf16.mxu0 0
      %2223 = vmatpush1.bf16.msra.mxu0 %v1797
      %2224 = vmatprep.subr.bf16.mxu0 0
      %2225 = vmatpush1.bf16.msra.mxu0 %v1798
      %2226 = vmatprep.subr.bf16.mxu0 0
      %2227 = vmatpush1.bf16.msra.mxu0 %v1799
      %2228 = vmatprep.subr.bf16.mxu0 0
      %2229 = vmatpush1.bf16.msra.mxu0 %v1800
      %2230 = vmatprep.subr.bf16.mxu0 0
      %2231 = vmatpush1.bf16.msra.mxu0 %v1801
      %2232 = vmatprep.subr.bf16.mxu0 0
      %2233 = vmatpush1.bf16.msra.mxu0 %v1802
      %2234 = vmatprep.subr.bf16.mxu0 0
      %2235 = vmatpush1.bf16.msra.mxu0 %v1803
      %2236 = vmatprep.subr.bf16.mxu0 0
      %2237 = vmatpush1.bf16.msra.mxu0 %v1804
      %2238 = vmatprep.subr.bf16.mxu0 0
      %2239 = vmatpush1.bf16.msra.mxu0 %v1805
      %2240 = vmatprep.mubr.bf16.mxu0 %v995
      %2241 = vmatmul.mubr.bf16.gmra.mrb[0].mxu0 %v994
      %v2242 = vpop.f32.mrb[0].mxu0
      %v2243 = vadd.f32 %v2146, %v2242
      %v2244 = vpop.f32.mrb[0].mxu0
      %v2245 = vpop.f32.mrb[0].mxu0
      %v2246 = vadd.f32 %v2149, %v2245
      %v2247 = vpop.f32.mrb[0].mxu0
      %2248 = vmatprep.mubr.bf16.mxu0 %v1011
      %2249 = vmatmul.mubr.bf16.gmra.mrb[0].mxu0 %v1010
      %v2250 = vpop.f32.mrb[0].mxu0
      %v2251 = vadd.f32 %v2154, %v2250
      %v2252 = vpop.f32.mrb[0].mxu0
      %v2253 = vpop.f32.mrb[0].mxu0
      %v2254 = vadd.f32 %v2157, %v2253
      %v2255 = vpop.f32.mrb[0].mxu0
      %2256 = vmatprep.mubr.bf16.mxu0 %v1027
      %2257 = vmatmul.mubr.bf16.gmra.mrb[0].mxu0 %v1026
      %v2258 = vpop.f32.mrb[0].mxu0
      %v2259 = vadd.f32 %v2162, %v2258
      %v2260 = vpop.f32.mrb[0].mxu0
      %v2261 = vpop.f32.mrb[0].mxu0
      %v2262 = vadd.f32 %v2165, %v2261
      %v2263 = vpop.f32.mrb[0].mxu0
      %2264 = vmatprep.mubr.bf16.mxu0 %v1043
      %2265 = vmatmul.mubr.bf16.gmra.mrb[0].mxu0 %v1042
      %v2266 = vpop.f32.mrb[0].mxu0
      %v2267 = vadd.f32 %v2170, %v2266
      %v2268 = vpop.f32.mrb[0].mxu0
      %v2269 = vpop.f32.mrb[0].mxu0
      %v2270 = vadd.f32 %v2173, %v2269
      %v2271 = vpop.f32.mrb[0].mxu0
      %2272 = vmatprep.mubr.bf16.mxu0 %v1059
      %2273 = vmatmul.mubr.bf16.gmra.mrb[0].mxu0 %v1058
      %v2274 = vpop.f32.mrb[0].mxu0
      %v2275 = vadd.f32 %v2178, %v2274
      %v2276 = vpop.f32.mrb[0].mxu0
      %v2277 = vpop.f32.mrb[0].mxu0
      %v2278 = vadd.f32 %v2181, %v2277
      %v2279 = vpop.f32.mrb[0].mxu0
      %2280 = vmatprep.mubr.bf16.mxu0 %v1075
      %2281 = vmatmul.mubr.bf16.gmra.mrb[0].mxu0 %v1074
      %v2282 = vpop.f32.mrb[0].mxu0
      %v2283 = vadd.f32 %v2186, %v2282
      %v2284 = vpop.f32.mrb[0].mxu0
      %v2285 = vpop.f32.mrb[0].mxu0
      %v2286 = vadd.f32 %v2189, %v2285
      %v2287 = vpop.f32.mrb[0].mxu0
      %2288 = vmatprep.mubr.bf16.mxu0 %v1091
      %2289 = vmatmul.mubr.bf16.gmra.mrb[0].mxu0 %v1090
      %v2290 = vpop.f32.mrb[0].mxu0
      %v2291 = vadd.f32 %v2194, %v2290
      %v2292 = vpop.f32.mrb[0].mxu0
      %v2293 = vpop.f32.mrb[0].mxu0
      %v2294 = vadd.f32 %v2197, %v2293
      %v2295 = vpop.f32.mrb[0].mxu0
      %2296 = vmatprep.mubr.bf16.mxu0 %v1107
      %2297 = vmatmul.mubr.bf16.gmra.mrb[0].mxu0 %v1106
      %v2298 = vpop.f32.mrb[0].mxu0
      %v2299 = vadd.f32 %v2202, %v2298
      %v2300 = vpop.f32.mrb[0].mxu0
      %v2301 = vpop.f32.mrb[0].mxu0
      %v2302 = vadd.f32 %v2205, %v2301
      %v2303 = vpop.f32.mrb[0].mxu0
      %2304 = vdwg.mxu0
      %2305 = vmatprep.subr.bf16.mxu0 0
      %2306 = vmatpush1.bf16.msra.mxu0 %v1806
      %2307 = vmatprep.subr.bf16.mxu0 0
      %2308 = vmatpush1.bf16.msra.mxu0 %v1807
      %2309 = vmatprep.subr.bf16.mxu0 0
      %2310 = vmatpush1.bf16.msra.mxu0 %v1808
      %2311 = vmatprep.subr.bf16.mxu0 0
      %2312 = vmatpush1.bf16.msra.mxu0 %v1809
      %2313 = vmatprep.subr.bf16.mxu0 0
      %2314 = vmatpush1.bf16.msra.mxu0 %v1810
      %2315 = vmatprep.subr.bf16.mxu0 0
      %2316 = vmatpush1.bf16.msra.mxu0 %v1811
      %2317 = vmatprep.subr.bf16.mxu0 0
      %2318 = vmatpush1.bf16.msra.mxu0 %v1812
      %2319 = vmatprep.subr.bf16.mxu0 0
      %2320 = vmatpush1.bf16.msra.mxu0 %v1813
      %2321 = vmatprep.subr.bf16.mxu0 0
      %2322 = vmatpush1.bf16.msra.mxu0 %v1814
      %2323 = vmatprep.subr.bf16.mxu0 0
      %2324 = vmatpush1.bf16.msra.mxu0 %v1815
      %2325 = vmatprep.subr.bf16.mxu0 0
      %2326 = vmatpush1.bf16.msra.mxu0 %v1816
      %2327 = vmatprep.subr.bf16.mxu0 0
      %2328 = vmatpush1.bf16.msra.mxu0 %v1817
      %2329 = vmatprep.subr.bf16.mxu0 0
      %2330 = vmatpush1.bf16.msra.mxu0 %v1818
      %2331 = vmatprep.subr.bf16.mxu0 0
      %2332 = vmatpush1.bf16.msra.mxu0 %v1819
      %2333 = vmatprep.subr.bf16.mxu0 0
      %2334 = vmatpush1.bf16.msra.mxu0 %v1820
      %2335 = vmatprep.subr.bf16.mxu0 0
      %2336 = vmatpush1.bf16.msra.mxu0 %v1821
      %2337 = vmatprep.mubr.bf16.mxu0 %v997
      %2338 = vmatmul.mubr.bf16.gmra.mrb[0].mxu0 %v996
      %v2339 = vpop.f32.mrb[0].mxu0
      %v2340 = vadd.f32 %v2243, %v2339
      %v2341 = vpop.f32.mrb[0].mxu0
      %v2342 = vpop.f32.mrb[0].mxu0
      %v2343 = vadd.f32 %v2246, %v2342
      %v2344 = vpop.f32.mrb[0].mxu0
      %2345 = vmatprep.mubr.bf16.mxu0 %v1013
      %2346 = vmatmul.mubr.bf16.gmra.mrb[0].mxu0 %v1012
      %v2347 = vpop.f32.mrb[0].mxu0
      %v2348 = vadd.f32 %v2251, %v2347
      %v2349 = vpop.f32.mrb[0].mxu0
      %v2350 = vpop.f32.mrb[0].mxu0
      %v2351 = vadd.f32 %v2254, %v2350
      %v2352 = vpop.f32.mrb[0].mxu0
      %2353 = vmatprep.mubr.bf16.mxu0 %v1029
      %2354 = vmatmul.mubr.bf16.gmra.mrb[0].mxu0 %v1028
      %v2355 = vpop.f32.mrb[0].mxu0
      %v2356 = vadd.f32 %v2259, %v2355
      %v2357 = vpop.f32.mrb[0].mxu0
      %v2358 = vpop.f32.mrb[0].mxu0
      %v2359 = vadd.f32 %v2262, %v2358
      %v2360 = vpop.f32.mrb[0].mxu0
      %2361 = vmatprep.mubr.bf16.mxu0 %v1045
      %2362 = vmatmul.mubr.bf16.gmra.mrb[0].mxu0 %v1044
      %v2363 = vpop.f32.mrb[0].mxu0
      %v2364 = vadd.f32 %v2267, %v2363
      %v2365 = vpop.f32.mrb[0].mxu0
      %v2366 = vpop.f32.mrb[0].mxu0
      %v2367 = vadd.f32 %v2270, %v2366
      %v2368 = vpop.f32.mrb[0].mxu0
      %2369 = vmatprep.mubr.bf16.mxu0 %v1061
      %2370 = vmatmul.mubr.bf16.gmra.mrb[0].mxu0 %v1060
      %v2371 = vpop.f32.mrb[0].mxu0
      %v2372 = vadd.f32 %v2275, %v2371
      %v2373 = vpop.f32.mrb[0].mxu0
      %v2374 = vpop.f32.mrb[0].mxu0
      %v2375 = vadd.f32 %v2278, %v2374
      %v2376 = vpop.f32.mrb[0].mxu0
      %2377 = vmatprep.mubr.bf16.mxu0 %v1077
      %2378 = vmatmul.mubr.bf16.gmra.mrb[0].mxu0 %v1076
      %v2379 = vpop.f32.mrb[0].mxu0
      %v2380 = vadd.f32 %v2283, %v2379
      %v2381 = vpop.f32.mrb[0].mxu0
      %v2382 = vpop.f32.mrb[0].mxu0
      %v2383 = vadd.f32 %v2286, %v2382
      %v2384 = vpop.f32.mrb[0].mxu0
      %2385 = vmatprep.mubr.bf16.mxu0 %v1093
      %2386 = vmatmul.mubr.bf16.gmra.mrb[0].mxu0 %v1092
      %v2387 = vpop.f32.mrb[0].mxu0
      %v2388 = vadd.f32 %v2291, %v2387
      %v2389 = vpop.f32.mrb[0].mxu0
      %v2390 = vpop.f32.mrb[0].mxu0
      %v2391 = vadd.f32 %v2294, %v2390
      %v2392 = vpop.f32.mrb[0].mxu0
      %2393 = vmatprep.mubr.bf16.mxu0 %v1109
      %2394 = vmatmul.mubr.bf16.gmra.mrb[0].mxu0 %v1108
      %v2395 = vpop.f32.mrb[0].mxu0
      %v2396 = vadd.f32 %v2299, %v2395
      %v2397 = vpop.f32.mrb[0].mxu0
      %v2398 = vpop.f32.mrb[0].mxu0
      %v2399 = vadd.f32 %v2302, %v2398
      %v2400 = vpop.f32.mrb[0].mxu0
      %2401 = vdwg.mxu0
      %2402 = vmatprep.subr.bf16.mxu0 0
      %2403 = vmatpush1.bf16.msra.mxu0 %v1822
      %2404 = vmatprep.subr.bf16.mxu0 0
      %2405 = vmatpush1.bf16.msra.mxu0 %v1823
      %2406 = vmatprep.subr.bf16.mxu0 0
      %2407 = vmatpush1.bf16.msra.mxu0 %v1824
      %2408 = vmatprep.subr.bf16.mxu0 0
      %2409 = vmatpush1.bf16.msra.mxu0 %v1825
      %2410 = vmatprep.subr.bf16.mxu0 0
      %2411 = vmatpush1.bf16.msra.mxu0 %v1826
      %2412 = vmatprep.subr.bf16.mxu0 0
      %2413 = vmatpush1.bf16.msra.mxu0 %v1827
      %2414 = vmatprep.subr.bf16.mxu0 0
      %2415 = vmatpush1.bf16.msra.mxu0 %v1828
      %2416 = vmatprep.subr.bf16.mxu0 0
      %2417 = vmatpush1.bf16.msra.mxu0 %v1829
      %2418 = vmatprep.subr.bf16.mxu0 0
      %2419 = vmatpush1.bf16.msra.mxu0 %v1830
      %2420 = vmatprep.subr.bf16.mxu0 0
      %2421 = vmatpush1.bf16.msra.mxu0 %v1831
      %2422 = vmatprep.subr.bf16.mxu0 0
      %2423 = vmatpush1.bf16.msra.mxu0 %v1832
      %2424 = vmatprep.subr.bf16.mxu0 0
      %2425 = vmatpush1.bf16.msra.mxu0 %v1833
      %2426 = vmatprep.subr.bf16.mxu0 0
      %2427 = vmatpush1.bf16.msra.mxu0 %v1834
      %2428 = vmatprep.subr.bf16.mxu0 0
      %2429 = vmatpush1.bf16.msra.mxu0 %v1835
      %2430 = vmatprep.subr.bf16.mxu0 0
      %2431 = vmatpush1.bf16.msra.mxu0 %v1836
      %2432 = vmatprep.subr.bf16.mxu0 0
      %2433 = vmatpush1.bf16.msra.mxu0 %v1837
      %2434 = vmatprep.mubr.bf16.mxu0 %v999
      %2435 = vmatmul.mubr.bf16.gmra.mrb[0].mxu0 %v998
      %v2436 = vpop.f32.mrb[0].mxu0
      %v2437 = vadd.f32 %v2340, %v2436
      %v2438 = vpop.f32.mrb[0].mxu0
      %v2439 = vpop.f32.mrb[0].mxu0
      %v2440 = vadd.f32 %v2343, %v2439
      %v2441 = vpop.f32.mrb[0].mxu0
      %2442 = vmatprep.mubr.bf16.mxu0 %v1015
      %2443 = vmatmul.mubr.bf16.gmra.mrb[0].mxu0 %v1014
      %v2444 = vpop.f32.mrb[0].mxu0
      %v2445 = vadd.f32 %v2348, %v2444
      %v2446 = vpop.f32.mrb[0].mxu0
      %v2447 = vpop.f32.mrb[0].mxu0
      %v2448 = vadd.f32 %v2351, %v2447
      %v2449 = vpop.f32.mrb[0].mxu0
      %2450 = vmatprep.mubr.bf16.mxu0 %v1031
      %2451 = vmatmul.mubr.bf16.gmra.mrb[0].mxu0 %v1030
      %v2452 = vpop.f32.mrb[0].mxu0
      %v2453 = vadd.f32 %v2356, %v2452
      %v2454 = vpop.f32.mrb[0].mxu0
      %v2455 = vpop.f32.mrb[0].mxu0
      %v2456 = vadd.f32 %v2359, %v2455
      %v2457 = vpop.f32.mrb[0].mxu0
      %2458 = vmatprep.mubr.bf16.mxu0 %v1047
      %2459 = vmatmul.mubr.bf16.gmra.mrb[0].mxu0 %v1046
      %v2460 = vpop.f32.mrb[0].mxu0
      %v2461 = vadd.f32 %v2364, %v2460
      %v2462 = vpop.f32.mrb[0].mxu0
      %v2463 = vpop.f32.mrb[0].mxu0
      %v2464 = vadd.f32 %v2367, %v2463
      %v2465 = vpop.f32.mrb[0].mxu0
      %2466 = vmatprep.mubr.bf16.mxu0 %v1063
      %2467 = vmatmul.mubr.bf16.gmra.mrb[0].mxu0 %v1062
      %v2468 = vpop.f32.mrb[0].mxu0
      %v2469 = vadd.f32 %v2372, %v2468
      %v2470 = vpop.f32.mrb[0].mxu0
      %v2471 = vpop.f32.mrb[0].mxu0
      %v2472 = vadd.f32 %v2375, %v2471
      %v2473 = vpop.f32.mrb[0].mxu0
      %2474 = vmatprep.mubr.bf16.mxu0 %v1079
      %2475 = vmatmul.mubr.bf16.gmra.mrb[0].mxu0 %v1078
      %v2476 = vpop.f32.mrb[0].mxu0
      %v2477 = vadd.f32 %v2380, %v2476
      %v2478 = vpop.f32.mrb[0].mxu0
      %v2479 = vpop.f32.mrb[0].mxu0
      %v2480 = vadd.f32 %v2383, %v2479
      %v2481 = vpop.f32.mrb[0].mxu0
      %2482 = vmatprep.mubr.bf16.mxu0 %v1095
      %2483 = vmatmul.mubr.bf16.gmra.mrb[0].mxu0 %v1094
      %v2484 = vpop.f32.mrb[0].mxu0
      %v2485 = vadd.f32 %v2388, %v2484
      %v2486 = vpop.f32.mrb[0].mxu0
      %v2487 = vpop.f32.mrb[0].mxu0
      %v2488 = vadd.f32 %v2391, %v2487
      %v2489 = vpop.f32.mrb[0].mxu0
      %2490 = vmatprep.mubr.bf16.mxu0 %v1111
      %2491 = vmatmul.mubr.bf16.gmra.mrb[0].mxu0 %v1110
      %v2492 = vpop.f32.mrb[0].mxu0
      %v2493 = vadd.f32 %v2396, %v2492
      %v2494 = vpop.f32.mrb[0].mxu0
      %v2495 = vpop.f32.mrb[0].mxu0
      %v2496 = vadd.f32 %v2399, %v2495
      %v2497 = vpop.f32.mrb[0].mxu0
      %2498 = vdwg.mxu0
      %2499 = vmatprep.subr.bf16.mxu0 0
      %2500 = vmatpush1.bf16.msra.mxu0 %v1838
      %2501 = vmatprep.subr.bf16.mxu0 0
      %2502 = vmatpush1.bf16.msra.mxu0 %v1839
      %2503 = vmatprep.subr.bf16.mxu0 0
      %2504 = vmatpush1.bf16.msra.mxu0 %v1840
      %2505 = vmatprep.subr.bf16.mxu0 0
      %2506 = vmatpush1.bf16.msra.mxu0 %v1841
      %2507 = vmatprep.subr.bf16.mxu0 0
      %2508 = vmatpush1.bf16.msra.mxu0 %v1842
      %2509 = vmatprep.subr.bf16.mxu0 0
      %2510 = vmatpush1.bf16.msra.mxu0 %v1843
      %2511 = vmatprep.subr.bf16.mxu0 0
      %2512 = vmatpush1.bf16.msra.mxu0 %v1844
      %2513 = vmatprep.subr.bf16.mxu0 0
      %2514 = vmatpush1.bf16.msra.mxu0 %v1845
      %2515 = vmatprep.subr.bf16.mxu0 0
      %2516 = vmatpush1.bf16.msra.mxu0 %v1846
      %2517 = vmatprep.subr.bf16.mxu0 0
      %2518 = vmatpush1.bf16.msra.mxu0 %v1847
      %2519 = vmatprep.subr.bf16.mxu0 0
      %2520 = vmatpush1.bf16.msra.mxu0 %v1848
      %2521 = vmatprep.subr.bf16.mxu0 0
      %2522 = vmatpush1.bf16.msra.mxu0 %v1849
      %2523 = vmatprep.subr.bf16.mxu0 0
      %2524 = vmatpush1.bf16.msra.mxu0 %v1850
      %2525 = vmatprep.subr.bf16.mxu0 0
      %2526 = vmatpush1.bf16.msra.mxu0 %v1851
      %2527 = vmatprep.subr.bf16.mxu0 0
      %2528 = vmatpush1.bf16.msra.mxu0 %v1852
      %2529 = vmatprep.subr.bf16.mxu0 0
      %2530 = vmatpush1.bf16.msra.mxu0 %v1853
      %2531 = vmatprep.mubr.bf16.mxu0 %v1001
      %2532 = vmatmul.mubr.bf16.gmra.mrb[0].mxu0 %v1000
      %v2533 = vpop.f32.mrb[0].mxu0
      %v2534 = vadd.f32 %v2437, %v2533
      %v2535 = vpop.f32.mrb[0].mxu0
      %v2536 = vpop.f32.mrb[0].mxu0
      %v2537 = vadd.f32 %v2440, %v2536
      %v2538 = vpop.f32.mrb[0].mxu0
      %2539 = vmatprep.mubr.bf16.mxu0 %v1017
      %2540 = vmatmul.mubr.bf16.gmra.mrb[0].mxu0 %v1016
      %v2541 = vpop.f32.mrb[0].mxu0
      %v2542 = vadd.f32 %v2445, %v2541
      %v2543 = vpop.f32.mrb[0].mxu0
      %v2544 = vpop.f32.mrb[0].mxu0
      %v2545 = vadd.f32 %v2448, %v2544
      %v2546 = vpop.f32.mrb[0].mxu0
      %2547 = vmatprep.mubr.bf16.mxu0 %v1033
      %2548 = vmatmul.mubr.bf16.gmra.mrb[0].mxu0 %v1032
      %v2549 = vpop.f32.mrb[0].mxu0
      %v2550 = vadd.f32 %v2453, %v2549
      %v2551 = vpop.f32.mrb[0].mxu0
      %v2552 = vpop.f32.mrb[0].mxu0
      %v2553 = vadd.f32 %v2456, %v2552
      %v2554 = vpop.f32.mrb[0].mxu0
      %2555 = vmatprep.mubr.bf16.mxu0 %v1049
      %2556 = vmatmul.mubr.bf16.gmra.mrb[0].mxu0 %v1048
      %v2557 = vpop.f32.mrb[0].mxu0
      %v2558 = vadd.f32 %v2461, %v2557
      %v2559 = vpop.f32.mrb[0].mxu0
      %v2560 = vpop.f32.mrb[0].mxu0
      %v2561 = vadd.f32 %v2464, %v2560
      %v2562 = vpop.f32.mrb[0].mxu0
      %2563 = vmatprep.mubr.bf16.mxu0 %v1065
      %2564 = vmatmul.mubr.bf16.gmra.mrb[0].mxu0 %v1064
      %v2565 = vpop.f32.mrb[0].mxu0
      %v2566 = vadd.f32 %v2469, %v2565
      %v2567 = vpop.f32.mrb[0].mxu0
      %v2568 = vpop.f32.mrb[0].mxu0
      %v2569 = vadd.f32 %v2472, %v2568
      %v2570 = vpop.f32.mrb[0].mxu0
      %2571 = vmatprep.mubr.bf16.mxu0 %v1081
      %2572 = vmatmul.mubr.bf16.gmra.mrb[0].mxu0 %v1080
      %v2573 = vpop.f32.mrb[0].mxu0
      %v2574 = vadd.f32 %v2477, %v2573
      %v2575 = vpop.f32.mrb[0].mxu0
      %v2576 = vpop.f32.mrb[0].mxu0
      %v2577 = vadd.f32 %v2480, %v2576
      %v2578 = vpop.f32.mrb[0].mxu0
      %2579 = vmatprep.mubr.bf16.mxu0 %v1097
      %2580 = vmatmul.mubr.bf16.gmra.mrb[0].mxu0 %v1096
      %v2581 = vpop.f32.mrb[0].mxu0
      %v2582 = vadd.f32 %v2485, %v2581
      %v2583 = vpop.f32.mrb[0].mxu0
      %v2584 = vpop.f32.mrb[0].mxu0
      %v2585 = vadd.f32 %v2488, %v2584
      %v2586 = vpop.f32.mrb[0].mxu0
      %2587 = vmatprep.mubr.bf16.mxu0 %v1113
      %2588 = vmatmul.mubr.bf16.gmra.mrb[0].mxu0 %v1112
      %v2589 = vpop.f32.mrb[0].mxu0
      %v2590 = vadd.f32 %v2493, %v2589
      %v2591 = vpop.f32.mrb[0].mxu0
      %v2592 = vpop.f32.mrb[0].mxu0
      %v2593 = vadd.f32 %v2496, %v2592
      %v2594 = vpop.f32.mrb[0].mxu0
      %2595 = vdwg.mxu0
      %2596 = vmatprep.subr.bf16.mxu0 0
      %2597 = vmatpush1.bf16.msra.mxu0 %v1854
      %2598 = vmatprep.subr.bf16.mxu0 0
      %2599 = vmatpush1.bf16.msra.mxu0 %v1855
      %2600 = vmatprep.subr.bf16.mxu0 0
      %2601 = vmatpush1.bf16.msra.mxu0 %v1856
      %2602 = vmatprep.subr.bf16.mxu0 0
      %2603 = vmatpush1.bf16.msra.mxu0 %v1857
      %2604 = vmatprep.subr.bf16.mxu0 0
      %2605 = vmatpush1.bf16.msra.mxu0 %v1858
      %2606 = vmatprep.subr.bf16.mxu0 0
      %2607 = vmatpush1.bf16.msra.mxu0 %v1859
      %2608 = vmatprep.subr.bf16.mxu0 0
      %2609 = vmatpush1.bf16.msra.mxu0 %v1860
      %2610 = vmatprep.subr.bf16.mxu0 0
      %2611 = vmatpush1.bf16.msra.mxu0 %v1861
      %2612 = vmatprep.subr.bf16.mxu0 0
      %2613 = vmatpush1.bf16.msra.mxu0 %v1862
      %2614 = vmatprep.subr.bf16.mxu0 0
      %2615 = vmatpush1.bf16.msra.mxu0 %v1863
      %2616 = vmatprep.subr.bf16.mxu0 0
      %2617 = vmatpush1.bf16.msra.mxu0 %v1864
      %2618 = vmatprep.subr.bf16.mxu0 0
      %2619 = vmatpush1.bf16.msra.mxu0 %v1865
      %2620 = vmatprep.subr.bf16.mxu0 0
      %2621 = vmatpush1.bf16.msra.mxu0 %v1866
      %2622 = vmatprep.subr.bf16.mxu0 0
      %2623 = vmatpush1.bf16.msra.mxu0 %v1867
      %2624 = vmatprep.subr.bf16.mxu0 0
      %2625 = vmatpush1.bf16.msra.mxu0 %v1868
      %2626 = vmatprep.subr.bf16.mxu0 0
      %2627 = vmatpush1.bf16.msra.mxu0 %v1869
      %2628 = vmatprep.mubr.bf16.mxu0 %v1003
      %2629 = vmatmul.mubr.bf16.gmra.mrb[0].mxu0 %v1002
      %v2630 = vpop.f32.mrb[0].mxu0
      %v2631 = vadd.f32 %v2534, %v2630
      %v2632 = vpop.f32.mrb[0].mxu0
      %v2633 = vpop.f32.mrb[0].mxu0
      %v2634 = vadd.f32 %v2537, %v2633
      %v2635 = vpop.f32.mrb[0].mxu0
      %2636 = vmatprep.mubr.bf16.mxu0 %v1019
      %2637 = vmatmul.mubr.bf16.gmra.mrb[0].mxu0 %v1018
      %v2638 = vpop.f32.mrb[0].mxu0
      %v2639 = vadd.f32 %v2542, %v2638
      %v2640 = vpop.f32.mrb[0].mxu0
      %v2641 = vpop.f32.mrb[0].mxu0
      %v2642 = vadd.f32 %v2545, %v2641
      %v2643 = vpop.f32.mrb[0].mxu0
      %2644 = vmatprep.mubr.bf16.mxu0 %v1035
      %2645 = vmatmul.mubr.bf16.gmra.mrb[0].mxu0 %v1034
      %v2646 = vpop.f32.mrb[0].mxu0
      %v2647 = vadd.f32 %v2550, %v2646
      %v2648 = vpop.f32.mrb[0].mxu0
      %v2649 = vpop.f32.mrb[0].mxu0
      %v2650 = vadd.f32 %v2553, %v2649
      %v2651 = vpop.f32.mrb[0].mxu0
      %2652 = vmatprep.mubr.bf16.mxu0 %v1051
      %2653 = vmatmul.mubr.bf16.gmra.mrb[0].mxu0 %v1050
      %v2654 = vpop.f32.mrb[0].mxu0
      %v2655 = vadd.f32 %v2558, %v2654
      %v2656 = vpop.f32.mrb[0].mxu0
      %v2657 = vpop.f32.mrb[0].mxu0
      %v2658 = vadd.f32 %v2561, %v2657
      %v2659 = vpop.f32.mrb[0].mxu0
      %2660 = vmatprep.mubr.bf16.mxu0 %v1067
      %2661 = vmatmul.mubr.bf16.gmra.mrb[0].mxu0 %v1066
      %v2662 = vpop.f32.mrb[0].mxu0
      %v2663 = vadd.f32 %v2566, %v2662
      %v2664 = vpop.f32.mrb[0].mxu0
      %v2665 = vpop.f32.mrb[0].mxu0
      %v2666 = vadd.f32 %v2569, %v2665
      %v2667 = vpop.f32.mrb[0].mxu0
      %2668 = vmatprep.mubr.bf16.mxu0 %v1083
      %2669 = vmatmul.mubr.bf16.gmra.mrb[0].mxu0 %v1082
      %v2670 = vpop.f32.mrb[0].mxu0
      %v2671 = vadd.f32 %v2574, %v2670
      %v2672 = vpop.f32.mrb[0].mxu0
      %v2673 = vpop.f32.mrb[0].mxu0
      %v2674 = vadd.f32 %v2577, %v2673
      %v2675 = vpop.f32.mrb[0].mxu0
      %2676 = vmatprep.mubr.bf16.mxu0 %v1099
      %2677 = vmatmul.mubr.bf16.gmra.mrb[0].mxu0 %v1098
      %v2678 = vpop.f32.mrb[0].mxu0
      %v2679 = vadd.f32 %v2582, %v2678
      %v2680 = vpop.f32.mrb[0].mxu0
      %v2681 = vpop.f32.mrb[0].mxu0
      %v2682 = vadd.f32 %v2585, %v2681
      %v2683 = vpop.f32.mrb[0].mxu0
      %2684 = vmatprep.mubr.bf16.mxu0 %v1115
      %2685 = vmatmul.mubr.bf16.gmra.mrb[0].mxu0 %v1114
      %v2686 = vpop.f32.mrb[0].mxu0
      %v2687 = vadd.f32 %v2590, %v2686
      %v2688 = vpop.f32.mrb[0].mxu0
      %v2689 = vpop.f32.mrb[0].mxu0
      %v2690 = vadd.f32 %v2593, %v2689
      %v2691 = vpop.f32.mrb[0].mxu0
      %2692 = vdwg.mxu0
      %2693 = vmatprep.subr.bf16.mxu0 0
      %2694 = vmatpush1.bf16.msra.mxu0 %v1870
      %2695 = vmatprep.subr.bf16.mxu0 0
      %2696 = vmatpush1.bf16.msra.mxu0 %v1871
      %2697 = vmatprep.subr.bf16.mxu0 0
      %2698 = vmatpush1.bf16.msra.mxu0 %v1872
      %2699 = vmatprep.subr.bf16.mxu0 0
      %2700 = vmatpush1.bf16.msra.mxu0 %v1873
      %2701 = vmatprep.subr.bf16.mxu0 0
      %2702 = vmatpush1.bf16.msra.mxu0 %v1874
      %2703 = vmatprep.subr.bf16.mxu0 0
      %2704 = vmatpush1.bf16.msra.mxu0 %v1875
      %2705 = vmatprep.subr.bf16.mxu0 0
      %2706 = vmatpush1.bf16.msra.mxu0 %v1876
      %2707 = vmatprep.subr.bf16.mxu0 0
      %2708 = vmatpush1.bf16.msra.mxu0 %v1877
      %2709 = vmatprep.subr.bf16.mxu0 0
      %2710 = vmatpush1.bf16.msra.mxu0 %v1878
      %2711 = vmatprep.subr.bf16.mxu0 0
      %2712 = vmatpush1.bf16.msra.mxu0 %v1879
      %2713 = vmatprep.subr.bf16.mxu0 0
      %2714 = vmatpush1.bf16.msra.mxu0 %v1880
      %2715 = vmatprep.subr.bf16.mxu0 0
      %2716 = vmatpush1.bf16.msra.mxu0 %v1881
      %2717 = vmatprep.subr.bf16.mxu0 0
      %2718 = vmatpush1.bf16.msra.mxu0 %v1882
      %2719 = vmatprep.subr.bf16.mxu0 0
      %2720 = vmatpush1.bf16.msra.mxu0 %v1883
      %2721 = vmatprep.subr.bf16.mxu0 0
      %2722 = vmatpush1.bf16.msra.mxu0 %v1884
      %2723 = vmatprep.subr.bf16.mxu0 0
      %2724 = vmatpush1.bf16.msra.mxu0 %v1885
      %2725 = vmatprep.mubr.bf16.mxu0 %v1005
      %2726 = vmatmul.mubr.bf16.gmra.mrb[0].mxu0 %v1004
      %v2727 = vpop.f32.mrb[0].mxu0
      %v2728 = vadd.f32 %v2631, %v2727
      %v2729 = vpop.f32.mrb[0].mxu0
      %v2730 = vpop.f32.mrb[0].mxu0
      %v2731 = vadd.f32 %v2634, %v2730
      %v2732 = vpop.f32.mrb[0].mxu0
      %2733 = vmatprep.mubr.bf16.mxu0 %v1021
      %2734 = vmatmul.mubr.bf16.gmra.mrb[0].mxu0 %v1020
      %v2735 = vpop.f32.mrb[0].mxu0
      %v2736 = vadd.f32 %v2639, %v2735
      %v2737 = vpop.f32.mrb[0].mxu0
      %v2738 = vpop.f32.mrb[0].mxu0
      %v2739 = vadd.f32 %v2642, %v2738
      %v2740 = vpop.f32.mrb[0].mxu0
      %2741 = vmatprep.mubr.bf16.mxu0 %v1037
      %2742 = vmatmul.mubr.bf16.gmra.mrb[0].mxu0 %v1036
      %v2743 = vpop.f32.mrb[0].mxu0
      %v2744 = vadd.f32 %v2647, %v2743
      %v2745 = vpop.f32.mrb[0].mxu0
      %v2746 = vpop.f32.mrb[0].mxu0
      %v2747 = vadd.f32 %v2650, %v2746
      %v2748 = vpop.f32.mrb[0].mxu0
      %2749 = vmatprep.mubr.bf16.mxu0 %v1053
      %2750 = vmatmul.mubr.bf16.gmra.mrb[0].mxu0 %v1052
      %v2751 = vpop.f32.mrb[0].mxu0
      %v2752 = vadd.f32 %v2655, %v2751
      %v2753 = vpop.f32.mrb[0].mxu0
      %v2754 = vpop.f32.mrb[0].mxu0
      %v2755 = vadd.f32 %v2658, %v2754
      %v2756 = vpop.f32.mrb[0].mxu0
      %2757 = vmatprep.mubr.bf16.mxu0 %v1069
      %2758 = vmatmul.mubr.bf16.gmra.mrb[0].mxu0 %v1068
      %v2759 = vpop.f32.mrb[0].mxu0
      %v2760 = vadd.f32 %v2663, %v2759
      %v2761 = vpop.f32.mrb[0].mxu0
      %v2762 = vpop.f32.mrb[0].mxu0
      %v2763 = vadd.f32 %v2666, %v2762
      %v2764 = vpop.f32.mrb[0].mxu0
      %2765 = vmatprep.mubr.bf16.mxu0 %v1085
      %2766 = vmatmul.mubr.bf16.gmra.mrb[0].mxu0 %v1084
      %v2767 = vpop.f32.mrb[0].mxu0
      %v2768 = vadd.f32 %v2671, %v2767
      %v2769 = vpop.f32.mrb[0].mxu0
      %v2770 = vpop.f32.mrb[0].mxu0
      %v2771 = vadd.f32 %v2674, %v2770
      %v2772 = vpop.f32.mrb[0].mxu0
      %2773 = vmatprep.mubr.bf16.mxu0 %v1101
      %2774 = vmatmul.mubr.bf16.gmra.mrb[0].mxu0 %v1100
      %v2775 = vpop.f32.mrb[0].mxu0
      %v2776 = vadd.f32 %v2679, %v2775
      %v2777 = vpop.f32.mrb[0].mxu0
      %v2778 = vpop.f32.mrb[0].mxu0
      %v2779 = vadd.f32 %v2682, %v2778
      %v2780 = vpop.f32.mrb[0].mxu0
      %2781 = vmatprep.mubr.bf16.mxu0 %v1117
      %2782 = vmatmul.mubr.bf16.gmra.mrb[0].mxu0 %v1116
      %v2783 = vpop.f32.mrb[0].mxu0
      %v2784 = vadd.f32 %v2687, %v2783
      %v2785 = vpop.f32.mrb[0].mxu0
      %v2786 = vpop.f32.mrb[0].mxu0
      %v2787 = vadd.f32 %v2690, %v2786
      %v2788 = vpop.f32.mrb[0].mxu0
      %2789 = vdwg.mxu0
      %p2790 = scmp.eq.s32.totalorder %s19, 0
      %p2791 = scmp.eq.s32.totalorder %s20, 0
      %p2792 = pnand %p2790, %p2791
      %p2793 = pneg %p2792
      // Predicated region
      $region37: #{discriminator_forward.5} parent=35 // pred_check
        _
      $region38: #{discriminator_forward.5} parent=35 // pred_check_branch
        %2795 = sbr.rel (%p2792) target = $region40
      $region39: #{discriminator_forward.5} parent=35 // pred_region
        %2796 = vst [vmem:[#allocation2] sm:$0x1] 0.0
        %2797 = vst [vmem:[#allocation3] sm:$0x1] 0.0
      $region40: #{discriminator_forward.5} parent=35 // pred_fallthru
        _
      // Predicated region
      $region41: #{discriminator_forward.5} parent=35 // pred_check
        %p2798 = pneg %p2790
      $region42: #{discriminator_forward.5} parent=35 // pred_check_branch
        %2800 = sbr.rel (%p2798) target = $region44
      $region43: #{discriminator_forward.5} parent=35 // pred_region
        %v2801 = vld [vmem:[#allocation2] sm:$0x1]
        %v2802 = vadd.f32 %v2728, %v2731
        %v2803 = vadd.f32 %v2802, %v2736
        %v2804 = vadd.f32 %v2803, %v2739
        %v2805 = vadd.f32 %v2804, %v2744
        %v2806 = vadd.f32 %v2805, %v2747
        %v2807 = vadd.f32 %v2806, %v2752
        %v2808 = vadd.f32 %v2807, %v2755
        %v2809 = vadd.f32 %v2808, %v2760
        %v2810 = vadd.f32 %v2809, %v2763
        %v2811 = vadd.f32 %v2810, %v2768
        %v2812 = vadd.f32 %v2811, %v2771
        %v2813 = vadd.f32 %v2812, %v2776
        %v2814 = vadd.f32 %v2813, %v2779
        %v2815 = vadd.f32 %v2814, %v2784
        %v2816 = vadd.f32 %v2815, %v2787
        %v2817 = vrot.slane %v2816, 4
        %v2818 = vadd.f32 %v2816, %v2817
        %v2819 = vrot.slane %v2818, 2
        %v2820 = vadd.f32 %v2818, %v2819
        %v2821 = vrot.slane %v2820, 1
        %v2822 = vadd.f32 %v2820, %v2821
        %v2823 = vadd.f32 %v2801, %v2822
        %2824 = vst [vmem:[#allocation2] sm:$0x1] %v2823
        %v2825 = vld [vmem:[#allocation3] sm:$0x1]
        %v2826 = vmul.f32 %v2728, %v2728
        %v2827 = vmul.f32 %v2731, %v2731
        %v2828 = vmul.f32 %v2736, %v2736
        %v2829 = vmul.f32 %v2739, %v2739
        %v2830 = vmul.f32 %v2744, %v2744
        %v2831 = vmul.f32 %v2747, %v2747
        %v2832 = vmul.f32 %v2752, %v2752
        %v2833 = vmul.f32 %v2755, %v2755
        %v2834 = vmul.f32 %v2760, %v2760
        %v2835 = vmul.f32 %v2763, %v2763
        %v2836 = vmul.f32 %v2768, %v2768
        %v2837 = vmul.f32 %v2771, %v2771
        %v2838 = vmul.f32 %v2776, %v2776
        %v2839 = vmul.f32 %v2779, %v2779
        %v2840 = vmul.f32 %v2784, %v2784
        %v2841 = vmul.f32 %v2787, %v2787
        %v2842 = vadd.f32 %v2826, %v2827
        %v2843 = vadd.f32 %v2842, %v2828
        %v2844 = vadd.f32 %v2843, %v2829
        %v2845 = vadd.f32 %v2844, %v2830
        %v2846 = vadd.f32 %v2845, %v2831
        %v2847 = vadd.f32 %v2846, %v2832
        %v2848 = vadd.f32 %v2847, %v2833
        %v2849 = vadd.f32 %v2848, %v2834
        %v2850 = vadd.f32 %v2849, %v2835
        %v2851 = vadd.f32 %v2850, %v2836
        %v2852 = vadd.f32 %v2851, %v2837
        %v2853 = vadd.f32 %v2852, %v2838
        %v2854 = vadd.f32 %v2853, %v2839
        %v2855 = vadd.f32 %v2854, %v2840
        %v2856 = vadd.f32 %v2855, %v2841
        %v2857 = vrot.slane %v2856, 4
        %v2858 = vadd.f32 %v2856, %v2857
        %v2859 = vrot.slane %v2858, 2
        %v2860 = vadd.f32 %v2858, %v2859
        %v2861 = vrot.slane %v2860, 1
        %v2862 = vadd.f32 %v2860, %v2861
        %v2863 = vadd.f32 %v2825, %v2862
        %2864 = vst [vmem:[#allocation3] sm:$0x1] %v2863
      $region44: #{discriminator_forward.5} parent=35 // pred_fallthru
        _
      %p2865 = scmp.eq.s32.totalorder %s19, 1
      %p2866 = pnand %p2865, %p2791
      %p2867 = pneg %p2866
      // Predicated region
      $region45: #{discriminator_forward.5} parent=35 // pred_check
        _
      $region46: #{discriminator_forward.5} parent=35 // pred_check_branch
        %2869 = sbr.rel (%p2866) target = $region48
      $region47: #{discriminator_forward.5} parent=35 // pred_region
        %v2870 = vld [vmem:[#allocation2] sm:$0x1]
        %v2871 = vmul.f32 %v2870, 0.0078125
        %v2872 = vld [vmem:[#allocation3] sm:$0x1]
        %v2873 = vmul.f32 %v2872, 0.0078125
        %v2874 = vmul.f32 %v2871, %v2871
        %v2875 = vsub.f32 %v2873, %v2874
        %v2876 = vmax.f32 %v2875, 0.0
        %v2877 = vadd.f32 %v2876, 1e-05
        %v2878 = vrsqrt.pop %v2877
        %v2879 = vld [vmem:[%s2] sm:$0x1]
        %v2880 = vmul.f32 %v2879, %v2878
        %2881 = vst [vmem:[#allocation4] sm:$0x1] %v2880
        %v2882 = vld [vmem:[%s3] sm:$0x1]
        %v2883 = vld [vmem:[%s2] sm:$0x1]
        %v2884 = vmul.f32 %v2871, %v2883
        %v2885 = vmul.f32 %v2884, %v2878
        %v2886 = vsub.f32 %v2882, %v2885
        %2887 = vst [vmem:[#allocation5] sm:$0x1] %v2886
      $region48: #{discriminator_forward.5} parent=35 // pred_fallthru
        _
      // Predicated region
      $region49: #{discriminator_forward.5} parent=35 // pred_check
        %p2888 = pneg %p2865
      $region50: #{discriminator_forward.5} parent=35 // pred_check_branch
        %2890 = sbr.rel (%p2888) target = $region52
      $region51: #{discriminator_forward.5} parent=35 // pred_region
        %v2891 = vld [vmem:[#allocation4] sm:$0x1]
        %v2893 = vlaneseq
        %v2894 = vshrl.u32 %v2893, 7
        %v2895 = vsub.s32 0, %v2894
        %v2896 = vrot.slane %v2891, %v2895
        %v2898 = vmul.f32 %v2728, %v2896
        %v2899 = vmul.f32 %v2731, %v2896
        %v2900 = vmul.f32 %v2736, %v2896
        %v2901 = vmul.f32 %v2739, %v2896
        %v2902 = vmul.f32 %v2744, %v2896
        %v2903 = vmul.f32 %v2747, %v2896
        %v2904 = vmul.f32 %v2752, %v2896
        %v2905 = vmul.f32 %v2755, %v2896
        %v2906 = vmul.f32 %v2760, %v2896
        %v2907 = vmul.f32 %v2763, %v2896
        %v2908 = vmul.f32 %v2768, %v2896
        %v2909 = vmul.f32 %v2771, %v2896
        %v2910 = vmul.f32 %v2776, %v2896
        %v2911 = vmul.f32 %v2779, %v2896
        %v2912 = vmul.f32 %v2784, %v2896
        %v2913 = vmul.f32 %v2787, %v2896
        %v2914 = vld [vmem:[#allocation5] sm:$0x1]
        %v2916 = vlaneseq
        %v2917 = vshrl.u32 %v2916, 7
        %v2918 = vsub.s32 0, %v2917
        %v2919 = vrot.slane %v2914, %v2918
        %v2921 = vadd.f32 %v2898, %v2919
        %v2922 = vadd.f32 %v2899, %v2919
        %v2923 = vadd.f32 %v2900, %v2919
        %v2924 = vadd.f32 %v2901, %v2919
        %v2925 = vadd.f32 %v2902, %v2919
        %v2926 = vadd.f32 %v2903, %v2919
        %v2927 = vadd.f32 %v2904, %v2919
        %v2928 = vadd.f32 %v2905, %v2919
        %v2929 = vadd.f32 %v2906, %v2919
        %v2930 = vadd.f32 %v2907, %v2919
        %v2931 = vadd.f32 %v2908, %v2919
        %v2932 = vadd.f32 %v2909, %v2919
        %v2933 = vadd.f32 %v2910, %v2919
        %v2934 = vadd.f32 %v2911, %v2919
        %v2935 = vadd.f32 %v2912, %v2919
        %v2936 = vadd.f32 %v2913, %v2919
        %vm2937 = vcmp.gt.f32.partialorder %v2921, 0.0
        %vm2938 = vcmp.gt.f32.partialorder %v2922, 0.0
        %vm2939 = vcmp.gt.f32.partialorder %v2923, 0.0
        %vm2940 = vcmp.gt.f32.partialorder %v2924, 0.0
        %vm2941 = vcmp.gt.f32.partialorder %v2925, 0.0
        %vm2942 = vcmp.gt.f32.partialorder %v2926, 0.0
        %vm2943 = vcmp.gt.f32.partialorder %v2927, 0.0
        %vm2944 = vcmp.gt.f32.partialorder %v2928, 0.0
        %vm2945 = vcmp.gt.f32.partialorder %v2929, 0.0
        %vm2946 = vcmp.gt.f32.partialorder %v2930, 0.0
        %vm2947 = vcmp.gt.f32.partialorder %v2931, 0.0
        %vm2948 = vcmp.gt.f32.partialorder %v2932, 0.0
        %vm2949 = vcmp.gt.f32.partialorder %v2933, 0.0
        %vm2950 = vcmp.gt.f32.partialorder %v2934, 0.0
        %vm2951 = vcmp.gt.f32.partialorder %v2935, 0.0
        %vm2952 = vcmp.gt.f32.partialorder %v2936, 0.0
        %v2953 = vmul.f32 %v2921, 0.2
        %v2954 = vmul.f32 %v2922, 0.2
        %v2955 = vmul.f32 %v2923, 0.2
        %v2956 = vmul.f32 %v2924, 0.2
        %v2957 = vmul.f32 %v2925, 0.2
        %v2958 = vmul.f32 %v2926, 0.2
        %v2959 = vmul.f32 %v2927, 0.2
        %v2960 = vmul.f32 %v2928, 0.2
        %v2961 = vmul.f32 %v2929, 0.2
        %v2962 = vmul.f32 %v2930, 0.2
        %v2963 = vmul.f32 %v2931, 0.2
        %v2964 = vmul.f32 %v2932, 0.2
        %v2965 = vmul.f32 %v2933, 0.2
        %v2966 = vmul.f32 %v2934, 0.2
        %v2967 = vmul.f32 %v2935, 0.2
        %v2968 = vmul.f32 %v2936, 0.2
        %v2969 = vsel %vm2937, %v2921, %v2953
        %v2970 = vsel %vm2938, %v2922, %v2954
        %v2971 = vsel %vm2939, %v2923, %v2955
        %v2972 = vsel %vm2940, %v2924, %v2956
        %v2973 = vsel %vm2941, %v2925, %v2957
        %v2974 = vsel %vm2942, %v2926, %v2958
        %v2975 = vsel %vm2943, %v2927, %v2959
        %v2976 = vsel %vm2944, %v2928, %v2960
        %v2977 = vsel %vm2945, %v2929, %v2961
        %v2978 = vsel %vm2946, %v2930, %v2962
        %v2979 = vsel %vm2947, %v2931, %v2963
        %v2980 = vsel %vm2948, %v2932, %v2964
        %v2981 = vsel %vm2949, %v2933, %v2965
        %v2982 = vsel %vm2950, %v2934, %v2966
        %v2983 = vsel %vm2951, %v2935, %v2967
        %v2984 = vsel %vm2952, %v2936, %v2968
        %v2985 = vpack.c.bf16 %v2970, %v2969
        %v2986 = vpack.c.bf16 %v2972, %v2971
        %v2987 = vpack.c.bf16 %v2974, %v2973
        %v2988 = vpack.c.bf16 %v2976, %v2975
        %v2989 = vpack.c.bf16 %v2978, %v2977
        %v2990 = vpack.c.bf16 %v2980, %v2979
        %v2991 = vpack.c.bf16 %v2982, %v2981
        %v2992 = vpack.c.bf16 %v2984, %v2983
        %v3001 = vunpack.c.l.b16 %v2985
        %v3002 = vunpack.c.h.b16 %v2985
        %v3003 = vunpack.c.l.b16 %v2986
        %v3004 = vunpack.c.h.b16 %v2986
        %v3005 = vunpack.c.l.b16 %v2987
        %v3006 = vunpack.c.h.b16 %v2987
        %v3007 = vunpack.c.l.b16 %v2988
        %v3008 = vunpack.c.h.b16 %v2988
        %v3009 = vunpack.c.l.b16 %v2989
        %v3010 = vunpack.c.h.b16 %v2989
        %v3011 = vunpack.c.l.b16 %v2990
        %v3012 = vunpack.c.h.b16 %v2990
        %v3013 = vunpack.c.l.b16 %v2991
        %v3014 = vunpack.c.h.b16 %v2991
        %v3015 = vunpack.c.l.b16 %v2992
        %v3016 = vunpack.c.h.b16 %v2992
        %v3017 = vpack.c.b16 %v3001, %v3001
        %v3018 = vpack.c.b16 %v3002, %v3002
        %v3019 = vpack.c.b16 %v3003, %v3003
        %v3020 = vpack.c.b16 %v3004, %v3004
        %v3021 = vpack.c.b16 %v3005, %v3005
        %v3022 = vpack.c.b16 %v3006, %v3006
        %v3023 = vpack.c.b16 %v3007, %v3007
        %v3024 = vpack.c.b16 %v3008, %v3008
        %v3025 = vpack.c.b16 %v3009, %v3009
        %v3026 = vpack.c.b16 %v3010, %v3010
        %v3027 = vpack.c.b16 %v3011, %v3011
        %v3028 = vpack.c.b16 %v3012, %v3012
        %v3029 = vpack.c.b16 %v3013, %v3013
        %v3030 = vpack.c.b16 %v3014, %v3014
        %v3031 = vpack.c.b16 %v3015, %v3015
        %v3032 = vpack.c.b16 %v3016, %v3016
        %3049 = vst [vmem:[%s218] sm:$0xf] %v3017
        %3050 = vst [vmem:[%s218 + $0x4] sm:$0xf] %v3018
        %3051 = vst [vmem:[%s218 + $0x8] sm:$0xf] %v3019
        %3052 = vst [vmem:[%s218 + $0xc] sm:$0xf] %v3020
        %3053 = vst [vmem:[%s218 + $0x10] sm:$0xf] %v3021
        %3054 = vst [vmem:[%s218 + $0x14] sm:$0xf] %v3022
        %3055 = vst [vmem:[%s218 + $0x18] sm:$0xf] %v3023
        %3056 = vst [vmem:[%s218 + $0x1c] sm:$0xf] %v3024
        %3057 = vst [vmem:[%s218 + $0x20] sm:$0xf] %v3025
        %3058 = vst [vmem:[%s218 + $0x24] sm:$0xf] %v3026
        %3059 = vst [vmem:[%s218 + $0x28] sm:$0xf] %v3027
        %3060 = vst [vmem:[%s218 + $0x2c] sm:$0xf] %v3028
        %3061 = vst [vmem:[%s218 + $0x30] sm:$0xf] %v3029
        %3062 = vst [vmem:[%s218 + $0x34] sm:$0xf] %v3030
        %3063 = vst [vmem:[%s218 + $0x38] sm:$0xf] %v3031
        %3064 = vst [vmem:[%s218 + $0x3c] sm:$0xf] %v3032
      $region52: #{discriminator_forward.5} parent=35 // pred_fallthru
        _
      %s3065 = smul.u32 %s20, %s19
      %s3066 = smul.u32 16, %s3065
      %p3067 = scmp.lt.s32.totalorder %s3066, 15
      %s3068 = scalar_select %p3067, %s3066, 15
      %s3069 = smul.addr %s3068, 4
      %s3070 = scalar_lea.vmem %s4, %s3069
      // Predicated region
      $region53: #{discriminator_forward.5} parent=35 // pred_check
        %p3071 = pneg %p136
      $region54: #{discriminator_forward.5} parent=35 // pred_check_branch
        %3073 = sbr.rel (%p3071) target = $region56
      $region55: #{discriminator_forward.5} parent=35 // pred_region
        %s3074 = smul.u32 %s20, %s19
        %s3075 = smul.u32 16, %s3074
      $region56: #{discriminator_forward.5} parent=35 // pred_fallthru
        _
    $region36: #{discriminator_forward.5} parent=5 // pred_fallthru
      _
    %p3076 = scmp.le.s32.totalorder 2, %s10
    // Predicated region
    $region57: #{discriminator_forward.5} parent=5 // pred_check
      %p3077 = pneg %p3076
    $region58: #{discriminator_forward.5} parent=5 // pred_check_branch
      %3079 = sbr.rel (%p3077) target = $region60
    $region59: #{discriminator_forward.5} parent=5 // pred_region
      %s3080 = ssub.s32 %s10, 2
      // Predicated region
      $region61: #{discriminator_forward.5} parent=59 // pred_check
        %p3081 = pneg %p142
      $region62: #{discriminator_forward.5} parent=59 // pred_check_branch
        %3083 = sbr.rel (%p3081) target = $region64
      $region63: #{discriminator_forward.5} parent=59 // pred_region
        %s3084 = smul.u32 %s22, %s21
        %s3085 = smul.u32 16, %s3084
        %p3086 = scmp.lt.s32.totalorder %s3085, 15
        %s3087 = scalar_select %p3086, %s3085, 15
        %s3088 = smul.addr %s3087, 4
        %s3089 = scalar_lea.vmem %s4, %s3088
      $region64: #{discriminator_forward.5} parent=59 // pred_fallthru
        _
    $region60: #{discriminator_forward.5} parent=5 // pred_fallthru
      _
  $region6: #{discriminator_forward.5} parent=0 // loop_footer
    %s14 = sadd.s32 1, %s10
  $region7: #{discriminator_forward.5} parent=0 // loop_footer_branch
    %9 = sbr.rel target = $region3
  $region8: #{discriminator_forward.5} parent=0 // loop_exit
    _

// kernel: discriminator_forward.6
$region0: #{discriminator_forward.6}
  #allocation0 [shape = 'u32[]', space=smem, size = 0x4, offset = 0x4, fixed_abs, tag = 'smem constant byte address 0x4 - core index']
  #allocation1 [shape = 'u32[144,128]{1,0:T(1,128)}', space=vmem, size = 0x12000, scoped, tag = 'internal scratch']
  #allocation2 [shape = 'f32[1,128]{1,0:T(1,128)}', space=vmem, size = 0x200, scoped, tag = 'scratch operand']
  #allocation3 [shape = 'f32[1,128]{1,0:T(1,128)}', space=vmem, size = 0x200, scoped, tag = 'scratch operand']
  #allocation4 [shape = 'f32[1,128]{1,0:T(1,128)}', space=vmem, size = 0x200, scoped, tag = 'scratch operand']
  #allocation5 [shape = 'f32[1,128]{1,0:T(1,128)}', space=vmem, size = 0x200, scoped, tag = 'scratch operand']
  %s0 = inlined_call_operand.vmem [shape: bf16[32,2048], index: 0, kind: input, shape index: {}]
  %s1 = inlined_call_operand.vmem [shape: bf16[2048,128], index: 1, kind: input, shape index: {}]
  %s2 = inlined_call_operand.vmem [shape: f32[1,128], index: 2, kind: input, shape index: {}]
  %s3 = inlined_call_operand.vmem [shape: f32[1,128], index: 3, kind: input, shape index: {}]
  %s4 = inlined_call_operand.vmem [shape: bf16[32,128], index: 4, kind: output, shape index: {}]
  %s5 = sld [smem:[#allocation0]]
  $region65: #{discriminator_forward.6} parent=0
    _
  %s7 = ssub.s32 1, %s5
  %s8 = scalar_select 0, %s7, %s5
  loop: start=0, step=1, limit=4
  $region2: #{discriminator_forward.6} parent=0 // loop_pre_header
    _
  $region3: #{discriminator_forward.6} parent=0 // loop_header
    %s10 = sphi 0, %s14
    %p11 = scmp.ge.s32.totalorder %s10, 4
    %s17 = sphi 0, %s29
    %s18 = sphi 0, %s25
    %s19 = sphi 0, %s17
    %s20 = sphi 0, %s18
    %s21 = sphi 0, %s19
    %s22 = sphi 0, %s20
    %s32 = sphi 0, %s34
    %s35 = sphi 0, %s32
    %s36 = sphi 0, %s35
    %s52 = sphi 0, %s36
    %s56 = sphi 0, %s56
    %s58 = sphi 0, %s56
    %s59 = sphi 0, %s58
    %s73 = sphi 0, %s59
    %s77 = sphi 0, %s77
    %s79 = sphi 0, %s77
    %s80 = sphi 0, %s79
    %s94 = sphi 0, %s80
    %s98 = sphi 0, %s98
    %s100 = sphi 0, %s98
    %s101 = sphi 0, %s100
    %s115 = sphi 0, %s101
    %s123 = sphi 0, %s125
    %s126 = sphi 0, %s123
    %s127 = sphi 0, %s126
    %s143 = sphi 0, %s127
  $region4: #{discriminator_forward.6} parent=0 // loop_header_branch
    %13 = sbr.rel (%p11) target = $region8
  $region5: #{discriminator_forward.6} parent=0 // loop_body
    %s15 = ssub.s32 %s10, 1
    %s16 = ssub.s32 %s10, 2
    %s23 = sadd.s32 1, %s18
    %p24 = scmp.ge.s32.totalorder %s23, 1
    %s25 = scalar_select %p24, 0, %s23
    %s26 = sadd.s32 1, %s17
    %s27 = scalar_select %p24, %s26, %s17
    %p28 = scmp.ge.s32.totalorder %s27, 2
    %s29 = scalar_select %p28, 0, %s27
    %s30 = ssub.s32 %s18, %s25
    %p31 = scmp.eq.s32.totalorder %s30, 0
    %s33 = sadd.s32 %s32, 1
    %s34 = scalar_select %p31, %s32, %s33
    %p37 = pneg %p31
    %p38 = scmp.eq.s32.totalorder %s10, 1
    %p39 = por %p37, %p38
    %p40 = scmp.ne.s32.totalorder %s32, %s35
    %p41 = scmp.eq.s32.totalorder %s10, 0
    %p42 = por %p40, %p41
    %p43 = scmp.ne.s32.totalorder %s32, %s35
    %p44 = scmp.eq.s32.totalorder %s15, 1
    %p45 = por %p43, %p44
    %p46 = scmp.ne.s32.totalorder %s35, %s36
    %p47 = scmp.eq.s32.totalorder %s15, 0
    %p48 = por %p46, %p47
    %p49 = scmp.ne.s32.totalorder %s35, %s36
    %p50 = scmp.eq.s32.totalorder %s16, 1
    %p51 = por %p49, %p50
    %p53 = scmp.ne.s32.totalorder %s36, %s52
    %p54 = scmp.eq.s32.totalorder %s16, 0
    %p55 = por %p53, %p54
    %s57 = sadd.s32 %s56, 1
    %p60 = scmp.eq.s32.totalorder %s10, 1
    %p61 = scmp.ne.s32.totalorder %s56, %s58
    %p62 = scmp.eq.s32.totalorder %s10, 0
    %p63 = por %p61, %p62
    %p64 = scmp.ne.s32.totalorder %s56, %s58
    %p65 = scmp.eq.s32.totalorder %s15, 1
    %p66 = por %p64, %p65
    %p67 = scmp.ne.s32.totalorder %s58, %s59
    %p68 = scmp.eq.s32.totalorder %s15, 0
    %p69 = por %p67, %p68
    %p70 = scmp.ne.s32.totalorder %s58, %s59
    %p71 = scmp.eq.s32.totalorder %s16, 1
    %p72 = por %p70, %p71
    %p74 = scmp.ne.s32.totalorder %s59, %s73
    %p75 = scmp.eq.s32.totalorder %s16, 0
    %p76 = por %p74, %p75
    %s78 = sadd.s32 %s77, 1
    %p81 = scmp.eq.s32.totalorder %s10, 1
    %p82 = scmp.ne.s32.totalorder %s77, %s79
    %p83 = scmp.eq.s32.totalorder %s10, 0
    %p84 = por %p82, %p83
    %p85 = scmp.ne.s32.totalorder %s77, %s79
    %p86 = scmp.eq.s32.totalorder %s15, 1
    %p87 = por %p85, %p86
    %p88 = scmp.ne.s32.totalorder %s79, %s80
    %p89 = scmp.eq.s32.totalorder %s15, 0
    %p90 = por %p88, %p89
    %p91 = scmp.ne.s32.totalorder %s79, %s80
    %p92 = scmp.eq.s32.totalorder %s16, 1
    %p93 = por %p91, %p92
    %p95 = scmp.ne.s32.totalorder %s80, %s94
    %p96 = scmp.eq.s32.totalorder %s16, 0
    %p97 = por %p95, %p96
    %s99 = sadd.s32 %s98, 1
    %p102 = scmp.eq.s32.totalorder %s10, 1
    %p103 = scmp.ne.s32.totalorder %s98, %s100
    %p104 = scmp.eq.s32.totalorder %s10, 0
    %p105 = por %p103, %p104
    %p106 = scmp.ne.s32.totalorder %s98, %s100
    %p107 = scmp.eq.s32.totalorder %s15, 1
    %p108 = por %p106, %p107
    %p109 = scmp.ne.s32.totalorder %s100, %s101
    %p110 = scmp.eq.s32.totalorder %s15, 0
    %p111 = por %p109, %p110
    %p112 = scmp.ne.s32.totalorder %s100, %s101
    %p113 = scmp.eq.s32.totalorder %s16, 1
    %p114 = por %p112, %p113
    %p116 = scmp.ne.s32.totalorder %s101, %s115
    %p117 = scmp.eq.s32.totalorder %s16, 0
    %p118 = por %p116, %p117
    %s119 = smul.u32 %s18, %s17
    %s120 = smul.u32 %s25, %s29
    %s121 = ssub.s32 %s119, %s120
    %p122 = scmp.eq.s32.totalorder %s121, 0
    %s124 = sadd.s32 %s123, 1
    %s125 = scalar_select %p122, %s123, %s124
    %p128 = pneg %p122
    %p129 = scmp.eq.s32.totalorder %s10, 1
    %p130 = por %p128, %p129
    %p131 = scmp.ne.s32.totalorder %s123, %s126
    %p132 = scmp.eq.s32.totalorder %s10, 0
    %p133 = por %p131, %p132
    %p134 = scmp.ne.s32.totalorder %s123, %s126
    %p135 = scmp.eq.s32.totalorder %s15, 1
    %p136 = por %p134, %p135
    %p137 = scmp.ne.s32.totalorder %s126, %s127
    %p138 = scmp.eq.s32.totalorder %s15, 0
    %p139 = por %p137, %p138
    %p140 = scmp.ne.s32.totalorder %s126, %s127
    %p141 = scmp.eq.s32.totalorder %s16, 1
    %p142 = por %p140, %p141
    %p144 = scmp.ne.s32.totalorder %s127, %s143
    %p145 = scmp.eq.s32.totalorder %s16, 0
    %p146 = por %p144, %p145
    %p147 = scmp.le.s32.totalorder 1, %s10
    %p148 = scmp.lt.s32.totalorder %s10, 3
    %p149 = pnand %p147, %p148
    %p150 = pneg %p149
    // Predicated region
    $region9: #{discriminator_forward.6} parent=5 // pred_check
      _
    $region10: #{discriminator_forward.6} parent=5 // pred_check_branch
      %152 = sbr.rel (%p149) target = $region12
    $region11: #{discriminator_forward.6} parent=5 // pred_region
      %s153 = ssub.s32 %s10, 1
      // Predicated region
      $region13: #{discriminator_forward.6} parent=11 // pred_check
        %p154 = pneg %p48
      $region14: #{discriminator_forward.6} parent=11 // pred_check_branch
        %156 = sbr.rel (%p154) target = $region16
      $region15: #{discriminator_forward.6} parent=11 // pred_region
        %s157 = smul.u32 4, %s20
        %p158 = scmp.lt.s32.totalorder %s157, 3
        %s159 = scalar_select %p158, %s157, 3
        %s160 = smul.addr %s159, 16
        %s161 = smul.addr %s160, 4
        %s162 = scalar_lea.vmem %s0, %s161
        %s163 = smul.u32 4, %s20
      $region16: #{discriminator_forward.6} parent=11 // pred_fallthru
        _
      // Predicated region
      $region17: #{discriminator_forward.6} parent=11 // pred_check
        %p164 = pneg %p69
      $region18: #{discriminator_forward.6} parent=11 // pred_check_branch
        %166 = sbr.rel (%p164) target = $region20
      $region19: #{discriminator_forward.6} parent=11 // pred_region
        _
      $region20: #{discriminator_forward.6} parent=11 // pred_fallthru
        _
      // Predicated region
      $region21: #{discriminator_forward.6} parent=11 // pred_check
        %p167 = pneg %p90
      $region22: #{discriminator_forward.6} parent=11 // pred_check_branch
        %169 = sbr.rel (%p167) target = $region24
      $region23: #{discriminator_forward.6} parent=11 // pred_region
        _
      $region24: #{discriminator_forward.6} parent=11 // pred_fallthru
        _
      // Predicated region
      $region25: #{discriminator_forward.6} parent=11 // pred_check
        %p170 = pneg %p111
      $region26: #{discriminator_forward.6} parent=11 // pred_check_branch
        %172 = sbr.rel (%p170) target = $region28
      $region27: #{discriminator_forward.6} parent=11 // pred_region
        _
      $region28: #{discriminator_forward.6} parent=11 // pred_fallthru
        _
    $region12: #{discriminator_forward.6} parent=5 // pred_fallthru
      _
    %p173 = scmp.lt.s32.totalorder %s10, 2
    // Predicated region
    $region29: #{discriminator_forward.6} parent=5 // pred_check
      %p174 = pneg %p173
    $region30: #{discriminator_forward.6} parent=5 // pred_check_branch
      %176 = sbr.rel (%p174) target = $region32
    $region31: #{discriminator_forward.6} parent=5 // pred_region
      _
    $region32: #{discriminator_forward.6} parent=5 // pred_fallthru
      _
    %p177 = scmp.le.s32.totalorder 1, %s10
    %p178 = scmp.lt.s32.totalorder %s10, 3
    %p179 = pnand %p177, %p178
    %p180 = pneg %p179
    // Predicated region
    $region33: #{discriminator_forward.6} parent=5 // pred_check
      _
    $region34: #{discriminator_forward.6} parent=5 // pred_check_branch
      %182 = sbr.rel (%p179) target = $region36
    $region35: #{discriminator_forward.6} parent=5 // pred_region
      %s183 = ssub.s32 %s10, 1
      %s184 = smul.u32 4, %s20
      %p185 = scmp.lt.s32.totalorder %s184, 3
      %s186 = scalar_select %p185, %s184, 3
      %s187 = smul.addr %s186, 16
      %s188 = smul.addr %s187, 4
      %s189 = scalar_lea.vmem %s0, %s188
      %p190 = pneg %p48
      %p191 = pneg %p45
      %p192 = pneg %p69
      %p193 = pneg %p66
      %p194 = pneg %p90
      %p195 = pneg %p87
      %p196 = pneg %p111
      %p197 = pneg %p108
      %p198 = pneg %p139
      %p199 = pneg %p136
      %s200 = smul.u32 %s20, %s19
      %s201 = smul.u32 4, %s200
      %p202 = scmp.lt.s32.totalorder %s201, 3
      %s203 = scalar_select %p202, %s201, 3
      %s204 = smul.addr %s203, 4
      %s205 = scalar_lea.vmem %s4, %s204
      %s206 = smul.u32 4, %s20
      %p207 = scmp.lt.s32.totalorder %s206, 3
      %s208 = scalar_select %p207, %s206, 3
      %s209 = smul.addr %s208, 16
      %s210 = smul.addr %s209, 4
      %s211 = scalar_lea.vmem %s0, %s210
      %s212 = smul.u32 4, %s20
      %s213 = smul.u32 %s20, %s19
      %s214 = smul.u32 4, %s213
      %p215 = scmp.lt.s32.totalorder %s214, 3
      %s216 = scalar_select %p215, %s214, 3
      %s217 = smul.addr %s216, 4
      %s218 = scalar_lea.vmem %s4, %s217
      %s219 = smul.u32 %s20, %s19
      %s220 = smul.u32 4, %s219
      %v222 = vld [vmem:[%s211] sm:$0xff]
      %v223 = vld [vmem:[%s211 + $0x8] sm:$0xff]
      %v224 = vld [vmem:[%s211 + $0x10] sm:$0xff]
      %v225 = vld [vmem:[%s211 + $0x18] sm:$0xff]
      %v226 = vld [vmem:[%s211 + $0x20] sm:$0xff]
      %v227 = vld [vmem:[%s211 + $0x28] sm:$0xff]
      %v228 = vld [vmem:[%s211 + $0x30] sm:$0xff]
      %v229 = vld [vmem:[%s211 + $0x38] sm:$0xff]
      %v230 = vld [vmem:[%s211 + $0x40] sm:$0xff]
      %v231 = vld [vmem:[%s211 + $0x48] sm:$0xff]
      %v232 = vld [vmem:[%s211 + $0x50] sm:$0xff]
      %v233 = vld [vmem:[%s211 + $0x58] sm:$0xff]
      %v234 = vld [vmem:[%s211 + $0x60] sm:$0xff]
      %v235 = vld [vmem:[%s211 + $0x68] sm:$0xff]
      %v236 = vld [vmem:[%s211 + $0x70] sm:$0xff]
      %v237 = vld [vmem:[%s211 + $0x78] sm:$0xff]
      %v238 = vld [vmem:[%s211 + $0x80] sm:$0xff]
      %v239 = vld [vmem:[%s211 + $0x88] sm:$0xff]
      %v240 = vld [vmem:[%s211 + $0x90] sm:$0xff]
      %v241 = vld [vmem:[%s211 + $0x98] sm:$0xff]
      %v242 = vld [vmem:[%s211 + $0xa0] sm:$0xff]
      %v243 = vld [vmem:[%s211 + $0xa8] sm:$0xff]
      %v244 = vld [vmem:[%s211 + $0xb0] sm:$0xff]
      %v245 = vld [vmem:[%s211 + $0xb8] sm:$0xff]
      %v246 = vld [vmem:[%s211 + $0xc0] sm:$0xff]
      %v247 = vld [vmem:[%s211 + $0xc8] sm:$0xff]
      %v248 = vld [vmem:[%s211 + $0xd0] sm:$0xff]
      %v249 = vld [vmem:[%s211 + $0xd8] sm:$0xff]
      %v250 = vld [vmem:[%s211 + $0xe0] sm:$0xff]
      %v251 = vld [vmem:[%s211 + $0xe8] sm:$0xff]
      %v252 = vld [vmem:[%s211 + $0xf0] sm:$0xff]
      %v253 = vld [vmem:[%s211 + $0xf8] sm:$0xff]
      %v254 = vld [vmem:[%s1] sm:$0xf]
      %v255 = vld [vmem:[%s1 + $0x4] sm:$0xf]
      %v256 = vld [vmem:[%s1 + $0x8] sm:$0xf]
      %v257 = vld [vmem:[%s1 + $0xc] sm:$0xf]
      %v258 = vld [vmem:[%s1 + $0x10] sm:$0xf]
      %v259 = vld [vmem:[%s1 + $0x14] sm:$0xf]
      %v260 = vld [vmem:[%s1 + $0x18] sm:$0xf]
      %v261 = vld [vmem:[%s1 + $0x1c] sm:$0xf]
      %v262 = vld [vmem:[%s1 + $0x20] sm:$0xf]
      %v263 = vld [vmem:[%s1 + $0x24] sm:$0xf]
      %v264 = vld [vmem:[%s1 + $0x28] sm:$0xf]
      %v265 = vld [vmem:[%s1 + $0x2c] sm:$0xf]
      %v266 = vld [vmem:[%s1 + $0x30] sm:$0xf]
      %v267 = vld [vmem:[%s1 + $0x34] sm:$0xf]
      %v268 = vld [vmem:[%s1 + $0x38] sm:$0xf]
      %v269 = vld [vmem:[%s1 + $0x3c] sm:$0xf]
      %v270 = vld [vmem:[%s1 + $0x40] sm:$0xf]
      %v271 = vld [vmem:[%s1 + $0x44] sm:$0xf]
      %v272 = vld [vmem:[%s1 + $0x48] sm:$0xf]
      %v273 = vld [vmem:[%s1 + $0x4c] sm:$0xf]
      %v274 = vld [vmem:[%s1 + $0x50] sm:$0xf]
      %v275 = vld [vmem:[%s1 + $0x54] sm:$0xf]
      %v276 = vld [vmem:[%s1 + $0x58] sm:$0xf]
      %v277 = vld [vmem:[%s1 + $0x5c] sm:$0xf]
      %v278 = vld [vmem:[%s1 + $0x60] sm:$0xf]
      %v279 = vld [vmem:[%s1 + $0x64] sm:$0xf]
      %v280 = vld [vmem:[%s1 + $0x68] sm:$0xf]
      %v281 = vld [vmem:[%s1 + $0x6c] sm:$0xf]
      %v282 = vld [vmem:[%s1 + $0x70] sm:$0xf]
      %v283 = vld [vmem:[%s1 + $0x74] sm:$0xf]
      %v284 = vld [vmem:[%s1 + $0x78] sm:$0xf]
      %v285 = vld [vmem:[%s1 + $0x7c] sm:$0xf]
      %v286 = vld [vmem:[%s1 + $0x80] sm:$0xf]
      %v287 = vld [vmem:[%s1 + $0x84] sm:$0xf]
      %v288 = vld [vmem:[%s1 + $0x88] sm:$0xf]
      %v289 = vld [vmem:[%s1 + $0x8c] sm:$0xf]
      %v290 = vld [vmem:[%s1 + $0x90] sm:$0xf]
      %v291 = vld [vmem:[%s1 + $0x94] sm:$0xf]
      %v292 = vld [vmem:[%s1 + $0x98] sm:$0xf]
      %v293 = vld [vmem:[%s1 + $0x9c] sm:$0xf]
      %v294 = vld [vmem:[%s1 + $0xa0] sm:$0xf]
      %v295 = vld [vmem:[%s1 + $0xa4] sm:$0xf]
      %v296 = vld [vmem:[%s1 + $0xa8] sm:$0xf]
      %v297 = vld [vmem:[%s1 + $0xac] sm:$0xf]
      %v298 = vld [vmem:[%s1 + $0xb0] sm:$0xf]
      %v299 = vld [vmem:[%s1 + $0xb4] sm:$0xf]
      %v300 = vld [vmem:[%s1 + $0xb8] sm:$0xf]
      %v301 = vld [vmem:[%s1 + $0xbc] sm:$0xf]
      %v302 = vld [vmem:[%s1 + $0xc0] sm:$0xf]
      %v303 = vld [vmem:[%s1 + $0xc4] sm:$0xf]
      %v304 = vld [vmem:[%s1 + $0xc8] sm:$0xf]
      %v305 = vld [vmem:[%s1 + $0xcc] sm:$0xf]
      %v306 = vld [vmem:[%s1 + $0xd0] sm:$0xf]
      %v307 = vld [vmem:[%s1 + $0xd4] sm:$0xf]
      %v308 = vld [vmem:[%s1 + $0xd8] sm:$0xf]
      %v309 = vld [vmem:[%s1 + $0xdc] sm:$0xf]
      %v310 = vld [vmem:[%s1 + $0xe0] sm:$0xf]
      %v311 = vld [vmem:[%s1 + $0xe4] sm:$0xf]
      %v312 = vld [vmem:[%s1 + $0xe8] sm:$0xf]
      %v313 = vld [vmem:[%s1 + $0xec] sm:$0xf]
      %v314 = vld [vmem:[%s1 + $0xf0] sm:$0xf]
      %v315 = vld [vmem:[%s1 + $0xf4] sm:$0xf]
      %v316 = vld [vmem:[%s1 + $0xf8] sm:$0xf]
      %v317 = vld [vmem:[%s1 + $0xfc] sm:$0xf]
      %v318 = vld [vmem:[%s1 + $0x100] sm:$0xf]
      %v319 = vld [vmem:[%s1 + $0x104] sm:$0xf]
      %v320 = vld [vmem:[%s1 + $0x108] sm:$0xf]
      %v321 = vld [vmem:[%s1 + $0x10c] sm:$0xf]
      %v322 = vld [vmem:[%s1 + $0x110] sm:$0xf]
      %v323 = vld [vmem:[%s1 + $0x114] sm:$0xf]
      %v324 = vld [vmem:[%s1 + $0x118] sm:$0xf]
      %v325 = vld [vmem:[%s1 + $0x11c] sm:$0xf]
      %v326 = vld [vmem:[%s1 + $0x120] sm:$0xf]
      %v327 = vld [vmem:[%s1 + $0x124] sm:$0xf]
      %v328 = vld [vmem:[%s1 + $0x128] sm:$0xf]
      %v329 = vld [vmem:[%s1 + $0x12c] sm:$0xf]
      %v330 = vld [vmem:[%s1 + $0x130] sm:$0xf]
      %v331 = vld [vmem:[%s1 + $0x134] sm:$0xf]
      %v332 = vld [vmem:[%s1 + $0x138] sm:$0xf]
      %v333 = vld [vmem:[%s1 + $0x13c] sm:$0xf]
      %v334 = vld [vmem:[%s1 + $0x140] sm:$0xf]
      %v335 = vld [vmem:[%s1 + $0x144] sm:$0xf]
      %v336 = vld [vmem:[%s1 + $0x148] sm:$0xf]
      %v337 = vld [vmem:[%s1 + $0x14c] sm:$0xf]
      %v338 = vld [vmem:[%s1 + $0x150] sm:$0xf]
      %v339 = vld [vmem:[%s1 + $0x154] sm:$0xf]
      %v340 = vld [vmem:[%s1 + $0x158] sm:$0xf]
      %v341 = vld [vmem:[%s1 + $0x15c] sm:$0xf]
      %v342 = vld [vmem:[%s1 + $0x160] sm:$0xf]
      %v343 = vld [vmem:[%s1 + $0x164] sm:$0xf]
      %v344 = vld [vmem:[%s1 + $0x168] sm:$0xf]
      %v345 = vld [vmem:[%s1 + $0x16c] sm:$0xf]
      %v346 = vld [vmem:[%s1 + $0x170] sm:$0xf]
      %v347 = vld [vmem:[%s1 + $0x174] sm:$0xf]
      %v348 = vld [vmem:[%s1 + $0x178] sm:$0xf]
      %v349 = vld [vmem:[%s1 + $0x17c] sm:$0xf]
      %v350 = vld [vmem:[%s1 + $0x180] sm:$0xf]
      %v351 = vld [vmem:[%s1 + $0x184] sm:$0xf]
      %v352 = vld [vmem:[%s1 + $0x188] sm:$0xf]
      %v353 = vld [vmem:[%s1 + $0x18c] sm:$0xf]
      %v354 = vld [vmem:[%s1 + $0x190] sm:$0xf]
      %v355 = vld [vmem:[%s1 + $0x194] sm:$0xf]
      %v356 = vld [vmem:[%s1 + $0x198] sm:$0xf]
      %v357 = vld [vmem:[%s1 + $0x19c] sm:$0xf]
      %v358 = vld [vmem:[%s1 + $0x1a0] sm:$0xf]
      %v359 = vld [vmem:[%s1 + $0x1a4] sm:$0xf]
      %v360 = vld [vmem:[%s1 + $0x1a8] sm:$0xf]
      %v361 = vld [vmem:[%s1 + $0x1ac] sm:$0xf]
      %v362 = vld [vmem:[%s1 + $0x1b0] sm:$0xf]
      %v363 = vld [vmem:[%s1 + $0x1b4] sm:$0xf]
      %v364 = vld [vmem:[%s1 + $0x1b8] sm:$0xf]
      %v365 = vld [vmem:[%s1 + $0x1bc] sm:$0xf]
      %v366 = vld [vmem:[%s1 + $0x1c0] sm:$0xf]
      %v367 = vld [vmem:[%s1 + $0x1c4] sm:$0xf]
      %v368 = vld [vmem:[%s1 + $0x1c8] sm:$0xf]
      %v369 = vld [vmem:[%s1 + $0x1cc] sm:$0xf]
      %v370 = vld [vmem:[%s1 + $0x1d0] sm:$0xf]
      %v371 = vld [vmem:[%s1 + $0x1d4] sm:$0xf]
      %v372 = vld [vmem:[%s1 + $0x1d8] sm:$0xf]
      %v373 = vld [vmem:[%s1 + $0x1dc] sm:$0xf]
      %v374 = vld [vmem:[%s1 + $0x1e0] sm:$0xf]
      %v375 = vld [vmem:[%s1 + $0x1e4] sm:$0xf]
      %v376 = vld [vmem:[%s1 + $0x1e8] sm:$0xf]
      %v377 = vld [vmem:[%s1 + $0x1ec] sm:$0xf]
      %v378 = vld [vmem:[%s1 + $0x1f0] sm:$0xf]
      %v379 = vld [vmem:[%s1 + $0x1f4] sm:$0xf]
      %v380 = vld [vmem:[%s1 + $0x1f8] sm:$0xf]
      %v381 = vld [vmem:[%s1 + $0x1fc] sm:$0xf]
      %v382 = vld [vmem:[%s1 + $0x200] sm:$0xf]
      %v383 = vld [vmem:[%s1 + $0x204] sm:$0xf]
      %v384 = vld [vmem:[%s1 + $0x208] sm:$0xf]
      %v385 = vld [vmem:[%s1 + $0x20c] sm:$0xf]
      %v386 = vld [vmem:[%s1 + $0x210] sm:$0xf]
      %v387 = vld [vmem:[%s1 + $0x214] sm:$0xf]
      %v388 = vld [vmem:[%s1 + $0x218] sm:$0xf]
      %v389 = vld [vmem:[%s1 + $0x21c] sm:$0xf]
      %v390 = vld [vmem:[%s1 + $0x220] sm:$0xf]
      %v391 = vld [vmem:[%s1 + $0x224] sm:$0xf]
      %v392 = vld [vmem:[%s1 + $0x228] sm:$0xf]
      %v393 = vld [vmem:[%s1 + $0x22c] sm:$0xf]
      %v394 = vld [vmem:[%s1 + $0x230] sm:$0xf]
      %v395 = vld [vmem:[%s1 + $0x234] sm:$0xf]
      %v396 = vld [vmem:[%s1 + $0x238] sm:$0xf]
      %v397 = vld [vmem:[%s1 + $0x23c] sm:$0xf]
      %v398 = vld [vmem:[%s1 + $0x240] sm:$0xf]
      %v399 = vld [vmem:[%s1 + $0x244] sm:$0xf]
      %v400 = vld [vmem:[%s1 + $0x248] sm:$0xf]
      %v401 = vld [vmem:[%s1 + $0x24c] sm:$0xf]
      %v402 = vld [vmem:[%s1 + $0x250] sm:$0xf]
      %v403 = vld [vmem:[%s1 + $0x254] sm:$0xf]
      %v404 = vld [vmem:[%s1 + $0x258] sm:$0xf]
      %v405 = vld [vmem:[%s1 + $0x25c] sm:$0xf]
      %v406 = vld [vmem:[%s1 + $0x260] sm:$0xf]
      %v407 = vld [vmem:[%s1 + $0x264] sm:$0xf]
      %v408 = vld [vmem:[%s1 + $0x268] sm:$0xf]
      %v409 = vld [vmem:[%s1 + $0x26c] sm:$0xf]
      %v410 = vld [vmem:[%s1 + $0x270] sm:$0xf]
      %v411 = vld [vmem:[%s1 + $0x274] sm:$0xf]
      %v412 = vld [vmem:[%s1 + $0x278] sm:$0xf]
      %v413 = vld [vmem:[%s1 + $0x27c] sm:$0xf]
      %v414 = vld [vmem:[%s1 + $0x280] sm:$0xf]
      %v415 = vld [vmem:[%s1 + $0x284] sm:$0xf]
      %v416 = vld [vmem:[%s1 + $0x288] sm:$0xf]
      %v417 = vld [vmem:[%s1 + $0x28c] sm:$0xf]
      %v418 = vld [vmem:[%s1 + $0x290] sm:$0xf]
      %v419 = vld [vmem:[%s1 + $0x294] sm:$0xf]
      %v420 = vld [vmem:[%s1 + $0x298] sm:$0xf]
      %v421 = vld [vmem:[%s1 + $0x29c] sm:$0xf]
      %v422 = vld [vmem:[%s1 + $0x2a0] sm:$0xf]
      %v423 = vld [vmem:[%s1 + $0x2a4] sm:$0xf]
      %v424 = vld [vmem:[%s1 + $0x2a8] sm:$0xf]
      %v425 = vld [vmem:[%s1 + $0x2ac] sm:$0xf]
      %v426 = vld [vmem:[%s1 + $0x2b0] sm:$0xf]
      %v427 = vld [vmem:[%s1 + $0x2b4] sm:$0xf]
      %v428 = vld [vmem:[%s1 + $0x2b8] sm:$0xf]
      %v429 = vld [vmem:[%s1 + $0x2bc] sm:$0xf]
      %v430 = vld [vmem:[%s1 + $0x2c0] sm:$0xf]
      %v431 = vld [vmem:[%s1 + $0x2c4] sm:$0xf]
      %v432 = vld [vmem:[%s1 + $0x2c8] sm:$0xf]
      %v433 = vld [vmem:[%s1 + $0x2cc] sm:$0xf]
      %v434 = vld [vmem:[%s1 + $0x2d0] sm:$0xf]
      %v435 = vld [vmem:[%s1 + $0x2d4] sm:$0xf]
      %v436 = vld [vmem:[%s1 + $0x2d8] sm:$0xf]
      %v437 = vld [vmem:[%s1 + $0x2dc] sm:$0xf]
      %v438 = vld [vmem:[%s1 + $0x2e0] sm:$0xf]
      %v439 = vld [vmem:[%s1 + $0x2e4] sm:$0xf]
      %v440 = vld [vmem:[%s1 + $0x2e8] sm:$0xf]
      %v441 = vld [vmem:[%s1 + $0x2ec] sm:$0xf]
      %v442 = vld [vmem:[%s1 + $0x2f0] sm:$0xf]
      %v443 = vld [vmem:[%s1 + $0x2f4] sm:$0xf]
      %v444 = vld [vmem:[%s1 + $0x2f8] sm:$0xf]
      %v445 = vld [vmem:[%s1 + $0x2fc] sm:$0xf]
      %v446 = vld [vmem:[%s1 + $0x300] sm:$0xf]
      %v447 = vld [vmem:[%s1 + $0x304] sm:$0xf]
      %v448 = vld [vmem:[%s1 + $0x308] sm:$0xf]
      %v449 = vld [vmem:[%s1 + $0x30c] sm:$0xf]
      %v450 = vld [vmem:[%s1 + $0x310] sm:$0xf]
      %v451 = vld [vmem:[%s1 + $0x314] sm:$0xf]
      %v452 = vld [vmem:[%s1 + $0x318] sm:$0xf]
      %v453 = vld [vmem:[%s1 + $0x31c] sm:$0xf]
      %v454 = vld [vmem:[%s1 + $0x320] sm:$0xf]
      %v455 = vld [vmem:[%s1 + $0x324] sm:$0xf]
      %v456 = vld [vmem:[%s1 + $0x328] sm:$0xf]
      %v457 = vld [vmem:[%s1 + $0x32c] sm:$0xf]
      %v458 = vld [vmem:[%s1 + $0x330] sm:$0xf]
      %v459 = vld [vmem:[%s1 + $0x334] sm:$0xf]
      %v460 = vld [vmem:[%s1 + $0x338] sm:$0xf]
      %v461 = vld [vmem:[%s1 + $0x33c] sm:$0xf]
      %v462 = vld [vmem:[%s1 + $0x340] sm:$0xf]
      %v463 = vld [vmem:[%s1 + $0x344] sm:$0xf]
      %v464 = vld [vmem:[%s1 + $0x348] sm:$0xf]
      %v465 = vld [vmem:[%s1 + $0x34c] sm:$0xf]
      %v466 = vld [vmem:[%s1 + $0x350] sm:$0xf]
      %v467 = vld [vmem:[%s1 + $0x354] sm:$0xf]
      %v468 = vld [vmem:[%s1 + $0x358] sm:$0xf]
      %v469 = vld [vmem:[%s1 + $0x35c] sm:$0xf]
      %v470 = vld [vmem:[%s1 + $0x360] sm:$0xf]
      %v471 = vld [vmem:[%s1 + $0x364] sm:$0xf]
      %v472 = vld [vmem:[%s1 + $0x368] sm:$0xf]
      %v473 = vld [vmem:[%s1 + $0x36c] sm:$0xf]
      %v474 = vld [vmem:[%s1 + $0x370] sm:$0xf]
      %v475 = vld [vmem:[%s1 + $0x374] sm:$0xf]
      %v476 = vld [vmem:[%s1 + $0x378] sm:$0xf]
      %v477 = vld [vmem:[%s1 + $0x37c] sm:$0xf]
      %v478 = vld [vmem:[%s1 + $0x380] sm:$0xf]
      %v479 = vld [vmem:[%s1 + $0x384] sm:$0xf]
      %v480 = vld [vmem:[%s1 + $0x388] sm:$0xf]
      %v481 = vld [vmem:[%s1 + $0x38c] sm:$0xf]
      %v482 = vld [vmem:[%s1 + $0x390] sm:$0xf]
      %v483 = vld [vmem:[%s1 + $0x394] sm:$0xf]
      %v484 = vld [vmem:[%s1 + $0x398] sm:$0xf]
      %v485 = vld [vmem:[%s1 + $0x39c] sm:$0xf]
      %v486 = vld [vmem:[%s1 + $0x3a0] sm:$0xf]
      %v487 = vld [vmem:[%s1 + $0x3a4] sm:$0xf]
      %v488 = vld [vmem:[%s1 + $0x3a8] sm:$0xf]
      %v489 = vld [vmem:[%s1 + $0x3ac] sm:$0xf]
      %v490 = vld [vmem:[%s1 + $0x3b0] sm:$0xf]
      %v491 = vld [vmem:[%s1 + $0x3b4] sm:$0xf]
      %v492 = vld [vmem:[%s1 + $0x3b8] sm:$0xf]
      %v493 = vld [vmem:[%s1 + $0x3bc] sm:$0xf]
      %v494 = vld [vmem:[%s1 + $0x3c0] sm:$0xf]
      %v495 = vld [vmem:[%s1 + $0x3c4] sm:$0xf]
      %v496 = vld [vmem:[%s1 + $0x3c8] sm:$0xf]
      %v497 = vld [vmem:[%s1 + $0x3cc] sm:$0xf]
      %v498 = vld [vmem:[%s1 + $0x3d0] sm:$0xf]
      %v499 = vld [vmem:[%s1 + $0x3d4] sm:$0xf]
      %v500 = vld [vmem:[%s1 + $0x3d8] sm:$0xf]
      %v501 = vld [vmem:[%s1 + $0x3dc] sm:$0xf]
      %v502 = vld [vmem:[%s1 + $0x3e0] sm:$0xf]
      %v503 = vld [vmem:[%s1 + $0x3e4] sm:$0xf]
      %v504 = vld [vmem:[%s1 + $0x3e8] sm:$0xf]
      %v505 = vld [vmem:[%s1 + $0x3ec] sm:$0xf]
      %v506 = vld [vmem:[%s1 + $0x3f0] sm:$0xf]
      %v507 = vld [vmem:[%s1 + $0x3f4] sm:$0xf]
      %v508 = vld [vmem:[%s1 + $0x3f8] sm:$0xf]
      %v509 = vld [vmem:[%s1 + $0x3fc] sm:$0xf]
      %v542 = vunpack.c.l.b16 %v222
      %v543 = vunpack.c.h.b16 %v222
      %v544 = vunpack.c.l.b16 %v223
      %v545 = vunpack.c.h.b16 %v223
      %v546 = vunpack.c.l.b16 %v224
      %v547 = vunpack.c.h.b16 %v224
      %v548 = vunpack.c.l.b16 %v225
      %v549 = vunpack.c.h.b16 %v225
      %v550 = vunpack.c.l.b16 %v226
      %v551 = vunpack.c.h.b16 %v226
      %v552 = vunpack.c.l.b16 %v227
      %v553 = vunpack.c.h.b16 %v227
      %v554 = vunpack.c.l.b16 %v228
      %v555 = vunpack.c.h.b16 %v228
      %v556 = vunpack.c.l.b16 %v229
      %v557 = vunpack.c.h.b16 %v229
      %v558 = vunpack.c.l.b16 %v230
      %v559 = vunpack.c.h.b16 %v230
      %v560 = vunpack.c.l.b16 %v231
      %v561 = vunpack.c.h.b16 %v231
      %v562 = vunpack.c.l.b16 %v232
      %v563 = vunpack.c.h.b16 %v232
      %v564 = vunpack.c.l.b16 %v233
      %v565 = vunpack.c.h.b16 %v233
      %v566 = vunpack.c.l.b16 %v234
      %v567 = vunpack.c.h.b16 %v234
      %v568 = vunpack.c.l.b16 %v235
      %v569 = vunpack.c.h.b16 %v235
      %v570 = vunpack.c.l.b16 %v236
      %v571 = vunpack.c.h.b16 %v236
      %v572 = vunpack.c.l.b16 %v237
      %v573 = vunpack.c.h.b16 %v237
      %v574 = vunpack.c.l.b16 %v238
      %v575 = vunpack.c.h.b16 %v238
      %v576 = vunpack.c.l.b16 %v239
      %v577 = vunpack.c.h.b16 %v239
      %v578 = vunpack.c.l.b16 %v240
      %v579 = vunpack.c.h.b16 %v240
      %v580 = vunpack.c.l.b16 %v241
      %v581 = vunpack.c.h.b16 %v241
      %v582 = vunpack.c.l.b16 %v242
      %v583 = vunpack.c.h.b16 %v242
      %v584 = vunpack.c.l.b16 %v243
      %v585 = vunpack.c.h.b16 %v243
      %v586 = vunpack.c.l.b16 %v244
      %v587 = vunpack.c.h.b16 %v244
      %v588 = vunpack.c.l.b16 %v245
      %v589 = vunpack.c.h.b16 %v245
      %v590 = vunpack.c.l.b16 %v246
      %v591 = vunpack.c.h.b16 %v246
      %v592 = vunpack.c.l.b16 %v247
      %v593 = vunpack.c.h.b16 %v247
      %v594 = vunpack.c.l.b16 %v248
      %v595 = vunpack.c.h.b16 %v248
      %v596 = vunpack.c.l.b16 %v249
      %v597 = vunpack.c.h.b16 %v249
      %v598 = vunpack.c.l.b16 %v250
      %v599 = vunpack.c.h.b16 %v250
      %v600 = vunpack.c.l.b16 %v251
      %v601 = vunpack.c.h.b16 %v251
      %v602 = vunpack.c.l.b16 %v252
      %v603 = vunpack.c.h.b16 %v252
      %v604 = vunpack.c.l.b16 %v253
      %v605 = vunpack.c.h.b16 %v253
      %v606 = vpack.c.b16 %v558, %v542
      %v607 = vpack.c.b16 %v559, %v543
      %v608 = vpack.c.b16 %v560, %v544
      %v609 = vpack.c.b16 %v561, %v545
      %v610 = vpack.c.b16 %v562, %v546
      %v611 = vpack.c.b16 %v563, %v547
      %v612 = vpack.c.b16 %v564, %v548
      %v613 = vpack.c.b16 %v565, %v549
      %v614 = vpack.c.b16 %v566, %v550
      %v615 = vpack.c.b16 %v567, %v551
      %v616 = vpack.c.b16 %v568, %v552
      %v617 = vpack.c.b16 %v569, %v553
      %v618 = vpack.c.b16 %v570, %v554
      %v619 = vpack.c.b16 %v571, %v555
      %v620 = vpack.c.b16 %v572, %v556
      %v621 = vpack.c.b16 %v573, %v557
      %v622 = vpack.c.b16 %v590, %v574
      %v623 = vpack.c.b16 %v591, %v575
      %v624 = vpack.c.b16 %v592, %v576
      %v625 = vpack.c.b16 %v593, %v577
      %v626 = vpack.c.b16 %v594, %v578
      %v627 = vpack.c.b16 %v595, %v579
      %v628 = vpack.c.b16 %v596, %v580
      %v629 = vpack.c.b16 %v597, %v581
      %v630 = vpack.c.b16 %v598, %v582
      %v631 = vpack.c.b16 %v599, %v583
      %v632 = vpack.c.b16 %v600, %v584
      %v633 = vpack.c.b16 %v601, %v585
      %v634 = vpack.c.b16 %v602, %v586
      %v635 = vpack.c.b16 %v603, %v587
      %v636 = vpack.c.b16 %v604, %v588
      %v637 = vpack.c.b16 %v605, %v589
      %v926 = vunpack.c.l.b16 %v254
      %v927 = vunpack.c.l.b16 %v255
      %v928 = vunpack.c.l.b16 %v256
      %v929 = vunpack.c.l.b16 %v257
      %v930 = vunpack.c.l.b16 %v258
      %v931 = vunpack.c.l.b16 %v259
      %v932 = vunpack.c.l.b16 %v260
      %v933 = vunpack.c.l.b16 %v261
      %v934 = vunpack.c.l.b16 %v262
      %v935 = vunpack.c.l.b16 %v263
      %v936 = vunpack.c.l.b16 %v264
      %v937 = vunpack.c.l.b16 %v265
      %v938 = vunpack.c.l.b16 %v266
      %v939 = vunpack.c.l.b16 %v267
      %v940 = vunpack.c.l.b16 %v268
      %v941 = vunpack.c.l.b16 %v269
      %v942 = vunpack.c.l.b16 %v270
      %v943 = vunpack.c.l.b16 %v271
      %v944 = vunpack.c.l.b16 %v272
      %v945 = vunpack.c.l.b16 %v273
      %v946 = vunpack.c.l.b16 %v274
      %v947 = vunpack.c.l.b16 %v275
      %v948 = vunpack.c.l.b16 %v276
      %v949 = vunpack.c.l.b16 %v277
      %v950 = vunpack.c.l.b16 %v278
      %v951 = vunpack.c.l.b16 %v279
      %v952 = vunpack.c.l.b16 %v280
      %v953 = vunpack.c.l.b16 %v281
      %v954 = vunpack.c.l.b16 %v282
      %v955 = vunpack.c.l.b16 %v283
      %v956 = vunpack.c.l.b16 %v284
      %v957 = vunpack.c.l.b16 %v285
      %v958 = vunpack.c.l.b16 %v286
      %v959 = vunpack.c.l.b16 %v287
      %v960 = vunpack.c.l.b16 %v288
      %v961 = vunpack.c.l.b16 %v289
      %v962 = vunpack.c.l.b16 %v290
      %v963 = vunpack.c.l.b16 %v291
      %v964 = vunpack.c.l.b16 %v292
      %v965 = vunpack.c.l.b16 %v293
      %v966 = vunpack.c.l.b16 %v294
      %v967 = vunpack.c.l.b16 %v295
      %v968 = vunpack.c.l.b16 %v296
      %v969 = vunpack.c.l.b16 %v297
      %v970 = vunpack.c.l.b16 %v298
      %v971 = vunpack.c.l.b16 %v299
      %v972 = vunpack.c.l.b16 %v300
      %v973 = vunpack.c.l.b16 %v301
      %v974 = vunpack.c.l.b16 %v302
      %v975 = vunpack.c.l.b16 %v303
      %v976 = vunpack.c.l.b16 %v304
      %v977 = vunpack.c.l.b16 %v305
      %v978 = vunpack.c.l.b16 %v306
      %v979 = vunpack.c.l.b16 %v307
      %v980 = vunpack.c.l.b16 %v308
      %v981 = vunpack.c.l.b16 %v309
      %v982 = vunpack.c.l.b16 %v310
      %v983 = vunpack.c.l.b16 %v311
      %v984 = vunpack.c.l.b16 %v312
      %v985 = vunpack.c.l.b16 %v313
      %v986 = vunpack.c.l.b16 %v314
      %v987 = vunpack.c.l.b16 %v315
      %v988 = vunpack.c.l.b16 %v316
      %v989 = vunpack.c.l.b16 %v317
      %v990 = vunpack.c.l.b16 %v318
      %v991 = vunpack.c.l.b16 %v319
      %v992 = vunpack.c.l.b16 %v320
      %v993 = vunpack.c.l.b16 %v321
      %v994 = vunpack.c.l.b16 %v322
      %v995 = vunpack.c.l.b16 %v323
      %v996 = vunpack.c.l.b16 %v324
      %v997 = vunpack.c.l.b16 %v325
      %v998 = vunpack.c.l.b16 %v326
      %v999 = vunpack.c.l.b16 %v327
      %v1000 = vunpack.c.l.b16 %v328
      %v1001 = vunpack.c.l.b16 %v329
      %v1002 = vunpack.c.l.b16 %v330
      %v1003 = vunpack.c.l.b16 %v331
      %v1004 = vunpack.c.l.b16 %v332
      %v1005 = vunpack.c.l.b16 %v333
      %v1006 = vunpack.c.l.b16 %v334
      %v1007 = vunpack.c.l.b16 %v335
      %v1008 = vunpack.c.l.b16 %v336
      %v1009 = vunpack.c.l.b16 %v337
      %v1010 = vunpack.c.l.b16 %v338
      %v1011 = vunpack.c.l.b16 %v339
      %v1012 = vunpack.c.l.b16 %v340
      %v1013 = vunpack.c.l.b16 %v341
      %v1014 = vunpack.c.l.b16 %v342
      %v1015 = vunpack.c.l.b16 %v343
      %v1016 = vunpack.c.l.b16 %v344
      %v1017 = vunpack.c.l.b16 %v345
      %v1018 = vunpack.c.l.b16 %v346
      %v1019 = vunpack.c.l.b16 %v347
      %v1020 = vunpack.c.l.b16 %v348
      %v1021 = vunpack.c.l.b16 %v349
      %v1022 = vunpack.c.l.b16 %v350
      %v1023 = vunpack.c.l.b16 %v351
      %v1024 = vunpack.c.l.b16 %v352
      %v1025 = vunpack.c.l.b16 %v353
      %v1026 = vunpack.c.l.b16 %v354
      %v1027 = vunpack.c.l.b16 %v355
      %v1028 = vunpack.c.l.b16 %v356
      %v1029 = vunpack.c.l.b16 %v357
      %v1030 = vunpack.c.l.b16 %v358
      %v1031 = vunpack.c.l.b16 %v359
      %v1032 = vunpack.c.l.b16 %v360
      %v1033 = vunpack.c.l.b16 %v361
      %v1034 = vunpack.c.l.b16 %v362
      %v1035 = vunpack.c.l.b16 %v363
      %v1036 = vunpack.c.l.b16 %v364
      %v1037 = vunpack.c.l.b16 %v365
      %v1038 = vunpack.c.l.b16 %v366
      %v1039 = vunpack.c.l.b16 %v367
      %v1040 = vunpack.c.l.b16 %v368
      %v1041 = vunpack.c.l.b16 %v369
      %v1042 = vunpack.c.l.b16 %v370
      %v1043 = vunpack.c.l.b16 %v371
      %v1044 = vunpack.c.l.b16 %v372
      %v1045 = vunpack.c.l.b16 %v373
      %v1046 = vunpack.c.l.b16 %v374
      %v1047 = vunpack.c.l.b16 %v375
      %v1048 = vunpack.c.l.b16 %v376
      %v1049 = vunpack.c.l.b16 %v377
      %v1050 = vunpack.c.l.b16 %v378
      %v1051 = vunpack.c.l.b16 %v379
      %v1052 = vunpack.c.l.b16 %v380
      %v1053 = vunpack.c.l.b16 %v381
      %v1054 = vunpack.c.l.b16 %v382
      %v1055 = vunpack.c.l.b16 %v383
      %v1056 = vunpack.c.l.b16 %v384
      %v1057 = vunpack.c.l.b16 %v385
      %v1058 = vunpack.c.l.b16 %v386
      %v1059 = vunpack.c.l.b16 %v387
      %v1060 = vunpack.c.l.b16 %v388
      %v1061 = vunpack.c.l.b16 %v389
      %v1062 = vunpack.c.l.b16 %v390
      %v1063 = vunpack.c.l.b16 %v391
      %v1064 = vunpack.c.l.b16 %v392
      %v1065 = vunpack.c.l.b16 %v393
      %v1066 = vunpack.c.l.b16 %v394
      %v1067 = vunpack.c.l.b16 %v395
      %v1068 = vunpack.c.l.b16 %v396
      %v1069 = vunpack.c.l.b16 %v397
      %v1070 = vunpack.c.l.b16 %v398
      %v1071 = vunpack.c.l.b16 %v399
      %v1072 = vunpack.c.l.b16 %v400
      %v1073 = vunpack.c.l.b16 %v401
      %v1074 = vunpack.c.l.b16 %v402
      %v1075 = vunpack.c.l.b16 %v403
      %v1076 = vunpack.c.l.b16 %v404
      %v1077 = vunpack.c.l.b16 %v405
      %v1078 = vunpack.c.l.b16 %v406
      %v1079 = vunpack.c.l.b16 %v407
      %v1080 = vunpack.c.l.b16 %v408
      %v1081 = vunpack.c.l.b16 %v409
      %v1082 = vunpack.c.l.b16 %v410
      %v1083 = vunpack.c.l.b16 %v411
      %v1084 = vunpack.c.l.b16 %v412
      %v1085 = vunpack.c.l.b16 %v413
      %v1086 = vunpack.c.l.b16 %v414
      %v1087 = vunpack.c.l.b16 %v415
      %v1088 = vunpack.c.l.b16 %v416
      %v1089 = vunpack.c.l.b16 %v417
      %v1090 = vunpack.c.l.b16 %v418
      %v1091 = vunpack.c.l.b16 %v419
      %v1092 = vunpack.c.l.b16 %v420
      %v1093 = vunpack.c.l.b16 %v421
      %v1094 = vunpack.c.l.b16 %v422
      %v1095 = vunpack.c.l.b16 %v423
      %v1096 = vunpack.c.l.b16 %v424
      %v1097 = vunpack.c.l.b16 %v425
      %v1098 = vunpack.c.l.b16 %v426
      %v1099 = vunpack.c.l.b16 %v427
      %v1100 = vunpack.c.l.b16 %v428
      %v1101 = vunpack.c.l.b16 %v429
      %v1102 = vunpack.c.l.b16 %v430
      %v1103 = vunpack.c.l.b16 %v431
      %v1104 = vunpack.c.l.b16 %v432
      %v1105 = vunpack.c.l.b16 %v433
      %v1106 = vunpack.c.l.b16 %v434
      %v1107 = vunpack.c.l.b16 %v435
      %v1108 = vunpack.c.l.b16 %v436
      %v1109 = vunpack.c.l.b16 %v437
      %v1110 = vunpack.c.l.b16 %v438
      %v1111 = vunpack.c.l.b16 %v439
      %v1112 = vunpack.c.l.b16 %v440
      %v1113 = vunpack.c.l.b16 %v441
      %v1114 = vunpack.c.l.b16 %v442
      %v1115 = vunpack.c.l.b16 %v443
      %v1116 = vunpack.c.l.b16 %v444
      %v1117 = vunpack.c.l.b16 %v445
      %v1118 = vunpack.c.l.b16 %v446
      %v1119 = vunpack.c.l.b16 %v447
      %v1120 = vunpack.c.l.b16 %v448
      %v1121 = vunpack.c.l.b16 %v449
      %v1122 = vunpack.c.l.b16 %v450
      %v1123 = vunpack.c.l.b16 %v451
      %v1124 = vunpack.c.l.b16 %v452
      %v1125 = vunpack.c.l.b16 %v453
      %v1126 = vunpack.c.l.b16 %v454
      %v1127 = vunpack.c.l.b16 %v455
      %v1128 = vunpack.c.l.b16 %v456
      %v1129 = vunpack.c.l.b16 %v457
      %v1130 = vunpack.c.l.b16 %v458
      %v1131 = vunpack.c.l.b16 %v459
      %v1132 = vunpack.c.l.b16 %v460
      %v1133 = vunpack.c.l.b16 %v461
      %v1134 = vunpack.c.l.b16 %v462
      %v1135 = vunpack.c.l.b16 %v463
      %v1136 = vunpack.c.l.b16 %v464
      %v1137 = vunpack.c.l.b16 %v465
      %v1138 = vunpack.c.l.b16 %v466
      %v1139 = vunpack.c.l.b16 %v467
      %v1140 = vunpack.c.l.b16 %v468
      %v1141 = vunpack.c.l.b16 %v469
      %v1142 = vunpack.c.l.b16 %v470
      %v1143 = vunpack.c.l.b16 %v471
      %v1144 = vunpack.c.l.b16 %v472
      %v1145 = vunpack.c.l.b16 %v473
      %v1146 = vunpack.c.l.b16 %v474
      %v1147 = vunpack.c.l.b16 %v475
      %v1148 = vunpack.c.l.b16 %v476
      %v1149 = vunpack.c.l.b16 %v477
      %v1150 = vunpack.c.l.b16 %v478
      %v1151 = vunpack.c.l.b16 %v479
      %v1152 = vunpack.c.l.b16 %v480
      %v1153 = vunpack.c.l.b16 %v481
      %v1154 = vunpack.c.l.b16 %v482
      %v1155 = vunpack.c.l.b16 %v483
      %v1156 = vunpack.c.l.b16 %v484
      %v1157 = vunpack.c.l.b16 %v485
      %v1158 = vunpack.c.l.b16 %v486
      %v1159 = vunpack.c.l.b16 %v487
      %v1160 = vunpack.c.l.b16 %v488
      %v1161 = vunpack.c.l.b16 %v489
      %v1162 = vunpack.c.l.b16 %v490
      %v1163 = vunpack.c.l.b16 %v491
      %v1164 = vunpack.c.l.b16 %v492
      %v1165 = vunpack.c.l.b16 %v493
      %v1166 = vunpack.c.l.b16 %v494
      %v1167 = vunpack.c.l.b16 %v495
      %v1168 = vunpack.c.l.b16 %v496
      %v1169 = vunpack.c.l.b16 %v497
      %v1170 = vunpack.c.l.b16 %v498
      %v1171 = vunpack.c.l.b16 %v499
      %v1172 = vunpack.c.l.b16 %v500
      %v1173 = vunpack.c.l.b16 %v501
      %v1174 = vunpack.c.l.b16 %v502
      %v1175 = vunpack.c.l.b16 %v503
      %v1176 = vunpack.c.l.b16 %v504
      %v1177 = vunpack.c.l.b16 %v505
      %v1178 = vunpack.c.l.b16 %v506
      %v1179 = vunpack.c.l.b16 %v507
      %v1180 = vunpack.c.l.b16 %v508
      %v1181 = vunpack.c.l.b16 %v509
      %v1182 = vpack.c.b16 %v927, %v926
      %v1183 = vpack.c.b16 %v929, %v928
      %v1184 = vpack.c.b16 %v931, %v930
      %v1185 = vpack.c.b16 %v933, %v932
      %v1186 = vpack.c.b16 %v935, %v934
      %v1187 = vpack.c.b16 %v937, %v936
      %v1188 = vpack.c.b16 %v939, %v938
      %v1189 = vpack.c.b16 %v941, %v940
      %v1190 = vpack.c.b16 %v943, %v942
      %v1191 = vpack.c.b16 %v945, %v944
      %v1192 = vpack.c.b16 %v947, %v946
      %v1193 = vpack.c.b16 %v949, %v948
      %v1194 = vpack.c.b16 %v951, %v950
      %v1195 = vpack.c.b16 %v953, %v952
      %v1196 = vpack.c.b16 %v955, %v954
      %v1197 = vpack.c.b16 %v957, %v956
      %v1198 = vpack.c.b16 %v959, %v958
      %v1199 = vpack.c.b16 %v961, %v960
      %v1200 = vpack.c.b16 %v963, %v962
      %v1201 = vpack.c.b16 %v965, %v964
      %v1202 = vpack.c.b16 %v967, %v966
      %v1203 = vpack.c.b16 %v969, %v968
      %v1204 = vpack.c.b16 %v971, %v970
      %v1205 = vpack.c.b16 %v973, %v972
      %v1206 = vpack.c.b16 %v975, %v974
      %v1207 = vpack.c.b16 %v977, %v976
      %v1208 = vpack.c.b16 %v979, %v978
      %v1209 = vpack.c.b16 %v981, %v980
      %v1210 = vpack.c.b16 %v983, %v982
      %v1211 = vpack.c.b16 %v985, %v984
      %v1212 = vpack.c.b16 %v987, %v986
      %v1213 = vpack.c.b16 %v989, %v988
      %v1214 = vpack.c.b16 %v991, %v990
      %v1215 = vpack.c.b16 %v993, %v992
      %v1216 = vpack.c.b16 %v995, %v994
      %v1217 = vpack.c.b16 %v997, %v996
      %v1218 = vpack.c.b16 %v999, %v998
      %v1219 = vpack.c.b16 %v1001, %v1000
      %v1220 = vpack.c.b16 %v1003, %v1002
      %v1221 = vpack.c.b16 %v1005, %v1004
      %v1222 = vpack.c.b16 %v1007, %v1006
      %v1223 = vpack.c.b16 %v1009, %v1008
      %v1224 = vpack.c.b16 %v1011, %v1010
      %v1225 = vpack.c.b16 %v1013, %v1012
      %v1226 = vpack.c.b16 %v1015, %v1014
      %v1227 = vpack.c.b16 %v1017, %v1016
      %v1228 = vpack.c.b16 %v1019, %v1018
      %v1229 = vpack.c.b16 %v1021, %v1020
      %v1230 = vpack.c.b16 %v1023, %v1022
      %v1231 = vpack.c.b16 %v1025, %v1024
      %v1232 = vpack.c.b16 %v1027, %v1026
      %v1233 = vpack.c.b16 %v1029, %v1028
      %v1234 = vpack.c.b16 %v1031, %v1030
      %v1235 = vpack.c.b16 %v1033, %v1032
      %v1236 = vpack.c.b16 %v1035, %v1034
      %v1237 = vpack.c.b16 %v1037, %v1036
      %v1238 = vpack.c.b16 %v1039, %v1038
      %v1239 = vpack.c.b16 %v1041, %v1040
      %v1240 = vpack.c.b16 %v1043, %v1042
      %v1241 = vpack.c.b16 %v1045, %v1044
      %v1242 = vpack.c.b16 %v1047, %v1046
      %v1243 = vpack.c.b16 %v1049, %v1048
      %v1244 = vpack.c.b16 %v1051, %v1050
      %v1245 = vpack.c.b16 %v1053, %v1052
      %v1246 = vpack.c.b16 %v1055, %v1054
      %v1247 = vpack.c.b16 %v1057, %v1056
      %v1248 = vpack.c.b16 %v1059, %v1058
      %v1249 = vpack.c.b16 %v1061, %v1060
      %v1250 = vpack.c.b16 %v1063, %v1062
      %v1251 = vpack.c.b16 %v1065, %v1064
      %v1252 = vpack.c.b16 %v1067, %v1066
      %v1253 = vpack.c.b16 %v1069, %v1068
      %v1254 = vpack.c.b16 %v1071, %v1070
      %v1255 = vpack.c.b16 %v1073, %v1072
      %v1256 = vpack.c.b16 %v1075, %v1074
      %v1257 = vpack.c.b16 %v1077, %v1076
      %v1258 = vpack.c.b16 %v1079, %v1078
      %v1259 = vpack.c.b16 %v1081, %v1080
      %v1260 = vpack.c.b16 %v1083, %v1082
      %v1261 = vpack.c.b16 %v1085, %v1084
      %v1262 = vpack.c.b16 %v1087, %v1086
      %v1263 = vpack.c.b16 %v1089, %v1088
      %v1264 = vpack.c.b16 %v1091, %v1090
      %v1265 = vpack.c.b16 %v1093, %v1092
      %v1266 = vpack.c.b16 %v1095, %v1094
      %v1267 = vpack.c.b16 %v1097, %v1096
      %v1268 = vpack.c.b16 %v1099, %v1098
      %v1269 = vpack.c.b16 %v1101, %v1100
      %v1270 = vpack.c.b16 %v1103, %v1102
      %v1271 = vpack.c.b16 %v1105, %v1104
      %v1272 = vpack.c.b16 %v1107, %v1106
      %v1273 = vpack.c.b16 %v1109, %v1108
      %v1274 = vpack.c.b16 %v1111, %v1110
      %v1275 = vpack.c.b16 %v1113, %v1112
      %v1276 = vpack.c.b16 %v1115, %v1114
      %v1277 = vpack.c.b16 %v1117, %v1116
      %v1278 = vpack.c.b16 %v1119, %v1118
      %v1279 = vpack.c.b16 %v1121, %v1120
      %v1280 = vpack.c.b16 %v1123, %v1122
      %v1281 = vpack.c.b16 %v1125, %v1124
      %v1282 = vpack.c.b16 %v1127, %v1126
      %v1283 = vpack.c.b16 %v1129, %v1128
      %v1284 = vpack.c.b16 %v1131, %v1130
      %v1285 = vpack.c.b16 %v1133, %v1132
      %v1286 = vpack.c.b16 %v1135, %v1134
      %v1287 = vpack.c.b16 %v1137, %v1136
      %v1288 = vpack.c.b16 %v1139, %v1138
      %v1289 = vpack.c.b16 %v1141, %v1140
      %v1290 = vpack.c.b16 %v1143, %v1142
      %v1291 = vpack.c.b16 %v1145, %v1144
      %v1292 = vpack.c.b16 %v1147, %v1146
      %v1293 = vpack.c.b16 %v1149, %v1148
      %v1294 = vpack.c.b16 %v1151, %v1150
      %v1295 = vpack.c.b16 %v1153, %v1152
      %v1296 = vpack.c.b16 %v1155, %v1154
      %v1297 = vpack.c.b16 %v1157, %v1156
      %v1298 = vpack.c.b16 %v1159, %v1158
      %v1299 = vpack.c.b16 %v1161, %v1160
      %v1300 = vpack.c.b16 %v1163, %v1162
      %v1301 = vpack.c.b16 %v1165, %v1164
      %v1302 = vpack.c.b16 %v1167, %v1166
      %v1303 = vpack.c.b16 %v1169, %v1168
      %v1304 = vpack.c.b16 %v1171, %v1170
      %v1305 = vpack.c.b16 %v1173, %v1172
      %v1306 = vpack.c.b16 %v1175, %v1174
      %v1307 = vpack.c.b16 %v1177, %v1176
      %v1308 = vpack.c.b16 %v1179, %v1178
      %v1309 = vpack.c.b16 %v1181, %v1180
      %1438 = vmatprep.subr.bf16.mxu0 0
      %1439 = vmatpush1.bf16.msra.mxu0 %v1182
      %1440 = vmatprep.subr.bf16.mxu0 0
      %1441 = vmatpush1.bf16.msra.mxu0 %v1183
      %1442 = vmatprep.subr.bf16.mxu0 0
      %1443 = vmatpush1.bf16.msra.mxu0 %v1184
      %1444 = vmatprep.subr.bf16.mxu0 0
      %1445 = vmatpush1.bf16.msra.mxu0 %v1185
      %1446 = vmatprep.subr.bf16.mxu0 0
      %1447 = vmatpush1.bf16.msra.mxu0 %v1186
      %1448 = vmatprep.subr.bf16.mxu0 0
      %1449 = vmatpush1.bf16.msra.mxu0 %v1187
      %1450 = vmatprep.subr.bf16.mxu0 0
      %1451 = vmatpush1.bf16.msra.mxu0 %v1188
      %1452 = vmatprep.subr.bf16.mxu0 0
      %1453 = vmatpush1.bf16.msra.mxu0 %v1189
      %1454 = vmatprep.subr.bf16.mxu0 0
      %1455 = vmatpush1.bf16.msra.mxu0 %v1190
      %1456 = vmatprep.subr.bf16.mxu0 0
      %1457 = vmatpush1.bf16.msra.mxu0 %v1191
      %1458 = vmatprep.subr.bf16.mxu0 0
      %1459 = vmatpush1.bf16.msra.mxu0 %v1192
      %1460 = vmatprep.subr.bf16.mxu0 0
      %1461 = vmatpush1.bf16.msra.mxu0 %v1193
      %1462 = vmatprep.subr.bf16.mxu0 0
      %1463 = vmatpush1.bf16.msra.mxu0 %v1194
      %1464 = vmatprep.subr.bf16.mxu0 0
      %1465 = vmatpush1.bf16.msra.mxu0 %v1195
      %1466 = vmatprep.subr.bf16.mxu0 0
      %1467 = vmatpush1.bf16.msra.mxu0 %v1196
      %1468 = vmatprep.subr.bf16.mxu0 0
      %1469 = vmatpush1.bf16.msra.mxu0 %v1197
      %1470 = vmatprep.mubr.bf16.mxu0 %v607
      %1471 = vmatmul.mubr.bf16.gmra.mrb[0].mxu0 %v606
      %v1472 = vpop.f32.mrb[0].mxu0
      %v1473 = vadd.f32 0.0, %v1472
      %v1474 = vpop.f32.mrb[0].mxu0
      %v1475 = vpop.f32.mrb[0].mxu0
      %v1476 = vadd.f32 0.0, %v1475
      %v1477 = vpop.f32.mrb[0].mxu0
      %1478 = vmatprep.mubr.bf16.mxu0 %v623
      %1479 = vmatmul.mubr.bf16.gmra.mrb[0].mxu0 %v622
      %v1480 = vpop.f32.mrb[0].mxu0
      %v1481 = vadd.f32 0.0, %v1480
      %v1482 = vpop.f32.mrb[0].mxu0
      %v1483 = vpop.f32.mrb[0].mxu0
      %v1484 = vadd.f32 0.0, %v1483
      %v1485 = vpop.f32.mrb[0].mxu0
      %1486 = vdwg.mxu0
      %1487 = vmatprep.subr.bf16.mxu0 0
      %1488 = vmatpush1.bf16.msra.mxu0 %v1198
      %1489 = vmatprep.subr.bf16.mxu0 0
      %1490 = vmatpush1.bf16.msra.mxu0 %v1199
      %1491 = vmatprep.subr.bf16.mxu0 0
      %1492 = vmatpush1.bf16.msra.mxu0 %v1200
      %1493 = vmatprep.subr.bf16.mxu0 0
      %1494 = vmatpush1.bf16.msra.mxu0 %v1201
      %1495 = vmatprep.subr.bf16.mxu0 0
      %1496 = vmatpush1.bf16.msra.mxu0 %v1202
      %1497 = vmatprep.subr.bf16.mxu0 0
      %1498 = vmatpush1.bf16.msra.mxu0 %v1203
      %1499 = vmatprep.subr.bf16.mxu0 0
      %1500 = vmatpush1.bf16.msra.mxu0 %v1204
      %1501 = vmatprep.subr.bf16.mxu0 0
      %1502 = vmatpush1.bf16.msra.mxu0 %v1205
      %1503 = vmatprep.subr.bf16.mxu0 0
      %1504 = vmatpush1.bf16.msra.mxu0 %v1206
      %1505 = vmatprep.subr.bf16.mxu0 0
      %1506 = vmatpush1.bf16.msra.mxu0 %v1207
      %1507 = vmatprep.subr.bf16.mxu0 0
      %1508 = vmatpush1.bf16.msra.mxu0 %v1208
      %1509 = vmatprep.subr.bf16.mxu0 0
      %1510 = vmatpush1.bf16.msra.mxu0 %v1209
      %1511 = vmatprep.subr.bf16.mxu0 0
      %1512 = vmatpush1.bf16.msra.mxu0 %v1210
      %1513 = vmatprep.subr.bf16.mxu0 0
      %1514 = vmatpush1.bf16.msra.mxu0 %v1211
      %1515 = vmatprep.subr.bf16.mxu0 0
      %1516 = vmatpush1.bf16.msra.mxu0 %v1212
      %1517 = vmatprep.subr.bf16.mxu0 0
      %1518 = vmatpush1.bf16.msra.mxu0 %v1213
      %1519 = vmatprep.mubr.bf16.mxu0 %v609
      %1520 = vmatmul.mubr.bf16.gmra.mrb[0].mxu0 %v608
      %v1521 = vpop.f32.mrb[0].mxu0
      %v1522 = vadd.f32 %v1473, %v1521
      %v1523 = vpop.f32.mrb[0].mxu0
      %v1524 = vpop.f32.mrb[0].mxu0
      %v1525 = vadd.f32 %v1476, %v1524
      %v1526 = vpop.f32.mrb[0].mxu0
      %1527 = vmatprep.mubr.bf16.mxu0 %v625
      %1528 = vmatmul.mubr.bf16.gmra.mrb[0].mxu0 %v624
      %v1529 = vpop.f32.mrb[0].mxu0
      %v1530 = vadd.f32 %v1481, %v1529
      %v1531 = vpop.f32.mrb[0].mxu0
      %v1532 = vpop.f32.mrb[0].mxu0
      %v1533 = vadd.f32 %v1484, %v1532
      %v1534 = vpop.f32.mrb[0].mxu0
      %1535 = vdwg.mxu0
      %1536 = vmatprep.subr.bf16.mxu0 0
      %1537 = vmatpush1.bf16.msra.mxu0 %v1214
      %1538 = vmatprep.subr.bf16.mxu0 0
      %1539 = vmatpush1.bf16.msra.mxu0 %v1215
      %1540 = vmatprep.subr.bf16.mxu0 0
      %1541 = vmatpush1.bf16.msra.mxu0 %v1216
      %1542 = vmatprep.subr.bf16.mxu0 0
      %1543 = vmatpush1.bf16.msra.mxu0 %v1217
      %1544 = vmatprep.subr.bf16.mxu0 0
      %1545 = vmatpush1.bf16.msra.mxu0 %v1218
      %1546 = vmatprep.subr.bf16.mxu0 0
      %1547 = vmatpush1.bf16.msra.mxu0 %v1219
      %1548 = vmatprep.subr.bf16.mxu0 0
      %1549 = vmatpush1.bf16.msra.mxu0 %v1220
      %1550 = vmatprep.subr.bf16.mxu0 0
      %1551 = vmatpush1.bf16.msra.mxu0 %v1221
      %1552 = vmatprep.subr.bf16.mxu0 0
      %1553 = vmatpush1.bf16.msra.mxu0 %v1222
      %1554 = vmatprep.subr.bf16.mxu0 0
      %1555 = vmatpush1.bf16.msra.mxu0 %v1223
      %1556 = vmatprep.subr.bf16.mxu0 0
      %1557 = vmatpush1.bf16.msra.mxu0 %v1224
      %1558 = vmatprep.subr.bf16.mxu0 0
      %1559 = vmatpush1.bf16.msra.mxu0 %v1225
      %1560 = vmatprep.subr.bf16.mxu0 0
      %1561 = vmatpush1.bf16.msra.mxu0 %v1226
      %1562 = vmatprep.subr.bf16.mxu0 0
      %1563 = vmatpush1.bf16.msra.mxu0 %v1227
      %1564 = vmatprep.subr.bf16.mxu0 0
      %1565 = vmatpush1.bf16.msra.mxu0 %v1228
      %1566 = vmatprep.subr.bf16.mxu0 0
      %1567 = vmatpush1.bf16.msra.mxu0 %v1229
      %1568 = vmatprep.mubr.bf16.mxu0 %v611
      %1569 = vmatmul.mubr.bf16.gmra.mrb[0].mxu0 %v610
      %v1570 = vpop.f32.mrb[0].mxu0
      %v1571 = vadd.f32 %v1522, %v1570
      %v1572 = vpop.f32.mrb[0].mxu0
      %v1573 = vpop.f32.mrb[0].mxu0
      %v1574 = vadd.f32 %v1525, %v1573
      %v1575 = vpop.f32.mrb[0].mxu0
      %1576 = vmatprep.mubr.bf16.mxu0 %v627
      %1577 = vmatmul.mubr.bf16.gmra.mrb[0].mxu0 %v626
      %v1578 = vpop.f32.mrb[0].mxu0
      %v1579 = vadd.f32 %v1530, %v1578
      %v1580 = vpop.f32.mrb[0].mxu0
      %v1581 = vpop.f32.mrb[0].mxu0
      %v1582 = vadd.f32 %v1533, %v1581
      %v1583 = vpop.f32.mrb[0].mxu0
      %1584 = vdwg.mxu0
      %1585 = vmatprep.subr.bf16.mxu0 0
      %1586 = vmatpush1.bf16.msra.mxu0 %v1230
      %1587 = vmatprep.subr.bf16.mxu0 0
      %1588 = vmatpush1.bf16.msra.mxu0 %v1231
      %1589 = vmatprep.subr.bf16.mxu0 0
      %1590 = vmatpush1.bf16.msra.mxu0 %v1232
      %1591 = vmatprep.subr.bf16.mxu0 0
      %1592 = vmatpush1.bf16.msra.mxu0 %v1233
      %1593 = vmatprep.subr.bf16.mxu0 0
      %1594 = vmatpush1.bf16.msra.mxu0 %v1234
      %1595 = vmatprep.subr.bf16.mxu0 0
      %1596 = vmatpush1.bf16.msra.mxu0 %v1235
      %1597 = vmatprep.subr.bf16.mxu0 0
      %1598 = vmatpush1.bf16.msra.mxu0 %v1236
      %1599 = vmatprep.subr.bf16.mxu0 0
      %1600 = vmatpush1.bf16.msra.mxu0 %v1237
      %1601 = vmatprep.subr.bf16.mxu0 0
      %1602 = vmatpush1.bf16.msra.mxu0 %v1238
      %1603 = vmatprep.subr.bf16.mxu0 0
      %1604 = vmatpush1.bf16.msra.mxu0 %v1239
      %1605 = vmatprep.subr.bf16.mxu0 0
      %1606 = vmatpush1.bf16.msra.mxu0 %v1240
      %1607 = vmatprep.subr.bf16.mxu0 0
      %1608 = vmatpush1.bf16.msra.mxu0 %v1241
      %1609 = vmatprep.subr.bf16.mxu0 0
      %1610 = vmatpush1.bf16.msra.mxu0 %v1242
      %1611 = vmatprep.subr.bf16.mxu0 0
      %1612 = vmatpush1.bf16.msra.mxu0 %v1243
      %1613 = vmatprep.subr.bf16.mxu0 0
      %1614 = vmatpush1.bf16.msra.mxu0 %v1244
      %1615 = vmatprep.subr.bf16.mxu0 0
      %1616 = vmatpush1.bf16.msra.mxu0 %v1245
      %1617 = vmatprep.mubr.bf16.mxu0 %v613
      %1618 = vmatmul.mubr.bf16.gmra.mrb[0].mxu0 %v612
      %v1619 = vpop.f32.mrb[0].mxu0
      %v1620 = vadd.f32 %v1571, %v1619
      %v1621 = vpop.f32.mrb[0].mxu0
      %v1622 = vpop.f32.mrb[0].mxu0
      %v1623 = vadd.f32 %v1574, %v1622
      %v1624 = vpop.f32.mrb[0].mxu0
      %1625 = vmatprep.mubr.bf16.mxu0 %v629
      %1626 = vmatmul.mubr.bf16.gmra.mrb[0].mxu0 %v628
      %v1627 = vpop.f32.mrb[0].mxu0
      %v1628 = vadd.f32 %v1579, %v1627
      %v1629 = vpop.f32.mrb[0].mxu0
      %v1630 = vpop.f32.mrb[0].mxu0
      %v1631 = vadd.f32 %v1582, %v1630
      %v1632 = vpop.f32.mrb[0].mxu0
      %1633 = vdwg.mxu0
      %1634 = vmatprep.subr.bf16.mxu0 0
      %1635 = vmatpush1.bf16.msra.mxu0 %v1246
      %1636 = vmatprep.subr.bf16.mxu0 0
      %1637 = vmatpush1.bf16.msra.mxu0 %v1247
      %1638 = vmatprep.subr.bf16.mxu0 0
      %1639 = vmatpush1.bf16.msra.mxu0 %v1248
      %1640 = vmatprep.subr.bf16.mxu0 0
      %1641 = vmatpush1.bf16.msra.mxu0 %v1249
      %1642 = vmatprep.subr.bf16.mxu0 0
      %1643 = vmatpush1.bf16.msra.mxu0 %v1250
      %1644 = vmatprep.subr.bf16.mxu0 0
      %1645 = vmatpush1.bf16.msra.mxu0 %v1251
      %1646 = vmatprep.subr.bf16.mxu0 0
      %1647 = vmatpush1.bf16.msra.mxu0 %v1252
      %1648 = vmatprep.subr.bf16.mxu0 0
      %1649 = vmatpush1.bf16.msra.mxu0 %v1253
      %1650 = vmatprep.subr.bf16.mxu0 0
      %1651 = vmatpush1.bf16.msra.mxu0 %v1254
      %1652 = vmatprep.subr.bf16.mxu0 0
      %1653 = vmatpush1.bf16.msra.mxu0 %v1255
      %1654 = vmatprep.subr.bf16.mxu0 0
      %1655 = vmatpush1.bf16.msra.mxu0 %v1256
      %1656 = vmatprep.subr.bf16.mxu0 0
      %1657 = vmatpush1.bf16.msra.mxu0 %v1257
      %1658 = vmatprep.subr.bf16.mxu0 0
      %1659 = vmatpush1.bf16.msra.mxu0 %v1258
      %1660 = vmatprep.subr.bf16.mxu0 0
      %1661 = vmatpush1.bf16.msra.mxu0 %v1259
      %1662 = vmatprep.subr.bf16.mxu0 0
      %1663 = vmatpush1.bf16.msra.mxu0 %v1260
      %1664 = vmatprep.subr.bf16.mxu0 0
      %1665 = vmatpush1.bf16.msra.mxu0 %v1261
      %1666 = vmatprep.mubr.bf16.mxu0 %v615
      %1667 = vmatmul.mubr.bf16.gmra.mrb[0].mxu0 %v614
      %v1668 = vpop.f32.mrb[0].mxu0
      %v1669 = vadd.f32 %v1620, %v1668
      %v1670 = vpop.f32.mrb[0].mxu0
      %v1671 = vpop.f32.mrb[0].mxu0
      %v1672 = vadd.f32 %v1623, %v1671
      %v1673 = vpop.f32.mrb[0].mxu0
      %1674 = vmatprep.mubr.bf16.mxu0 %v631
      %1675 = vmatmul.mubr.bf16.gmra.mrb[0].mxu0 %v630
      %v1676 = vpop.f32.mrb[0].mxu0
      %v1677 = vadd.f32 %v1628, %v1676
      %v1678 = vpop.f32.mrb[0].mxu0
      %v1679 = vpop.f32.mrb[0].mxu0
      %v1680 = vadd.f32 %v1631, %v1679
      %v1681 = vpop.f32.mrb[0].mxu0
      %1682 = vdwg.mxu0
      %1683 = vmatprep.subr.bf16.mxu0 0
      %1684 = vmatpush1.bf16.msra.mxu0 %v1262
      %1685 = vmatprep.subr.bf16.mxu0 0
      %1686 = vmatpush1.bf16.msra.mxu0 %v1263
      %1687 = vmatprep.subr.bf16.mxu0 0
      %1688 = vmatpush1.bf16.msra.mxu0 %v1264
      %1689 = vmatprep.subr.bf16.mxu0 0
      %1690 = vmatpush1.bf16.msra.mxu0 %v1265
      %1691 = vmatprep.subr.bf16.mxu0 0
      %1692 = vmatpush1.bf16.msra.mxu0 %v1266
      %1693 = vmatprep.subr.bf16.mxu0 0
      %1694 = vmatpush1.bf16.msra.mxu0 %v1267
      %1695 = vmatprep.subr.bf16.mxu0 0
      %1696 = vmatpush1.bf16.msra.mxu0 %v1268
      %1697 = vmatprep.subr.bf16.mxu0 0
      %1698 = vmatpush1.bf16.msra.mxu0 %v1269
      %1699 = vmatprep.subr.bf16.mxu0 0
      %1700 = vmatpush1.bf16.msra.mxu0 %v1270
      %1701 = vmatprep.subr.bf16.mxu0 0
      %1702 = vmatpush1.bf16.msra.mxu0 %v1271
      %1703 = vmatprep.subr.bf16.mxu0 0
      %1704 = vmatpush1.bf16.msra.mxu0 %v1272
      %1705 = vmatprep.subr.bf16.mxu0 0
      %1706 = vmatpush1.bf16.msra.mxu0 %v1273
      %1707 = vmatprep.subr.bf16.mxu0 0
      %1708 = vmatpush1.bf16.msra.mxu0 %v1274
      %1709 = vmatprep.subr.bf16.mxu0 0
      %1710 = vmatpush1.bf16.msra.mxu0 %v1275
      %1711 = vmatprep.subr.bf16.mxu0 0
      %1712 = vmatpush1.bf16.msra.mxu0 %v1276
      %1713 = vmatprep.subr.bf16.mxu0 0
      %1714 = vmatpush1.bf16.msra.mxu0 %v1277
      %1715 = vmatprep.mubr.bf16.mxu0 %v617
      %1716 = vmatmul.mubr.bf16.gmra.mrb[0].mxu0 %v616
      %v1717 = vpop.f32.mrb[0].mxu0
      %v1718 = vadd.f32 %v1669, %v1717
      %v1719 = vpop.f32.mrb[0].mxu0
      %v1720 = vpop.f32.mrb[0].mxu0
      %v1721 = vadd.f32 %v1672, %v1720
      %v1722 = vpop.f32.mrb[0].mxu0
      %1723 = vmatprep.mubr.bf16.mxu0 %v633
      %1724 = vmatmul.mubr.bf16.gmra.mrb[0].mxu0 %v632
      %v1725 = vpop.f32.mrb[0].mxu0
      %v1726 = vadd.f32 %v1677, %v1725
      %v1727 = vpop.f32.mrb[0].mxu0
      %v1728 = vpop.f32.mrb[0].mxu0
      %v1729 = vadd.f32 %v1680, %v1728
      %v1730 = vpop.f32.mrb[0].mxu0
      %1731 = vdwg.mxu0
      %1732 = vmatprep.subr.bf16.mxu0 0
      %1733 = vmatpush1.bf16.msra.mxu0 %v1278
      %1734 = vmatprep.subr.bf16.mxu0 0
      %1735 = vmatpush1.bf16.msra.mxu0 %v1279
      %1736 = vmatprep.subr.bf16.mxu0 0
      %1737 = vmatpush1.bf16.msra.mxu0 %v1280
      %1738 = vmatprep.subr.bf16.mxu0 0
      %1739 = vmatpush1.bf16.msra.mxu0 %v1281
      %1740 = vmatprep.subr.bf16.mxu0 0
      %1741 = vmatpush1.bf16.msra.mxu0 %v1282
      %1742 = vmatprep.subr.bf16.mxu0 0
      %1743 = vmatpush1.bf16.msra.mxu0 %v1283
      %1744 = vmatprep.subr.bf16.mxu0 0
      %1745 = vmatpush1.bf16.msra.mxu0 %v1284
      %1746 = vmatprep.subr.bf16.mxu0 0
      %1747 = vmatpush1.bf16.msra.mxu0 %v1285
      %1748 = vmatprep.subr.bf16.mxu0 0
      %1749 = vmatpush1.bf16.msra.mxu0 %v1286
      %1750 = vmatprep.subr.bf16.mxu0 0
      %1751 = vmatpush1.bf16.msra.mxu0 %v1287
      %1752 = vmatprep.subr.bf16.mxu0 0
      %1753 = vmatpush1.bf16.msra.mxu0 %v1288
      %1754 = vmatprep.subr.bf16.mxu0 0
      %1755 = vmatpush1.bf16.msra.mxu0 %v1289
      %1756 = vmatprep.subr.bf16.mxu0 0
      %1757 = vmatpush1.bf16.msra.mxu0 %v1290
      %1758 = vmatprep.subr.bf16.mxu0 0
      %1759 = vmatpush1.bf16.msra.mxu0 %v1291
      %1760 = vmatprep.subr.bf16.mxu0 0
      %1761 = vmatpush1.bf16.msra.mxu0 %v1292
      %1762 = vmatprep.subr.bf16.mxu0 0
      %1763 = vmatpush1.bf16.msra.mxu0 %v1293
      %1764 = vmatprep.mubr.bf16.mxu0 %v619
      %1765 = vmatmul.mubr.bf16.gmra.mrb[0].mxu0 %v618
      %v1766 = vpop.f32.mrb[0].mxu0
      %v1767 = vadd.f32 %v1718, %v1766
      %v1768 = vpop.f32.mrb[0].mxu0
      %v1769 = vpop.f32.mrb[0].mxu0
      %v1770 = vadd.f32 %v1721, %v1769
      %v1771 = vpop.f32.mrb[0].mxu0
      %1772 = vmatprep.mubr.bf16.mxu0 %v635
      %1773 = vmatmul.mubr.bf16.gmra.mrb[0].mxu0 %v634
      %v1774 = vpop.f32.mrb[0].mxu0
      %v1775 = vadd.f32 %v1726, %v1774
      %v1776 = vpop.f32.mrb[0].mxu0
      %v1777 = vpop.f32.mrb[0].mxu0
      %v1778 = vadd.f32 %v1729, %v1777
      %v1779 = vpop.f32.mrb[0].mxu0
      %1780 = vdwg.mxu0
      %1781 = vmatprep.subr.bf16.mxu0 0
      %1782 = vmatpush1.bf16.msra.mxu0 %v1294
      %1783 = vmatprep.subr.bf16.mxu0 0
      %1784 = vmatpush1.bf16.msra.mxu0 %v1295
      %1785 = vmatprep.subr.bf16.mxu0 0
      %1786 = vmatpush1.bf16.msra.mxu0 %v1296
      %1787 = vmatprep.subr.bf16.mxu0 0
      %1788 = vmatpush1.bf16.msra.mxu0 %v1297
      %1789 = vmatprep.subr.bf16.mxu0 0
      %1790 = vmatpush1.bf16.msra.mxu0 %v1298
      %1791 = vmatprep.subr.bf16.mxu0 0
      %1792 = vmatpush1.bf16.msra.mxu0 %v1299
      %1793 = vmatprep.subr.bf16.mxu0 0
      %1794 = vmatpush1.bf16.msra.mxu0 %v1300
      %1795 = vmatprep.subr.bf16.mxu0 0
      %1796 = vmatpush1.bf16.msra.mxu0 %v1301
      %1797 = vmatprep.subr.bf16.mxu0 0
      %1798 = vmatpush1.bf16.msra.mxu0 %v1302
      %1799 = vmatprep.subr.bf16.mxu0 0
      %1800 = vmatpush1.bf16.msra.mxu0 %v1303
      %1801 = vmatprep.subr.bf16.mxu0 0
      %1802 = vmatpush1.bf16.msra.mxu0 %v1304
      %1803 = vmatprep.subr.bf16.mxu0 0
      %1804 = vmatpush1.bf16.msra.mxu0 %v1305
      %1805 = vmatprep.subr.bf16.mxu0 0
      %1806 = vmatpush1.bf16.msra.mxu0 %v1306
      %1807 = vmatprep.subr.bf16.mxu0 0
      %1808 = vmatpush1.bf16.msra.mxu0 %v1307
      %1809 = vmatprep.subr.bf16.mxu0 0
      %1810 = vmatpush1.bf16.msra.mxu0 %v1308
      %1811 = vmatprep.subr.bf16.mxu0 0
      %1812 = vmatpush1.bf16.msra.mxu0 %v1309
      %1813 = vmatprep.mubr.bf16.mxu0 %v621
      %1814 = vmatmul.mubr.bf16.gmra.mrb[0].mxu0 %v620
      %v1815 = vpop.f32.mrb[0].mxu0
      %v1816 = vadd.f32 %v1767, %v1815
      %v1817 = vpop.f32.mrb[0].mxu0
      %v1818 = vpop.f32.mrb[0].mxu0
      %v1819 = vadd.f32 %v1770, %v1818
      %v1820 = vpop.f32.mrb[0].mxu0
      %1821 = vmatprep.mubr.bf16.mxu0 %v637
      %1822 = vmatmul.mubr.bf16.gmra.mrb[0].mxu0 %v636
      %v1823 = vpop.f32.mrb[0].mxu0
      %v1824 = vadd.f32 %v1775, %v1823
      %v1825 = vpop.f32.mrb[0].mxu0
      %v1826 = vpop.f32.mrb[0].mxu0
      %v1827 = vadd.f32 %v1778, %v1826
      %v1828 = vpop.f32.mrb[0].mxu0
      %1829 = vdwg.mxu0
      %p1830 = scmp.eq.s32.totalorder %s19, 0
      %p1831 = scmp.eq.s32.totalorder %s20, 0
      %p1832 = pnand %p1830, %p1831
      %p1833 = pneg %p1832
      // Predicated region
      $region37: #{discriminator_forward.6} parent=35 // pred_check
        _
      $region38: #{discriminator_forward.6} parent=35 // pred_check_branch
        %1835 = sbr.rel (%p1832) target = $region40
      $region39: #{discriminator_forward.6} parent=35 // pred_region
        %1836 = vst [vmem:[#allocation2] sm:$0x1] 0.0
        %1837 = vst [vmem:[#allocation3] sm:$0x1] 0.0
      $region40: #{discriminator_forward.6} parent=35 // pred_fallthru
        _
      // Predicated region
      $region41: #{discriminator_forward.6} parent=35 // pred_check
        %p1838 = pneg %p1830
      $region42: #{discriminator_forward.6} parent=35 // pred_check_branch
        %1840 = sbr.rel (%p1838) target = $region44
      $region43: #{discriminator_forward.6} parent=35 // pred_region
        %v1841 = vld [vmem:[#allocation2] sm:$0x1]
        %v1842 = vadd.f32 %v1816, %v1819
        %v1843 = vadd.f32 %v1842, %v1824
        %v1844 = vadd.f32 %v1843, %v1827
        %v1845 = vrot.slane %v1844, 4
        %v1846 = vadd.f32 %v1844, %v1845
        %v1847 = vrot.slane %v1846, 2
        %v1848 = vadd.f32 %v1846, %v1847
        %v1849 = vrot.slane %v1848, 1
        %v1850 = vadd.f32 %v1848, %v1849
        %v1851 = vadd.f32 %v1841, %v1850
        %1852 = vst [vmem:[#allocation2] sm:$0x1] %v1851
        %v1853 = vld [vmem:[#allocation3] sm:$0x1]
        %v1854 = vmul.f32 %v1816, %v1816
        %v1855 = vmul.f32 %v1819, %v1819
        %v1856 = vmul.f32 %v1824, %v1824
        %v1857 = vmul.f32 %v1827, %v1827
        %v1858 = vadd.f32 %v1854, %v1855
        %v1859 = vadd.f32 %v1858, %v1856
        %v1860 = vadd.f32 %v1859, %v1857
        %v1861 = vrot.slane %v1860, 4
        %v1862 = vadd.f32 %v1860, %v1861
        %v1863 = vrot.slane %v1862, 2
        %v1864 = vadd.f32 %v1862, %v1863
        %v1865 = vrot.slane %v1864, 1
        %v1866 = vadd.f32 %v1864, %v1865
        %v1867 = vadd.f32 %v1853, %v1866
        %1868 = vst [vmem:[#allocation3] sm:$0x1] %v1867
      $region44: #{discriminator_forward.6} parent=35 // pred_fallthru
        _
      %p1869 = scmp.eq.s32.totalorder %s19, 1
      %p1870 = pnand %p1869, %p1831
      %p1871 = pneg %p1870
      // Predicated region
      $region45: #{discriminator_forward.6} parent=35 // pred_check
        _
      $region46: #{discriminator_forward.6} parent=35 // pred_check_branch
        %1873 = sbr.rel (%p1870) target = $region48
      $region47: #{discriminator_forward.6} parent=35 // pred_region
        %v1874 = vld [vmem:[#allocation2] sm:$0x1]
        %v1875 = vmul.f32 %v1874, 0.03125
        %v1876 = vld [vmem:[#allocation3] sm:$0x1]
        %v1877 = vmul.f32 %v1876, 0.03125
        %v1878 = vmul.f32 %v1875, %v1875
        %v1879 = vsub.f32 %v1877, %v1878
        %v1880 = vmax.f32 %v1879, 0.0
        %v1881 = vadd.f32 %v1880, 1e-05
        %v1882 = vrsqrt.pop %v1881
        %v1883 = vld [vmem:[%s2] sm:$0x1]
        %v1884 = vmul.f32 %v1883, %v1882
        %1885 = vst [vmem:[#allocation4] sm:$0x1] %v1884
        %v1886 = vld [vmem:[%s3] sm:$0x1]
        %v1887 = vld [vmem:[%s2] sm:$0x1]
        %v1888 = vmul.f32 %v1875, %v1887
        %v1889 = vmul.f32 %v1888, %v1882
        %v1890 = vsub.f32 %v1886, %v1889
        %1891 = vst [vmem:[#allocation5] sm:$0x1] %v1890
      $region48: #{discriminator_forward.6} parent=35 // pred_fallthru
        _
      // Predicated region
      $region49: #{discriminator_forward.6} parent=35 // pred_check
        %p1892 = pneg %p1869
      $region50: #{discriminator_forward.6} parent=35 // pred_check_branch
        %1894 = sbr.rel (%p1892) target = $region52
      $region51: #{discriminator_forward.6} parent=35 // pred_region
        %v1895 = vld [vmem:[#allocation4] sm:$0x1]
        %v1897 = vlaneseq
        %v1898 = vshrl.u32 %v1897, 7
        %v1899 = vsub.s32 0, %v1898
        %v1900 = vrot.slane %v1895, %v1899
        %v1902 = vmul.f32 %v1816, %v1900
        %v1903 = vmul.f32 %v1819, %v1900
        %v1904 = vmul.f32 %v1824, %v1900
        %v1905 = vmul.f32 %v1827, %v1900
        %v1906 = vld [vmem:[#allocation5] sm:$0x1]
        %v1908 = vlaneseq
        %v1909 = vshrl.u32 %v1908, 7
        %v1910 = vsub.s32 0, %v1909
        %v1911 = vrot.slane %v1906, %v1910
        %v1913 = vadd.f32 %v1902, %v1911
        %v1914 = vadd.f32 %v1903, %v1911
        %v1915 = vadd.f32 %v1904, %v1911
        %v1916 = vadd.f32 %v1905, %v1911
        %vm1917 = vcmp.gt.f32.partialorder %v1913, 0.0
        %vm1918 = vcmp.gt.f32.partialorder %v1914, 0.0
        %vm1919 = vcmp.gt.f32.partialorder %v1915, 0.0
        %vm1920 = vcmp.gt.f32.partialorder %v1916, 0.0
        %v1921 = vmul.f32 %v1913, 0.2
        %v1922 = vmul.f32 %v1914, 0.2
        %v1923 = vmul.f32 %v1915, 0.2
        %v1924 = vmul.f32 %v1916, 0.2
        %v1925 = vsel %vm1917, %v1913, %v1921
        %v1926 = vsel %vm1918, %v1914, %v1922
        %v1927 = vsel %vm1919, %v1915, %v1923
        %v1928 = vsel %vm1920, %v1916, %v1924
        %v1929 = vpack.c.bf16 %v1926, %v1925
        %v1930 = vpack.c.bf16 %v1928, %v1927
        %v1933 = vunpack.c.l.b16 %v1929
        %v1934 = vunpack.c.h.b16 %v1929
        %v1935 = vunpack.c.l.b16 %v1930
        %v1936 = vunpack.c.h.b16 %v1930
        %v1937 = vpack.c.b16 %v1933, %v1933
        %v1938 = vpack.c.b16 %v1934, %v1934
        %v1939 = vpack.c.b16 %v1935, %v1935
        %v1940 = vpack.c.b16 %v1936, %v1936
        %1945 = vst [vmem:[%s218] sm:$0xf] %v1937
        %1946 = vst [vmem:[%s218 + $0x4] sm:$0xf] %v1938
        %1947 = vst [vmem:[%s218 + $0x8] sm:$0xf] %v1939
        %1948 = vst [vmem:[%s218 + $0xc] sm:$0xf] %v1940
      $region52: #{discriminator_forward.6} parent=35 // pred_fallthru
        _
      %s1949 = smul.u32 %s20, %s19
      %s1950 = smul.u32 4, %s1949
      %p1951 = scmp.lt.s32.totalorder %s1950, 3
      %s1952 = scalar_select %p1951, %s1950, 3
      %s1953 = smul.addr %s1952, 4
      %s1954 = scalar_lea.vmem %s4, %s1953
      // Predicated region
      $region53: #{discriminator_forward.6} parent=35 // pred_check
        %p1955 = pneg %p136
      $region54: #{discriminator_forward.6} parent=35 // pred_check_branch
        %1957 = sbr.rel (%p1955) target = $region56
      $region55: #{discriminator_forward.6} parent=35 // pred_region
        %s1958 = smul.u32 %s20, %s19
        %s1959 = smul.u32 4, %s1958
      $region56: #{discriminator_forward.6} parent=35 // pred_fallthru
        _
    $region36: #{discriminator_forward.6} parent=5 // pred_fallthru
      _
    %p1960 = scmp.le.s32.totalorder 2, %s10
    // Predicated region
    $region57: #{discriminator_forward.6} parent=5 // pred_check
      %p1961 = pneg %p1960
    $region58: #{discriminator_forward.6} parent=5 // pred_check_branch
      %1963 = sbr.rel (%p1961) target = $region60
    $region59: #{discriminator_forward.6} parent=5 // pred_region
      %s1964 = ssub.s32 %s10, 2
      // Predicated region
      $region61: #{discriminator_forward.6} parent=59 // pred_check
        %p1965 = pneg %p142
      $region62: #{discriminator_forward.6} parent=59 // pred_check_branch
        %1967 = sbr.rel (%p1965) target = $region64
      $region63: #{discriminator_forward.6} parent=59 // pred_region
        %s1968 = smul.u32 %s22, %s21
        %s1969 = smul.u32 4, %s1968
        %p1970 = scmp.lt.s32.totalorder %s1969, 3
        %s1971 = scalar_select %p1970, %s1969, 3
        %s1972 = smul.addr %s1971, 4
        %s1973 = scalar_lea.vmem %s4, %s1972
      $region64: #{discriminator_forward.6} parent=59 // pred_fallthru
        _
    $region60: #{discriminator_forward.6} parent=5 // pred_fallthru
      _
  $region6: #{discriminator_forward.6} parent=0 // loop_footer
    %s14 = sadd.s32 1, %s10
  $region7: #{discriminator_forward.6} parent=0 // loop_footer_branch
    %9 = sbr.rel target = $region3
  $region8: #{discriminator_forward.6} parent=0 // loop_exit
    _

// kernel: discriminator_forward.7
$region0: #{discriminator_forward.7}
  #allocation0 [shape = 'u32[]', space=smem, size = 0x4, offset = 0x4, fixed_abs, tag = 'smem constant byte address 0x4 - core index']
  #allocation1 [shape = 'u32[144,128]{1,0:T(1,128)}', space=vmem, size = 0x12000, scoped, tag = 'internal scratch']
  #allocation2 [shape = 'f32[1,128]{1,0:T(1,128)}', space=vmem, size = 0x200, scoped, tag = 'scratch operand']
  #allocation3 [shape = 'f32[1,128]{1,0:T(1,128)}', space=vmem, size = 0x200, scoped, tag = 'scratch operand']
  #allocation4 [shape = 'f32[1,128]{1,0:T(1,128)}', space=vmem, size = 0x200, scoped, tag = 'scratch operand']
  #allocation5 [shape = 'f32[1,128]{1,0:T(1,128)}', space=vmem, size = 0x200, scoped, tag = 'scratch operand']
  %s0 = inlined_call_operand.vmem [shape: bf16[16,2048], index: 0, kind: input, shape index: {}]
  %s1 = inlined_call_operand.vmem [shape: bf16[2048,128], index: 1, kind: input, shape index: {}]
  %s2 = inlined_call_operand.vmem [shape: f32[1,128], index: 2, kind: input, shape index: {}]
  %s3 = inlined_call_operand.vmem [shape: f32[1,128], index: 3, kind: input, shape index: {}]
  %s4 = inlined_call_operand.vmem [shape: bf16[16,128], index: 4, kind: output, shape index: {}]
  %s5 = sld [smem:[#allocation0]]
  $region65: #{discriminator_forward.7} parent=0
    _
  %s7 = ssub.s32 1, %s5
  %s8 = scalar_select 0, %s7, %s5
  loop: start=0, step=1, limit=4
  $region2: #{discriminator_forward.7} parent=0 // loop_pre_header
    _
  $region3: #{discriminator_forward.7} parent=0 // loop_header
    %s10 = sphi 0, %s14
    %p11 = scmp.ge.s32.totalorder %s10, 4
    %s17 = sphi 0, %s29
    %s18 = sphi 0, %s25
    %s19 = sphi 0, %s17
    %s20 = sphi 0, %s18
    %s21 = sphi 0, %s19
    %s22 = sphi 0, %s20
    %s32 = sphi 0, %s34
    %s35 = sphi 0, %s32
    %s36 = sphi 0, %s35
    %s52 = sphi 0, %s36
    %s56 = sphi 0, %s56
    %s58 = sphi 0, %s56
    %s59 = sphi 0, %s58
    %s73 = sphi 0, %s59
    %s77 = sphi 0, %s77
    %s79 = sphi 0, %s77
    %s80 = sphi 0, %s79
    %s94 = sphi 0, %s80
    %s98 = sphi 0, %s98
    %s100 = sphi 0, %s98
    %s101 = sphi 0, %s100
    %s115 = sphi 0, %s101
    %s123 = sphi 0, %s125
    %s126 = sphi 0, %s123
    %s127 = sphi 0, %s126
    %s143 = sphi 0, %s127
  $region4: #{discriminator_forward.7} parent=0 // loop_header_branch
    %13 = sbr.rel (%p11) target = $region8
  $region5: #{discriminator_forward.7} parent=0 // loop_body
    %s15 = ssub.s32 %s10, 1
    %s16 = ssub.s32 %s10, 2
    %s23 = sadd.s32 1, %s18
    %p24 = scmp.ge.s32.totalorder %s23, 1
    %s25 = scalar_select %p24, 0, %s23
    %s26 = sadd.s32 1, %s17
    %s27 = scalar_select %p24, %s26, %s17
    %p28 = scmp.ge.s32.totalorder %s27, 2
    %s29 = scalar_select %p28, 0, %s27
    %s30 = ssub.s32 %s18, %s25
    %p31 = scmp.eq.s32.totalorder %s30, 0
    %s33 = sadd.s32 %s32, 1
    %s34 = scalar_select %p31, %s32, %s33
    %p37 = pneg %p31
    %p38 = scmp.eq.s32.totalorder %s10, 1
    %p39 = por %p37, %p38
    %p40 = scmp.ne.s32.totalorder %s32, %s35
    %p41 = scmp.eq.s32.totalorder %s10, 0
    %p42 = por %p40, %p41
    %p43 = scmp.ne.s32.totalorder %s32, %s35
    %p44 = scmp.eq.s32.totalorder %s15, 1
    %p45 = por %p43, %p44
    %p46 = scmp.ne.s32.totalorder %s35, %s36
    %p47 = scmp.eq.s32.totalorder %s15, 0
    %p48 = por %p46, %p47
    %p49 = scmp.ne.s32.totalorder %s35, %s36
    %p50 = scmp.eq.s32.totalorder %s16, 1
    %p51 = por %p49, %p50
    %p53 = scmp.ne.s32.totalorder %s36, %s52
    %p54 = scmp.eq.s32.totalorder %s16, 0
    %p55 = por %p53, %p54
    %s57 = sadd.s32 %s56, 1
    %p60 = scmp.eq.s32.totalorder %s10, 1
    %p61 = scmp.ne.s32.totalorder %s56, %s58
    %p62 = scmp.eq.s32.totalorder %s10, 0
    %p63 = por %p61, %p62
    %p64 = scmp.ne.s32.totalorder %s56, %s58
    %p65 = scmp.eq.s32.totalorder %s15, 1
    %p66 = por %p64, %p65
    %p67 = scmp.ne.s32.totalorder %s58, %s59
    %p68 = scmp.eq.s32.totalorder %s15, 0
    %p69 = por %p67, %p68
    %p70 = scmp.ne.s32.totalorder %s58, %s59
    %p71 = scmp.eq.s32.totalorder %s16, 1
    %p72 = por %p70, %p71
    %p74 = scmp.ne.s32.totalorder %s59, %s73
    %p75 = scmp.eq.s32.totalorder %s16, 0
    %p76 = por %p74, %p75
    %s78 = sadd.s32 %s77, 1
    %p81 = scmp.eq.s32.totalorder %s10, 1
    %p82 = scmp.ne.s32.totalorder %s77, %s79
    %p83 = scmp.eq.s32.totalorder %s10, 0
    %p84 = por %p82, %p83
    %p85 = scmp.ne.s32.totalorder %s77, %s79
    %p86 = scmp.eq.s32.totalorder %s15, 1
    %p87 = por %p85, %p86
    %p88 = scmp.ne.s32.totalorder %s79, %s80
    %p89 = scmp.eq.s32.totalorder %s15, 0
    %p90 = por %p88, %p89
    %p91 = scmp.ne.s32.totalorder %s79, %s80
    %p92 = scmp.eq.s32.totalorder %s16, 1
    %p93 = por %p91, %p92
    %p95 = scmp.ne.s32.totalorder %s80, %s94
    %p96 = scmp.eq.s32.totalorder %s16, 0
    %p97 = por %p95, %p96
    %s99 = sadd.s32 %s98, 1
    %p102 = scmp.eq.s32.totalorder %s10, 1
    %p103 = scmp.ne.s32.totalorder %s98, %s100
    %p104 = scmp.eq.s32.totalorder %s10, 0
    %p105 = por %p103, %p104
    %p106 = scmp.ne.s32.totalorder %s98, %s100
    %p107 = scmp.eq.s32.totalorder %s15, 1
    %p108 = por %p106, %p107
    %p109 = scmp.ne.s32.totalorder %s100, %s101
    %p110 = scmp.eq.s32.totalorder %s15, 0
    %p111 = por %p109, %p110
    %p112 = scmp.ne.s32.totalorder %s100, %s101
    %p113 = scmp.eq.s32.totalorder %s16, 1
    %p114 = por %p112, %p113
    %p116 = scmp.ne.s32.totalorder %s101, %s115
    %p117 = scmp.eq.s32.totalorder %s16, 0
    %p118 = por %p116, %p117
    %s119 = smul.u32 %s18, %s17
    %s120 = smul.u32 %s25, %s29
    %s121 = ssub.s32 %s119, %s120
    %p122 = scmp.eq.s32.totalorder %s121, 0
    %s124 = sadd.s32 %s123, 1
    %s125 = scalar_select %p122, %s123, %s124
    %p128 = pneg %p122
    %p129 = scmp.eq.s32.totalorder %s10, 1
    %p130 = por %p128, %p129
    %p131 = scmp.ne.s32.totalorder %s123, %s126
    %p132 = scmp.eq.s32.totalorder %s10, 0
    %p133 = por %p131, %p132
    %p134 = scmp.ne.s32.totalorder %s123, %s126
    %p135 = scmp.eq.s32.totalorder %s15, 1
    %p136 = por %p134, %p135
    %p137 = scmp.ne.s32.totalorder %s126, %s127
    %p138 = scmp.eq.s32.totalorder %s15, 0
    %p139 = por %p137, %p138
    %p140 = scmp.ne.s32.totalorder %s126, %s127
    %p141 = scmp.eq.s32.totalorder %s16, 1
    %p142 = por %p140, %p141
    %p144 = scmp.ne.s32.totalorder %s127, %s143
    %p145 = scmp.eq.s32.totalorder %s16, 0
    %p146 = por %p144, %p145
    %p147 = scmp.le.s32.totalorder 1, %s10
    %p148 = scmp.lt.s32.totalorder %s10, 3
    %p149 = pnand %p147, %p148
    %p150 = pneg %p149
    // Predicated region
    $region9: #{discriminator_forward.7} parent=5 // pred_check
      _
    $region10: #{discriminator_forward.7} parent=5 // pred_check_branch
      %152 = sbr.rel (%p149) target = $region12
    $region11: #{discriminator_forward.7} parent=5 // pred_region
      %s153 = ssub.s32 %s10, 1
      // Predicated region
      $region13: #{discriminator_forward.7} parent=11 // pred_check
        %p154 = pneg %p48
      $region14: #{discriminator_forward.7} parent=11 // pred_check_branch
        %156 = sbr.rel (%p154) target = $region16
      $region15: #{discriminator_forward.7} parent=11 // pred_region
        %s157 = smul.u32 2, %s20
        %p158 = scmp.lt.s32.totalorder %s157, 1
        %s159 = scalar_select %p158, %s157, 1
        %s160 = smul.addr %s159, 16
        %s161 = smul.addr %s160, 4
        %s162 = scalar_lea.vmem %s0, %s161
        %s163 = smul.u32 2, %s20
      $region16: #{discriminator_forward.7} parent=11 // pred_fallthru
        _
      // Predicated region
      $region17: #{discriminator_forward.7} parent=11 // pred_check
        %p164 = pneg %p69
      $region18: #{discriminator_forward.7} parent=11 // pred_check_branch
        %166 = sbr.rel (%p164) target = $region20
      $region19: #{discriminator_forward.7} parent=11 // pred_region
        _
      $region20: #{discriminator_forward.7} parent=11 // pred_fallthru
        _
      // Predicated region
      $region21: #{discriminator_forward.7} parent=11 // pred_check
        %p167 = pneg %p90
      $region22: #{discriminator_forward.7} parent=11 // pred_check_branch
        %169 = sbr.rel (%p167) target = $region24
      $region23: #{discriminator_forward.7} parent=11 // pred_region
        _
      $region24: #{discriminator_forward.7} parent=11 // pred_fallthru
        _
      // Predicated region
      $region25: #{discriminator_forward.7} parent=11 // pred_check
        %p170 = pneg %p111
      $region26: #{discriminator_forward.7} parent=11 // pred_check_branch
        %172 = sbr.rel (%p170) target = $region28
      $region27: #{discriminator_forward.7} parent=11 // pred_region
        _
      $region28: #{discriminator_forward.7} parent=11 // pred_fallthru
        _
    $region12: #{discriminator_forward.7} parent=5 // pred_fallthru
      _
    %p173 = scmp.lt.s32.totalorder %s10, 2
    // Predicated region
    $region29: #{discriminator_forward.7} parent=5 // pred_check
      %p174 = pneg %p173
    $region30: #{discriminator_forward.7} parent=5 // pred_check_branch
      %176 = sbr.rel (%p174) target = $region32
    $region31: #{discriminator_forward.7} parent=5 // pred_region
      _
    $region32: #{discriminator_forward.7} parent=5 // pred_fallthru
      _
    %p177 = scmp.le.s32.totalorder 1, %s10
    %p178 = scmp.lt.s32.totalorder %s10, 3
    %p179 = pnand %p177, %p178
    %p180 = pneg %p179
    // Predicated region
    $region33: #{discriminator_forward.7} parent=5 // pred_check
      _
    $region34: #{discriminator_forward.7} parent=5 // pred_check_branch
      %182 = sbr.rel (%p179) target = $region36
    $region35: #{discriminator_forward.7} parent=5 // pred_region
      %s183 = ssub.s32 %s10, 1
      %s184 = smul.u32 2, %s20
      %p185 = scmp.lt.s32.totalorder %s184, 1
      %s186 = scalar_select %p185, %s184, 1
      %s187 = smul.addr %s186, 16
      %s188 = smul.addr %s187, 4
      %s189 = scalar_lea.vmem %s0, %s188
      %p190 = pneg %p48
      %p191 = pneg %p45
      %p192 = pneg %p69
      %p193 = pneg %p66
      %p194 = pneg %p90
      %p195 = pneg %p87
      %p196 = pneg %p111
      %p197 = pneg %p108
      %p198 = pneg %p139
      %p199 = pneg %p136
      %s200 = smul.u32 %s20, %s19
      %s201 = smul.u32 2, %s200
      %p202 = scmp.lt.s32.totalorder %s201, 1
      %s203 = scalar_select %p202, %s201, 1
      %s204 = smul.addr %s203, 4
      %s205 = scalar_lea.vmem %s4, %s204
      %s206 = smul.u32 2, %s20
      %p207 = scmp.lt.s32.totalorder %s206, 1
      %s208 = scalar_select %p207, %s206, 1
      %s209 = smul.addr %s208, 16
      %s210 = smul.addr %s209, 4
      %s211 = scalar_lea.vmem %s0, %s210
      %s212 = smul.u32 2, %s20
      %s213 = smul.u32 %s20, %s19
      %s214 = smul.u32 2, %s213
      %p215 = scmp.lt.s32.totalorder %s214, 1
      %s216 = scalar_select %p215, %s214, 1
      %s217 = smul.addr %s216, 4
      %s218 = scalar_lea.vmem %s4, %s217
      %s219 = smul.u32 %s20, %s19
      %s220 = smul.u32 2, %s219
      %v222 = vld [vmem:[%s211] sm:$0xff]
      %v223 = vld [vmem:[%s211 + $0x8] sm:$0xff]
      %v224 = vld [vmem:[%s211 + $0x10] sm:$0xff]
      %v225 = vld [vmem:[%s211 + $0x18] sm:$0xff]
      %v226 = vld [vmem:[%s211 + $0x20] sm:$0xff]
      %v227 = vld [vmem:[%s211 + $0x28] sm:$0xff]
      %v228 = vld [vmem:[%s211 + $0x30] sm:$0xff]
      %v229 = vld [vmem:[%s211 + $0x38] sm:$0xff]
      %v230 = vld [vmem:[%s211 + $0x40] sm:$0xff]
      %v231 = vld [vmem:[%s211 + $0x48] sm:$0xff]
      %v232 = vld [vmem:[%s211 + $0x50] sm:$0xff]
      %v233 = vld [vmem:[%s211 + $0x58] sm:$0xff]
      %v234 = vld [vmem:[%s211 + $0x60] sm:$0xff]
      %v235 = vld [vmem:[%s211 + $0x68] sm:$0xff]
      %v236 = vld [vmem:[%s211 + $0x70] sm:$0xff]
      %v237 = vld [vmem:[%s211 + $0x78] sm:$0xff]
      %v238 = vld [vmem:[%s1] sm:$0xf]
      %v239 = vld [vmem:[%s1 + $0x4] sm:$0xf]
      %v240 = vld [vmem:[%s1 + $0x8] sm:$0xf]
      %v241 = vld [vmem:[%s1 + $0xc] sm:$0xf]
      %v242 = vld [vmem:[%s1 + $0x10] sm:$0xf]
      %v243 = vld [vmem:[%s1 + $0x14] sm:$0xf]
      %v244 = vld [vmem:[%s1 + $0x18] sm:$0xf]
      %v245 = vld [vmem:[%s1 + $0x1c] sm:$0xf]
      %v246 = vld [vmem:[%s1 + $0x20] sm:$0xf]
      %v247 = vld [vmem:[%s1 + $0x24] sm:$0xf]
      %v248 = vld [vmem:[%s1 + $0x28] sm:$0xf]
      %v249 = vld [vmem:[%s1 + $0x2c] sm:$0xf]
      %v250 = vld [vmem:[%s1 + $0x30] sm:$0xf]
      %v251 = vld [vmem:[%s1 + $0x34] sm:$0xf]
      %v252 = vld [vmem:[%s1 + $0x38] sm:$0xf]
      %v253 = vld [vmem:[%s1 + $0x3c] sm:$0xf]
      %v254 = vld [vmem:[%s1 + $0x40] sm:$0xf]
      %v255 = vld [vmem:[%s1 + $0x44] sm:$0xf]
      %v256 = vld [vmem:[%s1 + $0x48] sm:$0xf]
      %v257 = vld [vmem:[%s1 + $0x4c] sm:$0xf]
      %v258 = vld [vmem:[%s1 + $0x50] sm:$0xf]
      %v259 = vld [vmem:[%s1 + $0x54] sm:$0xf]
      %v260 = vld [vmem:[%s1 + $0x58] sm:$0xf]
      %v261 = vld [vmem:[%s1 + $0x5c] sm:$0xf]
      %v262 = vld [vmem:[%s1 + $0x60] sm:$0xf]
      %v263 = vld [vmem:[%s1 + $0x64] sm:$0xf]
      %v264 = vld [vmem:[%s1 + $0x68] sm:$0xf]
      %v265 = vld [vmem:[%s1 + $0x6c] sm:$0xf]
      %v266 = vld [vmem:[%s1 + $0x70] sm:$0xf]
      %v267 = vld [vmem:[%s1 + $0x74] sm:$0xf]
      %v268 = vld [vmem:[%s1 + $0x78] sm:$0xf]
      %v269 = vld [vmem:[%s1 + $0x7c] sm:$0xf]
      %v270 = vld [vmem:[%s1 + $0x80] sm:$0xf]
      %v271 = vld [vmem:[%s1 + $0x84] sm:$0xf]
      %v272 = vld [vmem:[%s1 + $0x88] sm:$0xf]
      %v273 = vld [vmem:[%s1 + $0x8c] sm:$0xf]
      %v274 = vld [vmem:[%s1 + $0x90] sm:$0xf]
      %v275 = vld [vmem:[%s1 + $0x94] sm:$0xf]
      %v276 = vld [vmem:[%s1 + $0x98] sm:$0xf]
      %v277 = vld [vmem:[%s1 + $0x9c] sm:$0xf]
      %v278 = vld [vmem:[%s1 + $0xa0] sm:$0xf]
      %v279 = vld [vmem:[%s1 + $0xa4] sm:$0xf]
      %v280 = vld [vmem:[%s1 + $0xa8] sm:$0xf]
      %v281 = vld [vmem:[%s1 + $0xac] sm:$0xf]
      %v282 = vld [vmem:[%s1 + $0xb0] sm:$0xf]
      %v283 = vld [vmem:[%s1 + $0xb4] sm:$0xf]
      %v284 = vld [vmem:[%s1 + $0xb8] sm:$0xf]
      %v285 = vld [vmem:[%s1 + $0xbc] sm:$0xf]
      %v286 = vld [vmem:[%s1 + $0xc0] sm:$0xf]
      %v287 = vld [vmem:[%s1 + $0xc4] sm:$0xf]
      %v288 = vld [vmem:[%s1 + $0xc8] sm:$0xf]
      %v289 = vld [vmem:[%s1 + $0xcc] sm:$0xf]
      %v290 = vld [vmem:[%s1 + $0xd0] sm:$0xf]
      %v291 = vld [vmem:[%s1 + $0xd4] sm:$0xf]
      %v292 = vld [vmem:[%s1 + $0xd8] sm:$0xf]
      %v293 = vld [vmem:[%s1 + $0xdc] sm:$0xf]
      %v294 = vld [vmem:[%s1 + $0xe0] sm:$0xf]
      %v295 = vld [vmem:[%s1 + $0xe4] sm:$0xf]
      %v296 = vld [vmem:[%s1 + $0xe8] sm:$0xf]
      %v297 = vld [vmem:[%s1 + $0xec] sm:$0xf]
      %v298 = vld [vmem:[%s1 + $0xf0] sm:$0xf]
      %v299 = vld [vmem:[%s1 + $0xf4] sm:$0xf]
      %v300 = vld [vmem:[%s1 + $0xf8] sm:$0xf]
      %v301 = vld [vmem:[%s1 + $0xfc] sm:$0xf]
      %v302 = vld [vmem:[%s1 + $0x100] sm:$0xf]
      %v303 = vld [vmem:[%s1 + $0x104] sm:$0xf]
      %v304 = vld [vmem:[%s1 + $0x108] sm:$0xf]
      %v305 = vld [vmem:[%s1 + $0x10c] sm:$0xf]
      %v306 = vld [vmem:[%s1 + $0x110] sm:$0xf]
      %v307 = vld [vmem:[%s1 + $0x114] sm:$0xf]
      %v308 = vld [vmem:[%s1 + $0x118] sm:$0xf]
      %v309 = vld [vmem:[%s1 + $0x11c] sm:$0xf]
      %v310 = vld [vmem:[%s1 + $0x120] sm:$0xf]
      %v311 = vld [vmem:[%s1 + $0x124] sm:$0xf]
      %v312 = vld [vmem:[%s1 + $0x128] sm:$0xf]
      %v313 = vld [vmem:[%s1 + $0x12c] sm:$0xf]
      %v314 = vld [vmem:[%s1 + $0x130] sm:$0xf]
      %v315 = vld [vmem:[%s1 + $0x134] sm:$0xf]
      %v316 = vld [vmem:[%s1 + $0x138] sm:$0xf]
      %v317 = vld [vmem:[%s1 + $0x13c] sm:$0xf]
      %v318 = vld [vmem:[%s1 + $0x140] sm:$0xf]
      %v319 = vld [vmem:[%s1 + $0x144] sm:$0xf]
      %v320 = vld [vmem:[%s1 + $0x148] sm:$0xf]
      %v321 = vld [vmem:[%s1 + $0x14c] sm:$0xf]
      %v322 = vld [vmem:[%s1 + $0x150] sm:$0xf]
      %v323 = vld [vmem:[%s1 + $0x154] sm:$0xf]
      %v324 = vld [vmem:[%s1 + $0x158] sm:$0xf]
      %v325 = vld [vmem:[%s1 + $0x15c] sm:$0xf]
      %v326 = vld [vmem:[%s1 + $0x160] sm:$0xf]
      %v327 = vld [vmem:[%s1 + $0x164] sm:$0xf]
      %v328 = vld [vmem:[%s1 + $0x168] sm:$0xf]
      %v329 = vld [vmem:[%s1 + $0x16c] sm:$0xf]
      %v330 = vld [vmem:[%s1 + $0x170] sm:$0xf]
      %v331 = vld [vmem:[%s1 + $0x174] sm:$0xf]
      %v332 = vld [vmem:[%s1 + $0x178] sm:$0xf]
      %v333 = vld [vmem:[%s1 + $0x17c] sm:$0xf]
      %v334 = vld [vmem:[%s1 + $0x180] sm:$0xf]
      %v335 = vld [vmem:[%s1 + $0x184] sm:$0xf]
      %v336 = vld [vmem:[%s1 + $0x188] sm:$0xf]
      %v337 = vld [vmem:[%s1 + $0x18c] sm:$0xf]
      %v338 = vld [vmem:[%s1 + $0x190] sm:$0xf]
      %v339 = vld [vmem:[%s1 + $0x194] sm:$0xf]
      %v340 = vld [vmem:[%s1 + $0x198] sm:$0xf]
      %v341 = vld [vmem:[%s1 + $0x19c] sm:$0xf]
      %v342 = vld [vmem:[%s1 + $0x1a0] sm:$0xf]
      %v343 = vld [vmem:[%s1 + $0x1a4] sm:$0xf]
      %v344 = vld [vmem:[%s1 + $0x1a8] sm:$0xf]
      %v345 = vld [vmem:[%s1 + $0x1ac] sm:$0xf]
      %v346 = vld [vmem:[%s1 + $0x1b0] sm:$0xf]
      %v347 = vld [vmem:[%s1 + $0x1b4] sm:$0xf]
      %v348 = vld [vmem:[%s1 + $0x1b8] sm:$0xf]
      %v349 = vld [vmem:[%s1 + $0x1bc] sm:$0xf]
      %v350 = vld [vmem:[%s1 + $0x1c0] sm:$0xf]
      %v351 = vld [vmem:[%s1 + $0x1c4] sm:$0xf]
      %v352 = vld [vmem:[%s1 + $0x1c8] sm:$0xf]
      %v353 = vld [vmem:[%s1 + $0x1cc] sm:$0xf]
      %v354 = vld [vmem:[%s1 + $0x1d0] sm:$0xf]
      %v355 = vld [vmem:[%s1 + $0x1d4] sm:$0xf]
      %v356 = vld [vmem:[%s1 + $0x1d8] sm:$0xf]
      %v357 = vld [vmem:[%s1 + $0x1dc] sm:$0xf]
      %v358 = vld [vmem:[%s1 + $0x1e0] sm:$0xf]
      %v359 = vld [vmem:[%s1 + $0x1e4] sm:$0xf]
      %v360 = vld [vmem:[%s1 + $0x1e8] sm:$0xf]
      %v361 = vld [vmem:[%s1 + $0x1ec] sm:$0xf]
      %v362 = vld [vmem:[%s1 + $0x1f0] sm:$0xf]
      %v363 = vld [vmem:[%s1 + $0x1f4] sm:$0xf]
      %v364 = vld [vmem:[%s1 + $0x1f8] sm:$0xf]
      %v365 = vld [vmem:[%s1 + $0x1fc] sm:$0xf]
      %v366 = vld [vmem:[%s1 + $0x200] sm:$0xf]
      %v367 = vld [vmem:[%s1 + $0x204] sm:$0xf]
      %v368 = vld [vmem:[%s1 + $0x208] sm:$0xf]
      %v369 = vld [vmem:[%s1 + $0x20c] sm:$0xf]
      %v370 = vld [vmem:[%s1 + $0x210] sm:$0xf]
      %v371 = vld [vmem:[%s1 + $0x214] sm:$0xf]
      %v372 = vld [vmem:[%s1 + $0x218] sm:$0xf]
      %v373 = vld [vmem:[%s1 + $0x21c] sm:$0xf]
      %v374 = vld [vmem:[%s1 + $0x220] sm:$0xf]
      %v375 = vld [vmem:[%s1 + $0x224] sm:$0xf]
      %v376 = vld [vmem:[%s1 + $0x228] sm:$0xf]
      %v377 = vld [vmem:[%s1 + $0x22c] sm:$0xf]
      %v378 = vld [vmem:[%s1 + $0x230] sm:$0xf]
      %v379 = vld [vmem:[%s1 + $0x234] sm:$0xf]
      %v380 = vld [vmem:[%s1 + $0x238] sm:$0xf]
      %v381 = vld [vmem:[%s1 + $0x23c] sm:$0xf]
      %v382 = vld [vmem:[%s1 + $0x240] sm:$0xf]
      %v383 = vld [vmem:[%s1 + $0x244] sm:$0xf]
      %v384 = vld [vmem:[%s1 + $0x248] sm:$0xf]
      %v385 = vld [vmem:[%s1 + $0x24c] sm:$0xf]
      %v386 = vld [vmem:[%s1 + $0x250] sm:$0xf]
      %v387 = vld [vmem:[%s1 + $0x254] sm:$0xf]
      %v388 = vld [vmem:[%s1 + $0x258] sm:$0xf]
      %v389 = vld [vmem:[%s1 + $0x25c] sm:$0xf]
      %v390 = vld [vmem:[%s1 + $0x260] sm:$0xf]
      %v391 = vld [vmem:[%s1 + $0x264] sm:$0xf]
      %v392 = vld [vmem:[%s1 + $0x268] sm:$0xf]
      %v393 = vld [vmem:[%s1 + $0x26c] sm:$0xf]
      %v394 = vld [vmem:[%s1 + $0x270] sm:$0xf]
      %v395 = vld [vmem:[%s1 + $0x274] sm:$0xf]
      %v396 = vld [vmem:[%s1 + $0x278] sm:$0xf]
      %v397 = vld [vmem:[%s1 + $0x27c] sm:$0xf]
      %v398 = vld [vmem:[%s1 + $0x280] sm:$0xf]
      %v399 = vld [vmem:[%s1 + $0x284] sm:$0xf]
      %v400 = vld [vmem:[%s1 + $0x288] sm:$0xf]
      %v401 = vld [vmem:[%s1 + $0x28c] sm:$0xf]
      %v402 = vld [vmem:[%s1 + $0x290] sm:$0xf]
      %v403 = vld [vmem:[%s1 + $0x294] sm:$0xf]
      %v404 = vld [vmem:[%s1 + $0x298] sm:$0xf]
      %v405 = vld [vmem:[%s1 + $0x29c] sm:$0xf]
      %v406 = vld [vmem:[%s1 + $0x2a0] sm:$0xf]
      %v407 = vld [vmem:[%s1 + $0x2a4] sm:$0xf]
      %v408 = vld [vmem:[%s1 + $0x2a8] sm:$0xf]
      %v409 = vld [vmem:[%s1 + $0x2ac] sm:$0xf]
      %v410 = vld [vmem:[%s1 + $0x2b0] sm:$0xf]
      %v411 = vld [vmem:[%s1 + $0x2b4] sm:$0xf]
      %v412 = vld [vmem:[%s1 + $0x2b8] sm:$0xf]
      %v413 = vld [vmem:[%s1 + $0x2bc] sm:$0xf]
      %v414 = vld [vmem:[%s1 + $0x2c0] sm:$0xf]
      %v415 = vld [vmem:[%s1 + $0x2c4] sm:$0xf]
      %v416 = vld [vmem:[%s1 + $0x2c8] sm:$0xf]
      %v417 = vld [vmem:[%s1 + $0x2cc] sm:$0xf]
      %v418 = vld [vmem:[%s1 + $0x2d0] sm:$0xf]
      %v419 = vld [vmem:[%s1 + $0x2d4] sm:$0xf]
      %v420 = vld [vmem:[%s1 + $0x2d8] sm:$0xf]
      %v421 = vld [vmem:[%s1 + $0x2dc] sm:$0xf]
      %v422 = vld [vmem:[%s1 + $0x2e0] sm:$0xf]
      %v423 = vld [vmem:[%s1 + $0x2e4] sm:$0xf]
      %v424 = vld [vmem:[%s1 + $0x2e8] sm:$0xf]
      %v425 = vld [vmem:[%s1 + $0x2ec] sm:$0xf]
      %v426 = vld [vmem:[%s1 + $0x2f0] sm:$0xf]
      %v427 = vld [vmem:[%s1 + $0x2f4] sm:$0xf]
      %v428 = vld [vmem:[%s1 + $0x2f8] sm:$0xf]
      %v429 = vld [vmem:[%s1 + $0x2fc] sm:$0xf]
      %v430 = vld [vmem:[%s1 + $0x300] sm:$0xf]
      %v431 = vld [vmem:[%s1 + $0x304] sm:$0xf]
      %v432 = vld [vmem:[%s1 + $0x308] sm:$0xf]
      %v433 = vld [vmem:[%s1 + $0x30c] sm:$0xf]
      %v434 = vld [vmem:[%s1 + $0x310] sm:$0xf]
      %v435 = vld [vmem:[%s1 + $0x314] sm:$0xf]
      %v436 = vld [vmem:[%s1 + $0x318] sm:$0xf]
      %v437 = vld [vmem:[%s1 + $0x31c] sm:$0xf]
      %v438 = vld [vmem:[%s1 + $0x320] sm:$0xf]
      %v439 = vld [vmem:[%s1 + $0x324] sm:$0xf]
      %v440 = vld [vmem:[%s1 + $0x328] sm:$0xf]
      %v441 = vld [vmem:[%s1 + $0x32c] sm:$0xf]
      %v442 = vld [vmem:[%s1 + $0x330] sm:$0xf]
      %v443 = vld [vmem:[%s1 + $0x334] sm:$0xf]
      %v444 = vld [vmem:[%s1 + $0x338] sm:$0xf]
      %v445 = vld [vmem:[%s1 + $0x33c] sm:$0xf]
      %v446 = vld [vmem:[%s1 + $0x340] sm:$0xf]
      %v447 = vld [vmem:[%s1 + $0x344] sm:$0xf]
      %v448 = vld [vmem:[%s1 + $0x348] sm:$0xf]
      %v449 = vld [vmem:[%s1 + $0x34c] sm:$0xf]
      %v450 = vld [vmem:[%s1 + $0x350] sm:$0xf]
      %v451 = vld [vmem:[%s1 + $0x354] sm:$0xf]
      %v452 = vld [vmem:[%s1 + $0x358] sm:$0xf]
      %v453 = vld [vmem:[%s1 + $0x35c] sm:$0xf]
      %v454 = vld [vmem:[%s1 + $0x360] sm:$0xf]
      %v455 = vld [vmem:[%s1 + $0x364] sm:$0xf]
      %v456 = vld [vmem:[%s1 + $0x368] sm:$0xf]
      %v457 = vld [vmem:[%s1 + $0x36c] sm:$0xf]
      %v458 = vld [vmem:[%s1 + $0x370] sm:$0xf]
      %v459 = vld [vmem:[%s1 + $0x374] sm:$0xf]
      %v460 = vld [vmem:[%s1 + $0x378] sm:$0xf]
      %v461 = vld [vmem:[%s1 + $0x37c] sm:$0xf]
      %v462 = vld [vmem:[%s1 + $0x380] sm:$0xf]
      %v463 = vld [vmem:[%s1 + $0x384] sm:$0xf]
      %v464 = vld [vmem:[%s1 + $0x388] sm:$0xf]
      %v465 = vld [vmem:[%s1 + $0x38c] sm:$0xf]
      %v466 = vld [vmem:[%s1 + $0x390] sm:$0xf]
      %v467 = vld [vmem:[%s1 + $0x394] sm:$0xf]
      %v468 = vld [vmem:[%s1 + $0x398] sm:$0xf]
      %v469 = vld [vmem:[%s1 + $0x39c] sm:$0xf]
      %v470 = vld [vmem:[%s1 + $0x3a0] sm:$0xf]
      %v471 = vld [vmem:[%s1 + $0x3a4] sm:$0xf]
      %v472 = vld [vmem:[%s1 + $0x3a8] sm:$0xf]
      %v473 = vld [vmem:[%s1 + $0x3ac] sm:$0xf]
      %v474 = vld [vmem:[%s1 + $0x3b0] sm:$0xf]
      %v475 = vld [vmem:[%s1 + $0x3b4] sm:$0xf]
      %v476 = vld [vmem:[%s1 + $0x3b8] sm:$0xf]
      %v477 = vld [vmem:[%s1 + $0x3bc] sm:$0xf]
      %v478 = vld [vmem:[%s1 + $0x3c0] sm:$0xf]
      %v479 = vld [vmem:[%s1 + $0x3c4] sm:$0xf]
      %v480 = vld [vmem:[%s1 + $0x3c8] sm:$0xf]
      %v481 = vld [vmem:[%s1 + $0x3cc] sm:$0xf]
      %v482 = vld [vmem:[%s1 + $0x3d0] sm:$0xf]
      %v483 = vld [vmem:[%s1 + $0x3d4] sm:$0xf]
      %v484 = vld [vmem:[%s1 + $0x3d8] sm:$0xf]
      %v485 = vld [vmem:[%s1 + $0x3dc] sm:$0xf]
      %v486 = vld [vmem:[%s1 + $0x3e0] sm:$0xf]
      %v487 = vld [vmem:[%s1 + $0x3e4] sm:$0xf]
      %v488 = vld [vmem:[%s1 + $0x3e8] sm:$0xf]
      %v489 = vld [vmem:[%s1 + $0x3ec] sm:$0xf]
      %v490 = vld [vmem:[%s1 + $0x3f0] sm:$0xf]
      %v491 = vld [vmem:[%s1 + $0x3f4] sm:$0xf]
      %v492 = vld [vmem:[%s1 + $0x3f8] sm:$0xf]
      %v493 = vld [vmem:[%s1 + $0x3fc] sm:$0xf]
      %v510 = vunpack.c.l.b16 %v222
      %v511 = vunpack.c.h.b16 %v222
      %v512 = vunpack.c.l.b16 %v223
      %v513 = vunpack.c.h.b16 %v223
      %v514 = vunpack.c.l.b16 %v224
      %v515 = vunpack.c.h.b16 %v224
      %v516 = vunpack.c.l.b16 %v225
      %v517 = vunpack.c.h.b16 %v225
      %v518 = vunpack.c.l.b16 %v226
      %v519 = vunpack.c.h.b16 %v226
      %v520 = vunpack.c.l.b16 %v227
      %v521 = vunpack.c.h.b16 %v227
      %v522 = vunpack.c.l.b16 %v228
      %v523 = vunpack.c.h.b16 %v228
      %v524 = vunpack.c.l.b16 %v229
      %v525 = vunpack.c.h.b16 %v229
      %v526 = vunpack.c.l.b16 %v230
      %v527 = vunpack.c.h.b16 %v230
      %v528 = vunpack.c.l.b16 %v231
      %v529 = vunpack.c.h.b16 %v231
      %v530 = vunpack.c.l.b16 %v232
      %v531 = vunpack.c.h.b16 %v232
      %v532 = vunpack.c.l.b16 %v233
      %v533 = vunpack.c.h.b16 %v233
      %v534 = vunpack.c.l.b16 %v234
      %v535 = vunpack.c.h.b16 %v234
      %v536 = vunpack.c.l.b16 %v235
      %v537 = vunpack.c.h.b16 %v235
      %v538 = vunpack.c.l.b16 %v236
      %v539 = vunpack.c.h.b16 %v236
      %v540 = vunpack.c.l.b16 %v237
      %v541 = vunpack.c.h.b16 %v237
      %v542 = vpack.c.b16 %v526, %v510
      %v543 = vpack.c.b16 %v527, %v511
      %v544 = vpack.c.b16 %v528, %v512
      %v545 = vpack.c.b16 %v529, %v513
      %v546 = vpack.c.b16 %v530, %v514
      %v547 = vpack.c.b16 %v531, %v515
      %v548 = vpack.c.b16 %v532, %v516
      %v549 = vpack.c.b16 %v533, %v517
      %v550 = vpack.c.b16 %v534, %v518
      %v551 = vpack.c.b16 %v535, %v519
      %v552 = vpack.c.b16 %v536, %v520
      %v553 = vpack.c.b16 %v537, %v521
      %v554 = vpack.c.b16 %v538, %v522
      %v555 = vpack.c.b16 %v539, %v523
      %v556 = vpack.c.b16 %v540, %v524
      %v557 = vpack.c.b16 %v541, %v525
      %v830 = vunpack.c.l.b16 %v238
      %v831 = vunpack.c.l.b16 %v239
      %v832 = vunpack.c.l.b16 %v240
      %v833 = vunpack.c.l.b16 %v241
      %v834 = vunpack.c.l.b16 %v242
      %v835 = vunpack.c.l.b16 %v243
      %v836 = vunpack.c.l.b16 %v244
      %v837 = vunpack.c.l.b16 %v245
      %v838 = vunpack.c.l.b16 %v246
      %v839 = vunpack.c.l.b16 %v247
      %v840 = vunpack.c.l.b16 %v248
      %v841 = vunpack.c.l.b16 %v249
      %v842 = vunpack.c.l.b16 %v250
      %v843 = vunpack.c.l.b16 %v251
      %v844 = vunpack.c.l.b16 %v252
      %v845 = vunpack.c.l.b16 %v253
      %v846 = vunpack.c.l.b16 %v254
      %v847 = vunpack.c.l.b16 %v255
      %v848 = vunpack.c.l.b16 %v256
      %v849 = vunpack.c.l.b16 %v257
      %v850 = vunpack.c.l.b16 %v258
      %v851 = vunpack.c.l.b16 %v259
      %v852 = vunpack.c.l.b16 %v260
      %v853 = vunpack.c.l.b16 %v261
      %v854 = vunpack.c.l.b16 %v262
      %v855 = vunpack.c.l.b16 %v263
      %v856 = vunpack.c.l.b16 %v264
      %v857 = vunpack.c.l.b16 %v265
      %v858 = vunpack.c.l.b16 %v266
      %v859 = vunpack.c.l.b16 %v267
      %v860 = vunpack.c.l.b16 %v268
      %v861 = vunpack.c.l.b16 %v269
      %v862 = vunpack.c.l.b16 %v270
      %v863 = vunpack.c.l.b16 %v271
      %v864 = vunpack.c.l.b16 %v272
      %v865 = vunpack.c.l.b16 %v273
      %v866 = vunpack.c.l.b16 %v274
      %v867 = vunpack.c.l.b16 %v275
      %v868 = vunpack.c.l.b16 %v276
      %v869 = vunpack.c.l.b16 %v277
      %v870 = vunpack.c.l.b16 %v278
      %v871 = vunpack.c.l.b16 %v279
      %v872 = vunpack.c.l.b16 %v280
      %v873 = vunpack.c.l.b16 %v281
      %v874 = vunpack.c.l.b16 %v282
      %v875 = vunpack.c.l.b16 %v283
      %v876 = vunpack.c.l.b16 %v284
      %v877 = vunpack.c.l.b16 %v285
      %v878 = vunpack.c.l.b16 %v286
      %v879 = vunpack.c.l.b16 %v287
      %v880 = vunpack.c.l.b16 %v288
      %v881 = vunpack.c.l.b16 %v289
      %v882 = vunpack.c.l.b16 %v290
      %v883 = vunpack.c.l.b16 %v291
      %v884 = vunpack.c.l.b16 %v292
      %v885 = vunpack.c.l.b16 %v293
      %v886 = vunpack.c.l.b16 %v294
      %v887 = vunpack.c.l.b16 %v295
      %v888 = vunpack.c.l.b16 %v296
      %v889 = vunpack.c.l.b16 %v297
      %v890 = vunpack.c.l.b16 %v298
      %v891 = vunpack.c.l.b16 %v299
      %v892 = vunpack.c.l.b16 %v300
      %v893 = vunpack.c.l.b16 %v301
      %v894 = vunpack.c.l.b16 %v302
      %v895 = vunpack.c.l.b16 %v303
      %v896 = vunpack.c.l.b16 %v304
      %v897 = vunpack.c.l.b16 %v305
      %v898 = vunpack.c.l.b16 %v306
      %v899 = vunpack.c.l.b16 %v307
      %v900 = vunpack.c.l.b16 %v308
      %v901 = vunpack.c.l.b16 %v309
      %v902 = vunpack.c.l.b16 %v310
      %v903 = vunpack.c.l.b16 %v311
      %v904 = vunpack.c.l.b16 %v312
      %v905 = vunpack.c.l.b16 %v313
      %v906 = vunpack.c.l.b16 %v314
      %v907 = vunpack.c.l.b16 %v315
      %v908 = vunpack.c.l.b16 %v316
      %v909 = vunpack.c.l.b16 %v317
      %v910 = vunpack.c.l.b16 %v318
      %v911 = vunpack.c.l.b16 %v319
      %v912 = vunpack.c.l.b16 %v320
      %v913 = vunpack.c.l.b16 %v321
      %v914 = vunpack.c.l.b16 %v322
      %v915 = vunpack.c.l.b16 %v323
      %v916 = vunpack.c.l.b16 %v324
      %v917 = vunpack.c.l.b16 %v325
      %v918 = vunpack.c.l.b16 %v326
      %v919 = vunpack.c.l.b16 %v327
      %v920 = vunpack.c.l.b16 %v328
      %v921 = vunpack.c.l.b16 %v329
      %v922 = vunpack.c.l.b16 %v330
      %v923 = vunpack.c.l.b16 %v331
      %v924 = vunpack.c.l.b16 %v332
      %v925 = vunpack.c.l.b16 %v333
      %v926 = vunpack.c.l.b16 %v334
      %v927 = vunpack.c.l.b16 %v335
      %v928 = vunpack.c.l.b16 %v336
      %v929 = vunpack.c.l.b16 %v337
      %v930 = vunpack.c.l.b16 %v338
      %v931 = vunpack.c.l.b16 %v339
      %v932 = vunpack.c.l.b16 %v340
      %v933 = vunpack.c.l.b16 %v341
      %v934 = vunpack.c.l.b16 %v342
      %v935 = vunpack.c.l.b16 %v343
      %v936 = vunpack.c.l.b16 %v344
      %v937 = vunpack.c.l.b16 %v345
      %v938 = vunpack.c.l.b16 %v346
      %v939 = vunpack.c.l.b16 %v347
      %v940 = vunpack.c.l.b16 %v348
      %v941 = vunpack.c.l.b16 %v349
      %v942 = vunpack.c.l.b16 %v350
      %v943 = vunpack.c.l.b16 %v351
      %v944 = vunpack.c.l.b16 %v352
      %v945 = vunpack.c.l.b16 %v353
      %v946 = vunpack.c.l.b16 %v354
      %v947 = vunpack.c.l.b16 %v355
      %v948 = vunpack.c.l.b16 %v356
      %v949 = vunpack.c.l.b16 %v357
      %v950 = vunpack.c.l.b16 %v358
      %v951 = vunpack.c.l.b16 %v359
      %v952 = vunpack.c.l.b16 %v360
      %v953 = vunpack.c.l.b16 %v361
      %v954 = vunpack.c.l.b16 %v362
      %v955 = vunpack.c.l.b16 %v363
      %v956 = vunpack.c.l.b16 %v364
      %v957 = vunpack.c.l.b16 %v365
      %v958 = vunpack.c.l.b16 %v366
      %v959 = vunpack.c.l.b16 %v367
      %v960 = vunpack.c.l.b16 %v368
      %v961 = vunpack.c.l.b16 %v369
      %v962 = vunpack.c.l.b16 %v370
      %v963 = vunpack.c.l.b16 %v371
      %v964 = vunpack.c.l.b16 %v372
      %v965 = vunpack.c.l.b16 %v373
      %v966 = vunpack.c.l.b16 %v374
      %v967 = vunpack.c.l.b16 %v375
      %v968 = vunpack.c.l.b16 %v376
      %v969 = vunpack.c.l.b16 %v377
      %v970 = vunpack.c.l.b16 %v378
      %v971 = vunpack.c.l.b16 %v379
      %v972 = vunpack.c.l.b16 %v380
      %v973 = vunpack.c.l.b16 %v381
      %v974 = vunpack.c.l.b16 %v382
      %v975 = vunpack.c.l.b16 %v383
      %v976 = vunpack.c.l.b16 %v384
      %v977 = vunpack.c.l.b16 %v385
      %v978 = vunpack.c.l.b16 %v386
      %v979 = vunpack.c.l.b16 %v387
      %v980 = vunpack.c.l.b16 %v388
      %v981 = vunpack.c.l.b16 %v389
      %v982 = vunpack.c.l.b16 %v390
      %v983 = vunpack.c.l.b16 %v391
      %v984 = vunpack.c.l.b16 %v392
      %v985 = vunpack.c.l.b16 %v393
      %v986 = vunpack.c.l.b16 %v394
      %v987 = vunpack.c.l.b16 %v395
      %v988 = vunpack.c.l.b16 %v396
      %v989 = vunpack.c.l.b16 %v397
      %v990 = vunpack.c.l.b16 %v398
      %v991 = vunpack.c.l.b16 %v399
      %v992 = vunpack.c.l.b16 %v400
      %v993 = vunpack.c.l.b16 %v401
      %v994 = vunpack.c.l.b16 %v402
      %v995 = vunpack.c.l.b16 %v403
      %v996 = vunpack.c.l.b16 %v404
      %v997 = vunpack.c.l.b16 %v405
      %v998 = vunpack.c.l.b16 %v406
      %v999 = vunpack.c.l.b16 %v407
      %v1000 = vunpack.c.l.b16 %v408
      %v1001 = vunpack.c.l.b16 %v409
      %v1002 = vunpack.c.l.b16 %v410
      %v1003 = vunpack.c.l.b16 %v411
      %v1004 = vunpack.c.l.b16 %v412
      %v1005 = vunpack.c.l.b16 %v413
      %v1006 = vunpack.c.l.b16 %v414
      %v1007 = vunpack.c.l.b16 %v415
      %v1008 = vunpack.c.l.b16 %v416
      %v1009 = vunpack.c.l.b16 %v417
      %v1010 = vunpack.c.l.b16 %v418
      %v1011 = vunpack.c.l.b16 %v419
      %v1012 = vunpack.c.l.b16 %v420
      %v1013 = vunpack.c.l.b16 %v421
      %v1014 = vunpack.c.l.b16 %v422
      %v1015 = vunpack.c.l.b16 %v423
      %v1016 = vunpack.c.l.b16 %v424
      %v1017 = vunpack.c.l.b16 %v425
      %v1018 = vunpack.c.l.b16 %v426
      %v1019 = vunpack.c.l.b16 %v427
      %v1020 = vunpack.c.l.b16 %v428
      %v1021 = vunpack.c.l.b16 %v429
      %v1022 = vunpack.c.l.b16 %v430
      %v1023 = vunpack.c.l.b16 %v431
      %v1024 = vunpack.c.l.b16 %v432
      %v1025 = vunpack.c.l.b16 %v433
      %v1026 = vunpack.c.l.b16 %v434
      %v1027 = vunpack.c.l.b16 %v435
      %v1028 = vunpack.c.l.b16 %v436
      %v1029 = vunpack.c.l.b16 %v437
      %v1030 = vunpack.c.l.b16 %v438
      %v1031 = vunpack.c.l.b16 %v439
      %v1032 = vunpack.c.l.b16 %v440
      %v1033 = vunpack.c.l.b16 %v441
      %v1034 = vunpack.c.l.b16 %v442
      %v1035 = vunpack.c.l.b16 %v443
      %v1036 = vunpack.c.l.b16 %v444
      %v1037 = vunpack.c.l.b16 %v445
      %v1038 = vunpack.c.l.b16 %v446
      %v1039 = vunpack.c.l.b16 %v447
      %v1040 = vunpack.c.l.b16 %v448
      %v1041 = vunpack.c.l.b16 %v449
      %v1042 = vunpack.c.l.b16 %v450
      %v1043 = vunpack.c.l.b16 %v451
      %v1044 = vunpack.c.l.b16 %v452
      %v1045 = vunpack.c.l.b16 %v453
      %v1046 = vunpack.c.l.b16 %v454
      %v1047 = vunpack.c.l.b16 %v455
      %v1048 = vunpack.c.l.b16 %v456
      %v1049 = vunpack.c.l.b16 %v457
      %v1050 = vunpack.c.l.b16 %v458
      %v1051 = vunpack.c.l.b16 %v459
      %v1052 = vunpack.c.l.b16 %v460
      %v1053 = vunpack.c.l.b16 %v461
      %v1054 = vunpack.c.l.b16 %v462
      %v1055 = vunpack.c.l.b16 %v463
      %v1056 = vunpack.c.l.b16 %v464
      %v1057 = vunpack.c.l.b16 %v465
      %v1058 = vunpack.c.l.b16 %v466
      %v1059 = vunpack.c.l.b16 %v467
      %v1060 = vunpack.c.l.b16 %v468
      %v1061 = vunpack.c.l.b16 %v469
      %v1062 = vunpack.c.l.b16 %v470
      %v1063 = vunpack.c.l.b16 %v471
      %v1064 = vunpack.c.l.b16 %v472
      %v1065 = vunpack.c.l.b16 %v473
      %v1066 = vunpack.c.l.b16 %v474
      %v1067 = vunpack.c.l.b16 %v475
      %v1068 = vunpack.c.l.b16 %v476
      %v1069 = vunpack.c.l.b16 %v477
      %v1070 = vunpack.c.l.b16 %v478
      %v1071 = vunpack.c.l.b16 %v479
      %v1072 = vunpack.c.l.b16 %v480
      %v1073 = vunpack.c.l.b16 %v481
      %v1074 = vunpack.c.l.b16 %v482
      %v1075 = vunpack.c.l.b16 %v483
      %v1076 = vunpack.c.l.b16 %v484
      %v1077 = vunpack.c.l.b16 %v485
      %v1078 = vunpack.c.l.b16 %v486
      %v1079 = vunpack.c.l.b16 %v487
      %v1080 = vunpack.c.l.b16 %v488
      %v1081 = vunpack.c.l.b16 %v489
      %v1082 = vunpack.c.l.b16 %v490
      %v1083 = vunpack.c.l.b16 %v491
      %v1084 = vunpack.c.l.b16 %v492
      %v1085 = vunpack.c.l.b16 %v493
      %v1086 = vpack.c.b16 %v831, %v830
      %v1087 = vpack.c.b16 %v833, %v832
      %v1088 = vpack.c.b16 %v835, %v834
      %v1089 = vpack.c.b16 %v837, %v836
      %v1090 = vpack.c.b16 %v839, %v838
      %v1091 = vpack.c.b16 %v841, %v840
      %v1092 = vpack.c.b16 %v843, %v842
      %v1093 = vpack.c.b16 %v845, %v844
      %v1094 = vpack.c.b16 %v847, %v846
      %v1095 = vpack.c.b16 %v849, %v848
      %v1096 = vpack.c.b16 %v851, %v850
      %v1097 = vpack.c.b16 %v853, %v852
      %v1098 = vpack.c.b16 %v855, %v854
      %v1099 = vpack.c.b16 %v857, %v856
      %v1100 = vpack.c.b16 %v859, %v858
      %v1101 = vpack.c.b16 %v861, %v860
      %v1102 = vpack.c.b16 %v863, %v862
      %v1103 = vpack.c.b16 %v865, %v864
      %v1104 = vpack.c.b16 %v867, %v866
      %v1105 = vpack.c.b16 %v869, %v868
      %v1106 = vpack.c.b16 %v871, %v870
      %v1107 = vpack.c.b16 %v873, %v872
      %v1108 = vpack.c.b16 %v875, %v874
      %v1109 = vpack.c.b16 %v877, %v876
      %v1110 = vpack.c.b16 %v879, %v878
      %v1111 = vpack.c.b16 %v881, %v880
      %v1112 = vpack.c.b16 %v883, %v882
      %v1113 = vpack.c.b16 %v885, %v884
      %v1114 = vpack.c.b16 %v887, %v886
      %v1115 = vpack.c.b16 %v889, %v888
      %v1116 = vpack.c.b16 %v891, %v890
      %v1117 = vpack.c.b16 %v893, %v892
      %v1118 = vpack.c.b16 %v895, %v894
      %v1119 = vpack.c.b16 %v897, %v896
      %v1120 = vpack.c.b16 %v899, %v898
      %v1121 = vpack.c.b16 %v901, %v900
      %v1122 = vpack.c.b16 %v903, %v902
      %v1123 = vpack.c.b16 %v905, %v904
      %v1124 = vpack.c.b16 %v907, %v906
      %v1125 = vpack.c.b16 %v909, %v908
      %v1126 = vpack.c.b16 %v911, %v910
      %v1127 = vpack.c.b16 %v913, %v912
      %v1128 = vpack.c.b16 %v915, %v914
      %v1129 = vpack.c.b16 %v917, %v916
      %v1130 = vpack.c.b16 %v919, %v918
      %v1131 = vpack.c.b16 %v921, %v920
      %v1132 = vpack.c.b16 %v923, %v922
      %v1133 = vpack.c.b16 %v925, %v924
      %v1134 = vpack.c.b16 %v927, %v926
      %v1135 = vpack.c.b16 %v929, %v928
      %v1136 = vpack.c.b16 %v931, %v930
      %v1137 = vpack.c.b16 %v933, %v932
      %v1138 = vpack.c.b16 %v935, %v934
      %v1139 = vpack.c.b16 %v937, %v936
      %v1140 = vpack.c.b16 %v939, %v938
      %v1141 = vpack.c.b16 %v941, %v940
      %v1142 = vpack.c.b16 %v943, %v942
      %v1143 = vpack.c.b16 %v945, %v944
      %v1144 = vpack.c.b16 %v947, %v946
      %v1145 = vpack.c.b16 %v949, %v948
      %v1146 = vpack.c.b16 %v951, %v950
      %v1147 = vpack.c.b16 %v953, %v952
      %v1148 = vpack.c.b16 %v955, %v954
      %v1149 = vpack.c.b16 %v957, %v956
      %v1150 = vpack.c.b16 %v959, %v958
      %v1151 = vpack.c.b16 %v961, %v960
      %v1152 = vpack.c.b16 %v963, %v962
      %v1153 = vpack.c.b16 %v965, %v964
      %v1154 = vpack.c.b16 %v967, %v966
      %v1155 = vpack.c.b16 %v969, %v968
      %v1156 = vpack.c.b16 %v971, %v970
      %v1157 = vpack.c.b16 %v973, %v972
      %v1158 = vpack.c.b16 %v975, %v974
      %v1159 = vpack.c.b16 %v977, %v976
      %v1160 = vpack.c.b16 %v979, %v978
      %v1161 = vpack.c.b16 %v981, %v980
      %v1162 = vpack.c.b16 %v983, %v982
      %v1163 = vpack.c.b16 %v985, %v984
      %v1164 = vpack.c.b16 %v987, %v986
      %v1165 = vpack.c.b16 %v989, %v988
      %v1166 = vpack.c.b16 %v991, %v990
      %v1167 = vpack.c.b16 %v993, %v992
      %v1168 = vpack.c.b16 %v995, %v994
      %v1169 = vpack.c.b16 %v997, %v996
      %v1170 = vpack.c.b16 %v999, %v998
      %v1171 = vpack.c.b16 %v1001, %v1000
      %v1172 = vpack.c.b16 %v1003, %v1002
      %v1173 = vpack.c.b16 %v1005, %v1004
      %v1174 = vpack.c.b16 %v1007, %v1006
      %v1175 = vpack.c.b16 %v1009, %v1008
      %v1176 = vpack.c.b16 %v1011, %v1010
      %v1177 = vpack.c.b16 %v1013, %v1012
      %v1178 = vpack.c.b16 %v1015, %v1014
      %v1179 = vpack.c.b16 %v1017, %v1016
      %v1180 = vpack.c.b16 %v1019, %v1018
      %v1181 = vpack.c.b16 %v1021, %v1020
      %v1182 = vpack.c.b16 %v1023, %v1022
      %v1183 = vpack.c.b16 %v1025, %v1024
      %v1184 = vpack.c.b16 %v1027, %v1026
      %v1185 = vpack.c.b16 %v1029, %v1028
      %v1186 = vpack.c.b16 %v1031, %v1030
      %v1187 = vpack.c.b16 %v1033, %v1032
      %v1188 = vpack.c.b16 %v1035, %v1034
      %v1189 = vpack.c.b16 %v1037, %v1036
      %v1190 = vpack.c.b16 %v1039, %v1038
      %v1191 = vpack.c.b16 %v1041, %v1040
      %v1192 = vpack.c.b16 %v1043, %v1042
      %v1193 = vpack.c.b16 %v1045, %v1044
      %v1194 = vpack.c.b16 %v1047, %v1046
      %v1195 = vpack.c.b16 %v1049, %v1048
      %v1196 = vpack.c.b16 %v1051, %v1050
      %v1197 = vpack.c.b16 %v1053, %v1052
      %v1198 = vpack.c.b16 %v1055, %v1054
      %v1199 = vpack.c.b16 %v1057, %v1056
      %v1200 = vpack.c.b16 %v1059, %v1058
      %v1201 = vpack.c.b16 %v1061, %v1060
      %v1202 = vpack.c.b16 %v1063, %v1062
      %v1203 = vpack.c.b16 %v1065, %v1064
      %v1204 = vpack.c.b16 %v1067, %v1066
      %v1205 = vpack.c.b16 %v1069, %v1068
      %v1206 = vpack.c.b16 %v1071, %v1070
      %v1207 = vpack.c.b16 %v1073, %v1072
      %v1208 = vpack.c.b16 %v1075, %v1074
      %v1209 = vpack.c.b16 %v1077, %v1076
      %v1210 = vpack.c.b16 %v1079, %v1078
      %v1211 = vpack.c.b16 %v1081, %v1080
      %v1212 = vpack.c.b16 %v1083, %v1082
      %v1213 = vpack.c.b16 %v1085, %v1084
      %1342 = vmatprep.subr.bf16.mxu0 0
      %1343 = vmatpush1.bf16.msra.mxu0 %v1086
      %1344 = vmatprep.subr.bf16.mxu0 0
      %1345 = vmatpush1.bf16.msra.mxu0 %v1087
      %1346 = vmatprep.subr.bf16.mxu0 0
      %1347 = vmatpush1.bf16.msra.mxu0 %v1088
      %1348 = vmatprep.subr.bf16.mxu0 0
      %1349 = vmatpush1.bf16.msra.mxu0 %v1089
      %1350 = vmatprep.subr.bf16.mxu0 0
      %1351 = vmatpush1.bf16.msra.mxu0 %v1090
      %1352 = vmatprep.subr.bf16.mxu0 0
      %1353 = vmatpush1.bf16.msra.mxu0 %v1091
      %1354 = vmatprep.subr.bf16.mxu0 0
      %1355 = vmatpush1.bf16.msra.mxu0 %v1092
      %1356 = vmatprep.subr.bf16.mxu0 0
      %1357 = vmatpush1.bf16.msra.mxu0 %v1093
      %1358 = vmatprep.subr.bf16.mxu0 0
      %1359 = vmatpush1.bf16.msra.mxu0 %v1094
      %1360 = vmatprep.subr.bf16.mxu0 0
      %1361 = vmatpush1.bf16.msra.mxu0 %v1095
      %1362 = vmatprep.subr.bf16.mxu0 0
      %1363 = vmatpush1.bf16.msra.mxu0 %v1096
      %1364 = vmatprep.subr.bf16.mxu0 0
      %1365 = vmatpush1.bf16.msra.mxu0 %v1097
      %1366 = vmatprep.subr.bf16.mxu0 0
      %1367 = vmatpush1.bf16.msra.mxu0 %v1098
      %1368 = vmatprep.subr.bf16.mxu0 0
      %1369 = vmatpush1.bf16.msra.mxu0 %v1099
      %1370 = vmatprep.subr.bf16.mxu0 0
      %1371 = vmatpush1.bf16.msra.mxu0 %v1100
      %1372 = vmatprep.subr.bf16.mxu0 0
      %1373 = vmatpush1.bf16.msra.mxu0 %v1101
      %1374 = vmatprep.mubr.bf16.mxu0 %v543
      %1375 = vmatmul.mubr.bf16.gmra.mrb[0].mxu0 %v542
      %v1376 = vpop.f32.mrb[0].mxu0
      %v1377 = vadd.f32 0.0, %v1376
      %v1378 = vpop.f32.mrb[0].mxu0
      %v1379 = vpop.f32.mrb[0].mxu0
      %v1380 = vadd.f32 0.0, %v1379
      %v1381 = vpop.f32.mrb[0].mxu0
      %1382 = vdwg.mxu0
      %1383 = vmatprep.subr.bf16.mxu0 0
      %1384 = vmatpush1.bf16.msra.mxu0 %v1102
      %1385 = vmatprep.subr.bf16.mxu0 0
      %1386 = vmatpush1.bf16.msra.mxu0 %v1103
      %1387 = vmatprep.subr.bf16.mxu0 0
      %1388 = vmatpush1.bf16.msra.mxu0 %v1104
      %1389 = vmatprep.subr.bf16.mxu0 0
      %1390 = vmatpush1.bf16.msra.mxu0 %v1105
      %1391 = vmatprep.subr.bf16.mxu0 0
      %1392 = vmatpush1.bf16.msra.mxu0 %v1106
      %1393 = vmatprep.subr.bf16.mxu0 0
      %1394 = vmatpush1.bf16.msra.mxu0 %v1107
      %1395 = vmatprep.subr.bf16.mxu0 0
      %1396 = vmatpush1.bf16.msra.mxu0 %v1108
      %1397 = vmatprep.subr.bf16.mxu0 0
      %1398 = vmatpush1.bf16.msra.mxu0 %v1109
      %1399 = vmatprep.subr.bf16.mxu0 0
      %1400 = vmatpush1.bf16.msra.mxu0 %v1110
      %1401 = vmatprep.subr.bf16.mxu0 0
      %1402 = vmatpush1.bf16.msra.mxu0 %v1111
      %1403 = vmatprep.subr.bf16.mxu0 0
      %1404 = vmatpush1.bf16.msra.mxu0 %v1112
      %1405 = vmatprep.subr.bf16.mxu0 0
      %1406 = vmatpush1.bf16.msra.mxu0 %v1113
      %1407 = vmatprep.subr.bf16.mxu0 0
      %1408 = vmatpush1.bf16.msra.mxu0 %v1114
      %1409 = vmatprep.subr.bf16.mxu0 0
      %1410 = vmatpush1.bf16.msra.mxu0 %v1115
      %1411 = vmatprep.subr.bf16.mxu0 0
      %1412 = vmatpush1.bf16.msra.mxu0 %v1116
      %1413 = vmatprep.subr.bf16.mxu0 0
      %1414 = vmatpush1.bf16.msra.mxu0 %v1117
      %1415 = vmatprep.mubr.bf16.mxu0 %v545
      %1416 = vmatmul.mubr.bf16.gmra.mrb[0].mxu0 %v544
      %v1417 = vpop.f32.mrb[0].mxu0
      %v1418 = vadd.f32 %v1377, %v1417
      %v1419 = vpop.f32.mrb[0].mxu0
      %v1420 = vpop.f32.mrb[0].mxu0
      %v1421 = vadd.f32 %v1380, %v1420
      %v1422 = vpop.f32.mrb[0].mxu0
      %1423 = vdwg.mxu0
      %1424 = vmatprep.subr.bf16.mxu0 0
      %1425 = vmatpush1.bf16.msra.mxu0 %v1118
      %1426 = vmatprep.subr.bf16.mxu0 0
      %1427 = vmatpush1.bf16.msra.mxu0 %v1119
      %1428 = vmatprep.subr.bf16.mxu0 0
      %1429 = vmatpush1.bf16.msra.mxu0 %v1120
      %1430 = vmatprep.subr.bf16.mxu0 0
      %1431 = vmatpush1.bf16.msra.mxu0 %v1121
      %1432 = vmatprep.subr.bf16.mxu0 0
      %1433 = vmatpush1.bf16.msra.mxu0 %v1122
      %1434 = vmatprep.subr.bf16.mxu0 0
      %1435 = vmatpush1.bf16.msra.mxu0 %v1123
      %1436 = vmatprep.subr.bf16.mxu0 0
      %1437 = vmatpush1.bf16.msra.mxu0 %v1124
      %1438 = vmatprep.subr.bf16.mxu0 0
      %1439 = vmatpush1.bf16.msra.mxu0 %v1125
      %1440 = vmatprep.subr.bf16.mxu0 0
      %1441 = vmatpush1.bf16.msra.mxu0 %v1126
      %1442 = vmatprep.subr.bf16.mxu0 0
      %1443 = vmatpush1.bf16.msra.mxu0 %v1127
      %1444 = vmatprep.subr.bf16.mxu0 0
      %1445 = vmatpush1.bf16.msra.mxu0 %v1128
      %1446 = vmatprep.subr.bf16.mxu0 0
      %1447 = vmatpush1.bf16.msra.mxu0 %v1129
      %1448 = vmatprep.subr.bf16.mxu0 0
      %1449 = vmatpush1.bf16.msra.mxu0 %v1130
      %1450 = vmatprep.subr.bf16.mxu0 0
      %1451 = vmatpush1.bf16.msra.mxu0 %v1131
      %1452 = vmatprep.subr.bf16.mxu0 0
      %1453 = vmatpush1.bf16.msra.mxu0 %v1132
      %1454 = vmatprep.subr.bf16.mxu0 0
      %1455 = vmatpush1.bf16.msra.mxu0 %v1133
      %1456 = vmatprep.mubr.bf16.mxu0 %v547
      %1457 = vmatmul.mubr.bf16.gmra.mrb[0].mxu0 %v546
      %v1458 = vpop.f32.mrb[0].mxu0
      %v1459 = vadd.f32 %v1418, %v1458
      %v1460 = vpop.f32.mrb[0].mxu0
      %v1461 = vpop.f32.mrb[0].mxu0
      %v1462 = vadd.f32 %v1421, %v1461
      %v1463 = vpop.f32.mrb[0].mxu0
      %1464 = vdwg.mxu0
      %1465 = vmatprep.subr.bf16.mxu0 0
      %1466 = vmatpush1.bf16.msra.mxu0 %v1134
      %1467 = vmatprep.subr.bf16.mxu0 0
      %1468 = vmatpush1.bf16.msra.mxu0 %v1135
      %1469 = vmatprep.subr.bf16.mxu0 0
      %1470 = vmatpush1.bf16.msra.mxu0 %v1136
      %1471 = vmatprep.subr.bf16.mxu0 0
      %1472 = vmatpush1.bf16.msra.mxu0 %v1137
      %1473 = vmatprep.subr.bf16.mxu0 0
      %1474 = vmatpush1.bf16.msra.mxu0 %v1138
      %1475 = vmatprep.subr.bf16.mxu0 0
      %1476 = vmatpush1.bf16.msra.mxu0 %v1139
      %1477 = vmatprep.subr.bf16.mxu0 0
      %1478 = vmatpush1.bf16.msra.mxu0 %v1140
      %1479 = vmatprep.subr.bf16.mxu0 0
      %1480 = vmatpush1.bf16.msra.mxu0 %v1141
      %1481 = vmatprep.subr.bf16.mxu0 0
      %1482 = vmatpush1.bf16.msra.mxu0 %v1142
      %1483 = vmatprep.subr.bf16.mxu0 0
      %1484 = vmatpush1.bf16.msra.mxu0 %v1143
      %1485 = vmatprep.subr.bf16.mxu0 0
      %1486 = vmatpush1.bf16.msra.mxu0 %v1144
      %1487 = vmatprep.subr.bf16.mxu0 0
      %1488 = vmatpush1.bf16.msra.mxu0 %v1145
      %1489 = vmatprep.subr.bf16.mxu0 0
      %1490 = vmatpush1.bf16.msra.mxu0 %v1146
      %1491 = vmatprep.subr.bf16.mxu0 0
      %1492 = vmatpush1.bf16.msra.mxu0 %v1147
      %1493 = vmatprep.subr.bf16.mxu0 0
      %1494 = vmatpush1.bf16.msra.mxu0 %v1148
      %1495 = vmatprep.subr.bf16.mxu0 0
      %1496 = vmatpush1.bf16.msra.mxu0 %v1149
      %1497 = vmatprep.mubr.bf16.mxu0 %v549
      %1498 = vmatmul.mubr.bf16.gmra.mrb[0].mxu0 %v548
      %v1499 = vpop.f32.mrb[0].mxu0
      %v1500 = vadd.f32 %v1459, %v1499
      %v1501 = vpop.f32.mrb[0].mxu0
      %v1502 = vpop.f32.mrb[0].mxu0
      %v1503 = vadd.f32 %v1462, %v1502
      %v1504 = vpop.f32.mrb[0].mxu0
      %1505 = vdwg.mxu0
      %1506 = vmatprep.subr.bf16.mxu0 0
      %1507 = vmatpush1.bf16.msra.mxu0 %v1150
      %1508 = vmatprep.subr.bf16.mxu0 0
      %1509 = vmatpush1.bf16.msra.mxu0 %v1151
      %1510 = vmatprep.subr.bf16.mxu0 0
      %1511 = vmatpush1.bf16.msra.mxu0 %v1152
      %1512 = vmatprep.subr.bf16.mxu0 0
      %1513 = vmatpush1.bf16.msra.mxu0 %v1153
      %1514 = vmatprep.subr.bf16.mxu0 0
      %1515 = vmatpush1.bf16.msra.mxu0 %v1154
      %1516 = vmatprep.subr.bf16.mxu0 0
      %1517 = vmatpush1.bf16.msra.mxu0 %v1155
      %1518 = vmatprep.subr.bf16.mxu0 0
      %1519 = vmatpush1.bf16.msra.mxu0 %v1156
      %1520 = vmatprep.subr.bf16.mxu0 0
      %1521 = vmatpush1.bf16.msra.mxu0 %v1157
      %1522 = vmatprep.subr.bf16.mxu0 0
      %1523 = vmatpush1.bf16.msra.mxu0 %v1158
      %1524 = vmatprep.subr.bf16.mxu0 0
      %1525 = vmatpush1.bf16.msra.mxu0 %v1159
      %1526 = vmatprep.subr.bf16.mxu0 0
      %1527 = vmatpush1.bf16.msra.mxu0 %v1160
      %1528 = vmatprep.subr.bf16.mxu0 0
      %1529 = vmatpush1.bf16.msra.mxu0 %v1161
      %1530 = vmatprep.subr.bf16.mxu0 0
      %1531 = vmatpush1.bf16.msra.mxu0 %v1162
      %1532 = vmatprep.subr.bf16.mxu0 0
      %1533 = vmatpush1.bf16.msra.mxu0 %v1163
      %1534 = vmatprep.subr.bf16.mxu0 0
      %1535 = vmatpush1.bf16.msra.mxu0 %v1164
      %1536 = vmatprep.subr.bf16.mxu0 0
      %1537 = vmatpush1.bf16.msra.mxu0 %v1165
      %1538 = vmatprep.mubr.bf16.mxu0 %v551
      %1539 = vmatmul.mubr.bf16.gmra.mrb[0].mxu0 %v550
      %v1540 = vpop.f32.mrb[0].mxu0
      %v1541 = vadd.f32 %v1500, %v1540
      %v1542 = vpop.f32.mrb[0].mxu0
      %v1543 = vpop.f32.mrb[0].mxu0
      %v1544 = vadd.f32 %v1503, %v1543
      %v1545 = vpop.f32.mrb[0].mxu0
      %1546 = vdwg.mxu0
      %1547 = vmatprep.subr.bf16.mxu0 0
      %1548 = vmatpush1.bf16.msra.mxu0 %v1166
      %1549 = vmatprep.subr.bf16.mxu0 0
      %1550 = vmatpush1.bf16.msra.mxu0 %v1167
      %1551 = vmatprep.subr.bf16.mxu0 0
      %1552 = vmatpush1.bf16.msra.mxu0 %v1168
      %1553 = vmatprep.subr.bf16.mxu0 0
      %1554 = vmatpush1.bf16.msra.mxu0 %v1169
      %1555 = vmatprep.subr.bf16.mxu0 0
      %1556 = vmatpush1.bf16.msra.mxu0 %v1170
      %1557 = vmatprep.subr.bf16.mxu0 0
      %1558 = vmatpush1.bf16.msra.mxu0 %v1171
      %1559 = vmatprep.subr.bf16.mxu0 0
      %1560 = vmatpush1.bf16.msra.mxu0 %v1172
      %1561 = vmatprep.subr.bf16.mxu0 0
      %1562 = vmatpush1.bf16.msra.mxu0 %v1173
      %1563 = vmatprep.subr.bf16.mxu0 0
      %1564 = vmatpush1.bf16.msra.mxu0 %v1174
      %1565 = vmatprep.subr.bf16.mxu0 0
      %1566 = vmatpush1.bf16.msra.mxu0 %v1175
      %1567 = vmatprep.subr.bf16.mxu0 0
      %1568 = vmatpush1.bf16.msra.mxu0 %v1176
      %1569 = vmatprep.subr.bf16.mxu0 0
      %1570 = vmatpush1.bf16.msra.mxu0 %v1177
      %1571 = vmatprep.subr.bf16.mxu0 0
      %1572 = vmatpush1.bf16.msra.mxu0 %v1178
      %1573 = vmatprep.subr.bf16.mxu0 0
      %1574 = vmatpush1.bf16.msra.mxu0 %v1179
      %1575 = vmatprep.subr.bf16.mxu0 0
      %1576 = vmatpush1.bf16.msra.mxu0 %v1180
      %1577 = vmatprep.subr.bf16.mxu0 0
      %1578 = vmatpush1.bf16.msra.mxu0 %v1181
      %1579 = vmatprep.mubr.bf16.mxu0 %v553
      %1580 = vmatmul.mubr.bf16.gmra.mrb[0].mxu0 %v552
      %v1581 = vpop.f32.mrb[0].mxu0
      %v1582 = vadd.f32 %v1541, %v1581
      %v1583 = vpop.f32.mrb[0].mxu0
      %v1584 = vpop.f32.mrb[0].mxu0
      %v1585 = vadd.f32 %v1544, %v1584
      %v1586 = vpop.f32.mrb[0].mxu0
      %1587 = vdwg.mxu0
      %1588 = vmatprep.subr.bf16.mxu0 0
      %1589 = vmatpush1.bf16.msra.mxu0 %v1182
      %1590 = vmatprep.subr.bf16.mxu0 0
      %1591 = vmatpush1.bf16.msra.mxu0 %v1183
      %1592 = vmatprep.subr.bf16.mxu0 0
      %1593 = vmatpush1.bf16.msra.mxu0 %v1184
      %1594 = vmatprep.subr.bf16.mxu0 0
      %1595 = vmatpush1.bf16.msra.mxu0 %v1185
      %1596 = vmatprep.subr.bf16.mxu0 0
      %1597 = vmatpush1.bf16.msra.mxu0 %v1186
      %1598 = vmatprep.subr.bf16.mxu0 0
      %1599 = vmatpush1.bf16.msra.mxu0 %v1187
      %1600 = vmatprep.subr.bf16.mxu0 0
      %1601 = vmatpush1.bf16.msra.mxu0 %v1188
      %1602 = vmatprep.subr.bf16.mxu0 0
      %1603 = vmatpush1.bf16.msra.mxu0 %v1189
      %1604 = vmatprep.subr.bf16.mxu0 0
      %1605 = vmatpush1.bf16.msra.mxu0 %v1190
      %1606 = vmatprep.subr.bf16.mxu0 0
      %1607 = vmatpush1.bf16.msra.mxu0 %v1191
      %1608 = vmatprep.subr.bf16.mxu0 0
      %1609 = vmatpush1.bf16.msra.mxu0 %v1192
      %1610 = vmatprep.subr.bf16.mxu0 0
      %1611 = vmatpush1.bf16.msra.mxu0 %v1193
      %1612 = vmatprep.subr.bf16.mxu0 0
      %1613 = vmatpush1.bf16.msra.mxu0 %v1194
      %1614 = vmatprep.subr.bf16.mxu0 0
      %1615 = vmatpush1.bf16.msra.mxu0 %v1195
      %1616 = vmatprep.subr.bf16.mxu0 0
      %1617 = vmatpush1.bf16.msra.mxu0 %v1196
      %1618 = vmatprep.subr.bf16.mxu0 0
      %1619 = vmatpush1.bf16.msra.mxu0 %v1197
      %1620 = vmatprep.mubr.bf16.mxu0 %v555
      %1621 = vmatmul.mubr.bf16.gmra.mrb[0].mxu0 %v554
      %v1622 = vpop.f32.mrb[0].mxu0
      %v1623 = vadd.f32 %v1582, %v1622
      %v1624 = vpop.f32.mrb[0].mxu0
      %v1625 = vpop.f32.mrb[0].mxu0
      %v1626 = vadd.f32 %v1585, %v1625
      %v1627 = vpop.f32.mrb[0].mxu0
      %1628 = vdwg.mxu0
      %1629 = vmatprep.subr.bf16.mxu0 0
      %1630 = vmatpush1.bf16.msra.mxu0 %v1198
      %1631 = vmatprep.subr.bf16.mxu0 0
      %1632 = vmatpush1.bf16.msra.mxu0 %v1199
      %1633 = vmatprep.subr.bf16.mxu0 0
      %1634 = vmatpush1.bf16.msra.mxu0 %v1200
      %1635 = vmatprep.subr.bf16.mxu0 0
      %1636 = vmatpush1.bf16.msra.mxu0 %v1201
      %1637 = vmatprep.subr.bf16.mxu0 0
      %1638 = vmatpush1.bf16.msra.mxu0 %v1202
      %1639 = vmatprep.subr.bf16.mxu0 0
      %1640 = vmatpush1.bf16.msra.mxu0 %v1203
      %1641 = vmatprep.subr.bf16.mxu0 0
      %1642 = vmatpush1.bf16.msra.mxu0 %v1204
      %1643 = vmatprep.subr.bf16.mxu0 0
      %1644 = vmatpush1.bf16.msra.mxu0 %v1205
      %1645 = vmatprep.subr.bf16.mxu0 0
      %1646 = vmatpush1.bf16.msra.mxu0 %v1206
      %1647 = vmatprep.subr.bf16.mxu0 0
      %1648 = vmatpush1.bf16.msra.mxu0 %v1207
      %1649 = vmatprep.subr.bf16.mxu0 0
      %1650 = vmatpush1.bf16.msra.mxu0 %v1208
      %1651 = vmatprep.subr.bf16.mxu0 0
      %1652 = vmatpush1.bf16.msra.mxu0 %v1209
      %1653 = vmatprep.subr.bf16.mxu0 0
      %1654 = vmatpush1.bf16.msra.mxu0 %v1210
      %1655 = vmatprep.subr.bf16.mxu0 0
      %1656 = vmatpush1.bf16.msra.mxu0 %v1211
      %1657 = vmatprep.subr.bf16.mxu0 0
      %1658 = vmatpush1.bf16.msra.mxu0 %v1212
      %1659 = vmatprep.subr.bf16.mxu0 0
      %1660 = vmatpush1.bf16.msra.mxu0 %v1213
      %1661 = vmatprep.mubr.bf16.mxu0 %v557
      %1662 = vmatmul.mubr.bf16.gmra.mrb[0].mxu0 %v556
      %v1663 = vpop.f32.mrb[0].mxu0
      %v1664 = vadd.f32 %v1623, %v1663
      %v1665 = vpop.f32.mrb[0].mxu0
      %v1666 = vpop.f32.mrb[0].mxu0
      %v1667 = vadd.f32 %v1626, %v1666
      %v1668 = vpop.f32.mrb[0].mxu0
      %1669 = vdwg.mxu0
      %p1670 = scmp.eq.s32.totalorder %s19, 0
      %p1671 = scmp.eq.s32.totalorder %s20, 0
      %p1672 = pnand %p1670, %p1671
      %p1673 = pneg %p1672
      // Predicated region
      $region37: #{discriminator_forward.7} parent=35 // pred_check
        _
      $region38: #{discriminator_forward.7} parent=35 // pred_check_branch
        %1675 = sbr.rel (%p1672) target = $region40
      $region39: #{discriminator_forward.7} parent=35 // pred_region
        %1676 = vst [vmem:[#allocation2] sm:$0x1] 0.0
        %1677 = vst [vmem:[#allocation3] sm:$0x1] 0.0
      $region40: #{discriminator_forward.7} parent=35 // pred_fallthru
        _
      // Predicated region
      $region41: #{discriminator_forward.7} parent=35 // pred_check
        %p1678 = pneg %p1670
      $region42: #{discriminator_forward.7} parent=35 // pred_check_branch
        %1680 = sbr.rel (%p1678) target = $region44
      $region43: #{discriminator_forward.7} parent=35 // pred_region
        %v1681 = vld [vmem:[#allocation2] sm:$0x1]
        %v1682 = vadd.f32 %v1664, %v1667
        %v1683 = vrot.slane %v1682, 4
        %v1684 = vadd.f32 %v1682, %v1683
        %v1685 = vrot.slane %v1684, 2
        %v1686 = vadd.f32 %v1684, %v1685
        %v1687 = vrot.slane %v1686, 1
        %v1688 = vadd.f32 %v1686, %v1687
        %v1689 = vadd.f32 %v1681, %v1688
        %1690 = vst [vmem:[#allocation2] sm:$0x1] %v1689
        %v1691 = vld [vmem:[#allocation3] sm:$0x1]
        %v1692 = vmul.f32 %v1664, %v1664
        %v1693 = vmul.f32 %v1667, %v1667
        %v1694 = vadd.f32 %v1692, %v1693
        %v1695 = vrot.slane %v1694, 4
        %v1696 = vadd.f32 %v1694, %v1695
        %v1697 = vrot.slane %v1696, 2
        %v1698 = vadd.f32 %v1696, %v1697
        %v1699 = vrot.slane %v1698, 1
        %v1700 = vadd.f32 %v1698, %v1699
        %v1701 = vadd.f32 %v1691, %v1700
        %1702 = vst [vmem:[#allocation3] sm:$0x1] %v1701
      $region44: #{discriminator_forward.7} parent=35 // pred_fallthru
        _
      %p1703 = scmp.eq.s32.totalorder %s19, 1
      %p1704 = pnand %p1703, %p1671
      %p1705 = pneg %p1704
      // Predicated region
      $region45: #{discriminator_forward.7} parent=35 // pred_check
        _
      $region46: #{discriminator_forward.7} parent=35 // pred_check_branch
        %1707 = sbr.rel (%p1704) target = $region48
      $region47: #{discriminator_forward.7} parent=35 // pred_region
        %v1708 = vld [vmem:[#allocation2] sm:$0x1]
        %v1709 = vmul.f32 %v1708, 0.125
        %v1710 = vld [vmem:[#allocation3] sm:$0x1]
        %v1711 = vmul.f32 %v1710, 0.125
        %v1712 = vmul.f32 %v1709, %v1709
        %v1713 = vsub.f32 %v1711, %v1712
        %v1714 = vmax.f32 %v1713, 0.0
        %v1715 = vadd.f32 %v1714, 1e-05
        %v1716 = vrsqrt.pop %v1715
        %v1717 = vld [vmem:[%s2] sm:$0x1]
        %v1718 = vmul.f32 %v1717, %v1716
        %1719 = vst [vmem:[#allocation4] sm:$0x1] %v1718
        %v1720 = vld [vmem:[%s3] sm:$0x1]
        %v1721 = vld [vmem:[%s2] sm:$0x1]
        %v1722 = vmul.f32 %v1709, %v1721
        %v1723 = vmul.f32 %v1722, %v1716
        %v1724 = vsub.f32 %v1720, %v1723
        %1725 = vst [vmem:[#allocation5] sm:$0x1] %v1724
      $region48: #{discriminator_forward.7} parent=35 // pred_fallthru
        _
      // Predicated region
      $region49: #{discriminator_forward.7} parent=35 // pred_check
        %p1726 = pneg %p1703
      $region50: #{discriminator_forward.7} parent=35 // pred_check_branch
        %1728 = sbr.rel (%p1726) target = $region52
      $region51: #{discriminator_forward.7} parent=35 // pred_region
        %v1729 = vld [vmem:[#allocation4] sm:$0x1]
        %v1731 = vlaneseq
        %v1732 = vshrl.u32 %v1731, 7
        %v1733 = vsub.s32 0, %v1732
        %v1734 = vrot.slane %v1729, %v1733
        %v1736 = vmul.f32 %v1664, %v1734
        %v1737 = vmul.f32 %v1667, %v1734
        %v1738 = vld [vmem:[#allocation5] sm:$0x1]
        %v1740 = vlaneseq
        %v1741 = vshrl.u32 %v1740, 7
        %v1742 = vsub.s32 0, %v1741
        %v1743 = vrot.slane %v1738, %v1742
        %v1745 = vadd.f32 %v1736, %v1743
        %v1746 = vadd.f32 %v1737, %v1743
        %vm1747 = vcmp.gt.f32.partialorder %v1745, 0.0
        %vm1748 = vcmp.gt.f32.partialorder %v1746, 0.0
        %v1749 = vmul.f32 %v1745, 0.2
        %v1750 = vmul.f32 %v1746, 0.2
        %v1751 = vsel %vm1747, %v1745, %v1749
        %v1752 = vsel %vm1748, %v1746, %v1750
        %v1753 = vpack.c.bf16 %v1752, %v1751
        %v1755 = vunpack.c.l.b16 %v1753
        %v1756 = vunpack.c.h.b16 %v1753
        %v1757 = vpack.c.b16 %v1755, %v1755
        %v1758 = vpack.c.b16 %v1756, %v1756
        %1761 = vst [vmem:[%s218] sm:$0xf] %v1757
        %1762 = vst [vmem:[%s218 + $0x4] sm:$0xf] %v1758
      $region52: #{discriminator_forward.7} parent=35 // pred_fallthru
        _
      %s1763 = smul.u32 %s20, %s19
      %s1764 = smul.u32 2, %s1763
      %p1765 = scmp.lt.s32.totalorder %s1764, 1
      %s1766 = scalar_select %p1765, %s1764, 1
      %s1767 = smul.addr %s1766, 4
      %s1768 = scalar_lea.vmem %s4, %s1767
      // Predicated region
      $region53: #{discriminator_forward.7} parent=35 // pred_check
        %p1769 = pneg %p136
      $region54: #{discriminator_forward.7} parent=35 // pred_check_branch
        %1771 = sbr.rel (%p1769) target = $region56
      $region55: #{discriminator_forward.7} parent=35 // pred_region
        %s1772 = smul.u32 %s20, %s19
        %s1773 = smul.u32 2, %s1772
      $region56: #{discriminator_forward.7} parent=35 // pred_fallthru
        _
    $region36: #{discriminator_forward.7} parent=5 // pred_fallthru
      _
    %p1774 = scmp.le.s32.totalorder 2, %s10
    // Predicated region
    $region57: #{discriminator_forward.7} parent=5 // pred_check
      %p1775 = pneg %p1774
    $region58: #{discriminator_forward.7} parent=5 // pred_check_branch
      %1777 = sbr.rel (%p1775) target = $region60
    $region59: #{discriminator_forward.7} parent=5 // pred_region
      %s1778 = ssub.s32 %s10, 2
      // Predicated region
      $region61: #{discriminator_forward.7} parent=59 // pred_check
        %p1779 = pneg %p142
      $region62: #{discriminator_forward.7} parent=59 // pred_check_branch
        %1781 = sbr.rel (%p1779) target = $region64
      $region63: #{discriminator_forward.7} parent=59 // pred_region
        %s1782 = smul.u32 %s22, %s21
        %s1783 = smul.u32 2, %s1782
        %p1784 = scmp.lt.s32.totalorder %s1783, 1
        %s1785 = scalar_select %p1784, %s1783, 1
        %s1786 = smul.addr %s1785, 4
        %s1787 = scalar_lea.vmem %s4, %s1786
      $region64: #{discriminator_forward.7} parent=59 // pred_fallthru
        _
    $region60: #{discriminator_forward.7} parent=5 // pred_fallthru
      _
  $region6: #{discriminator_forward.7} parent=0 // loop_footer
    %s14 = sadd.s32 1, %s10
  $region7: #{discriminator_forward.7} parent=0 // loop_footer_branch
    %9 = sbr.rel target = $region3
  $region8: #{discriminator_forward.7} parent=0 // loop_exit
    _

</llo_original>
